<compile_context>
chip_gen: v7x
topology: tpu7x:2x2x1
jax: 0.10.0
libtpu: 0.0.40
codegen_flags: <defaults>
</compile_context>

<pallas_src>
import jax
import jax.numpy as jnp
from jax.experimental import pallas as pl
from jax.experimental.pallas import tpu as pltpu


def _fused_add_relu_conv1x1_kernel(w_ref, a_ref, b_ref, o_ref):
    # w_ref: (Cout, Cin) bf16 (resident); a_ref/b_ref: (Cin, TM) f32;
    # o_ref: (Cout, TM) f32
    y = jnp.maximum(a_ref[...] + b_ref[...], 0.0)              # add + ReLU (VPU)
    o_ref[...] = jnp.dot(
        w_ref[...],                                            # already bf16
        y.astype(jnp.bfloat16),                                # bf16: single-pass MXU
        preferred_element_type=jnp.float32,                    # f32 accumulation
    ).astype(o_ref.dtype)


def add_relu_conv1x1(x300, x292, weight, *, tm=384):
    """x300, x292: NCHW float32 [N, Cin, H, W]; weight: [Cout, Cin, 1, 1].

    Returns NCHW float32 [N, Cout, H, W], matching PyTorch semantics.
    """
    N, Cin, H, W = x300.shape
    Cout = weight.shape[0]
    M = H * W

    # NCHW -> (N, Cin, M): contiguous reshape, NO transpose.
    a = x300.reshape(N, Cin, M)
    b = x292.reshape(N, Cin, M)
    # Pre-cast weight to bf16 once in the wrapper (halves its HBM DMA + VMEM).
    w = weight.reshape(Cout, Cin).astype(jnp.bfloat16)

    # Lane-dim block must be a multiple of 128 or equal to the full extent.
    if tm >= M:
        tm = M
    else:
        tm = max(128, (tm // 128) * 128)
    m_tiles = pl.cdiv(M, tm)

    cost = pl.CostEstimate(
        flops=2 * N * M * Cin * Cout + N * M * Cin,
        transcendentals=0,
        bytes_accessed=(2 * N * Cin * M + N * Cout * M) * 4 + Cin * Cout * 2,
    )

    out = pl.pallas_call(
        _fused_add_relu_conv1x1_kernel,
        out_shape=jax.ShapeDtypeStruct((N, Cout, M), jnp.float32),
        grid_spec=pltpu.PrefetchScalarGridSpec(
            num_scalar_prefetch=0,
            grid=(N, m_tiles),
            in_specs=[
                pl.BlockSpec((Cout, Cin), lambda n, i: (0, 0)),         # weight (resident)
                pl.BlockSpec((None, Cin, tm), lambda n, i: (n, 0, i)),  # a tile
                pl.BlockSpec((None, Cin, tm), lambda n, i: (n, 0, i)),  # b tile
            ],
            out_specs=pl.BlockSpec((None, Cout, tm), lambda n, i: (n, 0, i)),
        ),
        compiler_params=pltpu.CompilerParams(
            dimension_semantics=("parallel", "parallel"),
        ),
        cost_estimate=cost,
    )(w, a, b)

    # (N, Cout, M) -> NCHW, again a pure reshape (no transpose).
    return out.reshape(N, Cout, H, W)


def reference(x300, x292, weight):
    y = jnp.maximum(x300 + x292, 0.0)                         # add + relu, NCHW
    w = weight.reshape(weight.shape[0], weight.shape[1])      # (Cout, Cin), f32
    return jnp.einsum("nchw,oc->nohw", y, w)                  # 1x1 conv


if __name__ == "__main__":
    # Shapes implied by the module: inputs [1, 1024, 28, 28], weight [256, 1024, 1, 1]
    N, Cin, H, W, Cout = 1, 1024, 28, 28, 256

    key = jax.random.PRNGKey(0)
    k1, k2, k3 = jax.random.split(key, 3)
    x300 = jax.random.normal(k1, (N, Cin, H, W), dtype=jnp.float32)
    x292 = jax.random.normal(k2, (N, Cin, H, W), dtype=jnp.float32)
    # Deterministic weight init (kaiming-like scale for a 1x1 conv, bias=False)
    weight = jax.random.normal(k3, (Cout, Cin, 1, 1), dtype=jnp.float32) * (2.0 / Cin) ** 0.5

    out = jax.block_until_ready(add_relu_conv1x1(x300, x292, weight))
    ref = reference(x300, x292, weight)

    assert out.shape == (N, Cout, H, W), out.shape
    # bf16 MXU operands with f32 accumulation over K=1024 -> expected |err| ~1e-2.
    assert jnp.allclose(out, ref, atol=5e-2, rtol=2e-2), float(jnp.max(jnp.abs(out - ref)))

    print("KERNEL_OK")
</pallas_src>

<mosaic_0001>
module attributes {stable_mosaic.version = 11 : i64} {
  func.func @_fused_add_relu_conv1x1_kernel(%arg0: i32, %arg1: i32, %arg2: memref<256x1024xbf16, #tpu.memory_space<vmem>>, %arg3: memref<1x1024x384xf32, #tpu.memory_space<vmem>>, %arg4: memref<1x1024x384xf32, #tpu.memory_space<vmem>>, %arg5: memref<1x256x384xf32, #tpu.memory_space<vmem>>) attributes {dimension_semantics = [#tpu.dimension_semantics<parallel>, #tpu.dimension_semantics<parallel>], iteration_bounds = array<i64: 1, 3>, scalar_prefetch = 0 : i64, scratch_operands = 0 : i64, tpu.core_type = #tpu.core_type<tc>, window_params = [{pipeline_mode = #tpu.pipeline_mode<synchronous>, transform_indices = @transform_0, window_bounds = array<i64: 256, 1024>}, {transform_indices = @transform_1, window_bounds = array<i64: 1, 1024, 384>}, {transform_indices = @transform_2, window_bounds = array<i64: 1, 1024, 384>}, {transform_indices = @transform_3, window_bounds = array<i64: 1, 256, 384>}]} {
    %c0 = arith.constant 0 : index
    %c0_0 = arith.constant 0 : index
    %c0_1 = arith.constant 0 : index
    %0 = vector.load %arg3[%c0, %c0_0, %c0_1] : memref<1x1024x384xf32, #tpu.memory_space<vmem>>, vector<1x1024x384xf32>
    %1 = vector.shape_cast %0 : vector<1x1024x384xf32> to vector<1024x384xf32>
    %c0_2 = arith.constant 0 : index
    %c0_3 = arith.constant 0 : index
    %c0_4 = arith.constant 0 : index
    %2 = vector.load %arg4[%c0_2, %c0_3, %c0_4] : memref<1x1024x384xf32, #tpu.memory_space<vmem>>, vector<1x1024x384xf32>
    %3 = vector.shape_cast %2 : vector<1x1024x384xf32> to vector<1024x384xf32>
    %4 = arith.addf %1, %3 : vector<1024x384xf32>
    %cst = arith.constant 0.000000e+00 : f32
    %5 = vector.broadcast %cst : f32 to vector<1024x384xf32>
    %6 = arith.maximumf %4, %5 : vector<1024x384xf32>
    %c0_5 = arith.constant 0 : index
    %c0_6 = arith.constant 0 : index
    %7 = vector.load %arg2[%c0_5, %c0_6] : memref<256x1024xbf16, #tpu.memory_space<vmem>>, vector<256x1024xbf16>
    %8 = arith.truncf %6 : vector<1024x384xf32> to vector<1024x384xbf16>
    %cst_7 = arith.constant dense<0.000000e+00> : vector<256x384xf32>
    %9 = tpu.matmul %7, %8, %cst_7 {dimension_numbers = #tpu.dot_dimension_numbers<[1], [0], [0], [1], [0, 0, 1, 1], [], []>} : vector<256x1024xbf16>, vector<1024x384xbf16>, vector<256x384xf32> -> vector<256x384xf32>
    %c0_8 = arith.constant 0 : index
    %c0_9 = arith.constant 0 : index
    %c0_10 = arith.constant 0 : index
    %10 = vector.load %arg5[%c0_8, %c0_9, %c0_10] : memref<1x256x384xf32, #tpu.memory_space<vmem>>, vector<1x256x384xf32>
    %11 = vector.shape_cast %10 : vector<1x256x384xf32> to vector<256x384xf32>
    %12 = vector.shape_cast %9 : vector<256x384xf32> to vector<1x256x384xf32>
    tpu.vector_store %arg5[%c0_8, %c0_9, %c0_10], %12 {strides = array<i32>} : memref<1x256x384xf32, #tpu.memory_space<vmem>>, vector<1x256x384xf32>,
    return
  }
  func.func @transform_0(%arg0: i32, %arg1: i32) -> (i32, i32) {
    %c0_i32 = arith.constant 0 : i32
    %c0_i32_0 = arith.constant 0 : i32
    %c0_i32_1 = arith.constant 0 : i32
    return %c0_i32, %c0_i32_0 : i32, i32
  }
  func.func @transform_1(%arg0: i32, %arg1: i32) -> (i32, i32, i32) {
    %c0_i32 = arith.constant 0 : i32
    %c0_i32_0 = arith.constant 0 : i32
    return %arg0, %c0_i32, %arg1 : i32, i32, i32
  }
  func.func @transform_2(%arg0: i32, %arg1: i32) -> (i32, i32, i32) {
    %c0_i32 = arith.constant 0 : i32
    %c0_i32_0 = arith.constant 0 : i32
    return %arg0, %c0_i32, %arg1 : i32, i32, i32
  }
  func.func @transform_3(%arg0: i32, %arg1: i32) -> (i32, i32, i32) {
    %c0_i32 = arith.constant 0 : i32
    %c0_i32_0 = arith.constant 0 : i32
    return %arg0, %c0_i32, %arg1 : i32, i32, i32
  }
}

</mosaic_0001>

<llo_original>
// kernel: tpu_custom_call.1
$region0: #{tpu_custom_call.1}
  #allocation0 [shape = 'u32[]', space=smem, size = 0x4, offset = 0x4, fixed_abs, tag = 'smem constant byte address 0x4 - core index']
  #allocation1 [shape = 'u32[144,128]{1,0:T(1,128)}', space=vmem, size = 0x12000, scoped, tag = 'internal scratch']
  %s0 = inlined_call_operand.vmem [shape: bf16[256,1024], index: 0, kind: input, shape index: {}]
  %s1 = inlined_call_operand.vmem [shape: f32[1,1024,784], index: 1, kind: input, shape index: {}]
  %s2 = inlined_call_operand.vmem [shape: f32[1,1024,784], index: 2, kind: input, shape index: {}]
  %s3 = inlined_call_operand.vmem [shape: f32[1,256,784], index: 3, kind: output, shape index: {}]
  %s4 = sld [smem:[#allocation0]]
  $region211: #{tpu_custom_call.1} parent=0
    _
  %s6 = ssub.s32 1, %s4
  %s7 = scalar_select 0, %s6, %s4
  $region1: #{tpu_custom_call.1} parent=0
    #allocation2 [shape = 'u8[3145728]{0}', space=vmem, size = 0x300000, scoped, tag = 'input window, operand 1']
    #allocation3 [shape = 'u8[3145728]{0}', space=vmem, size = 0x300000, scoped, tag = 'input window, operand 2']
    #allocation4 [shape = 'u8[786432]{0}', space=vmem, size = 0xc0000, scoped, tag = 'output window, operand 0']
    loop: start=0, step=1, limit=5
    $region2: #{tpu_custom_call.1} parent=1 // loop_pre_header
      _
    $region3: #{tpu_custom_call.1} parent=1 // loop_header
      %s9 = sphi 0, %s13
      %p10 = scmp.ge.s32.totalorder %s9, 5
      %s16 = sphi 0, %s28
      %s17 = sphi 0, %s24
      %s18 = sphi 0, %s16
      %s19 = sphi 0, %s17
      %s20 = sphi 0, %s18
      %s21 = sphi 0, %s19
      %s29 = sphi 0, %s29
      %s31 = sphi 0, %s29
      %s32 = sphi 0, %s31
      %s46 = sphi 0, %s32
      %s54 = sphi 0, %s56
      %s57 = sphi 0, %s54
      %s58 = sphi 0, %s57
      %s74 = sphi 0, %s58
      %s82 = sphi 0, %s84
      %s85 = sphi 0, %s82
      %s86 = sphi 0, %s85
      %s102 = sphi 0, %s86
      %s110 = sphi 0, %s112
      %s113 = sphi 0, %s110
      %s114 = sphi 0, %s113
      %s130 = sphi 0, %s114
    $region4: #{tpu_custom_call.1} parent=1 // loop_header_branch
      %12 = sbr.rel (%p10) target = $region8
    $region5: #{tpu_custom_call.1} parent=1 // loop_body
      %s14 = ssub.s32 %s9, 1
      %s15 = ssub.s32 %s9, 2
      %s22 = sadd.s32 1, %s17
      %p23 = scmp.ge.s32.totalorder %s22, 3
      %s24 = scalar_select %p23, 0, %s22
      %s25 = sadd.s32 1, %s16
      %s26 = scalar_select %p23, %s25, %s16
      %p27 = scmp.ge.s32.totalorder %s26, 1
      %s28 = scalar_select %p27, 0, %s26
      %s30 = sadd.s32 %s29, 1
      %p33 = scmp.eq.s32.totalorder %s9, 2
      %p34 = scmp.ne.s32.totalorder %s29, %s31
      %p35 = scmp.eq.s32.totalorder %s9, 0
      %p36 = por %p34, %p35
      %p37 = scmp.ne.s32.totalorder %s29, %s31
      %p38 = scmp.eq.s32.totalorder %s14, 2
      %p39 = por %p37, %p38
      %p40 = scmp.ne.s32.totalorder %s31, %s32
      %p41 = scmp.eq.s32.totalorder %s14, 0
      %p42 = por %p40, %p41
      %p43 = scmp.ne.s32.totalorder %s31, %s32
      %p44 = scmp.eq.s32.totalorder %s15, 2
      %p45 = por %p43, %p44
      %p47 = scmp.ne.s32.totalorder %s32, %s46
      %p48 = scmp.eq.s32.totalorder %s15, 0
      %p49 = por %p47, %p48
      %s50 = ssub.s32 %s16, %s28
      %s51 = ssub.s32 %s17, %s24
      %s52 = sor.u32 %s50, %s51
      %p53 = scmp.eq.s32.totalorder %s52, 0
      %s55 = sadd.s32 %s54, 1
      %s56 = scalar_select %p53, %s54, %s55
      %p59 = pneg %p53
      %p60 = scmp.eq.s32.totalorder %s9, 2
      %p61 = por %p59, %p60
      %p62 = scmp.ne.s32.totalorder %s54, %s57
      %p63 = scmp.eq.s32.totalorder %s9, 0
      %p64 = por %p62, %p63
      %p65 = scmp.ne.s32.totalorder %s54, %s57
      %p66 = scmp.eq.s32.totalorder %s14, 2
      %p67 = por %p65, %p66
      %p68 = scmp.ne.s32.totalorder %s57, %s58
      %p69 = scmp.eq.s32.totalorder %s14, 0
      %p70 = por %p68, %p69
      %p71 = scmp.ne.s32.totalorder %s57, %s58
      %p72 = scmp.eq.s32.totalorder %s15, 2
      %p73 = por %p71, %p72
      %p75 = scmp.ne.s32.totalorder %s58, %s74
      %p76 = scmp.eq.s32.totalorder %s15, 0
      %p77 = por %p75, %p76
      %s78 = ssub.s32 %s16, %s28
      %s79 = ssub.s32 %s17, %s24
      %s80 = sor.u32 %s78, %s79
      %p81 = scmp.eq.s32.totalorder %s80, 0
      %s83 = sadd.s32 %s82, 1
      %s84 = scalar_select %p81, %s82, %s83
      %p87 = pneg %p81
      %p88 = scmp.eq.s32.totalorder %s9, 2
      %p89 = por %p87, %p88
      %p90 = scmp.ne.s32.totalorder %s82, %s85
      %p91 = scmp.eq.s32.totalorder %s9, 0
      %p92 = por %p90, %p91
      %p93 = scmp.ne.s32.totalorder %s82, %s85
      %p94 = scmp.eq.s32.totalorder %s14, 2
      %p95 = por %p93, %p94
      %p96 = scmp.ne.s32.totalorder %s85, %s86
      %p97 = scmp.eq.s32.totalorder %s14, 0
      %p98 = por %p96, %p97
      %p99 = scmp.ne.s32.totalorder %s85, %s86
      %p100 = scmp.eq.s32.totalorder %s15, 2
      %p101 = por %p99, %p100
      %p103 = scmp.ne.s32.totalorder %s86, %s102
      %p104 = scmp.eq.s32.totalorder %s15, 0
      %p105 = por %p103, %p104
      %s106 = ssub.s32 %s16, %s28
      %s107 = ssub.s32 %s17, %s24
      %s108 = sor.u32 %s106, %s107
      %p109 = scmp.eq.s32.totalorder %s108, 0
      %s111 = sadd.s32 %s110, 1
      %s112 = scalar_select %p109, %s110, %s111
      %p115 = pneg %p109
      %p116 = scmp.eq.s32.totalorder %s9, 2
      %p117 = por %p115, %p116
      %p118 = scmp.ne.s32.totalorder %s110, %s113
      %p119 = scmp.eq.s32.totalorder %s9, 0
      %p120 = por %p118, %p119
      %p121 = scmp.ne.s32.totalorder %s110, %s113
      %p122 = scmp.eq.s32.totalorder %s14, 2
      %p123 = por %p121, %p122
      %p124 = scmp.ne.s32.totalorder %s113, %s114
      %p125 = scmp.eq.s32.totalorder %s14, 0
      %p126 = por %p124, %p125
      %p127 = scmp.ne.s32.totalorder %s113, %s114
      %p128 = scmp.eq.s32.totalorder %s15, 2
      %p129 = por %p127, %p128
      %p131 = scmp.ne.s32.totalorder %s114, %s130
      %p132 = scmp.eq.s32.totalorder %s15, 0
      %p133 = por %p131, %p132
      %p134 = scmp.le.s32.totalorder 1, %s9
      %p135 = scmp.lt.s32.totalorder %s9, 4
      %p136 = pnand %p134, %p135
      %p137 = pneg %p136
      // Predicated region
      $region9: #{tpu_custom_call.1} parent=5 // pred_check
        _
      $region10: #{tpu_custom_call.1} parent=5 // pred_check_branch
        %139 = sbr.rel (%p136) target = $region12
      $region11: #{tpu_custom_call.1} parent=5 // pred_region
        %s140 = ssub.s32 %s9, 1
        // Predicated region
        $region13: #{tpu_custom_call.1} parent=11 // pred_check
          %p141 = pneg %p42
        $region14: #{tpu_custom_call.1} parent=11 // pred_check_branch
          %143 = sbr.rel (%p141) target = $region16
        $region15: #{tpu_custom_call.1} parent=11 // pred_region
          _
        $region16: #{tpu_custom_call.1} parent=11 // pred_fallthru
          _
      $region12: #{tpu_custom_call.1} parent=5 // pred_fallthru
        _
      %p144 = scmp.lt.s32.totalorder %s9, 3
      // Predicated region
      $region17: #{tpu_custom_call.1} parent=5 // pred_check
        %p145 = pneg %p144
      $region18: #{tpu_custom_call.1} parent=5 // pred_check_branch
        %147 = sbr.rel (%p145) target = $region20
      $region19: #{tpu_custom_call.1} parent=5 // pred_region
        // Predicated region
        $region21: #{tpu_custom_call.1} parent=19 // pred_check
          %p148 = pneg %p64
        $region22: #{tpu_custom_call.1} parent=19 // pred_check_branch
          %150 = sbr.rel (%p148) target = $region24
        $region23: #{tpu_custom_call.1} parent=19 // pred_region
          %s151 = sand.u32 %s54, 1
          %s152 = sand.u32 %s54, 1
          %s153 = smul.addr %s152, 3072
          %s154 = scalar_lea.vmem [#allocation2], %s153
          %s155 = smul.u32 3, %s17
          %s156 = ssub.s32 7, %s155
          %p157 = scmp.lt.s32.totalorder %s156, 3
          %s158 = scalar_select %p157, %s156, 3
          %s159 = smul.u32 16384, %s158
          %p160 = scmp.ne.s32.totalorder 0, %s159
          %s161 = smul.addr %s16, 896
          %s162 = sadd.s32 %s155, %s161
          %s163 = smul.addr %s162, 8
          %s164 = scalar_lea.vmem %s1, %s163
          %s165 = smul.u32 %s158, 8
          // Predicated region
          $region25: #{tpu_custom_call.1} parent=23 // pred_check
            %p166 = pneg %p160
          $region26: #{tpu_custom_call.1} parent=23 // pred_check_branch
            %168 = sbr.rel (%p166) target = $region28
          $region27: #{tpu_custom_call.1} parent=23 // pred_region
            %p169 = scmp.lt.u32.totalorder %s165, 8
            %p170 = pneg %p169
            // Predicated region
            $region29: #{tpu_custom_call.1} parent=27 // pred_check
              _
            $region30: #{tpu_custom_call.1} parent=27 // pred_check_branch
              %172 = sbr.rel (%p169) target = $region32
            $region31: #{tpu_custom_call.1} parent=27 // pred_region
              %s441 = sand.u32 %s165, 7
              %p442 = scmp.eq.s32.totalorder %s441, 0
              // Predicated region
              $region44: #{tpu_custom_call.1} parent=31 // pred_check
                %p443 = pneg %p442
              $region45: #{tpu_custom_call.1} parent=31 // pred_check_branch
                %445 = sbr.rel (%p443) target = $region47
              $region46: #{tpu_custom_call.1} parent=31 // pred_region
                %s446 = sshrl.u32 %s165, 3
                // While loop
                $region48: #{tpu_custom_call.1} parent=46 // loop_pre_header
                  _
                $region49: #{tpu_custom_call.1} parent=46 // loop_header
                  %s450 = sphi 0, %s452
                  %p451 = scmp.ge.s32.totalorder %s450, %s446
                  %s455 = sphi 0, %s716
                  %s456 = sphi %s164, %s719
                  %s457 = sphi %s154, %s720
                $region50: #{tpu_custom_call.1} parent=46 // loop_header_branch
                  %454 = sbr.rel (%p451) target = $region54
                $region51: #{tpu_custom_call.1} parent=46 // loop_body
                  %v458 = vld [vmem:[%s456] sm:$0xff]
                  %459 = vst [vmem:[%s457] sm:$0xff] %v458
                  %v460 = vld [vmem:[%s456 + $0x38] sm:$0xff]
                  %461 = vst [vmem:[%s457 + $0x18] sm:$0xff] %v460
                  %v462 = vld [vmem:[%s456 + $0x70] sm:$0xff]
                  %463 = vst [vmem:[%s457 + $0x30] sm:$0xff] %v462
                  %v464 = vld [vmem:[%s456 + $0xa8] sm:$0xff]
                  %465 = vst [vmem:[%s457 + $0x48] sm:$0xff] %v464
                  %v466 = vld [vmem:[%s456 + $0xe0] sm:$0xff]
                  %467 = vst [vmem:[%s457 + $0x60] sm:$0xff] %v466
                  %v468 = vld [vmem:[%s456 + $0x118] sm:$0xff]
                  %469 = vst [vmem:[%s457 + $0x78] sm:$0xff] %v468
                  %v470 = vld [vmem:[%s456 + $0x150] sm:$0xff]
                  %471 = vst [vmem:[%s457 + $0x90] sm:$0xff] %v470
                  %v472 = vld [vmem:[%s456 + $0x188] sm:$0xff]
                  %473 = vst [vmem:[%s457 + $0xa8] sm:$0xff] %v472
                  %v474 = vld [vmem:[%s456 + $0x1c0] sm:$0xff]
                  %475 = vst [vmem:[%s457 + $0xc0] sm:$0xff] %v474
                  %v476 = vld [vmem:[%s456 + $0x1f8] sm:$0xff]
                  %477 = vst [vmem:[%s457 + $0xd8] sm:$0xff] %v476
                  %v478 = vld [vmem:[%s456 + $0x230] sm:$0xff]
                  %479 = vst [vmem:[%s457 + $0xf0] sm:$0xff] %v478
                  %v480 = vld [vmem:[%s456 + $0x268] sm:$0xff]
                  %481 = vst [vmem:[%s457 + $0x108] sm:$0xff] %v480
                  %v482 = vld [vmem:[%s456 + $0x2a0] sm:$0xff]
                  %483 = vst [vmem:[%s457 + $0x120] sm:$0xff] %v482
                  %v484 = vld [vmem:[%s456 + $0x2d8] sm:$0xff]
                  %485 = vst [vmem:[%s457 + $0x138] sm:$0xff] %v484
                  %v486 = vld [vmem:[%s456 + $0x310] sm:$0xff]
                  %487 = vst [vmem:[%s457 + $0x150] sm:$0xff] %v486
                  %v488 = vld [vmem:[%s456 + $0x348] sm:$0xff]
                  %489 = vst [vmem:[%s457 + $0x168] sm:$0xff] %v488
                  %v490 = vld [vmem:[%s456 + $0x380] sm:$0xff]
                  %491 = vst [vmem:[%s457 + $0x180] sm:$0xff] %v490
                  %v492 = vld [vmem:[%s456 + $0x3b8] sm:$0xff]
                  %493 = vst [vmem:[%s457 + $0x198] sm:$0xff] %v492
                  %v494 = vld [vmem:[%s456 + $0x3f0] sm:$0xff]
                  %495 = vst [vmem:[%s457 + $0x1b0] sm:$0xff] %v494
                  %v496 = vld [vmem:[%s456 + $0x428] sm:$0xff]
                  %497 = vst [vmem:[%s457 + $0x1c8] sm:$0xff] %v496
                  %v498 = vld [vmem:[%s456 + $0x460] sm:$0xff]
                  %499 = vst [vmem:[%s457 + $0x1e0] sm:$0xff] %v498
                  %v500 = vld [vmem:[%s456 + $0x498] sm:$0xff]
                  %501 = vst [vmem:[%s457 + $0x1f8] sm:$0xff] %v500
                  %v502 = vld [vmem:[%s456 + $0x4d0] sm:$0xff]
                  %503 = vst [vmem:[%s457 + $0x210] sm:$0xff] %v502
                  %v504 = vld [vmem:[%s456 + $0x508] sm:$0xff]
                  %505 = vst [vmem:[%s457 + $0x228] sm:$0xff] %v504
                  %v506 = vld [vmem:[%s456 + $0x540] sm:$0xff]
                  %507 = vst [vmem:[%s457 + $0x240] sm:$0xff] %v506
                  %v508 = vld [vmem:[%s456 + $0x578] sm:$0xff]
                  %509 = vst [vmem:[%s457 + $0x258] sm:$0xff] %v508
                  %v510 = vld [vmem:[%s456 + $0x5b0] sm:$0xff]
                  %511 = vst [vmem:[%s457 + $0x270] sm:$0xff] %v510
                  %v512 = vld [vmem:[%s456 + $0x5e8] sm:$0xff]
                  %513 = vst [vmem:[%s457 + $0x288] sm:$0xff] %v512
                  %v514 = vld [vmem:[%s456 + $0x620] sm:$0xff]
                  %515 = vst [vmem:[%s457 + $0x2a0] sm:$0xff] %v514
                  %v516 = vld [vmem:[%s456 + $0x658] sm:$0xff]
                  %517 = vst [vmem:[%s457 + $0x2b8] sm:$0xff] %v516
                  %v518 = vld [vmem:[%s456 + $0x690] sm:$0xff]
                  %519 = vst [vmem:[%s457 + $0x2d0] sm:$0xff] %v518
                  %v520 = vld [vmem:[%s456 + $0x6c8] sm:$0xff]
                  %521 = vst [vmem:[%s457 + $0x2e8] sm:$0xff] %v520
                  %v522 = vld [vmem:[%s456 + $0x700] sm:$0xff]
                  %523 = vst [vmem:[%s457 + $0x300] sm:$0xff] %v522
                  %v524 = vld [vmem:[%s456 + $0x738] sm:$0xff]
                  %525 = vst [vmem:[%s457 + $0x318] sm:$0xff] %v524
                  %v526 = vld [vmem:[%s456 + $0x770] sm:$0xff]
                  %527 = vst [vmem:[%s457 + $0x330] sm:$0xff] %v526
                  %v528 = vld [vmem:[%s456 + $0x7a8] sm:$0xff]
                  %529 = vst [vmem:[%s457 + $0x348] sm:$0xff] %v528
                  %v530 = vld [vmem:[%s456 + $0x7e0] sm:$0xff]
                  %531 = vst [vmem:[%s457 + $0x360] sm:$0xff] %v530
                  %v532 = vld [vmem:[%s456 + $0x818] sm:$0xff]
                  %533 = vst [vmem:[%s457 + $0x378] sm:$0xff] %v532
                  %v534 = vld [vmem:[%s456 + $0x850] sm:$0xff]
                  %535 = vst [vmem:[%s457 + $0x390] sm:$0xff] %v534
                  %v536 = vld [vmem:[%s456 + $0x888] sm:$0xff]
                  %537 = vst [vmem:[%s457 + $0x3a8] sm:$0xff] %v536
                  %v538 = vld [vmem:[%s456 + $0x8c0] sm:$0xff]
                  %539 = vst [vmem:[%s457 + $0x3c0] sm:$0xff] %v538
                  %v540 = vld [vmem:[%s456 + $0x8f8] sm:$0xff]
                  %541 = vst [vmem:[%s457 + $0x3d8] sm:$0xff] %v540
                  %v542 = vld [vmem:[%s456 + $0x930] sm:$0xff]
                  %543 = vst [vmem:[%s457 + $0x3f0] sm:$0xff] %v542
                  %v544 = vld [vmem:[%s456 + $0x968] sm:$0xff]
                  %545 = vst [vmem:[%s457 + $0x408] sm:$0xff] %v544
                  %v546 = vld [vmem:[%s456 + $0x9a0] sm:$0xff]
                  %547 = vst [vmem:[%s457 + $0x420] sm:$0xff] %v546
                  %v548 = vld [vmem:[%s456 + $0x9d8] sm:$0xff]
                  %549 = vst [vmem:[%s457 + $0x438] sm:$0xff] %v548
                  %v550 = vld [vmem:[%s456 + $0xa10] sm:$0xff]
                  %551 = vst [vmem:[%s457 + $0x450] sm:$0xff] %v550
                  %v552 = vld [vmem:[%s456 + $0xa48] sm:$0xff]
                  %553 = vst [vmem:[%s457 + $0x468] sm:$0xff] %v552
                  %v554 = vld [vmem:[%s456 + $0xa80] sm:$0xff]
                  %555 = vst [vmem:[%s457 + $0x480] sm:$0xff] %v554
                  %v556 = vld [vmem:[%s456 + $0xab8] sm:$0xff]
                  %557 = vst [vmem:[%s457 + $0x498] sm:$0xff] %v556
                  %v558 = vld [vmem:[%s456 + $0xaf0] sm:$0xff]
                  %559 = vst [vmem:[%s457 + $0x4b0] sm:$0xff] %v558
                  %v560 = vld [vmem:[%s456 + $0xb28] sm:$0xff]
                  %561 = vst [vmem:[%s457 + $0x4c8] sm:$0xff] %v560
                  %v562 = vld [vmem:[%s456 + $0xb60] sm:$0xff]
                  %563 = vst [vmem:[%s457 + $0x4e0] sm:$0xff] %v562
                  %v564 = vld [vmem:[%s456 + $0xb98] sm:$0xff]
                  %565 = vst [vmem:[%s457 + $0x4f8] sm:$0xff] %v564
                  %v566 = vld [vmem:[%s456 + $0xbd0] sm:$0xff]
                  %567 = vst [vmem:[%s457 + $0x510] sm:$0xff] %v566
                  %v568 = vld [vmem:[%s456 + $0xc08] sm:$0xff]
                  %569 = vst [vmem:[%s457 + $0x528] sm:$0xff] %v568
                  %v570 = vld [vmem:[%s456 + $0xc40] sm:$0xff]
                  %571 = vst [vmem:[%s457 + $0x540] sm:$0xff] %v570
                  %v572 = vld [vmem:[%s456 + $0xc78] sm:$0xff]
                  %573 = vst [vmem:[%s457 + $0x558] sm:$0xff] %v572
                  %v574 = vld [vmem:[%s456 + $0xcb0] sm:$0xff]
                  %575 = vst [vmem:[%s457 + $0x570] sm:$0xff] %v574
                  %v576 = vld [vmem:[%s456 + $0xce8] sm:$0xff]
                  %577 = vst [vmem:[%s457 + $0x588] sm:$0xff] %v576
                  %v578 = vld [vmem:[%s456 + $0xd20] sm:$0xff]
                  %579 = vst [vmem:[%s457 + $0x5a0] sm:$0xff] %v578
                  %v580 = vld [vmem:[%s456 + $0xd58] sm:$0xff]
                  %581 = vst [vmem:[%s457 + $0x5b8] sm:$0xff] %v580
                  %v582 = vld [vmem:[%s456 + $0xd90] sm:$0xff]
                  %583 = vst [vmem:[%s457 + $0x5d0] sm:$0xff] %v582
                  %v584 = vld [vmem:[%s456 + $0xdc8] sm:$0xff]
                  %585 = vst [vmem:[%s457 + $0x5e8] sm:$0xff] %v584
                  %v586 = vld [vmem:[%s456 + $0xe00] sm:$0xff]
                  %587 = vst [vmem:[%s457 + $0x600] sm:$0xff] %v586
                  %v588 = vld [vmem:[%s456 + $0xe38] sm:$0xff]
                  %589 = vst [vmem:[%s457 + $0x618] sm:$0xff] %v588
                  %v590 = vld [vmem:[%s456 + $0xe70] sm:$0xff]
                  %591 = vst [vmem:[%s457 + $0x630] sm:$0xff] %v590
                  %v592 = vld [vmem:[%s456 + $0xea8] sm:$0xff]
                  %593 = vst [vmem:[%s457 + $0x648] sm:$0xff] %v592
                  %v594 = vld [vmem:[%s456 + $0xee0] sm:$0xff]
                  %595 = vst [vmem:[%s457 + $0x660] sm:$0xff] %v594
                  %v596 = vld [vmem:[%s456 + $0xf18] sm:$0xff]
                  %597 = vst [vmem:[%s457 + $0x678] sm:$0xff] %v596
                  %v598 = vld [vmem:[%s456 + $0xf50] sm:$0xff]
                  %599 = vst [vmem:[%s457 + $0x690] sm:$0xff] %v598
                  %v600 = vld [vmem:[%s456 + $0xf88] sm:$0xff]
                  %601 = vst [vmem:[%s457 + $0x6a8] sm:$0xff] %v600
                  %v602 = vld [vmem:[%s456 + $0xfc0] sm:$0xff]
                  %603 = vst [vmem:[%s457 + $0x6c0] sm:$0xff] %v602
                  %v604 = vld [vmem:[%s456 + $0xff8] sm:$0xff]
                  %605 = vst [vmem:[%s457 + $0x6d8] sm:$0xff] %v604
                  %v606 = vld [vmem:[%s456 + $0x1030] sm:$0xff]
                  %607 = vst [vmem:[%s457 + $0x6f0] sm:$0xff] %v606
                  %v608 = vld [vmem:[%s456 + $0x1068] sm:$0xff]
                  %609 = vst [vmem:[%s457 + $0x708] sm:$0xff] %v608
                  %v610 = vld [vmem:[%s456 + $0x10a0] sm:$0xff]
                  %611 = vst [vmem:[%s457 + $0x720] sm:$0xff] %v610
                  %v612 = vld [vmem:[%s456 + $0x10d8] sm:$0xff]
                  %613 = vst [vmem:[%s457 + $0x738] sm:$0xff] %v612
                  %v614 = vld [vmem:[%s456 + $0x1110] sm:$0xff]
                  %615 = vst [vmem:[%s457 + $0x750] sm:$0xff] %v614
                  %v616 = vld [vmem:[%s456 + $0x1148] sm:$0xff]
                  %617 = vst [vmem:[%s457 + $0x768] sm:$0xff] %v616
                  %v618 = vld [vmem:[%s456 + $0x1180] sm:$0xff]
                  %619 = vst [vmem:[%s457 + $0x780] sm:$0xff] %v618
                  %v620 = vld [vmem:[%s456 + $0x11b8] sm:$0xff]
                  %621 = vst [vmem:[%s457 + $0x798] sm:$0xff] %v620
                  %v622 = vld [vmem:[%s456 + $0x11f0] sm:$0xff]
                  %623 = vst [vmem:[%s457 + $0x7b0] sm:$0xff] %v622
                  %v624 = vld [vmem:[%s456 + $0x1228] sm:$0xff]
                  %625 = vst [vmem:[%s457 + $0x7c8] sm:$0xff] %v624
                  %v626 = vld [vmem:[%s456 + $0x1260] sm:$0xff]
                  %627 = vst [vmem:[%s457 + $0x7e0] sm:$0xff] %v626
                  %v628 = vld [vmem:[%s456 + $0x1298] sm:$0xff]
                  %629 = vst [vmem:[%s457 + $0x7f8] sm:$0xff] %v628
                  %v630 = vld [vmem:[%s456 + $0x12d0] sm:$0xff]
                  %631 = vst [vmem:[%s457 + $0x810] sm:$0xff] %v630
                  %v632 = vld [vmem:[%s456 + $0x1308] sm:$0xff]
                  %633 = vst [vmem:[%s457 + $0x828] sm:$0xff] %v632
                  %v634 = vld [vmem:[%s456 + $0x1340] sm:$0xff]
                  %635 = vst [vmem:[%s457 + $0x840] sm:$0xff] %v634
                  %v636 = vld [vmem:[%s456 + $0x1378] sm:$0xff]
                  %637 = vst [vmem:[%s457 + $0x858] sm:$0xff] %v636
                  %v638 = vld [vmem:[%s456 + $0x13b0] sm:$0xff]
                  %639 = vst [vmem:[%s457 + $0x870] sm:$0xff] %v638
                  %v640 = vld [vmem:[%s456 + $0x13e8] sm:$0xff]
                  %641 = vst [vmem:[%s457 + $0x888] sm:$0xff] %v640
                  %v642 = vld [vmem:[%s456 + $0x1420] sm:$0xff]
                  %643 = vst [vmem:[%s457 + $0x8a0] sm:$0xff] %v642
                  %v644 = vld [vmem:[%s456 + $0x1458] sm:$0xff]
                  %645 = vst [vmem:[%s457 + $0x8b8] sm:$0xff] %v644
                  %v646 = vld [vmem:[%s456 + $0x1490] sm:$0xff]
                  %647 = vst [vmem:[%s457 + $0x8d0] sm:$0xff] %v646
                  %v648 = vld [vmem:[%s456 + $0x14c8] sm:$0xff]
                  %649 = vst [vmem:[%s457 + $0x8e8] sm:$0xff] %v648
                  %v650 = vld [vmem:[%s456 + $0x1500] sm:$0xff]
                  %651 = vst [vmem:[%s457 + $0x900] sm:$0xff] %v650
                  %v652 = vld [vmem:[%s456 + $0x1538] sm:$0xff]
                  %653 = vst [vmem:[%s457 + $0x918] sm:$0xff] %v652
                  %v654 = vld [vmem:[%s456 + $0x1570] sm:$0xff]
                  %655 = vst [vmem:[%s457 + $0x930] sm:$0xff] %v654
                  %v656 = vld [vmem:[%s456 + $0x15a8] sm:$0xff]
                  %657 = vst [vmem:[%s457 + $0x948] sm:$0xff] %v656
                  %v658 = vld [vmem:[%s456 + $0x15e0] sm:$0xff]
                  %659 = vst [vmem:[%s457 + $0x960] sm:$0xff] %v658
                  %v660 = vld [vmem:[%s456 + $0x1618] sm:$0xff]
                  %661 = vst [vmem:[%s457 + $0x978] sm:$0xff] %v660
                  %v662 = vld [vmem:[%s456 + $0x1650] sm:$0xff]
                  %663 = vst [vmem:[%s457 + $0x990] sm:$0xff] %v662
                  %v664 = vld [vmem:[%s456 + $0x1688] sm:$0xff]
                  %665 = vst [vmem:[%s457 + $0x9a8] sm:$0xff] %v664
                  %v666 = vld [vmem:[%s456 + $0x16c0] sm:$0xff]
                  %667 = vst [vmem:[%s457 + $0x9c0] sm:$0xff] %v666
                  %v668 = vld [vmem:[%s456 + $0x16f8] sm:$0xff]
                  %669 = vst [vmem:[%s457 + $0x9d8] sm:$0xff] %v668
                  %v670 = vld [vmem:[%s456 + $0x1730] sm:$0xff]
                  %671 = vst [vmem:[%s457 + $0x9f0] sm:$0xff] %v670
                  %v672 = vld [vmem:[%s456 + $0x1768] sm:$0xff]
                  %673 = vst [vmem:[%s457 + $0xa08] sm:$0xff] %v672
                  %v674 = vld [vmem:[%s456 + $0x17a0] sm:$0xff]
                  %675 = vst [vmem:[%s457 + $0xa20] sm:$0xff] %v674
                  %v676 = vld [vmem:[%s456 + $0x17d8] sm:$0xff]
                  %677 = vst [vmem:[%s457 + $0xa38] sm:$0xff] %v676
                  %v678 = vld [vmem:[%s456 + $0x1810] sm:$0xff]
                  %679 = vst [vmem:[%s457 + $0xa50] sm:$0xff] %v678
                  %v680 = vld [vmem:[%s456 + $0x1848] sm:$0xff]
                  %681 = vst [vmem:[%s457 + $0xa68] sm:$0xff] %v680
                  %v682 = vld [vmem:[%s456 + $0x1880] sm:$0xff]
                  %683 = vst [vmem:[%s457 + $0xa80] sm:$0xff] %v682
                  %v684 = vld [vmem:[%s456 + $0x18b8] sm:$0xff]
                  %685 = vst [vmem:[%s457 + $0xa98] sm:$0xff] %v684
                  %v686 = vld [vmem:[%s456 + $0x18f0] sm:$0xff]
                  %687 = vst [vmem:[%s457 + $0xab0] sm:$0xff] %v686
                  %v688 = vld [vmem:[%s456 + $0x1928] sm:$0xff]
                  %689 = vst [vmem:[%s457 + $0xac8] sm:$0xff] %v688
                  %v690 = vld [vmem:[%s456 + $0x1960] sm:$0xff]
                  %691 = vst [vmem:[%s457 + $0xae0] sm:$0xff] %v690
                  %v692 = vld [vmem:[%s456 + $0x1998] sm:$0xff]
                  %693 = vst [vmem:[%s457 + $0xaf8] sm:$0xff] %v692
                  %v694 = vld [vmem:[%s456 + $0x19d0] sm:$0xff]
                  %695 = vst [vmem:[%s457 + $0xb10] sm:$0xff] %v694
                  %v696 = vld [vmem:[%s456 + $0x1a08] sm:$0xff]
                  %697 = vst [vmem:[%s457 + $0xb28] sm:$0xff] %v696
                  %v698 = vld [vmem:[%s456 + $0x1a40] sm:$0xff]
                  %699 = vst [vmem:[%s457 + $0xb40] sm:$0xff] %v698
                  %v700 = vld [vmem:[%s456 + $0x1a78] sm:$0xff]
                  %701 = vst [vmem:[%s457 + $0xb58] sm:$0xff] %v700
                  %v702 = vld [vmem:[%s456 + $0x1ab0] sm:$0xff]
                  %703 = vst [vmem:[%s457 + $0xb70] sm:$0xff] %v702
                  %v704 = vld [vmem:[%s456 + $0x1ae8] sm:$0xff]
                  %705 = vst [vmem:[%s457 + $0xb88] sm:$0xff] %v704
                  %v706 = vld [vmem:[%s456 + $0x1b20] sm:$0xff]
                  %707 = vst [vmem:[%s457 + $0xba0] sm:$0xff] %v706
                  %v708 = vld [vmem:[%s456 + $0x1b58] sm:$0xff]
                  %709 = vst [vmem:[%s457 + $0xbb8] sm:$0xff] %v708
                  %v710 = vld [vmem:[%s456 + $0x1b90] sm:$0xff]
                  %711 = vst [vmem:[%s457 + $0xbd0] sm:$0xff] %v710
                  %v712 = vld [vmem:[%s456 + $0x1bc8] sm:$0xff]
                  %713 = vst [vmem:[%s457 + $0xbe8] sm:$0xff] %v712
                  %s714 = sadd.s32 1, %s455
                  %p715 = scmp.ge.s32.totalorder %s714, %s446
                  %s716 = scalar_select %p715, 0, %s714
                  %s717 = smul.u32 %s716, 8
                  %s718 = smul.u32 %s716, 8
                  %s719 = scalar_lea.vmem %s164, %s717
                  %s720 = scalar_lea.vmem %s154, %s718 [#allocation2]
                $region52: #{tpu_custom_call.1} parent=46 // loop_footer
                  %s452 = sadd.s32 %s450, 1
                $region53: #{tpu_custom_call.1} parent=46 // loop_footer_branch
                  %449 = sbr.rel target = $region49
                $region54: #{tpu_custom_call.1} parent=46 // loop_exit
                  _
              $region47: #{tpu_custom_call.1} parent=31 // pred_fallthru
                _
              %p721 = pneg %p442
              // Predicated region
              $region55: #{tpu_custom_call.1} parent=31 // pred_check
                _
              $region56: #{tpu_custom_call.1} parent=31 // pred_check_branch
                %723 = sbr.rel (%p442) target = $region58
              $region57: #{tpu_custom_call.1} parent=31 // pred_region
                %s724 = sand.u32 %s165, 7
                %s725 = ssub.s32 %s165, %s724
                %s726 = scalar_lea.vmem %s164, %s725
                %s727 = ssub.s32 %s165, %s724
                %s728 = scalar_lea.vmem %s154, %s727 [#allocation2]
                %s729 = sshrl.u32 %s165, 3
                // While loop
                $region59: #{tpu_custom_call.1} parent=57 // loop_pre_header
                  _
                $region60: #{tpu_custom_call.1} parent=57 // loop_header
                  %s733 = sphi 0, %s735
                  %p734 = scmp.ge.s32.totalorder %s733, %s729
                  %s738 = sphi 0, %s999
                  %s739 = sphi %s164, %s1002
                  %s740 = sphi %s154, %s1003
                $region61: #{tpu_custom_call.1} parent=57 // loop_header_branch
                  %737 = sbr.rel (%p734) target = $region65
                $region62: #{tpu_custom_call.1} parent=57 // loop_body
                  %v741 = vld [vmem:[%s739] sm:$0xff]
                  %742 = vst [vmem:[%s740] sm:$0xff] %v741
                  %v743 = vld [vmem:[%s739 + $0x38] sm:$0xff]
                  %744 = vst [vmem:[%s740 + $0x18] sm:$0xff] %v743
                  %v745 = vld [vmem:[%s739 + $0x70] sm:$0xff]
                  %746 = vst [vmem:[%s740 + $0x30] sm:$0xff] %v745
                  %v747 = vld [vmem:[%s739 + $0xa8] sm:$0xff]
                  %748 = vst [vmem:[%s740 + $0x48] sm:$0xff] %v747
                  %v749 = vld [vmem:[%s739 + $0xe0] sm:$0xff]
                  %750 = vst [vmem:[%s740 + $0x60] sm:$0xff] %v749
                  %v751 = vld [vmem:[%s739 + $0x118] sm:$0xff]
                  %752 = vst [vmem:[%s740 + $0x78] sm:$0xff] %v751
                  %v753 = vld [vmem:[%s739 + $0x150] sm:$0xff]
                  %754 = vst [vmem:[%s740 + $0x90] sm:$0xff] %v753
                  %v755 = vld [vmem:[%s739 + $0x188] sm:$0xff]
                  %756 = vst [vmem:[%s740 + $0xa8] sm:$0xff] %v755
                  %v757 = vld [vmem:[%s739 + $0x1c0] sm:$0xff]
                  %758 = vst [vmem:[%s740 + $0xc0] sm:$0xff] %v757
                  %v759 = vld [vmem:[%s739 + $0x1f8] sm:$0xff]
                  %760 = vst [vmem:[%s740 + $0xd8] sm:$0xff] %v759
                  %v761 = vld [vmem:[%s739 + $0x230] sm:$0xff]
                  %762 = vst [vmem:[%s740 + $0xf0] sm:$0xff] %v761
                  %v763 = vld [vmem:[%s739 + $0x268] sm:$0xff]
                  %764 = vst [vmem:[%s740 + $0x108] sm:$0xff] %v763
                  %v765 = vld [vmem:[%s739 + $0x2a0] sm:$0xff]
                  %766 = vst [vmem:[%s740 + $0x120] sm:$0xff] %v765
                  %v767 = vld [vmem:[%s739 + $0x2d8] sm:$0xff]
                  %768 = vst [vmem:[%s740 + $0x138] sm:$0xff] %v767
                  %v769 = vld [vmem:[%s739 + $0x310] sm:$0xff]
                  %770 = vst [vmem:[%s740 + $0x150] sm:$0xff] %v769
                  %v771 = vld [vmem:[%s739 + $0x348] sm:$0xff]
                  %772 = vst [vmem:[%s740 + $0x168] sm:$0xff] %v771
                  %v773 = vld [vmem:[%s739 + $0x380] sm:$0xff]
                  %774 = vst [vmem:[%s740 + $0x180] sm:$0xff] %v773
                  %v775 = vld [vmem:[%s739 + $0x3b8] sm:$0xff]
                  %776 = vst [vmem:[%s740 + $0x198] sm:$0xff] %v775
                  %v777 = vld [vmem:[%s739 + $0x3f0] sm:$0xff]
                  %778 = vst [vmem:[%s740 + $0x1b0] sm:$0xff] %v777
                  %v779 = vld [vmem:[%s739 + $0x428] sm:$0xff]
                  %780 = vst [vmem:[%s740 + $0x1c8] sm:$0xff] %v779
                  %v781 = vld [vmem:[%s739 + $0x460] sm:$0xff]
                  %782 = vst [vmem:[%s740 + $0x1e0] sm:$0xff] %v781
                  %v783 = vld [vmem:[%s739 + $0x498] sm:$0xff]
                  %784 = vst [vmem:[%s740 + $0x1f8] sm:$0xff] %v783
                  %v785 = vld [vmem:[%s739 + $0x4d0] sm:$0xff]
                  %786 = vst [vmem:[%s740 + $0x210] sm:$0xff] %v785
                  %v787 = vld [vmem:[%s739 + $0x508] sm:$0xff]
                  %788 = vst [vmem:[%s740 + $0x228] sm:$0xff] %v787
                  %v789 = vld [vmem:[%s739 + $0x540] sm:$0xff]
                  %790 = vst [vmem:[%s740 + $0x240] sm:$0xff] %v789
                  %v791 = vld [vmem:[%s739 + $0x578] sm:$0xff]
                  %792 = vst [vmem:[%s740 + $0x258] sm:$0xff] %v791
                  %v793 = vld [vmem:[%s739 + $0x5b0] sm:$0xff]
                  %794 = vst [vmem:[%s740 + $0x270] sm:$0xff] %v793
                  %v795 = vld [vmem:[%s739 + $0x5e8] sm:$0xff]
                  %796 = vst [vmem:[%s740 + $0x288] sm:$0xff] %v795
                  %v797 = vld [vmem:[%s739 + $0x620] sm:$0xff]
                  %798 = vst [vmem:[%s740 + $0x2a0] sm:$0xff] %v797
                  %v799 = vld [vmem:[%s739 + $0x658] sm:$0xff]
                  %800 = vst [vmem:[%s740 + $0x2b8] sm:$0xff] %v799
                  %v801 = vld [vmem:[%s739 + $0x690] sm:$0xff]
                  %802 = vst [vmem:[%s740 + $0x2d0] sm:$0xff] %v801
                  %v803 = vld [vmem:[%s739 + $0x6c8] sm:$0xff]
                  %804 = vst [vmem:[%s740 + $0x2e8] sm:$0xff] %v803
                  %v805 = vld [vmem:[%s739 + $0x700] sm:$0xff]
                  %806 = vst [vmem:[%s740 + $0x300] sm:$0xff] %v805
                  %v807 = vld [vmem:[%s739 + $0x738] sm:$0xff]
                  %808 = vst [vmem:[%s740 + $0x318] sm:$0xff] %v807
                  %v809 = vld [vmem:[%s739 + $0x770] sm:$0xff]
                  %810 = vst [vmem:[%s740 + $0x330] sm:$0xff] %v809
                  %v811 = vld [vmem:[%s739 + $0x7a8] sm:$0xff]
                  %812 = vst [vmem:[%s740 + $0x348] sm:$0xff] %v811
                  %v813 = vld [vmem:[%s739 + $0x7e0] sm:$0xff]
                  %814 = vst [vmem:[%s740 + $0x360] sm:$0xff] %v813
                  %v815 = vld [vmem:[%s739 + $0x818] sm:$0xff]
                  %816 = vst [vmem:[%s740 + $0x378] sm:$0xff] %v815
                  %v817 = vld [vmem:[%s739 + $0x850] sm:$0xff]
                  %818 = vst [vmem:[%s740 + $0x390] sm:$0xff] %v817
                  %v819 = vld [vmem:[%s739 + $0x888] sm:$0xff]
                  %820 = vst [vmem:[%s740 + $0x3a8] sm:$0xff] %v819
                  %v821 = vld [vmem:[%s739 + $0x8c0] sm:$0xff]
                  %822 = vst [vmem:[%s740 + $0x3c0] sm:$0xff] %v821
                  %v823 = vld [vmem:[%s739 + $0x8f8] sm:$0xff]
                  %824 = vst [vmem:[%s740 + $0x3d8] sm:$0xff] %v823
                  %v825 = vld [vmem:[%s739 + $0x930] sm:$0xff]
                  %826 = vst [vmem:[%s740 + $0x3f0] sm:$0xff] %v825
                  %v827 = vld [vmem:[%s739 + $0x968] sm:$0xff]
                  %828 = vst [vmem:[%s740 + $0x408] sm:$0xff] %v827
                  %v829 = vld [vmem:[%s739 + $0x9a0] sm:$0xff]
                  %830 = vst [vmem:[%s740 + $0x420] sm:$0xff] %v829
                  %v831 = vld [vmem:[%s739 + $0x9d8] sm:$0xff]
                  %832 = vst [vmem:[%s740 + $0x438] sm:$0xff] %v831
                  %v833 = vld [vmem:[%s739 + $0xa10] sm:$0xff]
                  %834 = vst [vmem:[%s740 + $0x450] sm:$0xff] %v833
                  %v835 = vld [vmem:[%s739 + $0xa48] sm:$0xff]
                  %836 = vst [vmem:[%s740 + $0x468] sm:$0xff] %v835
                  %v837 = vld [vmem:[%s739 + $0xa80] sm:$0xff]
                  %838 = vst [vmem:[%s740 + $0x480] sm:$0xff] %v837
                  %v839 = vld [vmem:[%s739 + $0xab8] sm:$0xff]
                  %840 = vst [vmem:[%s740 + $0x498] sm:$0xff] %v839
                  %v841 = vld [vmem:[%s739 + $0xaf0] sm:$0xff]
                  %842 = vst [vmem:[%s740 + $0x4b0] sm:$0xff] %v841
                  %v843 = vld [vmem:[%s739 + $0xb28] sm:$0xff]
                  %844 = vst [vmem:[%s740 + $0x4c8] sm:$0xff] %v843
                  %v845 = vld [vmem:[%s739 + $0xb60] sm:$0xff]
                  %846 = vst [vmem:[%s740 + $0x4e0] sm:$0xff] %v845
                  %v847 = vld [vmem:[%s739 + $0xb98] sm:$0xff]
                  %848 = vst [vmem:[%s740 + $0x4f8] sm:$0xff] %v847
                  %v849 = vld [vmem:[%s739 + $0xbd0] sm:$0xff]
                  %850 = vst [vmem:[%s740 + $0x510] sm:$0xff] %v849
                  %v851 = vld [vmem:[%s739 + $0xc08] sm:$0xff]
                  %852 = vst [vmem:[%s740 + $0x528] sm:$0xff] %v851
                  %v853 = vld [vmem:[%s739 + $0xc40] sm:$0xff]
                  %854 = vst [vmem:[%s740 + $0x540] sm:$0xff] %v853
                  %v855 = vld [vmem:[%s739 + $0xc78] sm:$0xff]
                  %856 = vst [vmem:[%s740 + $0x558] sm:$0xff] %v855
                  %v857 = vld [vmem:[%s739 + $0xcb0] sm:$0xff]
                  %858 = vst [vmem:[%s740 + $0x570] sm:$0xff] %v857
                  %v859 = vld [vmem:[%s739 + $0xce8] sm:$0xff]
                  %860 = vst [vmem:[%s740 + $0x588] sm:$0xff] %v859
                  %v861 = vld [vmem:[%s739 + $0xd20] sm:$0xff]
                  %862 = vst [vmem:[%s740 + $0x5a0] sm:$0xff] %v861
                  %v863 = vld [vmem:[%s739 + $0xd58] sm:$0xff]
                  %864 = vst [vmem:[%s740 + $0x5b8] sm:$0xff] %v863
                  %v865 = vld [vmem:[%s739 + $0xd90] sm:$0xff]
                  %866 = vst [vmem:[%s740 + $0x5d0] sm:$0xff] %v865
                  %v867 = vld [vmem:[%s739 + $0xdc8] sm:$0xff]
                  %868 = vst [vmem:[%s740 + $0x5e8] sm:$0xff] %v867
                  %v869 = vld [vmem:[%s739 + $0xe00] sm:$0xff]
                  %870 = vst [vmem:[%s740 + $0x600] sm:$0xff] %v869
                  %v871 = vld [vmem:[%s739 + $0xe38] sm:$0xff]
                  %872 = vst [vmem:[%s740 + $0x618] sm:$0xff] %v871
                  %v873 = vld [vmem:[%s739 + $0xe70] sm:$0xff]
                  %874 = vst [vmem:[%s740 + $0x630] sm:$0xff] %v873
                  %v875 = vld [vmem:[%s739 + $0xea8] sm:$0xff]
                  %876 = vst [vmem:[%s740 + $0x648] sm:$0xff] %v875
                  %v877 = vld [vmem:[%s739 + $0xee0] sm:$0xff]
                  %878 = vst [vmem:[%s740 + $0x660] sm:$0xff] %v877
                  %v879 = vld [vmem:[%s739 + $0xf18] sm:$0xff]
                  %880 = vst [vmem:[%s740 + $0x678] sm:$0xff] %v879
                  %v881 = vld [vmem:[%s739 + $0xf50] sm:$0xff]
                  %882 = vst [vmem:[%s740 + $0x690] sm:$0xff] %v881
                  %v883 = vld [vmem:[%s739 + $0xf88] sm:$0xff]
                  %884 = vst [vmem:[%s740 + $0x6a8] sm:$0xff] %v883
                  %v885 = vld [vmem:[%s739 + $0xfc0] sm:$0xff]
                  %886 = vst [vmem:[%s740 + $0x6c0] sm:$0xff] %v885
                  %v887 = vld [vmem:[%s739 + $0xff8] sm:$0xff]
                  %888 = vst [vmem:[%s740 + $0x6d8] sm:$0xff] %v887
                  %v889 = vld [vmem:[%s739 + $0x1030] sm:$0xff]
                  %890 = vst [vmem:[%s740 + $0x6f0] sm:$0xff] %v889
                  %v891 = vld [vmem:[%s739 + $0x1068] sm:$0xff]
                  %892 = vst [vmem:[%s740 + $0x708] sm:$0xff] %v891
                  %v893 = vld [vmem:[%s739 + $0x10a0] sm:$0xff]
                  %894 = vst [vmem:[%s740 + $0x720] sm:$0xff] %v893
                  %v895 = vld [vmem:[%s739 + $0x10d8] sm:$0xff]
                  %896 = vst [vmem:[%s740 + $0x738] sm:$0xff] %v895
                  %v897 = vld [vmem:[%s739 + $0x1110] sm:$0xff]
                  %898 = vst [vmem:[%s740 + $0x750] sm:$0xff] %v897
                  %v899 = vld [vmem:[%s739 + $0x1148] sm:$0xff]
                  %900 = vst [vmem:[%s740 + $0x768] sm:$0xff] %v899
                  %v901 = vld [vmem:[%s739 + $0x1180] sm:$0xff]
                  %902 = vst [vmem:[%s740 + $0x780] sm:$0xff] %v901
                  %v903 = vld [vmem:[%s739 + $0x11b8] sm:$0xff]
                  %904 = vst [vmem:[%s740 + $0x798] sm:$0xff] %v903
                  %v905 = vld [vmem:[%s739 + $0x11f0] sm:$0xff]
                  %906 = vst [vmem:[%s740 + $0x7b0] sm:$0xff] %v905
                  %v907 = vld [vmem:[%s739 + $0x1228] sm:$0xff]
                  %908 = vst [vmem:[%s740 + $0x7c8] sm:$0xff] %v907
                  %v909 = vld [vmem:[%s739 + $0x1260] sm:$0xff]
                  %910 = vst [vmem:[%s740 + $0x7e0] sm:$0xff] %v909
                  %v911 = vld [vmem:[%s739 + $0x1298] sm:$0xff]
                  %912 = vst [vmem:[%s740 + $0x7f8] sm:$0xff] %v911
                  %v913 = vld [vmem:[%s739 + $0x12d0] sm:$0xff]
                  %914 = vst [vmem:[%s740 + $0x810] sm:$0xff] %v913
                  %v915 = vld [vmem:[%s739 + $0x1308] sm:$0xff]
                  %916 = vst [vmem:[%s740 + $0x828] sm:$0xff] %v915
                  %v917 = vld [vmem:[%s739 + $0x1340] sm:$0xff]
                  %918 = vst [vmem:[%s740 + $0x840] sm:$0xff] %v917
                  %v919 = vld [vmem:[%s739 + $0x1378] sm:$0xff]
                  %920 = vst [vmem:[%s740 + $0x858] sm:$0xff] %v919
                  %v921 = vld [vmem:[%s739 + $0x13b0] sm:$0xff]
                  %922 = vst [vmem:[%s740 + $0x870] sm:$0xff] %v921
                  %v923 = vld [vmem:[%s739 + $0x13e8] sm:$0xff]
                  %924 = vst [vmem:[%s740 + $0x888] sm:$0xff] %v923
                  %v925 = vld [vmem:[%s739 + $0x1420] sm:$0xff]
                  %926 = vst [vmem:[%s740 + $0x8a0] sm:$0xff] %v925
                  %v927 = vld [vmem:[%s739 + $0x1458] sm:$0xff]
                  %928 = vst [vmem:[%s740 + $0x8b8] sm:$0xff] %v927
                  %v929 = vld [vmem:[%s739 + $0x1490] sm:$0xff]
                  %930 = vst [vmem:[%s740 + $0x8d0] sm:$0xff] %v929
                  %v931 = vld [vmem:[%s739 + $0x14c8] sm:$0xff]
                  %932 = vst [vmem:[%s740 + $0x8e8] sm:$0xff] %v931
                  %v933 = vld [vmem:[%s739 + $0x1500] sm:$0xff]
                  %934 = vst [vmem:[%s740 + $0x900] sm:$0xff] %v933
                  %v935 = vld [vmem:[%s739 + $0x1538] sm:$0xff]
                  %936 = vst [vmem:[%s740 + $0x918] sm:$0xff] %v935
                  %v937 = vld [vmem:[%s739 + $0x1570] sm:$0xff]
                  %938 = vst [vmem:[%s740 + $0x930] sm:$0xff] %v937
                  %v939 = vld [vmem:[%s739 + $0x15a8] sm:$0xff]
                  %940 = vst [vmem:[%s740 + $0x948] sm:$0xff] %v939
                  %v941 = vld [vmem:[%s739 + $0x15e0] sm:$0xff]
                  %942 = vst [vmem:[%s740 + $0x960] sm:$0xff] %v941
                  %v943 = vld [vmem:[%s739 + $0x1618] sm:$0xff]
                  %944 = vst [vmem:[%s740 + $0x978] sm:$0xff] %v943
                  %v945 = vld [vmem:[%s739 + $0x1650] sm:$0xff]
                  %946 = vst [vmem:[%s740 + $0x990] sm:$0xff] %v945
                  %v947 = vld [vmem:[%s739 + $0x1688] sm:$0xff]
                  %948 = vst [vmem:[%s740 + $0x9a8] sm:$0xff] %v947
                  %v949 = vld [vmem:[%s739 + $0x16c0] sm:$0xff]
                  %950 = vst [vmem:[%s740 + $0x9c0] sm:$0xff] %v949
                  %v951 = vld [vmem:[%s739 + $0x16f8] sm:$0xff]
                  %952 = vst [vmem:[%s740 + $0x9d8] sm:$0xff] %v951
                  %v953 = vld [vmem:[%s739 + $0x1730] sm:$0xff]
                  %954 = vst [vmem:[%s740 + $0x9f0] sm:$0xff] %v953
                  %v955 = vld [vmem:[%s739 + $0x1768] sm:$0xff]
                  %956 = vst [vmem:[%s740 + $0xa08] sm:$0xff] %v955
                  %v957 = vld [vmem:[%s739 + $0x17a0] sm:$0xff]
                  %958 = vst [vmem:[%s740 + $0xa20] sm:$0xff] %v957
                  %v959 = vld [vmem:[%s739 + $0x17d8] sm:$0xff]
                  %960 = vst [vmem:[%s740 + $0xa38] sm:$0xff] %v959
                  %v961 = vld [vmem:[%s739 + $0x1810] sm:$0xff]
                  %962 = vst [vmem:[%s740 + $0xa50] sm:$0xff] %v961
                  %v963 = vld [vmem:[%s739 + $0x1848] sm:$0xff]
                  %964 = vst [vmem:[%s740 + $0xa68] sm:$0xff] %v963
                  %v965 = vld [vmem:[%s739 + $0x1880] sm:$0xff]
                  %966 = vst [vmem:[%s740 + $0xa80] sm:$0xff] %v965
                  %v967 = vld [vmem:[%s739 + $0x18b8] sm:$0xff]
                  %968 = vst [vmem:[%s740 + $0xa98] sm:$0xff] %v967
                  %v969 = vld [vmem:[%s739 + $0x18f0] sm:$0xff]
                  %970 = vst [vmem:[%s740 + $0xab0] sm:$0xff] %v969
                  %v971 = vld [vmem:[%s739 + $0x1928] sm:$0xff]
                  %972 = vst [vmem:[%s740 + $0xac8] sm:$0xff] %v971
                  %v973 = vld [vmem:[%s739 + $0x1960] sm:$0xff]
                  %974 = vst [vmem:[%s740 + $0xae0] sm:$0xff] %v973
                  %v975 = vld [vmem:[%s739 + $0x1998] sm:$0xff]
                  %976 = vst [vmem:[%s740 + $0xaf8] sm:$0xff] %v975
                  %v977 = vld [vmem:[%s739 + $0x19d0] sm:$0xff]
                  %978 = vst [vmem:[%s740 + $0xb10] sm:$0xff] %v977
                  %v979 = vld [vmem:[%s739 + $0x1a08] sm:$0xff]
                  %980 = vst [vmem:[%s740 + $0xb28] sm:$0xff] %v979
                  %v981 = vld [vmem:[%s739 + $0x1a40] sm:$0xff]
                  %982 = vst [vmem:[%s740 + $0xb40] sm:$0xff] %v981
                  %v983 = vld [vmem:[%s739 + $0x1a78] sm:$0xff]
                  %984 = vst [vmem:[%s740 + $0xb58] sm:$0xff] %v983
                  %v985 = vld [vmem:[%s739 + $0x1ab0] sm:$0xff]
                  %986 = vst [vmem:[%s740 + $0xb70] sm:$0xff] %v985
                  %v987 = vld [vmem:[%s739 + $0x1ae8] sm:$0xff]
                  %988 = vst [vmem:[%s740 + $0xb88] sm:$0xff] %v987
                  %v989 = vld [vmem:[%s739 + $0x1b20] sm:$0xff]
                  %990 = vst [vmem:[%s740 + $0xba0] sm:$0xff] %v989
                  %v991 = vld [vmem:[%s739 + $0x1b58] sm:$0xff]
                  %992 = vst [vmem:[%s740 + $0xbb8] sm:$0xff] %v991
                  %v993 = vld [vmem:[%s739 + $0x1b90] sm:$0xff]
                  %994 = vst [vmem:[%s740 + $0xbd0] sm:$0xff] %v993
                  %v995 = vld [vmem:[%s739 + $0x1bc8] sm:$0xff]
                  %996 = vst [vmem:[%s740 + $0xbe8] sm:$0xff] %v995
                  %s997 = sadd.s32 1, %s738
                  %p998 = scmp.ge.s32.totalorder %s997, %s729
                  %s999 = scalar_select %p998, 0, %s997
                  %s1000 = smul.u32 %s999, 8
                  %s1001 = smul.u32 %s999, 8
                  %s1002 = scalar_lea.vmem %s164, %s1000
                  %s1003 = scalar_lea.vmem %s154, %s1001 [#allocation2]
                $region63: #{tpu_custom_call.1} parent=57 // loop_footer
                  %s735 = sadd.s32 %s733, 1
                $region64: #{tpu_custom_call.1} parent=57 // loop_footer_branch
                  %732 = sbr.rel target = $region60
                $region65: #{tpu_custom_call.1} parent=57 // loop_exit
                  _
                %s1004 = sshllo.u32 0, %s724
                loop: start=0, step=1, limit=1
                $region66: #{tpu_custom_call.1} parent=57 // loop_pre_header
                  _
                $region67: #{tpu_custom_call.1} parent=57 // loop_header
                  %s1006 = sphi 0, %s1010
                  %p1007 = scmp.ge.s32.totalorder %s1006, 1
                  %s1011 = sphi %s726, %s726
                  %s1012 = sphi %s728, %s728
                $region68: #{tpu_custom_call.1} parent=57 // loop_header_branch
                  %1009 = sbr.rel (%p1007) target = $region72
                $region69: #{tpu_custom_call.1} parent=57 // loop_body
                  %v1013 = vld [vmem:[%s1011] sm:%s1004]
                  %1014 = vst [vmem:[%s1012] sm:%s1004] %v1013
                  %v1015 = vld [vmem:[%s1011 + $0x38] sm:%s1004]
                  %1016 = vst [vmem:[%s1012 + $0x18] sm:%s1004] %v1015
                  %v1017 = vld [vmem:[%s1011 + $0x70] sm:%s1004]
                  %1018 = vst [vmem:[%s1012 + $0x30] sm:%s1004] %v1017
                  %v1019 = vld [vmem:[%s1011 + $0xa8] sm:%s1004]
                  %1020 = vst [vmem:[%s1012 + $0x48] sm:%s1004] %v1019
                  %v1021 = vld [vmem:[%s1011 + $0xe0] sm:%s1004]
                  %1022 = vst [vmem:[%s1012 + $0x60] sm:%s1004] %v1021
                  %v1023 = vld [vmem:[%s1011 + $0x118] sm:%s1004]
                  %1024 = vst [vmem:[%s1012 + $0x78] sm:%s1004] %v1023
                  %v1025 = vld [vmem:[%s1011 + $0x150] sm:%s1004]
                  %1026 = vst [vmem:[%s1012 + $0x90] sm:%s1004] %v1025
                  %v1027 = vld [vmem:[%s1011 + $0x188] sm:%s1004]
                  %1028 = vst [vmem:[%s1012 + $0xa8] sm:%s1004] %v1027
                  %v1029 = vld [vmem:[%s1011 + $0x1c0] sm:%s1004]
                  %1030 = vst [vmem:[%s1012 + $0xc0] sm:%s1004] %v1029
                  %v1031 = vld [vmem:[%s1011 + $0x1f8] sm:%s1004]
                  %1032 = vst [vmem:[%s1012 + $0xd8] sm:%s1004] %v1031
                  %v1033 = vld [vmem:[%s1011 + $0x230] sm:%s1004]
                  %1034 = vst [vmem:[%s1012 + $0xf0] sm:%s1004] %v1033
                  %v1035 = vld [vmem:[%s1011 + $0x268] sm:%s1004]
                  %1036 = vst [vmem:[%s1012 + $0x108] sm:%s1004] %v1035
                  %v1037 = vld [vmem:[%s1011 + $0x2a0] sm:%s1004]
                  %1038 = vst [vmem:[%s1012 + $0x120] sm:%s1004] %v1037
                  %v1039 = vld [vmem:[%s1011 + $0x2d8] sm:%s1004]
                  %1040 = vst [vmem:[%s1012 + $0x138] sm:%s1004] %v1039
                  %v1041 = vld [vmem:[%s1011 + $0x310] sm:%s1004]
                  %1042 = vst [vmem:[%s1012 + $0x150] sm:%s1004] %v1041
                  %v1043 = vld [vmem:[%s1011 + $0x348] sm:%s1004]
                  %1044 = vst [vmem:[%s1012 + $0x168] sm:%s1004] %v1043
                  %v1045 = vld [vmem:[%s1011 + $0x380] sm:%s1004]
                  %1046 = vst [vmem:[%s1012 + $0x180] sm:%s1004] %v1045
                  %v1047 = vld [vmem:[%s1011 + $0x3b8] sm:%s1004]
                  %1048 = vst [vmem:[%s1012 + $0x198] sm:%s1004] %v1047
                  %v1049 = vld [vmem:[%s1011 + $0x3f0] sm:%s1004]
                  %1050 = vst [vmem:[%s1012 + $0x1b0] sm:%s1004] %v1049
                  %v1051 = vld [vmem:[%s1011 + $0x428] sm:%s1004]
                  %1052 = vst [vmem:[%s1012 + $0x1c8] sm:%s1004] %v1051
                  %v1053 = vld [vmem:[%s1011 + $0x460] sm:%s1004]
                  %1054 = vst [vmem:[%s1012 + $0x1e0] sm:%s1004] %v1053
                  %v1055 = vld [vmem:[%s1011 + $0x498] sm:%s1004]
                  %1056 = vst [vmem:[%s1012 + $0x1f8] sm:%s1004] %v1055
                  %v1057 = vld [vmem:[%s1011 + $0x4d0] sm:%s1004]
                  %1058 = vst [vmem:[%s1012 + $0x210] sm:%s1004] %v1057
                  %v1059 = vld [vmem:[%s1011 + $0x508] sm:%s1004]
                  %1060 = vst [vmem:[%s1012 + $0x228] sm:%s1004] %v1059
                  %v1061 = vld [vmem:[%s1011 + $0x540] sm:%s1004]
                  %1062 = vst [vmem:[%s1012 + $0x240] sm:%s1004] %v1061
                  %v1063 = vld [vmem:[%s1011 + $0x578] sm:%s1004]
                  %1064 = vst [vmem:[%s1012 + $0x258] sm:%s1004] %v1063
                  %v1065 = vld [vmem:[%s1011 + $0x5b0] sm:%s1004]
                  %1066 = vst [vmem:[%s1012 + $0x270] sm:%s1004] %v1065
                  %v1067 = vld [vmem:[%s1011 + $0x5e8] sm:%s1004]
                  %1068 = vst [vmem:[%s1012 + $0x288] sm:%s1004] %v1067
                  %v1069 = vld [vmem:[%s1011 + $0x620] sm:%s1004]
                  %1070 = vst [vmem:[%s1012 + $0x2a0] sm:%s1004] %v1069
                  %v1071 = vld [vmem:[%s1011 + $0x658] sm:%s1004]
                  %1072 = vst [vmem:[%s1012 + $0x2b8] sm:%s1004] %v1071
                  %v1073 = vld [vmem:[%s1011 + $0x690] sm:%s1004]
                  %1074 = vst [vmem:[%s1012 + $0x2d0] sm:%s1004] %v1073
                  %v1075 = vld [vmem:[%s1011 + $0x6c8] sm:%s1004]
                  %1076 = vst [vmem:[%s1012 + $0x2e8] sm:%s1004] %v1075
                  %v1077 = vld [vmem:[%s1011 + $0x700] sm:%s1004]
                  %1078 = vst [vmem:[%s1012 + $0x300] sm:%s1004] %v1077
                  %v1079 = vld [vmem:[%s1011 + $0x738] sm:%s1004]
                  %1080 = vst [vmem:[%s1012 + $0x318] sm:%s1004] %v1079
                  %v1081 = vld [vmem:[%s1011 + $0x770] sm:%s1004]
                  %1082 = vst [vmem:[%s1012 + $0x330] sm:%s1004] %v1081
                  %v1083 = vld [vmem:[%s1011 + $0x7a8] sm:%s1004]
                  %1084 = vst [vmem:[%s1012 + $0x348] sm:%s1004] %v1083
                  %v1085 = vld [vmem:[%s1011 + $0x7e0] sm:%s1004]
                  %1086 = vst [vmem:[%s1012 + $0x360] sm:%s1004] %v1085
                  %v1087 = vld [vmem:[%s1011 + $0x818] sm:%s1004]
                  %1088 = vst [vmem:[%s1012 + $0x378] sm:%s1004] %v1087
                  %v1089 = vld [vmem:[%s1011 + $0x850] sm:%s1004]
                  %1090 = vst [vmem:[%s1012 + $0x390] sm:%s1004] %v1089
                  %v1091 = vld [vmem:[%s1011 + $0x888] sm:%s1004]
                  %1092 = vst [vmem:[%s1012 + $0x3a8] sm:%s1004] %v1091
                  %v1093 = vld [vmem:[%s1011 + $0x8c0] sm:%s1004]
                  %1094 = vst [vmem:[%s1012 + $0x3c0] sm:%s1004] %v1093
                  %v1095 = vld [vmem:[%s1011 + $0x8f8] sm:%s1004]
                  %1096 = vst [vmem:[%s1012 + $0x3d8] sm:%s1004] %v1095
                  %v1097 = vld [vmem:[%s1011 + $0x930] sm:%s1004]
                  %1098 = vst [vmem:[%s1012 + $0x3f0] sm:%s1004] %v1097
                  %v1099 = vld [vmem:[%s1011 + $0x968] sm:%s1004]
                  %1100 = vst [vmem:[%s1012 + $0x408] sm:%s1004] %v1099
                  %v1101 = vld [vmem:[%s1011 + $0x9a0] sm:%s1004]
                  %1102 = vst [vmem:[%s1012 + $0x420] sm:%s1004] %v1101
                  %v1103 = vld [vmem:[%s1011 + $0x9d8] sm:%s1004]
                  %1104 = vst [vmem:[%s1012 + $0x438] sm:%s1004] %v1103
                  %v1105 = vld [vmem:[%s1011 + $0xa10] sm:%s1004]
                  %1106 = vst [vmem:[%s1012 + $0x450] sm:%s1004] %v1105
                  %v1107 = vld [vmem:[%s1011 + $0xa48] sm:%s1004]
                  %1108 = vst [vmem:[%s1012 + $0x468] sm:%s1004] %v1107
                  %v1109 = vld [vmem:[%s1011 + $0xa80] sm:%s1004]
                  %1110 = vst [vmem:[%s1012 + $0x480] sm:%s1004] %v1109
                  %v1111 = vld [vmem:[%s1011 + $0xab8] sm:%s1004]
                  %1112 = vst [vmem:[%s1012 + $0x498] sm:%s1004] %v1111
                  %v1113 = vld [vmem:[%s1011 + $0xaf0] sm:%s1004]
                  %1114 = vst [vmem:[%s1012 + $0x4b0] sm:%s1004] %v1113
                  %v1115 = vld [vmem:[%s1011 + $0xb28] sm:%s1004]
                  %1116 = vst [vmem:[%s1012 + $0x4c8] sm:%s1004] %v1115
                  %v1117 = vld [vmem:[%s1011 + $0xb60] sm:%s1004]
                  %1118 = vst [vmem:[%s1012 + $0x4e0] sm:%s1004] %v1117
                  %v1119 = vld [vmem:[%s1011 + $0xb98] sm:%s1004]
                  %1120 = vst [vmem:[%s1012 + $0x4f8] sm:%s1004] %v1119
                  %v1121 = vld [vmem:[%s1011 + $0xbd0] sm:%s1004]
                  %1122 = vst [vmem:[%s1012 + $0x510] sm:%s1004] %v1121
                  %v1123 = vld [vmem:[%s1011 + $0xc08] sm:%s1004]
                  %1124 = vst [vmem:[%s1012 + $0x528] sm:%s1004] %v1123
                  %v1125 = vld [vmem:[%s1011 + $0xc40] sm:%s1004]
                  %1126 = vst [vmem:[%s1012 + $0x540] sm:%s1004] %v1125
                  %v1127 = vld [vmem:[%s1011 + $0xc78] sm:%s1004]
                  %1128 = vst [vmem:[%s1012 + $0x558] sm:%s1004] %v1127
                  %v1129 = vld [vmem:[%s1011 + $0xcb0] sm:%s1004]
                  %1130 = vst [vmem:[%s1012 + $0x570] sm:%s1004] %v1129
                  %v1131 = vld [vmem:[%s1011 + $0xce8] sm:%s1004]
                  %1132 = vst [vmem:[%s1012 + $0x588] sm:%s1004] %v1131
                  %v1133 = vld [vmem:[%s1011 + $0xd20] sm:%s1004]
                  %1134 = vst [vmem:[%s1012 + $0x5a0] sm:%s1004] %v1133
                  %v1135 = vld [vmem:[%s1011 + $0xd58] sm:%s1004]
                  %1136 = vst [vmem:[%s1012 + $0x5b8] sm:%s1004] %v1135
                  %v1137 = vld [vmem:[%s1011 + $0xd90] sm:%s1004]
                  %1138 = vst [vmem:[%s1012 + $0x5d0] sm:%s1004] %v1137
                  %v1139 = vld [vmem:[%s1011 + $0xdc8] sm:%s1004]
                  %1140 = vst [vmem:[%s1012 + $0x5e8] sm:%s1004] %v1139
                  %v1141 = vld [vmem:[%s1011 + $0xe00] sm:%s1004]
                  %1142 = vst [vmem:[%s1012 + $0x600] sm:%s1004] %v1141
                  %v1143 = vld [vmem:[%s1011 + $0xe38] sm:%s1004]
                  %1144 = vst [vmem:[%s1012 + $0x618] sm:%s1004] %v1143
                  %v1145 = vld [vmem:[%s1011 + $0xe70] sm:%s1004]
                  %1146 = vst [vmem:[%s1012 + $0x630] sm:%s1004] %v1145
                  %v1147 = vld [vmem:[%s1011 + $0xea8] sm:%s1004]
                  %1148 = vst [vmem:[%s1012 + $0x648] sm:%s1004] %v1147
                  %v1149 = vld [vmem:[%s1011 + $0xee0] sm:%s1004]
                  %1150 = vst [vmem:[%s1012 + $0x660] sm:%s1004] %v1149
                  %v1151 = vld [vmem:[%s1011 + $0xf18] sm:%s1004]
                  %1152 = vst [vmem:[%s1012 + $0x678] sm:%s1004] %v1151
                  %v1153 = vld [vmem:[%s1011 + $0xf50] sm:%s1004]
                  %1154 = vst [vmem:[%s1012 + $0x690] sm:%s1004] %v1153
                  %v1155 = vld [vmem:[%s1011 + $0xf88] sm:%s1004]
                  %1156 = vst [vmem:[%s1012 + $0x6a8] sm:%s1004] %v1155
                  %v1157 = vld [vmem:[%s1011 + $0xfc0] sm:%s1004]
                  %1158 = vst [vmem:[%s1012 + $0x6c0] sm:%s1004] %v1157
                  %v1159 = vld [vmem:[%s1011 + $0xff8] sm:%s1004]
                  %1160 = vst [vmem:[%s1012 + $0x6d8] sm:%s1004] %v1159
                  %v1161 = vld [vmem:[%s1011 + $0x1030] sm:%s1004]
                  %1162 = vst [vmem:[%s1012 + $0x6f0] sm:%s1004] %v1161
                  %v1163 = vld [vmem:[%s1011 + $0x1068] sm:%s1004]
                  %1164 = vst [vmem:[%s1012 + $0x708] sm:%s1004] %v1163
                  %v1165 = vld [vmem:[%s1011 + $0x10a0] sm:%s1004]
                  %1166 = vst [vmem:[%s1012 + $0x720] sm:%s1004] %v1165
                  %v1167 = vld [vmem:[%s1011 + $0x10d8] sm:%s1004]
                  %1168 = vst [vmem:[%s1012 + $0x738] sm:%s1004] %v1167
                  %v1169 = vld [vmem:[%s1011 + $0x1110] sm:%s1004]
                  %1170 = vst [vmem:[%s1012 + $0x750] sm:%s1004] %v1169
                  %v1171 = vld [vmem:[%s1011 + $0x1148] sm:%s1004]
                  %1172 = vst [vmem:[%s1012 + $0x768] sm:%s1004] %v1171
                  %v1173 = vld [vmem:[%s1011 + $0x1180] sm:%s1004]
                  %1174 = vst [vmem:[%s1012 + $0x780] sm:%s1004] %v1173
                  %v1175 = vld [vmem:[%s1011 + $0x11b8] sm:%s1004]
                  %1176 = vst [vmem:[%s1012 + $0x798] sm:%s1004] %v1175
                  %v1177 = vld [vmem:[%s1011 + $0x11f0] sm:%s1004]
                  %1178 = vst [vmem:[%s1012 + $0x7b0] sm:%s1004] %v1177
                  %v1179 = vld [vmem:[%s1011 + $0x1228] sm:%s1004]
                  %1180 = vst [vmem:[%s1012 + $0x7c8] sm:%s1004] %v1179
                  %v1181 = vld [vmem:[%s1011 + $0x1260] sm:%s1004]
                  %1182 = vst [vmem:[%s1012 + $0x7e0] sm:%s1004] %v1181
                  %v1183 = vld [vmem:[%s1011 + $0x1298] sm:%s1004]
                  %1184 = vst [vmem:[%s1012 + $0x7f8] sm:%s1004] %v1183
                  %v1185 = vld [vmem:[%s1011 + $0x12d0] sm:%s1004]
                  %1186 = vst [vmem:[%s1012 + $0x810] sm:%s1004] %v1185
                  %v1187 = vld [vmem:[%s1011 + $0x1308] sm:%s1004]
                  %1188 = vst [vmem:[%s1012 + $0x828] sm:%s1004] %v1187
                  %v1189 = vld [vmem:[%s1011 + $0x1340] sm:%s1004]
                  %1190 = vst [vmem:[%s1012 + $0x840] sm:%s1004] %v1189
                  %v1191 = vld [vmem:[%s1011 + $0x1378] sm:%s1004]
                  %1192 = vst [vmem:[%s1012 + $0x858] sm:%s1004] %v1191
                  %v1193 = vld [vmem:[%s1011 + $0x13b0] sm:%s1004]
                  %1194 = vst [vmem:[%s1012 + $0x870] sm:%s1004] %v1193
                  %v1195 = vld [vmem:[%s1011 + $0x13e8] sm:%s1004]
                  %1196 = vst [vmem:[%s1012 + $0x888] sm:%s1004] %v1195
                  %v1197 = vld [vmem:[%s1011 + $0x1420] sm:%s1004]
                  %1198 = vst [vmem:[%s1012 + $0x8a0] sm:%s1004] %v1197
                  %v1199 = vld [vmem:[%s1011 + $0x1458] sm:%s1004]
                  %1200 = vst [vmem:[%s1012 + $0x8b8] sm:%s1004] %v1199
                  %v1201 = vld [vmem:[%s1011 + $0x1490] sm:%s1004]
                  %1202 = vst [vmem:[%s1012 + $0x8d0] sm:%s1004] %v1201
                  %v1203 = vld [vmem:[%s1011 + $0x14c8] sm:%s1004]
                  %1204 = vst [vmem:[%s1012 + $0x8e8] sm:%s1004] %v1203
                  %v1205 = vld [vmem:[%s1011 + $0x1500] sm:%s1004]
                  %1206 = vst [vmem:[%s1012 + $0x900] sm:%s1004] %v1205
                  %v1207 = vld [vmem:[%s1011 + $0x1538] sm:%s1004]
                  %1208 = vst [vmem:[%s1012 + $0x918] sm:%s1004] %v1207
                  %v1209 = vld [vmem:[%s1011 + $0x1570] sm:%s1004]
                  %1210 = vst [vmem:[%s1012 + $0x930] sm:%s1004] %v1209
                  %v1211 = vld [vmem:[%s1011 + $0x15a8] sm:%s1004]
                  %1212 = vst [vmem:[%s1012 + $0x948] sm:%s1004] %v1211
                  %v1213 = vld [vmem:[%s1011 + $0x15e0] sm:%s1004]
                  %1214 = vst [vmem:[%s1012 + $0x960] sm:%s1004] %v1213
                  %v1215 = vld [vmem:[%s1011 + $0x1618] sm:%s1004]
                  %1216 = vst [vmem:[%s1012 + $0x978] sm:%s1004] %v1215
                  %v1217 = vld [vmem:[%s1011 + $0x1650] sm:%s1004]
                  %1218 = vst [vmem:[%s1012 + $0x990] sm:%s1004] %v1217
                  %v1219 = vld [vmem:[%s1011 + $0x1688] sm:%s1004]
                  %1220 = vst [vmem:[%s1012 + $0x9a8] sm:%s1004] %v1219
                  %v1221 = vld [vmem:[%s1011 + $0x16c0] sm:%s1004]
                  %1222 = vst [vmem:[%s1012 + $0x9c0] sm:%s1004] %v1221
                  %v1223 = vld [vmem:[%s1011 + $0x16f8] sm:%s1004]
                  %1224 = vst [vmem:[%s1012 + $0x9d8] sm:%s1004] %v1223
                  %v1225 = vld [vmem:[%s1011 + $0x1730] sm:%s1004]
                  %1226 = vst [vmem:[%s1012 + $0x9f0] sm:%s1004] %v1225
                  %v1227 = vld [vmem:[%s1011 + $0x1768] sm:%s1004]
                  %1228 = vst [vmem:[%s1012 + $0xa08] sm:%s1004] %v1227
                  %v1229 = vld [vmem:[%s1011 + $0x17a0] sm:%s1004]
                  %1230 = vst [vmem:[%s1012 + $0xa20] sm:%s1004] %v1229
                  %v1231 = vld [vmem:[%s1011 + $0x17d8] sm:%s1004]
                  %1232 = vst [vmem:[%s1012 + $0xa38] sm:%s1004] %v1231
                  %v1233 = vld [vmem:[%s1011 + $0x1810] sm:%s1004]
                  %1234 = vst [vmem:[%s1012 + $0xa50] sm:%s1004] %v1233
                  %v1235 = vld [vmem:[%s1011 + $0x1848] sm:%s1004]
                  %1236 = vst [vmem:[%s1012 + $0xa68] sm:%s1004] %v1235
                  %v1237 = vld [vmem:[%s1011 + $0x1880] sm:%s1004]
                  %1238 = vst [vmem:[%s1012 + $0xa80] sm:%s1004] %v1237
                  %v1239 = vld [vmem:[%s1011 + $0x18b8] sm:%s1004]
                  %1240 = vst [vmem:[%s1012 + $0xa98] sm:%s1004] %v1239
                  %v1241 = vld [vmem:[%s1011 + $0x18f0] sm:%s1004]
                  %1242 = vst [vmem:[%s1012 + $0xab0] sm:%s1004] %v1241
                  %v1243 = vld [vmem:[%s1011 + $0x1928] sm:%s1004]
                  %1244 = vst [vmem:[%s1012 + $0xac8] sm:%s1004] %v1243
                  %v1245 = vld [vmem:[%s1011 + $0x1960] sm:%s1004]
                  %1246 = vst [vmem:[%s1012 + $0xae0] sm:%s1004] %v1245
                  %v1247 = vld [vmem:[%s1011 + $0x1998] sm:%s1004]
                  %1248 = vst [vmem:[%s1012 + $0xaf8] sm:%s1004] %v1247
                  %v1249 = vld [vmem:[%s1011 + $0x19d0] sm:%s1004]
                  %1250 = vst [vmem:[%s1012 + $0xb10] sm:%s1004] %v1249
                  %v1251 = vld [vmem:[%s1011 + $0x1a08] sm:%s1004]
                  %1252 = vst [vmem:[%s1012 + $0xb28] sm:%s1004] %v1251
                  %v1253 = vld [vmem:[%s1011 + $0x1a40] sm:%s1004]
                  %1254 = vst [vmem:[%s1012 + $0xb40] sm:%s1004] %v1253
                  %v1255 = vld [vmem:[%s1011 + $0x1a78] sm:%s1004]
                  %1256 = vst [vmem:[%s1012 + $0xb58] sm:%s1004] %v1255
                  %v1257 = vld [vmem:[%s1011 + $0x1ab0] sm:%s1004]
                  %1258 = vst [vmem:[%s1012 + $0xb70] sm:%s1004] %v1257
                  %v1259 = vld [vmem:[%s1011 + $0x1ae8] sm:%s1004]
                  %1260 = vst [vmem:[%s1012 + $0xb88] sm:%s1004] %v1259
                  %v1261 = vld [vmem:[%s1011 + $0x1b20] sm:%s1004]
                  %1262 = vst [vmem:[%s1012 + $0xba0] sm:%s1004] %v1261
                  %v1263 = vld [vmem:[%s1011 + $0x1b58] sm:%s1004]
                  %1264 = vst [vmem:[%s1012 + $0xbb8] sm:%s1004] %v1263
                  %v1265 = vld [vmem:[%s1011 + $0x1b90] sm:%s1004]
                  %1266 = vst [vmem:[%s1012 + $0xbd0] sm:%s1004] %v1265
                  %v1267 = vld [vmem:[%s1011 + $0x1bc8] sm:%s1004]
                  %1268 = vst [vmem:[%s1012 + $0xbe8] sm:%s1004] %v1267
                $region70: #{tpu_custom_call.1} parent=57 // loop_footer
                  %s1010 = sadd.s32 1, %s1006
                $region71: #{tpu_custom_call.1} parent=57 // loop_footer_branch
                  %1005 = sbr.rel target = $region67
                $region72: #{tpu_custom_call.1} parent=57 // loop_exit
                  _
              $region58: #{tpu_custom_call.1} parent=31 // pred_fallthru
                _
            $region32: #{tpu_custom_call.1} parent=27 // pred_fallthru
              _
            // Predicated region
            $region33: #{tpu_custom_call.1} parent=27 // pred_check
              %p173 = pneg %p169
            $region34: #{tpu_custom_call.1} parent=27 // pred_check_branch
              %175 = sbr.rel (%p173) target = $region36
            $region35: #{tpu_custom_call.1} parent=27 // pred_region
              %s176 = sshllo.u32 0, %s165
              loop: start=0, step=1, limit=1
              $region37: #{tpu_custom_call.1} parent=35 // loop_pre_header
                _
              $region38: #{tpu_custom_call.1} parent=35 // loop_header
                %s178 = sphi 0, %s182
                %p179 = scmp.ge.s32.totalorder %s178, 1
                %s183 = sphi %s164, %s164
                %s184 = sphi %s154, %s154
              $region39: #{tpu_custom_call.1} parent=35 // loop_header_branch
                %181 = sbr.rel (%p179) target = $region43
              $region40: #{tpu_custom_call.1} parent=35 // loop_body
                %v185 = vld [vmem:[%s183] sm:%s176]
                %186 = vst [vmem:[%s184] sm:%s176] %v185
                %v187 = vld [vmem:[%s183 + $0x38] sm:%s176]
                %188 = vst [vmem:[%s184 + $0x18] sm:%s176] %v187
                %v189 = vld [vmem:[%s183 + $0x70] sm:%s176]
                %190 = vst [vmem:[%s184 + $0x30] sm:%s176] %v189
                %v191 = vld [vmem:[%s183 + $0xa8] sm:%s176]
                %192 = vst [vmem:[%s184 + $0x48] sm:%s176] %v191
                %v193 = vld [vmem:[%s183 + $0xe0] sm:%s176]
                %194 = vst [vmem:[%s184 + $0x60] sm:%s176] %v193
                %v195 = vld [vmem:[%s183 + $0x118] sm:%s176]
                %196 = vst [vmem:[%s184 + $0x78] sm:%s176] %v195
                %v197 = vld [vmem:[%s183 + $0x150] sm:%s176]
                %198 = vst [vmem:[%s184 + $0x90] sm:%s176] %v197
                %v199 = vld [vmem:[%s183 + $0x188] sm:%s176]
                %200 = vst [vmem:[%s184 + $0xa8] sm:%s176] %v199
                %v201 = vld [vmem:[%s183 + $0x1c0] sm:%s176]
                %202 = vst [vmem:[%s184 + $0xc0] sm:%s176] %v201
                %v203 = vld [vmem:[%s183 + $0x1f8] sm:%s176]
                %204 = vst [vmem:[%s184 + $0xd8] sm:%s176] %v203
                %v205 = vld [vmem:[%s183 + $0x230] sm:%s176]
                %206 = vst [vmem:[%s184 + $0xf0] sm:%s176] %v205
                %v207 = vld [vmem:[%s183 + $0x268] sm:%s176]
                %208 = vst [vmem:[%s184 + $0x108] sm:%s176] %v207
                %v209 = vld [vmem:[%s183 + $0x2a0] sm:%s176]
                %210 = vst [vmem:[%s184 + $0x120] sm:%s176] %v209
                %v211 = vld [vmem:[%s183 + $0x2d8] sm:%s176]
                %212 = vst [vmem:[%s184 + $0x138] sm:%s176] %v211
                %v213 = vld [vmem:[%s183 + $0x310] sm:%s176]
                %214 = vst [vmem:[%s184 + $0x150] sm:%s176] %v213
                %v215 = vld [vmem:[%s183 + $0x348] sm:%s176]
                %216 = vst [vmem:[%s184 + $0x168] sm:%s176] %v215
                %v217 = vld [vmem:[%s183 + $0x380] sm:%s176]
                %218 = vst [vmem:[%s184 + $0x180] sm:%s176] %v217
                %v219 = vld [vmem:[%s183 + $0x3b8] sm:%s176]
                %220 = vst [vmem:[%s184 + $0x198] sm:%s176] %v219
                %v221 = vld [vmem:[%s183 + $0x3f0] sm:%s176]
                %222 = vst [vmem:[%s184 + $0x1b0] sm:%s176] %v221
                %v223 = vld [vmem:[%s183 + $0x428] sm:%s176]
                %224 = vst [vmem:[%s184 + $0x1c8] sm:%s176] %v223
                %v225 = vld [vmem:[%s183 + $0x460] sm:%s176]
                %226 = vst [vmem:[%s184 + $0x1e0] sm:%s176] %v225
                %v227 = vld [vmem:[%s183 + $0x498] sm:%s176]
                %228 = vst [vmem:[%s184 + $0x1f8] sm:%s176] %v227
                %v229 = vld [vmem:[%s183 + $0x4d0] sm:%s176]
                %230 = vst [vmem:[%s184 + $0x210] sm:%s176] %v229
                %v231 = vld [vmem:[%s183 + $0x508] sm:%s176]
                %232 = vst [vmem:[%s184 + $0x228] sm:%s176] %v231
                %v233 = vld [vmem:[%s183 + $0x540] sm:%s176]
                %234 = vst [vmem:[%s184 + $0x240] sm:%s176] %v233
                %v235 = vld [vmem:[%s183 + $0x578] sm:%s176]
                %236 = vst [vmem:[%s184 + $0x258] sm:%s176] %v235
                %v237 = vld [vmem:[%s183 + $0x5b0] sm:%s176]
                %238 = vst [vmem:[%s184 + $0x270] sm:%s176] %v237
                %v239 = vld [vmem:[%s183 + $0x5e8] sm:%s176]
                %240 = vst [vmem:[%s184 + $0x288] sm:%s176] %v239
                %v241 = vld [vmem:[%s183 + $0x620] sm:%s176]
                %242 = vst [vmem:[%s184 + $0x2a0] sm:%s176] %v241
                %v243 = vld [vmem:[%s183 + $0x658] sm:%s176]
                %244 = vst [vmem:[%s184 + $0x2b8] sm:%s176] %v243
                %v245 = vld [vmem:[%s183 + $0x690] sm:%s176]
                %246 = vst [vmem:[%s184 + $0x2d0] sm:%s176] %v245
                %v247 = vld [vmem:[%s183 + $0x6c8] sm:%s176]
                %248 = vst [vmem:[%s184 + $0x2e8] sm:%s176] %v247
                %v249 = vld [vmem:[%s183 + $0x700] sm:%s176]
                %250 = vst [vmem:[%s184 + $0x300] sm:%s176] %v249
                %v251 = vld [vmem:[%s183 + $0x738] sm:%s176]
                %252 = vst [vmem:[%s184 + $0x318] sm:%s176] %v251
                %v253 = vld [vmem:[%s183 + $0x770] sm:%s176]
                %254 = vst [vmem:[%s184 + $0x330] sm:%s176] %v253
                %v255 = vld [vmem:[%s183 + $0x7a8] sm:%s176]
                %256 = vst [vmem:[%s184 + $0x348] sm:%s176] %v255
                %v257 = vld [vmem:[%s183 + $0x7e0] sm:%s176]
                %258 = vst [vmem:[%s184 + $0x360] sm:%s176] %v257
                %v259 = vld [vmem:[%s183 + $0x818] sm:%s176]
                %260 = vst [vmem:[%s184 + $0x378] sm:%s176] %v259
                %v261 = vld [vmem:[%s183 + $0x850] sm:%s176]
                %262 = vst [vmem:[%s184 + $0x390] sm:%s176] %v261
                %v263 = vld [vmem:[%s183 + $0x888] sm:%s176]
                %264 = vst [vmem:[%s184 + $0x3a8] sm:%s176] %v263
                %v265 = vld [vmem:[%s183 + $0x8c0] sm:%s176]
                %266 = vst [vmem:[%s184 + $0x3c0] sm:%s176] %v265
                %v267 = vld [vmem:[%s183 + $0x8f8] sm:%s176]
                %268 = vst [vmem:[%s184 + $0x3d8] sm:%s176] %v267
                %v269 = vld [vmem:[%s183 + $0x930] sm:%s176]
                %270 = vst [vmem:[%s184 + $0x3f0] sm:%s176] %v269
                %v271 = vld [vmem:[%s183 + $0x968] sm:%s176]
                %272 = vst [vmem:[%s184 + $0x408] sm:%s176] %v271
                %v273 = vld [vmem:[%s183 + $0x9a0] sm:%s176]
                %274 = vst [vmem:[%s184 + $0x420] sm:%s176] %v273
                %v275 = vld [vmem:[%s183 + $0x9d8] sm:%s176]
                %276 = vst [vmem:[%s184 + $0x438] sm:%s176] %v275
                %v277 = vld [vmem:[%s183 + $0xa10] sm:%s176]
                %278 = vst [vmem:[%s184 + $0x450] sm:%s176] %v277
                %v279 = vld [vmem:[%s183 + $0xa48] sm:%s176]
                %280 = vst [vmem:[%s184 + $0x468] sm:%s176] %v279
                %v281 = vld [vmem:[%s183 + $0xa80] sm:%s176]
                %282 = vst [vmem:[%s184 + $0x480] sm:%s176] %v281
                %v283 = vld [vmem:[%s183 + $0xab8] sm:%s176]
                %284 = vst [vmem:[%s184 + $0x498] sm:%s176] %v283
                %v285 = vld [vmem:[%s183 + $0xaf0] sm:%s176]
                %286 = vst [vmem:[%s184 + $0x4b0] sm:%s176] %v285
                %v287 = vld [vmem:[%s183 + $0xb28] sm:%s176]
                %288 = vst [vmem:[%s184 + $0x4c8] sm:%s176] %v287
                %v289 = vld [vmem:[%s183 + $0xb60] sm:%s176]
                %290 = vst [vmem:[%s184 + $0x4e0] sm:%s176] %v289
                %v291 = vld [vmem:[%s183 + $0xb98] sm:%s176]
                %292 = vst [vmem:[%s184 + $0x4f8] sm:%s176] %v291
                %v293 = vld [vmem:[%s183 + $0xbd0] sm:%s176]
                %294 = vst [vmem:[%s184 + $0x510] sm:%s176] %v293
                %v295 = vld [vmem:[%s183 + $0xc08] sm:%s176]
                %296 = vst [vmem:[%s184 + $0x528] sm:%s176] %v295
                %v297 = vld [vmem:[%s183 + $0xc40] sm:%s176]
                %298 = vst [vmem:[%s184 + $0x540] sm:%s176] %v297
                %v299 = vld [vmem:[%s183 + $0xc78] sm:%s176]
                %300 = vst [vmem:[%s184 + $0x558] sm:%s176] %v299
                %v301 = vld [vmem:[%s183 + $0xcb0] sm:%s176]
                %302 = vst [vmem:[%s184 + $0x570] sm:%s176] %v301
                %v303 = vld [vmem:[%s183 + $0xce8] sm:%s176]
                %304 = vst [vmem:[%s184 + $0x588] sm:%s176] %v303
                %v305 = vld [vmem:[%s183 + $0xd20] sm:%s176]
                %306 = vst [vmem:[%s184 + $0x5a0] sm:%s176] %v305
                %v307 = vld [vmem:[%s183 + $0xd58] sm:%s176]
                %308 = vst [vmem:[%s184 + $0x5b8] sm:%s176] %v307
                %v309 = vld [vmem:[%s183 + $0xd90] sm:%s176]
                %310 = vst [vmem:[%s184 + $0x5d0] sm:%s176] %v309
                %v311 = vld [vmem:[%s183 + $0xdc8] sm:%s176]
                %312 = vst [vmem:[%s184 + $0x5e8] sm:%s176] %v311
                %v313 = vld [vmem:[%s183 + $0xe00] sm:%s176]
                %314 = vst [vmem:[%s184 + $0x600] sm:%s176] %v313
                %v315 = vld [vmem:[%s183 + $0xe38] sm:%s176]
                %316 = vst [vmem:[%s184 + $0x618] sm:%s176] %v315
                %v317 = vld [vmem:[%s183 + $0xe70] sm:%s176]
                %318 = vst [vmem:[%s184 + $0x630] sm:%s176] %v317
                %v319 = vld [vmem:[%s183 + $0xea8] sm:%s176]
                %320 = vst [vmem:[%s184 + $0x648] sm:%s176] %v319
                %v321 = vld [vmem:[%s183 + $0xee0] sm:%s176]
                %322 = vst [vmem:[%s184 + $0x660] sm:%s176] %v321
                %v323 = vld [vmem:[%s183 + $0xf18] sm:%s176]
                %324 = vst [vmem:[%s184 + $0x678] sm:%s176] %v323
                %v325 = vld [vmem:[%s183 + $0xf50] sm:%s176]
                %326 = vst [vmem:[%s184 + $0x690] sm:%s176] %v325
                %v327 = vld [vmem:[%s183 + $0xf88] sm:%s176]
                %328 = vst [vmem:[%s184 + $0x6a8] sm:%s176] %v327
                %v329 = vld [vmem:[%s183 + $0xfc0] sm:%s176]
                %330 = vst [vmem:[%s184 + $0x6c0] sm:%s176] %v329
                %v331 = vld [vmem:[%s183 + $0xff8] sm:%s176]
                %332 = vst [vmem:[%s184 + $0x6d8] sm:%s176] %v331
                %v333 = vld [vmem:[%s183 + $0x1030] sm:%s176]
                %334 = vst [vmem:[%s184 + $0x6f0] sm:%s176] %v333
                %v335 = vld [vmem:[%s183 + $0x1068] sm:%s176]
                %336 = vst [vmem:[%s184 + $0x708] sm:%s176] %v335
                %v337 = vld [vmem:[%s183 + $0x10a0] sm:%s176]
                %338 = vst [vmem:[%s184 + $0x720] sm:%s176] %v337
                %v339 = vld [vmem:[%s183 + $0x10d8] sm:%s176]
                %340 = vst [vmem:[%s184 + $0x738] sm:%s176] %v339
                %v341 = vld [vmem:[%s183 + $0x1110] sm:%s176]
                %342 = vst [vmem:[%s184 + $0x750] sm:%s176] %v341
                %v343 = vld [vmem:[%s183 + $0x1148] sm:%s176]
                %344 = vst [vmem:[%s184 + $0x768] sm:%s176] %v343
                %v345 = vld [vmem:[%s183 + $0x1180] sm:%s176]
                %346 = vst [vmem:[%s184 + $0x780] sm:%s176] %v345
                %v347 = vld [vmem:[%s183 + $0x11b8] sm:%s176]
                %348 = vst [vmem:[%s184 + $0x798] sm:%s176] %v347
                %v349 = vld [vmem:[%s183 + $0x11f0] sm:%s176]
                %350 = vst [vmem:[%s184 + $0x7b0] sm:%s176] %v349
                %v351 = vld [vmem:[%s183 + $0x1228] sm:%s176]
                %352 = vst [vmem:[%s184 + $0x7c8] sm:%s176] %v351
                %v353 = vld [vmem:[%s183 + $0x1260] sm:%s176]
                %354 = vst [vmem:[%s184 + $0x7e0] sm:%s176] %v353
                %v355 = vld [vmem:[%s183 + $0x1298] sm:%s176]
                %356 = vst [vmem:[%s184 + $0x7f8] sm:%s176] %v355
                %v357 = vld [vmem:[%s183 + $0x12d0] sm:%s176]
                %358 = vst [vmem:[%s184 + $0x810] sm:%s176] %v357
                %v359 = vld [vmem:[%s183 + $0x1308] sm:%s176]
                %360 = vst [vmem:[%s184 + $0x828] sm:%s176] %v359
                %v361 = vld [vmem:[%s183 + $0x1340] sm:%s176]
                %362 = vst [vmem:[%s184 + $0x840] sm:%s176] %v361
                %v363 = vld [vmem:[%s183 + $0x1378] sm:%s176]
                %364 = vst [vmem:[%s184 + $0x858] sm:%s176] %v363
                %v365 = vld [vmem:[%s183 + $0x13b0] sm:%s176]
                %366 = vst [vmem:[%s184 + $0x870] sm:%s176] %v365
                %v367 = vld [vmem:[%s183 + $0x13e8] sm:%s176]
                %368 = vst [vmem:[%s184 + $0x888] sm:%s176] %v367
                %v369 = vld [vmem:[%s183 + $0x1420] sm:%s176]
                %370 = vst [vmem:[%s184 + $0x8a0] sm:%s176] %v369
                %v371 = vld [vmem:[%s183 + $0x1458] sm:%s176]
                %372 = vst [vmem:[%s184 + $0x8b8] sm:%s176] %v371
                %v373 = vld [vmem:[%s183 + $0x1490] sm:%s176]
                %374 = vst [vmem:[%s184 + $0x8d0] sm:%s176] %v373
                %v375 = vld [vmem:[%s183 + $0x14c8] sm:%s176]
                %376 = vst [vmem:[%s184 + $0x8e8] sm:%s176] %v375
                %v377 = vld [vmem:[%s183 + $0x1500] sm:%s176]
                %378 = vst [vmem:[%s184 + $0x900] sm:%s176] %v377
                %v379 = vld [vmem:[%s183 + $0x1538] sm:%s176]
                %380 = vst [vmem:[%s184 + $0x918] sm:%s176] %v379
                %v381 = vld [vmem:[%s183 + $0x1570] sm:%s176]
                %382 = vst [vmem:[%s184 + $0x930] sm:%s176] %v381
                %v383 = vld [vmem:[%s183 + $0x15a8] sm:%s176]
                %384 = vst [vmem:[%s184 + $0x948] sm:%s176] %v383
                %v385 = vld [vmem:[%s183 + $0x15e0] sm:%s176]
                %386 = vst [vmem:[%s184 + $0x960] sm:%s176] %v385
                %v387 = vld [vmem:[%s183 + $0x1618] sm:%s176]
                %388 = vst [vmem:[%s184 + $0x978] sm:%s176] %v387
                %v389 = vld [vmem:[%s183 + $0x1650] sm:%s176]
                %390 = vst [vmem:[%s184 + $0x990] sm:%s176] %v389
                %v391 = vld [vmem:[%s183 + $0x1688] sm:%s176]
                %392 = vst [vmem:[%s184 + $0x9a8] sm:%s176] %v391
                %v393 = vld [vmem:[%s183 + $0x16c0] sm:%s176]
                %394 = vst [vmem:[%s184 + $0x9c0] sm:%s176] %v393
                %v395 = vld [vmem:[%s183 + $0x16f8] sm:%s176]
                %396 = vst [vmem:[%s184 + $0x9d8] sm:%s176] %v395
                %v397 = vld [vmem:[%s183 + $0x1730] sm:%s176]
                %398 = vst [vmem:[%s184 + $0x9f0] sm:%s176] %v397
                %v399 = vld [vmem:[%s183 + $0x1768] sm:%s176]
                %400 = vst [vmem:[%s184 + $0xa08] sm:%s176] %v399
                %v401 = vld [vmem:[%s183 + $0x17a0] sm:%s176]
                %402 = vst [vmem:[%s184 + $0xa20] sm:%s176] %v401
                %v403 = vld [vmem:[%s183 + $0x17d8] sm:%s176]
                %404 = vst [vmem:[%s184 + $0xa38] sm:%s176] %v403
                %v405 = vld [vmem:[%s183 + $0x1810] sm:%s176]
                %406 = vst [vmem:[%s184 + $0xa50] sm:%s176] %v405
                %v407 = vld [vmem:[%s183 + $0x1848] sm:%s176]
                %408 = vst [vmem:[%s184 + $0xa68] sm:%s176] %v407
                %v409 = vld [vmem:[%s183 + $0x1880] sm:%s176]
                %410 = vst [vmem:[%s184 + $0xa80] sm:%s176] %v409
                %v411 = vld [vmem:[%s183 + $0x18b8] sm:%s176]
                %412 = vst [vmem:[%s184 + $0xa98] sm:%s176] %v411
                %v413 = vld [vmem:[%s183 + $0x18f0] sm:%s176]
                %414 = vst [vmem:[%s184 + $0xab0] sm:%s176] %v413
                %v415 = vld [vmem:[%s183 + $0x1928] sm:%s176]
                %416 = vst [vmem:[%s184 + $0xac8] sm:%s176] %v415
                %v417 = vld [vmem:[%s183 + $0x1960] sm:%s176]
                %418 = vst [vmem:[%s184 + $0xae0] sm:%s176] %v417
                %v419 = vld [vmem:[%s183 + $0x1998] sm:%s176]
                %420 = vst [vmem:[%s184 + $0xaf8] sm:%s176] %v419
                %v421 = vld [vmem:[%s183 + $0x19d0] sm:%s176]
                %422 = vst [vmem:[%s184 + $0xb10] sm:%s176] %v421
                %v423 = vld [vmem:[%s183 + $0x1a08] sm:%s176]
                %424 = vst [vmem:[%s184 + $0xb28] sm:%s176] %v423
                %v425 = vld [vmem:[%s183 + $0x1a40] sm:%s176]
                %426 = vst [vmem:[%s184 + $0xb40] sm:%s176] %v425
                %v427 = vld [vmem:[%s183 + $0x1a78] sm:%s176]
                %428 = vst [vmem:[%s184 + $0xb58] sm:%s176] %v427
                %v429 = vld [vmem:[%s183 + $0x1ab0] sm:%s176]
                %430 = vst [vmem:[%s184 + $0xb70] sm:%s176] %v429
                %v431 = vld [vmem:[%s183 + $0x1ae8] sm:%s176]
                %432 = vst [vmem:[%s184 + $0xb88] sm:%s176] %v431
                %v433 = vld [vmem:[%s183 + $0x1b20] sm:%s176]
                %434 = vst [vmem:[%s184 + $0xba0] sm:%s176] %v433
                %v435 = vld [vmem:[%s183 + $0x1b58] sm:%s176]
                %436 = vst [vmem:[%s184 + $0xbb8] sm:%s176] %v435
                %v437 = vld [vmem:[%s183 + $0x1b90] sm:%s176]
                %438 = vst [vmem:[%s184 + $0xbd0] sm:%s176] %v437
                %v439 = vld [vmem:[%s183 + $0x1bc8] sm:%s176]
                %440 = vst [vmem:[%s184 + $0xbe8] sm:%s176] %v439
              $region41: #{tpu_custom_call.1} parent=35 // loop_footer
                %s182 = sadd.s32 1, %s178
              $region42: #{tpu_custom_call.1} parent=35 // loop_footer_branch
                %177 = sbr.rel target = $region38
              $region43: #{tpu_custom_call.1} parent=35 // loop_exit
                _
            $region36: #{tpu_custom_call.1} parent=27 // pred_fallthru
              _
          $region28: #{tpu_custom_call.1} parent=23 // pred_fallthru
            _
          %1269 = vnop
        $region24: #{tpu_custom_call.1} parent=19 // pred_fallthru
          _
        // Predicated region
        $region73: #{tpu_custom_call.1} parent=19 // pred_check
          %p1270 = pneg %p92
        $region74: #{tpu_custom_call.1} parent=19 // pred_check_branch
          %1272 = sbr.rel (%p1270) target = $region76
        $region75: #{tpu_custom_call.1} parent=19 // pred_region
          %s1273 = sand.u32 %s82, 1
          %s1274 = sand.u32 %s82, 1
          %s1275 = smul.addr %s1274, 3072
          %s1276 = scalar_lea.vmem [#allocation3], %s1275
          %s1277 = smul.u32 3, %s17
          %s1278 = ssub.s32 7, %s1277
          %p1279 = scmp.lt.s32.totalorder %s1278, 3
          %s1280 = scalar_select %p1279, %s1278, 3
          %s1281 = smul.u32 16384, %s1280
          %p1282 = scmp.ne.s32.totalorder 0, %s1281
          %s1283 = smul.addr %s16, 896
          %s1284 = sadd.s32 %s1277, %s1283
          %s1285 = smul.addr %s1284, 8
          %s1286 = scalar_lea.vmem %s2, %s1285
          %s1287 = smul.u32 %s1280, 8
          // Predicated region
          $region77: #{tpu_custom_call.1} parent=75 // pred_check
            %p1288 = pneg %p1282
          $region78: #{tpu_custom_call.1} parent=75 // pred_check_branch
            %1290 = sbr.rel (%p1288) target = $region80
          $region79: #{tpu_custom_call.1} parent=75 // pred_region
            %p1291 = scmp.lt.u32.totalorder %s1287, 8
            %p1292 = pneg %p1291
            // Predicated region
            $region81: #{tpu_custom_call.1} parent=79 // pred_check
              _
            $region82: #{tpu_custom_call.1} parent=79 // pred_check_branch
              %1294 = sbr.rel (%p1291) target = $region84
            $region83: #{tpu_custom_call.1} parent=79 // pred_region
              %s1563 = sand.u32 %s1287, 7
              %p1564 = scmp.eq.s32.totalorder %s1563, 0
              // Predicated region
              $region96: #{tpu_custom_call.1} parent=83 // pred_check
                %p1565 = pneg %p1564
              $region97: #{tpu_custom_call.1} parent=83 // pred_check_branch
                %1567 = sbr.rel (%p1565) target = $region99
              $region98: #{tpu_custom_call.1} parent=83 // pred_region
                %s1568 = sshrl.u32 %s1287, 3
                // While loop
                $region100: #{tpu_custom_call.1} parent=98 // loop_pre_header
                  _
                $region101: #{tpu_custom_call.1} parent=98 // loop_header
                  %s1572 = sphi 0, %s1574
                  %p1573 = scmp.ge.s32.totalorder %s1572, %s1568
                  %s1577 = sphi 0, %s1838
                  %s1578 = sphi %s1286, %s1841
                  %s1579 = sphi %s1276, %s1842
                $region102: #{tpu_custom_call.1} parent=98 // loop_header_branch
                  %1576 = sbr.rel (%p1573) target = $region106
                $region103: #{tpu_custom_call.1} parent=98 // loop_body
                  %v1580 = vld [vmem:[%s1578] sm:$0xff]
                  %1581 = vst [vmem:[%s1579] sm:$0xff] %v1580
                  %v1582 = vld [vmem:[%s1578 + $0x38] sm:$0xff]
                  %1583 = vst [vmem:[%s1579 + $0x18] sm:$0xff] %v1582
                  %v1584 = vld [vmem:[%s1578 + $0x70] sm:$0xff]
                  %1585 = vst [vmem:[%s1579 + $0x30] sm:$0xff] %v1584
                  %v1586 = vld [vmem:[%s1578 + $0xa8] sm:$0xff]
                  %1587 = vst [vmem:[%s1579 + $0x48] sm:$0xff] %v1586
                  %v1588 = vld [vmem:[%s1578 + $0xe0] sm:$0xff]
                  %1589 = vst [vmem:[%s1579 + $0x60] sm:$0xff] %v1588
                  %v1590 = vld [vmem:[%s1578 + $0x118] sm:$0xff]
                  %1591 = vst [vmem:[%s1579 + $0x78] sm:$0xff] %v1590
                  %v1592 = vld [vmem:[%s1578 + $0x150] sm:$0xff]
                  %1593 = vst [vmem:[%s1579 + $0x90] sm:$0xff] %v1592
                  %v1594 = vld [vmem:[%s1578 + $0x188] sm:$0xff]
                  %1595 = vst [vmem:[%s1579 + $0xa8] sm:$0xff] %v1594
                  %v1596 = vld [vmem:[%s1578 + $0x1c0] sm:$0xff]
                  %1597 = vst [vmem:[%s1579 + $0xc0] sm:$0xff] %v1596
                  %v1598 = vld [vmem:[%s1578 + $0x1f8] sm:$0xff]
                  %1599 = vst [vmem:[%s1579 + $0xd8] sm:$0xff] %v1598
                  %v1600 = vld [vmem:[%s1578 + $0x230] sm:$0xff]
                  %1601 = vst [vmem:[%s1579 + $0xf0] sm:$0xff] %v1600
                  %v1602 = vld [vmem:[%s1578 + $0x268] sm:$0xff]
                  %1603 = vst [vmem:[%s1579 + $0x108] sm:$0xff] %v1602
                  %v1604 = vld [vmem:[%s1578 + $0x2a0] sm:$0xff]
                  %1605 = vst [vmem:[%s1579 + $0x120] sm:$0xff] %v1604
                  %v1606 = vld [vmem:[%s1578 + $0x2d8] sm:$0xff]
                  %1607 = vst [vmem:[%s1579 + $0x138] sm:$0xff] %v1606
                  %v1608 = vld [vmem:[%s1578 + $0x310] sm:$0xff]
                  %1609 = vst [vmem:[%s1579 + $0x150] sm:$0xff] %v1608
                  %v1610 = vld [vmem:[%s1578 + $0x348] sm:$0xff]
                  %1611 = vst [vmem:[%s1579 + $0x168] sm:$0xff] %v1610
                  %v1612 = vld [vmem:[%s1578 + $0x380] sm:$0xff]
                  %1613 = vst [vmem:[%s1579 + $0x180] sm:$0xff] %v1612
                  %v1614 = vld [vmem:[%s1578 + $0x3b8] sm:$0xff]
                  %1615 = vst [vmem:[%s1579 + $0x198] sm:$0xff] %v1614
                  %v1616 = vld [vmem:[%s1578 + $0x3f0] sm:$0xff]
                  %1617 = vst [vmem:[%s1579 + $0x1b0] sm:$0xff] %v1616
                  %v1618 = vld [vmem:[%s1578 + $0x428] sm:$0xff]
                  %1619 = vst [vmem:[%s1579 + $0x1c8] sm:$0xff] %v1618
                  %v1620 = vld [vmem:[%s1578 + $0x460] sm:$0xff]
                  %1621 = vst [vmem:[%s1579 + $0x1e0] sm:$0xff] %v1620
                  %v1622 = vld [vmem:[%s1578 + $0x498] sm:$0xff]
                  %1623 = vst [vmem:[%s1579 + $0x1f8] sm:$0xff] %v1622
                  %v1624 = vld [vmem:[%s1578 + $0x4d0] sm:$0xff]
                  %1625 = vst [vmem:[%s1579 + $0x210] sm:$0xff] %v1624
                  %v1626 = vld [vmem:[%s1578 + $0x508] sm:$0xff]
                  %1627 = vst [vmem:[%s1579 + $0x228] sm:$0xff] %v1626
                  %v1628 = vld [vmem:[%s1578 + $0x540] sm:$0xff]
                  %1629 = vst [vmem:[%s1579 + $0x240] sm:$0xff] %v1628
                  %v1630 = vld [vmem:[%s1578 + $0x578] sm:$0xff]
                  %1631 = vst [vmem:[%s1579 + $0x258] sm:$0xff] %v1630
                  %v1632 = vld [vmem:[%s1578 + $0x5b0] sm:$0xff]
                  %1633 = vst [vmem:[%s1579 + $0x270] sm:$0xff] %v1632
                  %v1634 = vld [vmem:[%s1578 + $0x5e8] sm:$0xff]
                  %1635 = vst [vmem:[%s1579 + $0x288] sm:$0xff] %v1634
                  %v1636 = vld [vmem:[%s1578 + $0x620] sm:$0xff]
                  %1637 = vst [vmem:[%s1579 + $0x2a0] sm:$0xff] %v1636
                  %v1638 = vld [vmem:[%s1578 + $0x658] sm:$0xff]
                  %1639 = vst [vmem:[%s1579 + $0x2b8] sm:$0xff] %v1638
                  %v1640 = vld [vmem:[%s1578 + $0x690] sm:$0xff]
                  %1641 = vst [vmem:[%s1579 + $0x2d0] sm:$0xff] %v1640
                  %v1642 = vld [vmem:[%s1578 + $0x6c8] sm:$0xff]
                  %1643 = vst [vmem:[%s1579 + $0x2e8] sm:$0xff] %v1642
                  %v1644 = vld [vmem:[%s1578 + $0x700] sm:$0xff]
                  %1645 = vst [vmem:[%s1579 + $0x300] sm:$0xff] %v1644
                  %v1646 = vld [vmem:[%s1578 + $0x738] sm:$0xff]
                  %1647 = vst [vmem:[%s1579 + $0x318] sm:$0xff] %v1646
                  %v1648 = vld [vmem:[%s1578 + $0x770] sm:$0xff]
                  %1649 = vst [vmem:[%s1579 + $0x330] sm:$0xff] %v1648
                  %v1650 = vld [vmem:[%s1578 + $0x7a8] sm:$0xff]
                  %1651 = vst [vmem:[%s1579 + $0x348] sm:$0xff] %v1650
                  %v1652 = vld [vmem:[%s1578 + $0x7e0] sm:$0xff]
                  %1653 = vst [vmem:[%s1579 + $0x360] sm:$0xff] %v1652
                  %v1654 = vld [vmem:[%s1578 + $0x818] sm:$0xff]
                  %1655 = vst [vmem:[%s1579 + $0x378] sm:$0xff] %v1654
                  %v1656 = vld [vmem:[%s1578 + $0x850] sm:$0xff]
                  %1657 = vst [vmem:[%s1579 + $0x390] sm:$0xff] %v1656
                  %v1658 = vld [vmem:[%s1578 + $0x888] sm:$0xff]
                  %1659 = vst [vmem:[%s1579 + $0x3a8] sm:$0xff] %v1658
                  %v1660 = vld [vmem:[%s1578 + $0x8c0] sm:$0xff]
                  %1661 = vst [vmem:[%s1579 + $0x3c0] sm:$0xff] %v1660
                  %v1662 = vld [vmem:[%s1578 + $0x8f8] sm:$0xff]
                  %1663 = vst [vmem:[%s1579 + $0x3d8] sm:$0xff] %v1662
                  %v1664 = vld [vmem:[%s1578 + $0x930] sm:$0xff]
                  %1665 = vst [vmem:[%s1579 + $0x3f0] sm:$0xff] %v1664
                  %v1666 = vld [vmem:[%s1578 + $0x968] sm:$0xff]
                  %1667 = vst [vmem:[%s1579 + $0x408] sm:$0xff] %v1666
                  %v1668 = vld [vmem:[%s1578 + $0x9a0] sm:$0xff]
                  %1669 = vst [vmem:[%s1579 + $0x420] sm:$0xff] %v1668
                  %v1670 = vld [vmem:[%s1578 + $0x9d8] sm:$0xff]
                  %1671 = vst [vmem:[%s1579 + $0x438] sm:$0xff] %v1670
                  %v1672 = vld [vmem:[%s1578 + $0xa10] sm:$0xff]
                  %1673 = vst [vmem:[%s1579 + $0x450] sm:$0xff] %v1672
                  %v1674 = vld [vmem:[%s1578 + $0xa48] sm:$0xff]
                  %1675 = vst [vmem:[%s1579 + $0x468] sm:$0xff] %v1674
                  %v1676 = vld [vmem:[%s1578 + $0xa80] sm:$0xff]
                  %1677 = vst [vmem:[%s1579 + $0x480] sm:$0xff] %v1676
                  %v1678 = vld [vmem:[%s1578 + $0xab8] sm:$0xff]
                  %1679 = vst [vmem:[%s1579 + $0x498] sm:$0xff] %v1678
                  %v1680 = vld [vmem:[%s1578 + $0xaf0] sm:$0xff]
                  %1681 = vst [vmem:[%s1579 + $0x4b0] sm:$0xff] %v1680
                  %v1682 = vld [vmem:[%s1578 + $0xb28] sm:$0xff]
                  %1683 = vst [vmem:[%s1579 + $0x4c8] sm:$0xff] %v1682
                  %v1684 = vld [vmem:[%s1578 + $0xb60] sm:$0xff]
                  %1685 = vst [vmem:[%s1579 + $0x4e0] sm:$0xff] %v1684
                  %v1686 = vld [vmem:[%s1578 + $0xb98] sm:$0xff]
                  %1687 = vst [vmem:[%s1579 + $0x4f8] sm:$0xff] %v1686
                  %v1688 = vld [vmem:[%s1578 + $0xbd0] sm:$0xff]
                  %1689 = vst [vmem:[%s1579 + $0x510] sm:$0xff] %v1688
                  %v1690 = vld [vmem:[%s1578 + $0xc08] sm:$0xff]
                  %1691 = vst [vmem:[%s1579 + $0x528] sm:$0xff] %v1690
                  %v1692 = vld [vmem:[%s1578 + $0xc40] sm:$0xff]
                  %1693 = vst [vmem:[%s1579 + $0x540] sm:$0xff] %v1692
                  %v1694 = vld [vmem:[%s1578 + $0xc78] sm:$0xff]
                  %1695 = vst [vmem:[%s1579 + $0x558] sm:$0xff] %v1694
                  %v1696 = vld [vmem:[%s1578 + $0xcb0] sm:$0xff]
                  %1697 = vst [vmem:[%s1579 + $0x570] sm:$0xff] %v1696
                  %v1698 = vld [vmem:[%s1578 + $0xce8] sm:$0xff]
                  %1699 = vst [vmem:[%s1579 + $0x588] sm:$0xff] %v1698
                  %v1700 = vld [vmem:[%s1578 + $0xd20] sm:$0xff]
                  %1701 = vst [vmem:[%s1579 + $0x5a0] sm:$0xff] %v1700
                  %v1702 = vld [vmem:[%s1578 + $0xd58] sm:$0xff]
                  %1703 = vst [vmem:[%s1579 + $0x5b8] sm:$0xff] %v1702
                  %v1704 = vld [vmem:[%s1578 + $0xd90] sm:$0xff]
                  %1705 = vst [vmem:[%s1579 + $0x5d0] sm:$0xff] %v1704
                  %v1706 = vld [vmem:[%s1578 + $0xdc8] sm:$0xff]
                  %1707 = vst [vmem:[%s1579 + $0x5e8] sm:$0xff] %v1706
                  %v1708 = vld [vmem:[%s1578 + $0xe00] sm:$0xff]
                  %1709 = vst [vmem:[%s1579 + $0x600] sm:$0xff] %v1708
                  %v1710 = vld [vmem:[%s1578 + $0xe38] sm:$0xff]
                  %1711 = vst [vmem:[%s1579 + $0x618] sm:$0xff] %v1710
                  %v1712 = vld [vmem:[%s1578 + $0xe70] sm:$0xff]
                  %1713 = vst [vmem:[%s1579 + $0x630] sm:$0xff] %v1712
                  %v1714 = vld [vmem:[%s1578 + $0xea8] sm:$0xff]
                  %1715 = vst [vmem:[%s1579 + $0x648] sm:$0xff] %v1714
                  %v1716 = vld [vmem:[%s1578 + $0xee0] sm:$0xff]
                  %1717 = vst [vmem:[%s1579 + $0x660] sm:$0xff] %v1716
                  %v1718 = vld [vmem:[%s1578 + $0xf18] sm:$0xff]
                  %1719 = vst [vmem:[%s1579 + $0x678] sm:$0xff] %v1718
                  %v1720 = vld [vmem:[%s1578 + $0xf50] sm:$0xff]
                  %1721 = vst [vmem:[%s1579 + $0x690] sm:$0xff] %v1720
                  %v1722 = vld [vmem:[%s1578 + $0xf88] sm:$0xff]
                  %1723 = vst [vmem:[%s1579 + $0x6a8] sm:$0xff] %v1722
                  %v1724 = vld [vmem:[%s1578 + $0xfc0] sm:$0xff]
                  %1725 = vst [vmem:[%s1579 + $0x6c0] sm:$0xff] %v1724
                  %v1726 = vld [vmem:[%s1578 + $0xff8] sm:$0xff]
                  %1727 = vst [vmem:[%s1579 + $0x6d8] sm:$0xff] %v1726
                  %v1728 = vld [vmem:[%s1578 + $0x1030] sm:$0xff]
                  %1729 = vst [vmem:[%s1579 + $0x6f0] sm:$0xff] %v1728
                  %v1730 = vld [vmem:[%s1578 + $0x1068] sm:$0xff]
                  %1731 = vst [vmem:[%s1579 + $0x708] sm:$0xff] %v1730
                  %v1732 = vld [vmem:[%s1578 + $0x10a0] sm:$0xff]
                  %1733 = vst [vmem:[%s1579 + $0x720] sm:$0xff] %v1732
                  %v1734 = vld [vmem:[%s1578 + $0x10d8] sm:$0xff]
                  %1735 = vst [vmem:[%s1579 + $0x738] sm:$0xff] %v1734
                  %v1736 = vld [vmem:[%s1578 + $0x1110] sm:$0xff]
                  %1737 = vst [vmem:[%s1579 + $0x750] sm:$0xff] %v1736
                  %v1738 = vld [vmem:[%s1578 + $0x1148] sm:$0xff]
                  %1739 = vst [vmem:[%s1579 + $0x768] sm:$0xff] %v1738
                  %v1740 = vld [vmem:[%s1578 + $0x1180] sm:$0xff]
                  %1741 = vst [vmem:[%s1579 + $0x780] sm:$0xff] %v1740
                  %v1742 = vld [vmem:[%s1578 + $0x11b8] sm:$0xff]
                  %1743 = vst [vmem:[%s1579 + $0x798] sm:$0xff] %v1742
                  %v1744 = vld [vmem:[%s1578 + $0x11f0] sm:$0xff]
                  %1745 = vst [vmem:[%s1579 + $0x7b0] sm:$0xff] %v1744
                  %v1746 = vld [vmem:[%s1578 + $0x1228] sm:$0xff]
                  %1747 = vst [vmem:[%s1579 + $0x7c8] sm:$0xff] %v1746
                  %v1748 = vld [vmem:[%s1578 + $0x1260] sm:$0xff]
                  %1749 = vst [vmem:[%s1579 + $0x7e0] sm:$0xff] %v1748
                  %v1750 = vld [vmem:[%s1578 + $0x1298] sm:$0xff]
                  %1751 = vst [vmem:[%s1579 + $0x7f8] sm:$0xff] %v1750
                  %v1752 = vld [vmem:[%s1578 + $0x12d0] sm:$0xff]
                  %1753 = vst [vmem:[%s1579 + $0x810] sm:$0xff] %v1752
                  %v1754 = vld [vmem:[%s1578 + $0x1308] sm:$0xff]
                  %1755 = vst [vmem:[%s1579 + $0x828] sm:$0xff] %v1754
                  %v1756 = vld [vmem:[%s1578 + $0x1340] sm:$0xff]
                  %1757 = vst [vmem:[%s1579 + $0x840] sm:$0xff] %v1756
                  %v1758 = vld [vmem:[%s1578 + $0x1378] sm:$0xff]
                  %1759 = vst [vmem:[%s1579 + $0x858] sm:$0xff] %v1758
                  %v1760 = vld [vmem:[%s1578 + $0x13b0] sm:$0xff]
                  %1761 = vst [vmem:[%s1579 + $0x870] sm:$0xff] %v1760
                  %v1762 = vld [vmem:[%s1578 + $0x13e8] sm:$0xff]
                  %1763 = vst [vmem:[%s1579 + $0x888] sm:$0xff] %v1762
                  %v1764 = vld [vmem:[%s1578 + $0x1420] sm:$0xff]
                  %1765 = vst [vmem:[%s1579 + $0x8a0] sm:$0xff] %v1764
                  %v1766 = vld [vmem:[%s1578 + $0x1458] sm:$0xff]
                  %1767 = vst [vmem:[%s1579 + $0x8b8] sm:$0xff] %v1766
                  %v1768 = vld [vmem:[%s1578 + $0x1490] sm:$0xff]
                  %1769 = vst [vmem:[%s1579 + $0x8d0] sm:$0xff] %v1768
                  %v1770 = vld [vmem:[%s1578 + $0x14c8] sm:$0xff]
                  %1771 = vst [vmem:[%s1579 + $0x8e8] sm:$0xff] %v1770
                  %v1772 = vld [vmem:[%s1578 + $0x1500] sm:$0xff]
                  %1773 = vst [vmem:[%s1579 + $0x900] sm:$0xff] %v1772
                  %v1774 = vld [vmem:[%s1578 + $0x1538] sm:$0xff]
                  %1775 = vst [vmem:[%s1579 + $0x918] sm:$0xff] %v1774
                  %v1776 = vld [vmem:[%s1578 + $0x1570] sm:$0xff]
                  %1777 = vst [vmem:[%s1579 + $0x930] sm:$0xff] %v1776
                  %v1778 = vld [vmem:[%s1578 + $0x15a8] sm:$0xff]
                  %1779 = vst [vmem:[%s1579 + $0x948] sm:$0xff] %v1778
                  %v1780 = vld [vmem:[%s1578 + $0x15e0] sm:$0xff]
                  %1781 = vst [vmem:[%s1579 + $0x960] sm:$0xff] %v1780
                  %v1782 = vld [vmem:[%s1578 + $0x1618] sm:$0xff]
                  %1783 = vst [vmem:[%s1579 + $0x978] sm:$0xff] %v1782
                  %v1784 = vld [vmem:[%s1578 + $0x1650] sm:$0xff]
                  %1785 = vst [vmem:[%s1579 + $0x990] sm:$0xff] %v1784
                  %v1786 = vld [vmem:[%s1578 + $0x1688] sm:$0xff]
                  %1787 = vst [vmem:[%s1579 + $0x9a8] sm:$0xff] %v1786
                  %v1788 = vld [vmem:[%s1578 + $0x16c0] sm:$0xff]
                  %1789 = vst [vmem:[%s1579 + $0x9c0] sm:$0xff] %v1788
                  %v1790 = vld [vmem:[%s1578 + $0x16f8] sm:$0xff]
                  %1791 = vst [vmem:[%s1579 + $0x9d8] sm:$0xff] %v1790
                  %v1792 = vld [vmem:[%s1578 + $0x1730] sm:$0xff]
                  %1793 = vst [vmem:[%s1579 + $0x9f0] sm:$0xff] %v1792
                  %v1794 = vld [vmem:[%s1578 + $0x1768] sm:$0xff]
                  %1795 = vst [vmem:[%s1579 + $0xa08] sm:$0xff] %v1794
                  %v1796 = vld [vmem:[%s1578 + $0x17a0] sm:$0xff]
                  %1797 = vst [vmem:[%s1579 + $0xa20] sm:$0xff] %v1796
                  %v1798 = vld [vmem:[%s1578 + $0x17d8] sm:$0xff]
                  %1799 = vst [vmem:[%s1579 + $0xa38] sm:$0xff] %v1798
                  %v1800 = vld [vmem:[%s1578 + $0x1810] sm:$0xff]
                  %1801 = vst [vmem:[%s1579 + $0xa50] sm:$0xff] %v1800
                  %v1802 = vld [vmem:[%s1578 + $0x1848] sm:$0xff]
                  %1803 = vst [vmem:[%s1579 + $0xa68] sm:$0xff] %v1802
                  %v1804 = vld [vmem:[%s1578 + $0x1880] sm:$0xff]
                  %1805 = vst [vmem:[%s1579 + $0xa80] sm:$0xff] %v1804
                  %v1806 = vld [vmem:[%s1578 + $0x18b8] sm:$0xff]
                  %1807 = vst [vmem:[%s1579 + $0xa98] sm:$0xff] %v1806
                  %v1808 = vld [vmem:[%s1578 + $0x18f0] sm:$0xff]
                  %1809 = vst [vmem:[%s1579 + $0xab0] sm:$0xff] %v1808
                  %v1810 = vld [vmem:[%s1578 + $0x1928] sm:$0xff]
                  %1811 = vst [vmem:[%s1579 + $0xac8] sm:$0xff] %v1810
                  %v1812 = vld [vmem:[%s1578 + $0x1960] sm:$0xff]
                  %1813 = vst [vmem:[%s1579 + $0xae0] sm:$0xff] %v1812
                  %v1814 = vld [vmem:[%s1578 + $0x1998] sm:$0xff]
                  %1815 = vst [vmem:[%s1579 + $0xaf8] sm:$0xff] %v1814
                  %v1816 = vld [vmem:[%s1578 + $0x19d0] sm:$0xff]
                  %1817 = vst [vmem:[%s1579 + $0xb10] sm:$0xff] %v1816
                  %v1818 = vld [vmem:[%s1578 + $0x1a08] sm:$0xff]
                  %1819 = vst [vmem:[%s1579 + $0xb28] sm:$0xff] %v1818
                  %v1820 = vld [vmem:[%s1578 + $0x1a40] sm:$0xff]
                  %1821 = vst [vmem:[%s1579 + $0xb40] sm:$0xff] %v1820
                  %v1822 = vld [vmem:[%s1578 + $0x1a78] sm:$0xff]
                  %1823 = vst [vmem:[%s1579 + $0xb58] sm:$0xff] %v1822
                  %v1824 = vld [vmem:[%s1578 + $0x1ab0] sm:$0xff]
                  %1825 = vst [vmem:[%s1579 + $0xb70] sm:$0xff] %v1824
                  %v1826 = vld [vmem:[%s1578 + $0x1ae8] sm:$0xff]
                  %1827 = vst [vmem:[%s1579 + $0xb88] sm:$0xff] %v1826
                  %v1828 = vld [vmem:[%s1578 + $0x1b20] sm:$0xff]
                  %1829 = vst [vmem:[%s1579 + $0xba0] sm:$0xff] %v1828
                  %v1830 = vld [vmem:[%s1578 + $0x1b58] sm:$0xff]
                  %1831 = vst [vmem:[%s1579 + $0xbb8] sm:$0xff] %v1830
                  %v1832 = vld [vmem:[%s1578 + $0x1b90] sm:$0xff]
                  %1833 = vst [vmem:[%s1579 + $0xbd0] sm:$0xff] %v1832
                  %v1834 = vld [vmem:[%s1578 + $0x1bc8] sm:$0xff]
                  %1835 = vst [vmem:[%s1579 + $0xbe8] sm:$0xff] %v1834
                  %s1836 = sadd.s32 1, %s1577
                  %p1837 = scmp.ge.s32.totalorder %s1836, %s1568
                  %s1838 = scalar_select %p1837, 0, %s1836
                  %s1839 = smul.u32 %s1838, 8
                  %s1840 = smul.u32 %s1838, 8
                  %s1841 = scalar_lea.vmem %s1286, %s1839
                  %s1842 = scalar_lea.vmem %s1276, %s1840 [#allocation3]
                $region104: #{tpu_custom_call.1} parent=98 // loop_footer
                  %s1574 = sadd.s32 %s1572, 1
                $region105: #{tpu_custom_call.1} parent=98 // loop_footer_branch
                  %1571 = sbr.rel target = $region101
                $region106: #{tpu_custom_call.1} parent=98 // loop_exit
                  _
              $region99: #{tpu_custom_call.1} parent=83 // pred_fallthru
                _
              %p1843 = pneg %p1564
              // Predicated region
              $region107: #{tpu_custom_call.1} parent=83 // pred_check
                _
              $region108: #{tpu_custom_call.1} parent=83 // pred_check_branch
                %1845 = sbr.rel (%p1564) target = $region110
              $region109: #{tpu_custom_call.1} parent=83 // pred_region
                %s1846 = sand.u32 %s1287, 7
                %s1847 = ssub.s32 %s1287, %s1846
                %s1848 = scalar_lea.vmem %s1286, %s1847
                %s1849 = ssub.s32 %s1287, %s1846
                %s1850 = scalar_lea.vmem %s1276, %s1849 [#allocation3]
                %s1851 = sshrl.u32 %s1287, 3
                // While loop
                $region111: #{tpu_custom_call.1} parent=109 // loop_pre_header
                  _
                $region112: #{tpu_custom_call.1} parent=109 // loop_header
                  %s1855 = sphi 0, %s1857
                  %p1856 = scmp.ge.s32.totalorder %s1855, %s1851
                  %s1860 = sphi 0, %s2121
                  %s1861 = sphi %s1286, %s2124
                  %s1862 = sphi %s1276, %s2125
                $region113: #{tpu_custom_call.1} parent=109 // loop_header_branch
                  %1859 = sbr.rel (%p1856) target = $region117
                $region114: #{tpu_custom_call.1} parent=109 // loop_body
                  %v1863 = vld [vmem:[%s1861] sm:$0xff]
                  %1864 = vst [vmem:[%s1862] sm:$0xff] %v1863
                  %v1865 = vld [vmem:[%s1861 + $0x38] sm:$0xff]
                  %1866 = vst [vmem:[%s1862 + $0x18] sm:$0xff] %v1865
                  %v1867 = vld [vmem:[%s1861 + $0x70] sm:$0xff]
                  %1868 = vst [vmem:[%s1862 + $0x30] sm:$0xff] %v1867
                  %v1869 = vld [vmem:[%s1861 + $0xa8] sm:$0xff]
                  %1870 = vst [vmem:[%s1862 + $0x48] sm:$0xff] %v1869
                  %v1871 = vld [vmem:[%s1861 + $0xe0] sm:$0xff]
                  %1872 = vst [vmem:[%s1862 + $0x60] sm:$0xff] %v1871
                  %v1873 = vld [vmem:[%s1861 + $0x118] sm:$0xff]
                  %1874 = vst [vmem:[%s1862 + $0x78] sm:$0xff] %v1873
                  %v1875 = vld [vmem:[%s1861 + $0x150] sm:$0xff]
                  %1876 = vst [vmem:[%s1862 + $0x90] sm:$0xff] %v1875
                  %v1877 = vld [vmem:[%s1861 + $0x188] sm:$0xff]
                  %1878 = vst [vmem:[%s1862 + $0xa8] sm:$0xff] %v1877
                  %v1879 = vld [vmem:[%s1861 + $0x1c0] sm:$0xff]
                  %1880 = vst [vmem:[%s1862 + $0xc0] sm:$0xff] %v1879
                  %v1881 = vld [vmem:[%s1861 + $0x1f8] sm:$0xff]
                  %1882 = vst [vmem:[%s1862 + $0xd8] sm:$0xff] %v1881
                  %v1883 = vld [vmem:[%s1861 + $0x230] sm:$0xff]
                  %1884 = vst [vmem:[%s1862 + $0xf0] sm:$0xff] %v1883
                  %v1885 = vld [vmem:[%s1861 + $0x268] sm:$0xff]
                  %1886 = vst [vmem:[%s1862 + $0x108] sm:$0xff] %v1885
                  %v1887 = vld [vmem:[%s1861 + $0x2a0] sm:$0xff]
                  %1888 = vst [vmem:[%s1862 + $0x120] sm:$0xff] %v1887
                  %v1889 = vld [vmem:[%s1861 + $0x2d8] sm:$0xff]
                  %1890 = vst [vmem:[%s1862 + $0x138] sm:$0xff] %v1889
                  %v1891 = vld [vmem:[%s1861 + $0x310] sm:$0xff]
                  %1892 = vst [vmem:[%s1862 + $0x150] sm:$0xff] %v1891
                  %v1893 = vld [vmem:[%s1861 + $0x348] sm:$0xff]
                  %1894 = vst [vmem:[%s1862 + $0x168] sm:$0xff] %v1893
                  %v1895 = vld [vmem:[%s1861 + $0x380] sm:$0xff]
                  %1896 = vst [vmem:[%s1862 + $0x180] sm:$0xff] %v1895
                  %v1897 = vld [vmem:[%s1861 + $0x3b8] sm:$0xff]
                  %1898 = vst [vmem:[%s1862 + $0x198] sm:$0xff] %v1897
                  %v1899 = vld [vmem:[%s1861 + $0x3f0] sm:$0xff]
                  %1900 = vst [vmem:[%s1862 + $0x1b0] sm:$0xff] %v1899
                  %v1901 = vld [vmem:[%s1861 + $0x428] sm:$0xff]
                  %1902 = vst [vmem:[%s1862 + $0x1c8] sm:$0xff] %v1901
                  %v1903 = vld [vmem:[%s1861 + $0x460] sm:$0xff]
                  %1904 = vst [vmem:[%s1862 + $0x1e0] sm:$0xff] %v1903
                  %v1905 = vld [vmem:[%s1861 + $0x498] sm:$0xff]
                  %1906 = vst [vmem:[%s1862 + $0x1f8] sm:$0xff] %v1905
                  %v1907 = vld [vmem:[%s1861 + $0x4d0] sm:$0xff]
                  %1908 = vst [vmem:[%s1862 + $0x210] sm:$0xff] %v1907
                  %v1909 = vld [vmem:[%s1861 + $0x508] sm:$0xff]
                  %1910 = vst [vmem:[%s1862 + $0x228] sm:$0xff] %v1909
                  %v1911 = vld [vmem:[%s1861 + $0x540] sm:$0xff]
                  %1912 = vst [vmem:[%s1862 + $0x240] sm:$0xff] %v1911
                  %v1913 = vld [vmem:[%s1861 + $0x578] sm:$0xff]
                  %1914 = vst [vmem:[%s1862 + $0x258] sm:$0xff] %v1913
                  %v1915 = vld [vmem:[%s1861 + $0x5b0] sm:$0xff]
                  %1916 = vst [vmem:[%s1862 + $0x270] sm:$0xff] %v1915
                  %v1917 = vld [vmem:[%s1861 + $0x5e8] sm:$0xff]
                  %1918 = vst [vmem:[%s1862 + $0x288] sm:$0xff] %v1917
                  %v1919 = vld [vmem:[%s1861 + $0x620] sm:$0xff]
                  %1920 = vst [vmem:[%s1862 + $0x2a0] sm:$0xff] %v1919
                  %v1921 = vld [vmem:[%s1861 + $0x658] sm:$0xff]
                  %1922 = vst [vmem:[%s1862 + $0x2b8] sm:$0xff] %v1921
                  %v1923 = vld [vmem:[%s1861 + $0x690] sm:$0xff]
                  %1924 = vst [vmem:[%s1862 + $0x2d0] sm:$0xff] %v1923
                  %v1925 = vld [vmem:[%s1861 + $0x6c8] sm:$0xff]
                  %1926 = vst [vmem:[%s1862 + $0x2e8] sm:$0xff] %v1925
                  %v1927 = vld [vmem:[%s1861 + $0x700] sm:$0xff]
                  %1928 = vst [vmem:[%s1862 + $0x300] sm:$0xff] %v1927
                  %v1929 = vld [vmem:[%s1861 + $0x738] sm:$0xff]
                  %1930 = vst [vmem:[%s1862 + $0x318] sm:$0xff] %v1929
                  %v1931 = vld [vmem:[%s1861 + $0x770] sm:$0xff]
                  %1932 = vst [vmem:[%s1862 + $0x330] sm:$0xff] %v1931
                  %v1933 = vld [vmem:[%s1861 + $0x7a8] sm:$0xff]
                  %1934 = vst [vmem:[%s1862 + $0x348] sm:$0xff] %v1933
                  %v1935 = vld [vmem:[%s1861 + $0x7e0] sm:$0xff]
                  %1936 = vst [vmem:[%s1862 + $0x360] sm:$0xff] %v1935
                  %v1937 = vld [vmem:[%s1861 + $0x818] sm:$0xff]
                  %1938 = vst [vmem:[%s1862 + $0x378] sm:$0xff] %v1937
                  %v1939 = vld [vmem:[%s1861 + $0x850] sm:$0xff]
                  %1940 = vst [vmem:[%s1862 + $0x390] sm:$0xff] %v1939
                  %v1941 = vld [vmem:[%s1861 + $0x888] sm:$0xff]
                  %1942 = vst [vmem:[%s1862 + $0x3a8] sm:$0xff] %v1941
                  %v1943 = vld [vmem:[%s1861 + $0x8c0] sm:$0xff]
                  %1944 = vst [vmem:[%s1862 + $0x3c0] sm:$0xff] %v1943
                  %v1945 = vld [vmem:[%s1861 + $0x8f8] sm:$0xff]
                  %1946 = vst [vmem:[%s1862 + $0x3d8] sm:$0xff] %v1945
                  %v1947 = vld [vmem:[%s1861 + $0x930] sm:$0xff]
                  %1948 = vst [vmem:[%s1862 + $0x3f0] sm:$0xff] %v1947
                  %v1949 = vld [vmem:[%s1861 + $0x968] sm:$0xff]
                  %1950 = vst [vmem:[%s1862 + $0x408] sm:$0xff] %v1949
                  %v1951 = vld [vmem:[%s1861 + $0x9a0] sm:$0xff]
                  %1952 = vst [vmem:[%s1862 + $0x420] sm:$0xff] %v1951
                  %v1953 = vld [vmem:[%s1861 + $0x9d8] sm:$0xff]
                  %1954 = vst [vmem:[%s1862 + $0x438] sm:$0xff] %v1953
                  %v1955 = vld [vmem:[%s1861 + $0xa10] sm:$0xff]
                  %1956 = vst [vmem:[%s1862 + $0x450] sm:$0xff] %v1955
                  %v1957 = vld [vmem:[%s1861 + $0xa48] sm:$0xff]
                  %1958 = vst [vmem:[%s1862 + $0x468] sm:$0xff] %v1957
                  %v1959 = vld [vmem:[%s1861 + $0xa80] sm:$0xff]
                  %1960 = vst [vmem:[%s1862 + $0x480] sm:$0xff] %v1959
                  %v1961 = vld [vmem:[%s1861 + $0xab8] sm:$0xff]
                  %1962 = vst [vmem:[%s1862 + $0x498] sm:$0xff] %v1961
                  %v1963 = vld [vmem:[%s1861 + $0xaf0] sm:$0xff]
                  %1964 = vst [vmem:[%s1862 + $0x4b0] sm:$0xff] %v1963
                  %v1965 = vld [vmem:[%s1861 + $0xb28] sm:$0xff]
                  %1966 = vst [vmem:[%s1862 + $0x4c8] sm:$0xff] %v1965
                  %v1967 = vld [vmem:[%s1861 + $0xb60] sm:$0xff]
                  %1968 = vst [vmem:[%s1862 + $0x4e0] sm:$0xff] %v1967
                  %v1969 = vld [vmem:[%s1861 + $0xb98] sm:$0xff]
                  %1970 = vst [vmem:[%s1862 + $0x4f8] sm:$0xff] %v1969
                  %v1971 = vld [vmem:[%s1861 + $0xbd0] sm:$0xff]
                  %1972 = vst [vmem:[%s1862 + $0x510] sm:$0xff] %v1971
                  %v1973 = vld [vmem:[%s1861 + $0xc08] sm:$0xff]
                  %1974 = vst [vmem:[%s1862 + $0x528] sm:$0xff] %v1973
                  %v1975 = vld [vmem:[%s1861 + $0xc40] sm:$0xff]
                  %1976 = vst [vmem:[%s1862 + $0x540] sm:$0xff] %v1975
                  %v1977 = vld [vmem:[%s1861 + $0xc78] sm:$0xff]
                  %1978 = vst [vmem:[%s1862 + $0x558] sm:$0xff] %v1977
                  %v1979 = vld [vmem:[%s1861 + $0xcb0] sm:$0xff]
                  %1980 = vst [vmem:[%s1862 + $0x570] sm:$0xff] %v1979
                  %v1981 = vld [vmem:[%s1861 + $0xce8] sm:$0xff]
                  %1982 = vst [vmem:[%s1862 + $0x588] sm:$0xff] %v1981
                  %v1983 = vld [vmem:[%s1861 + $0xd20] sm:$0xff]
                  %1984 = vst [vmem:[%s1862 + $0x5a0] sm:$0xff] %v1983
                  %v1985 = vld [vmem:[%s1861 + $0xd58] sm:$0xff]
                  %1986 = vst [vmem:[%s1862 + $0x5b8] sm:$0xff] %v1985
                  %v1987 = vld [vmem:[%s1861 + $0xd90] sm:$0xff]
                  %1988 = vst [vmem:[%s1862 + $0x5d0] sm:$0xff] %v1987
                  %v1989 = vld [vmem:[%s1861 + $0xdc8] sm:$0xff]
                  %1990 = vst [vmem:[%s1862 + $0x5e8] sm:$0xff] %v1989
                  %v1991 = vld [vmem:[%s1861 + $0xe00] sm:$0xff]
                  %1992 = vst [vmem:[%s1862 + $0x600] sm:$0xff] %v1991
                  %v1993 = vld [vmem:[%s1861 + $0xe38] sm:$0xff]
                  %1994 = vst [vmem:[%s1862 + $0x618] sm:$0xff] %v1993
                  %v1995 = vld [vmem:[%s1861 + $0xe70] sm:$0xff]
                  %1996 = vst [vmem:[%s1862 + $0x630] sm:$0xff] %v1995
                  %v1997 = vld [vmem:[%s1861 + $0xea8] sm:$0xff]
                  %1998 = vst [vmem:[%s1862 + $0x648] sm:$0xff] %v1997
                  %v1999 = vld [vmem:[%s1861 + $0xee0] sm:$0xff]
                  %2000 = vst [vmem:[%s1862 + $0x660] sm:$0xff] %v1999
                  %v2001 = vld [vmem:[%s1861 + $0xf18] sm:$0xff]
                  %2002 = vst [vmem:[%s1862 + $0x678] sm:$0xff] %v2001
                  %v2003 = vld [vmem:[%s1861 + $0xf50] sm:$0xff]
                  %2004 = vst [vmem:[%s1862 + $0x690] sm:$0xff] %v2003
                  %v2005 = vld [vmem:[%s1861 + $0xf88] sm:$0xff]
                  %2006 = vst [vmem:[%s1862 + $0x6a8] sm:$0xff] %v2005
                  %v2007 = vld [vmem:[%s1861 + $0xfc0] sm:$0xff]
                  %2008 = vst [vmem:[%s1862 + $0x6c0] sm:$0xff] %v2007
                  %v2009 = vld [vmem:[%s1861 + $0xff8] sm:$0xff]
                  %2010 = vst [vmem:[%s1862 + $0x6d8] sm:$0xff] %v2009
                  %v2011 = vld [vmem:[%s1861 + $0x1030] sm:$0xff]
                  %2012 = vst [vmem:[%s1862 + $0x6f0] sm:$0xff] %v2011
                  %v2013 = vld [vmem:[%s1861 + $0x1068] sm:$0xff]
                  %2014 = vst [vmem:[%s1862 + $0x708] sm:$0xff] %v2013
                  %v2015 = vld [vmem:[%s1861 + $0x10a0] sm:$0xff]
                  %2016 = vst [vmem:[%s1862 + $0x720] sm:$0xff] %v2015
                  %v2017 = vld [vmem:[%s1861 + $0x10d8] sm:$0xff]
                  %2018 = vst [vmem:[%s1862 + $0x738] sm:$0xff] %v2017
                  %v2019 = vld [vmem:[%s1861 + $0x1110] sm:$0xff]
                  %2020 = vst [vmem:[%s1862 + $0x750] sm:$0xff] %v2019
                  %v2021 = vld [vmem:[%s1861 + $0x1148] sm:$0xff]
                  %2022 = vst [vmem:[%s1862 + $0x768] sm:$0xff] %v2021
                  %v2023 = vld [vmem:[%s1861 + $0x1180] sm:$0xff]
                  %2024 = vst [vmem:[%s1862 + $0x780] sm:$0xff] %v2023
                  %v2025 = vld [vmem:[%s1861 + $0x11b8] sm:$0xff]
                  %2026 = vst [vmem:[%s1862 + $0x798] sm:$0xff] %v2025
                  %v2027 = vld [vmem:[%s1861 + $0x11f0] sm:$0xff]
                  %2028 = vst [vmem:[%s1862 + $0x7b0] sm:$0xff] %v2027
                  %v2029 = vld [vmem:[%s1861 + $0x1228] sm:$0xff]
                  %2030 = vst [vmem:[%s1862 + $0x7c8] sm:$0xff] %v2029
                  %v2031 = vld [vmem:[%s1861 + $0x1260] sm:$0xff]
                  %2032 = vst [vmem:[%s1862 + $0x7e0] sm:$0xff] %v2031
                  %v2033 = vld [vmem:[%s1861 + $0x1298] sm:$0xff]
                  %2034 = vst [vmem:[%s1862 + $0x7f8] sm:$0xff] %v2033
                  %v2035 = vld [vmem:[%s1861 + $0x12d0] sm:$0xff]
                  %2036 = vst [vmem:[%s1862 + $0x810] sm:$0xff] %v2035
                  %v2037 = vld [vmem:[%s1861 + $0x1308] sm:$0xff]
                  %2038 = vst [vmem:[%s1862 + $0x828] sm:$0xff] %v2037
                  %v2039 = vld [vmem:[%s1861 + $0x1340] sm:$0xff]
                  %2040 = vst [vmem:[%s1862 + $0x840] sm:$0xff] %v2039
                  %v2041 = vld [vmem:[%s1861 + $0x1378] sm:$0xff]
                  %2042 = vst [vmem:[%s1862 + $0x858] sm:$0xff] %v2041
                  %v2043 = vld [vmem:[%s1861 + $0x13b0] sm:$0xff]
                  %2044 = vst [vmem:[%s1862 + $0x870] sm:$0xff] %v2043
                  %v2045 = vld [vmem:[%s1861 + $0x13e8] sm:$0xff]
                  %2046 = vst [vmem:[%s1862 + $0x888] sm:$0xff] %v2045
                  %v2047 = vld [vmem:[%s1861 + $0x1420] sm:$0xff]
                  %2048 = vst [vmem:[%s1862 + $0x8a0] sm:$0xff] %v2047
                  %v2049 = vld [vmem:[%s1861 + $0x1458] sm:$0xff]
                  %2050 = vst [vmem:[%s1862 + $0x8b8] sm:$0xff] %v2049
                  %v2051 = vld [vmem:[%s1861 + $0x1490] sm:$0xff]
                  %2052 = vst [vmem:[%s1862 + $0x8d0] sm:$0xff] %v2051
                  %v2053 = vld [vmem:[%s1861 + $0x14c8] sm:$0xff]
                  %2054 = vst [vmem:[%s1862 + $0x8e8] sm:$0xff] %v2053
                  %v2055 = vld [vmem:[%s1861 + $0x1500] sm:$0xff]
                  %2056 = vst [vmem:[%s1862 + $0x900] sm:$0xff] %v2055
                  %v2057 = vld [vmem:[%s1861 + $0x1538] sm:$0xff]
                  %2058 = vst [vmem:[%s1862 + $0x918] sm:$0xff] %v2057
                  %v2059 = vld [vmem:[%s1861 + $0x1570] sm:$0xff]
                  %2060 = vst [vmem:[%s1862 + $0x930] sm:$0xff] %v2059
                  %v2061 = vld [vmem:[%s1861 + $0x15a8] sm:$0xff]
                  %2062 = vst [vmem:[%s1862 + $0x948] sm:$0xff] %v2061
                  %v2063 = vld [vmem:[%s1861 + $0x15e0] sm:$0xff]
                  %2064 = vst [vmem:[%s1862 + $0x960] sm:$0xff] %v2063
                  %v2065 = vld [vmem:[%s1861 + $0x1618] sm:$0xff]
                  %2066 = vst [vmem:[%s1862 + $0x978] sm:$0xff] %v2065
                  %v2067 = vld [vmem:[%s1861 + $0x1650] sm:$0xff]
                  %2068 = vst [vmem:[%s1862 + $0x990] sm:$0xff] %v2067
                  %v2069 = vld [vmem:[%s1861 + $0x1688] sm:$0xff]
                  %2070 = vst [vmem:[%s1862 + $0x9a8] sm:$0xff] %v2069
                  %v2071 = vld [vmem:[%s1861 + $0x16c0] sm:$0xff]
                  %2072 = vst [vmem:[%s1862 + $0x9c0] sm:$0xff] %v2071
                  %v2073 = vld [vmem:[%s1861 + $0x16f8] sm:$0xff]
                  %2074 = vst [vmem:[%s1862 + $0x9d8] sm:$0xff] %v2073
                  %v2075 = vld [vmem:[%s1861 + $0x1730] sm:$0xff]
                  %2076 = vst [vmem:[%s1862 + $0x9f0] sm:$0xff] %v2075
                  %v2077 = vld [vmem:[%s1861 + $0x1768] sm:$0xff]
                  %2078 = vst [vmem:[%s1862 + $0xa08] sm:$0xff] %v2077
                  %v2079 = vld [vmem:[%s1861 + $0x17a0] sm:$0xff]
                  %2080 = vst [vmem:[%s1862 + $0xa20] sm:$0xff] %v2079
                  %v2081 = vld [vmem:[%s1861 + $0x17d8] sm:$0xff]
                  %2082 = vst [vmem:[%s1862 + $0xa38] sm:$0xff] %v2081
                  %v2083 = vld [vmem:[%s1861 + $0x1810] sm:$0xff]
                  %2084 = vst [vmem:[%s1862 + $0xa50] sm:$0xff] %v2083
                  %v2085 = vld [vmem:[%s1861 + $0x1848] sm:$0xff]
                  %2086 = vst [vmem:[%s1862 + $0xa68] sm:$0xff] %v2085
                  %v2087 = vld [vmem:[%s1861 + $0x1880] sm:$0xff]
                  %2088 = vst [vmem:[%s1862 + $0xa80] sm:$0xff] %v2087
                  %v2089 = vld [vmem:[%s1861 + $0x18b8] sm:$0xff]
                  %2090 = vst [vmem:[%s1862 + $0xa98] sm:$0xff] %v2089
                  %v2091 = vld [vmem:[%s1861 + $0x18f0] sm:$0xff]
                  %2092 = vst [vmem:[%s1862 + $0xab0] sm:$0xff] %v2091
                  %v2093 = vld [vmem:[%s1861 + $0x1928] sm:$0xff]
                  %2094 = vst [vmem:[%s1862 + $0xac8] sm:$0xff] %v2093
                  %v2095 = vld [vmem:[%s1861 + $0x1960] sm:$0xff]
                  %2096 = vst [vmem:[%s1862 + $0xae0] sm:$0xff] %v2095
                  %v2097 = vld [vmem:[%s1861 + $0x1998] sm:$0xff]
                  %2098 = vst [vmem:[%s1862 + $0xaf8] sm:$0xff] %v2097
                  %v2099 = vld [vmem:[%s1861 + $0x19d0] sm:$0xff]
                  %2100 = vst [vmem:[%s1862 + $0xb10] sm:$0xff] %v2099
                  %v2101 = vld [vmem:[%s1861 + $0x1a08] sm:$0xff]
                  %2102 = vst [vmem:[%s1862 + $0xb28] sm:$0xff] %v2101
                  %v2103 = vld [vmem:[%s1861 + $0x1a40] sm:$0xff]
                  %2104 = vst [vmem:[%s1862 + $0xb40] sm:$0xff] %v2103
                  %v2105 = vld [vmem:[%s1861 + $0x1a78] sm:$0xff]
                  %2106 = vst [vmem:[%s1862 + $0xb58] sm:$0xff] %v2105
                  %v2107 = vld [vmem:[%s1861 + $0x1ab0] sm:$0xff]
                  %2108 = vst [vmem:[%s1862 + $0xb70] sm:$0xff] %v2107
                  %v2109 = vld [vmem:[%s1861 + $0x1ae8] sm:$0xff]
                  %2110 = vst [vmem:[%s1862 + $0xb88] sm:$0xff] %v2109
                  %v2111 = vld [vmem:[%s1861 + $0x1b20] sm:$0xff]
                  %2112 = vst [vmem:[%s1862 + $0xba0] sm:$0xff] %v2111
                  %v2113 = vld [vmem:[%s1861 + $0x1b58] sm:$0xff]
                  %2114 = vst [vmem:[%s1862 + $0xbb8] sm:$0xff] %v2113
                  %v2115 = vld [vmem:[%s1861 + $0x1b90] sm:$0xff]
                  %2116 = vst [vmem:[%s1862 + $0xbd0] sm:$0xff] %v2115
                  %v2117 = vld [vmem:[%s1861 + $0x1bc8] sm:$0xff]
                  %2118 = vst [vmem:[%s1862 + $0xbe8] sm:$0xff] %v2117
                  %s2119 = sadd.s32 1, %s1860
                  %p2120 = scmp.ge.s32.totalorder %s2119, %s1851
                  %s2121 = scalar_select %p2120, 0, %s2119
                  %s2122 = smul.u32 %s2121, 8
                  %s2123 = smul.u32 %s2121, 8
                  %s2124 = scalar_lea.vmem %s1286, %s2122
                  %s2125 = scalar_lea.vmem %s1276, %s2123 [#allocation3]
                $region115: #{tpu_custom_call.1} parent=109 // loop_footer
                  %s1857 = sadd.s32 %s1855, 1
                $region116: #{tpu_custom_call.1} parent=109 // loop_footer_branch
                  %1854 = sbr.rel target = $region112
                $region117: #{tpu_custom_call.1} parent=109 // loop_exit
                  _
                %s2126 = sshllo.u32 0, %s1846
                loop: start=0, step=1, limit=1
                $region118: #{tpu_custom_call.1} parent=109 // loop_pre_header
                  _
                $region119: #{tpu_custom_call.1} parent=109 // loop_header
                  %s2128 = sphi 0, %s2132
                  %p2129 = scmp.ge.s32.totalorder %s2128, 1
                  %s2133 = sphi %s1848, %s1848
                  %s2134 = sphi %s1850, %s1850
                $region120: #{tpu_custom_call.1} parent=109 // loop_header_branch
                  %2131 = sbr.rel (%p2129) target = $region124
                $region121: #{tpu_custom_call.1} parent=109 // loop_body
                  %v2135 = vld [vmem:[%s2133] sm:%s2126]
                  %2136 = vst [vmem:[%s2134] sm:%s2126] %v2135
                  %v2137 = vld [vmem:[%s2133 + $0x38] sm:%s2126]
                  %2138 = vst [vmem:[%s2134 + $0x18] sm:%s2126] %v2137
                  %v2139 = vld [vmem:[%s2133 + $0x70] sm:%s2126]
                  %2140 = vst [vmem:[%s2134 + $0x30] sm:%s2126] %v2139
                  %v2141 = vld [vmem:[%s2133 + $0xa8] sm:%s2126]
                  %2142 = vst [vmem:[%s2134 + $0x48] sm:%s2126] %v2141
                  %v2143 = vld [vmem:[%s2133 + $0xe0] sm:%s2126]
                  %2144 = vst [vmem:[%s2134 + $0x60] sm:%s2126] %v2143
                  %v2145 = vld [vmem:[%s2133 + $0x118] sm:%s2126]
                  %2146 = vst [vmem:[%s2134 + $0x78] sm:%s2126] %v2145
                  %v2147 = vld [vmem:[%s2133 + $0x150] sm:%s2126]
                  %2148 = vst [vmem:[%s2134 + $0x90] sm:%s2126] %v2147
                  %v2149 = vld [vmem:[%s2133 + $0x188] sm:%s2126]
                  %2150 = vst [vmem:[%s2134 + $0xa8] sm:%s2126] %v2149
                  %v2151 = vld [vmem:[%s2133 + $0x1c0] sm:%s2126]
                  %2152 = vst [vmem:[%s2134 + $0xc0] sm:%s2126] %v2151
                  %v2153 = vld [vmem:[%s2133 + $0x1f8] sm:%s2126]
                  %2154 = vst [vmem:[%s2134 + $0xd8] sm:%s2126] %v2153
                  %v2155 = vld [vmem:[%s2133 + $0x230] sm:%s2126]
                  %2156 = vst [vmem:[%s2134 + $0xf0] sm:%s2126] %v2155
                  %v2157 = vld [vmem:[%s2133 + $0x268] sm:%s2126]
                  %2158 = vst [vmem:[%s2134 + $0x108] sm:%s2126] %v2157
                  %v2159 = vld [vmem:[%s2133 + $0x2a0] sm:%s2126]
                  %2160 = vst [vmem:[%s2134 + $0x120] sm:%s2126] %v2159
                  %v2161 = vld [vmem:[%s2133 + $0x2d8] sm:%s2126]
                  %2162 = vst [vmem:[%s2134 + $0x138] sm:%s2126] %v2161
                  %v2163 = vld [vmem:[%s2133 + $0x310] sm:%s2126]
                  %2164 = vst [vmem:[%s2134 + $0x150] sm:%s2126] %v2163
                  %v2165 = vld [vmem:[%s2133 + $0x348] sm:%s2126]
                  %2166 = vst [vmem:[%s2134 + $0x168] sm:%s2126] %v2165
                  %v2167 = vld [vmem:[%s2133 + $0x380] sm:%s2126]
                  %2168 = vst [vmem:[%s2134 + $0x180] sm:%s2126] %v2167
                  %v2169 = vld [vmem:[%s2133 + $0x3b8] sm:%s2126]
                  %2170 = vst [vmem:[%s2134 + $0x198] sm:%s2126] %v2169
                  %v2171 = vld [vmem:[%s2133 + $0x3f0] sm:%s2126]
                  %2172 = vst [vmem:[%s2134 + $0x1b0] sm:%s2126] %v2171
                  %v2173 = vld [vmem:[%s2133 + $0x428] sm:%s2126]
                  %2174 = vst [vmem:[%s2134 + $0x1c8] sm:%s2126] %v2173
                  %v2175 = vld [vmem:[%s2133 + $0x460] sm:%s2126]
                  %2176 = vst [vmem:[%s2134 + $0x1e0] sm:%s2126] %v2175
                  %v2177 = vld [vmem:[%s2133 + $0x498] sm:%s2126]
                  %2178 = vst [vmem:[%s2134 + $0x1f8] sm:%s2126] %v2177
                  %v2179 = vld [vmem:[%s2133 + $0x4d0] sm:%s2126]
                  %2180 = vst [vmem:[%s2134 + $0x210] sm:%s2126] %v2179
                  %v2181 = vld [vmem:[%s2133 + $0x508] sm:%s2126]
                  %2182 = vst [vmem:[%s2134 + $0x228] sm:%s2126] %v2181
                  %v2183 = vld [vmem:[%s2133 + $0x540] sm:%s2126]
                  %2184 = vst [vmem:[%s2134 + $0x240] sm:%s2126] %v2183
                  %v2185 = vld [vmem:[%s2133 + $0x578] sm:%s2126]
                  %2186 = vst [vmem:[%s2134 + $0x258] sm:%s2126] %v2185
                  %v2187 = vld [vmem:[%s2133 + $0x5b0] sm:%s2126]
                  %2188 = vst [vmem:[%s2134 + $0x270] sm:%s2126] %v2187
                  %v2189 = vld [vmem:[%s2133 + $0x5e8] sm:%s2126]
                  %2190 = vst [vmem:[%s2134 + $0x288] sm:%s2126] %v2189
                  %v2191 = vld [vmem:[%s2133 + $0x620] sm:%s2126]
                  %2192 = vst [vmem:[%s2134 + $0x2a0] sm:%s2126] %v2191
                  %v2193 = vld [vmem:[%s2133 + $0x658] sm:%s2126]
                  %2194 = vst [vmem:[%s2134 + $0x2b8] sm:%s2126] %v2193
                  %v2195 = vld [vmem:[%s2133 + $0x690] sm:%s2126]
                  %2196 = vst [vmem:[%s2134 + $0x2d0] sm:%s2126] %v2195
                  %v2197 = vld [vmem:[%s2133 + $0x6c8] sm:%s2126]
                  %2198 = vst [vmem:[%s2134 + $0x2e8] sm:%s2126] %v2197
                  %v2199 = vld [vmem:[%s2133 + $0x700] sm:%s2126]
                  %2200 = vst [vmem:[%s2134 + $0x300] sm:%s2126] %v2199
                  %v2201 = vld [vmem:[%s2133 + $0x738] sm:%s2126]
                  %2202 = vst [vmem:[%s2134 + $0x318] sm:%s2126] %v2201
                  %v2203 = vld [vmem:[%s2133 + $0x770] sm:%s2126]
                  %2204 = vst [vmem:[%s2134 + $0x330] sm:%s2126] %v2203
                  %v2205 = vld [vmem:[%s2133 + $0x7a8] sm:%s2126]
                  %2206 = vst [vmem:[%s2134 + $0x348] sm:%s2126] %v2205
                  %v2207 = vld [vmem:[%s2133 + $0x7e0] sm:%s2126]
                  %2208 = vst [vmem:[%s2134 + $0x360] sm:%s2126] %v2207
                  %v2209 = vld [vmem:[%s2133 + $0x818] sm:%s2126]
                  %2210 = vst [vmem:[%s2134 + $0x378] sm:%s2126] %v2209
                  %v2211 = vld [vmem:[%s2133 + $0x850] sm:%s2126]
                  %2212 = vst [vmem:[%s2134 + $0x390] sm:%s2126] %v2211
                  %v2213 = vld [vmem:[%s2133 + $0x888] sm:%s2126]
                  %2214 = vst [vmem:[%s2134 + $0x3a8] sm:%s2126] %v2213
                  %v2215 = vld [vmem:[%s2133 + $0x8c0] sm:%s2126]
                  %2216 = vst [vmem:[%s2134 + $0x3c0] sm:%s2126] %v2215
                  %v2217 = vld [vmem:[%s2133 + $0x8f8] sm:%s2126]
                  %2218 = vst [vmem:[%s2134 + $0x3d8] sm:%s2126] %v2217
                  %v2219 = vld [vmem:[%s2133 + $0x930] sm:%s2126]
                  %2220 = vst [vmem:[%s2134 + $0x3f0] sm:%s2126] %v2219
                  %v2221 = vld [vmem:[%s2133 + $0x968] sm:%s2126]
                  %2222 = vst [vmem:[%s2134 + $0x408] sm:%s2126] %v2221
                  %v2223 = vld [vmem:[%s2133 + $0x9a0] sm:%s2126]
                  %2224 = vst [vmem:[%s2134 + $0x420] sm:%s2126] %v2223
                  %v2225 = vld [vmem:[%s2133 + $0x9d8] sm:%s2126]
                  %2226 = vst [vmem:[%s2134 + $0x438] sm:%s2126] %v2225
                  %v2227 = vld [vmem:[%s2133 + $0xa10] sm:%s2126]
                  %2228 = vst [vmem:[%s2134 + $0x450] sm:%s2126] %v2227
                  %v2229 = vld [vmem:[%s2133 + $0xa48] sm:%s2126]
                  %2230 = vst [vmem:[%s2134 + $0x468] sm:%s2126] %v2229
                  %v2231 = vld [vmem:[%s2133 + $0xa80] sm:%s2126]
                  %2232 = vst [vmem:[%s2134 + $0x480] sm:%s2126] %v2231
                  %v2233 = vld [vmem:[%s2133 + $0xab8] sm:%s2126]
                  %2234 = vst [vmem:[%s2134 + $0x498] sm:%s2126] %v2233
                  %v2235 = vld [vmem:[%s2133 + $0xaf0] sm:%s2126]
                  %2236 = vst [vmem:[%s2134 + $0x4b0] sm:%s2126] %v2235
                  %v2237 = vld [vmem:[%s2133 + $0xb28] sm:%s2126]
                  %2238 = vst [vmem:[%s2134 + $0x4c8] sm:%s2126] %v2237
                  %v2239 = vld [vmem:[%s2133 + $0xb60] sm:%s2126]
                  %2240 = vst [vmem:[%s2134 + $0x4e0] sm:%s2126] %v2239
                  %v2241 = vld [vmem:[%s2133 + $0xb98] sm:%s2126]
                  %2242 = vst [vmem:[%s2134 + $0x4f8] sm:%s2126] %v2241
                  %v2243 = vld [vmem:[%s2133 + $0xbd0] sm:%s2126]
                  %2244 = vst [vmem:[%s2134 + $0x510] sm:%s2126] %v2243
                  %v2245 = vld [vmem:[%s2133 + $0xc08] sm:%s2126]
                  %2246 = vst [vmem:[%s2134 + $0x528] sm:%s2126] %v2245
                  %v2247 = vld [vmem:[%s2133 + $0xc40] sm:%s2126]
                  %2248 = vst [vmem:[%s2134 + $0x540] sm:%s2126] %v2247
                  %v2249 = vld [vmem:[%s2133 + $0xc78] sm:%s2126]
                  %2250 = vst [vmem:[%s2134 + $0x558] sm:%s2126] %v2249
                  %v2251 = vld [vmem:[%s2133 + $0xcb0] sm:%s2126]
                  %2252 = vst [vmem:[%s2134 + $0x570] sm:%s2126] %v2251
                  %v2253 = vld [vmem:[%s2133 + $0xce8] sm:%s2126]
                  %2254 = vst [vmem:[%s2134 + $0x588] sm:%s2126] %v2253
                  %v2255 = vld [vmem:[%s2133 + $0xd20] sm:%s2126]
                  %2256 = vst [vmem:[%s2134 + $0x5a0] sm:%s2126] %v2255
                  %v2257 = vld [vmem:[%s2133 + $0xd58] sm:%s2126]
                  %2258 = vst [vmem:[%s2134 + $0x5b8] sm:%s2126] %v2257
                  %v2259 = vld [vmem:[%s2133 + $0xd90] sm:%s2126]
                  %2260 = vst [vmem:[%s2134 + $0x5d0] sm:%s2126] %v2259
                  %v2261 = vld [vmem:[%s2133 + $0xdc8] sm:%s2126]
                  %2262 = vst [vmem:[%s2134 + $0x5e8] sm:%s2126] %v2261
                  %v2263 = vld [vmem:[%s2133 + $0xe00] sm:%s2126]
                  %2264 = vst [vmem:[%s2134 + $0x600] sm:%s2126] %v2263
                  %v2265 = vld [vmem:[%s2133 + $0xe38] sm:%s2126]
                  %2266 = vst [vmem:[%s2134 + $0x618] sm:%s2126] %v2265
                  %v2267 = vld [vmem:[%s2133 + $0xe70] sm:%s2126]
                  %2268 = vst [vmem:[%s2134 + $0x630] sm:%s2126] %v2267
                  %v2269 = vld [vmem:[%s2133 + $0xea8] sm:%s2126]
                  %2270 = vst [vmem:[%s2134 + $0x648] sm:%s2126] %v2269
                  %v2271 = vld [vmem:[%s2133 + $0xee0] sm:%s2126]
                  %2272 = vst [vmem:[%s2134 + $0x660] sm:%s2126] %v2271
                  %v2273 = vld [vmem:[%s2133 + $0xf18] sm:%s2126]
                  %2274 = vst [vmem:[%s2134 + $0x678] sm:%s2126] %v2273
                  %v2275 = vld [vmem:[%s2133 + $0xf50] sm:%s2126]
                  %2276 = vst [vmem:[%s2134 + $0x690] sm:%s2126] %v2275
                  %v2277 = vld [vmem:[%s2133 + $0xf88] sm:%s2126]
                  %2278 = vst [vmem:[%s2134 + $0x6a8] sm:%s2126] %v2277
                  %v2279 = vld [vmem:[%s2133 + $0xfc0] sm:%s2126]
                  %2280 = vst [vmem:[%s2134 + $0x6c0] sm:%s2126] %v2279
                  %v2281 = vld [vmem:[%s2133 + $0xff8] sm:%s2126]
                  %2282 = vst [vmem:[%s2134 + $0x6d8] sm:%s2126] %v2281
                  %v2283 = vld [vmem:[%s2133 + $0x1030] sm:%s2126]
                  %2284 = vst [vmem:[%s2134 + $0x6f0] sm:%s2126] %v2283
                  %v2285 = vld [vmem:[%s2133 + $0x1068] sm:%s2126]
                  %2286 = vst [vmem:[%s2134 + $0x708] sm:%s2126] %v2285
                  %v2287 = vld [vmem:[%s2133 + $0x10a0] sm:%s2126]
                  %2288 = vst [vmem:[%s2134 + $0x720] sm:%s2126] %v2287
                  %v2289 = vld [vmem:[%s2133 + $0x10d8] sm:%s2126]
                  %2290 = vst [vmem:[%s2134 + $0x738] sm:%s2126] %v2289
                  %v2291 = vld [vmem:[%s2133 + $0x1110] sm:%s2126]
                  %2292 = vst [vmem:[%s2134 + $0x750] sm:%s2126] %v2291
                  %v2293 = vld [vmem:[%s2133 + $0x1148] sm:%s2126]
                  %2294 = vst [vmem:[%s2134 + $0x768] sm:%s2126] %v2293
                  %v2295 = vld [vmem:[%s2133 + $0x1180] sm:%s2126]
                  %2296 = vst [vmem:[%s2134 + $0x780] sm:%s2126] %v2295
                  %v2297 = vld [vmem:[%s2133 + $0x11b8] sm:%s2126]
                  %2298 = vst [vmem:[%s2134 + $0x798] sm:%s2126] %v2297
                  %v2299 = vld [vmem:[%s2133 + $0x11f0] sm:%s2126]
                  %2300 = vst [vmem:[%s2134 + $0x7b0] sm:%s2126] %v2299
                  %v2301 = vld [vmem:[%s2133 + $0x1228] sm:%s2126]
                  %2302 = vst [vmem:[%s2134 + $0x7c8] sm:%s2126] %v2301
                  %v2303 = vld [vmem:[%s2133 + $0x1260] sm:%s2126]
                  %2304 = vst [vmem:[%s2134 + $0x7e0] sm:%s2126] %v2303
                  %v2305 = vld [vmem:[%s2133 + $0x1298] sm:%s2126]
                  %2306 = vst [vmem:[%s2134 + $0x7f8] sm:%s2126] %v2305
                  %v2307 = vld [vmem:[%s2133 + $0x12d0] sm:%s2126]
                  %2308 = vst [vmem:[%s2134 + $0x810] sm:%s2126] %v2307
                  %v2309 = vld [vmem:[%s2133 + $0x1308] sm:%s2126]
                  %2310 = vst [vmem:[%s2134 + $0x828] sm:%s2126] %v2309
                  %v2311 = vld [vmem:[%s2133 + $0x1340] sm:%s2126]
                  %2312 = vst [vmem:[%s2134 + $0x840] sm:%s2126] %v2311
                  %v2313 = vld [vmem:[%s2133 + $0x1378] sm:%s2126]
                  %2314 = vst [vmem:[%s2134 + $0x858] sm:%s2126] %v2313
                  %v2315 = vld [vmem:[%s2133 + $0x13b0] sm:%s2126]
                  %2316 = vst [vmem:[%s2134 + $0x870] sm:%s2126] %v2315
                  %v2317 = vld [vmem:[%s2133 + $0x13e8] sm:%s2126]
                  %2318 = vst [vmem:[%s2134 + $0x888] sm:%s2126] %v2317
                  %v2319 = vld [vmem:[%s2133 + $0x1420] sm:%s2126]
                  %2320 = vst [vmem:[%s2134 + $0x8a0] sm:%s2126] %v2319
                  %v2321 = vld [vmem:[%s2133 + $0x1458] sm:%s2126]
                  %2322 = vst [vmem:[%s2134 + $0x8b8] sm:%s2126] %v2321
                  %v2323 = vld [vmem:[%s2133 + $0x1490] sm:%s2126]
                  %2324 = vst [vmem:[%s2134 + $0x8d0] sm:%s2126] %v2323
                  %v2325 = vld [vmem:[%s2133 + $0x14c8] sm:%s2126]
                  %2326 = vst [vmem:[%s2134 + $0x8e8] sm:%s2126] %v2325
                  %v2327 = vld [vmem:[%s2133 + $0x1500] sm:%s2126]
                  %2328 = vst [vmem:[%s2134 + $0x900] sm:%s2126] %v2327
                  %v2329 = vld [vmem:[%s2133 + $0x1538] sm:%s2126]
                  %2330 = vst [vmem:[%s2134 + $0x918] sm:%s2126] %v2329
                  %v2331 = vld [vmem:[%s2133 + $0x1570] sm:%s2126]
                  %2332 = vst [vmem:[%s2134 + $0x930] sm:%s2126] %v2331
                  %v2333 = vld [vmem:[%s2133 + $0x15a8] sm:%s2126]
                  %2334 = vst [vmem:[%s2134 + $0x948] sm:%s2126] %v2333
                  %v2335 = vld [vmem:[%s2133 + $0x15e0] sm:%s2126]
                  %2336 = vst [vmem:[%s2134 + $0x960] sm:%s2126] %v2335
                  %v2337 = vld [vmem:[%s2133 + $0x1618] sm:%s2126]
                  %2338 = vst [vmem:[%s2134 + $0x978] sm:%s2126] %v2337
                  %v2339 = vld [vmem:[%s2133 + $0x1650] sm:%s2126]
                  %2340 = vst [vmem:[%s2134 + $0x990] sm:%s2126] %v2339
                  %v2341 = vld [vmem:[%s2133 + $0x1688] sm:%s2126]
                  %2342 = vst [vmem:[%s2134 + $0x9a8] sm:%s2126] %v2341
                  %v2343 = vld [vmem:[%s2133 + $0x16c0] sm:%s2126]
                  %2344 = vst [vmem:[%s2134 + $0x9c0] sm:%s2126] %v2343
                  %v2345 = vld [vmem:[%s2133 + $0x16f8] sm:%s2126]
                  %2346 = vst [vmem:[%s2134 + $0x9d8] sm:%s2126] %v2345
                  %v2347 = vld [vmem:[%s2133 + $0x1730] sm:%s2126]
                  %2348 = vst [vmem:[%s2134 + $0x9f0] sm:%s2126] %v2347
                  %v2349 = vld [vmem:[%s2133 + $0x1768] sm:%s2126]
                  %2350 = vst [vmem:[%s2134 + $0xa08] sm:%s2126] %v2349
                  %v2351 = vld [vmem:[%s2133 + $0x17a0] sm:%s2126]
                  %2352 = vst [vmem:[%s2134 + $0xa20] sm:%s2126] %v2351
                  %v2353 = vld [vmem:[%s2133 + $0x17d8] sm:%s2126]
                  %2354 = vst [vmem:[%s2134 + $0xa38] sm:%s2126] %v2353
                  %v2355 = vld [vmem:[%s2133 + $0x1810] sm:%s2126]
                  %2356 = vst [vmem:[%s2134 + $0xa50] sm:%s2126] %v2355
                  %v2357 = vld [vmem:[%s2133 + $0x1848] sm:%s2126]
                  %2358 = vst [vmem:[%s2134 + $0xa68] sm:%s2126] %v2357
                  %v2359 = vld [vmem:[%s2133 + $0x1880] sm:%s2126]
                  %2360 = vst [vmem:[%s2134 + $0xa80] sm:%s2126] %v2359
                  %v2361 = vld [vmem:[%s2133 + $0x18b8] sm:%s2126]
                  %2362 = vst [vmem:[%s2134 + $0xa98] sm:%s2126] %v2361
                  %v2363 = vld [vmem:[%s2133 + $0x18f0] sm:%s2126]
                  %2364 = vst [vmem:[%s2134 + $0xab0] sm:%s2126] %v2363
                  %v2365 = vld [vmem:[%s2133 + $0x1928] sm:%s2126]
                  %2366 = vst [vmem:[%s2134 + $0xac8] sm:%s2126] %v2365
                  %v2367 = vld [vmem:[%s2133 + $0x1960] sm:%s2126]
                  %2368 = vst [vmem:[%s2134 + $0xae0] sm:%s2126] %v2367
                  %v2369 = vld [vmem:[%s2133 + $0x1998] sm:%s2126]
                  %2370 = vst [vmem:[%s2134 + $0xaf8] sm:%s2126] %v2369
                  %v2371 = vld [vmem:[%s2133 + $0x19d0] sm:%s2126]
                  %2372 = vst [vmem:[%s2134 + $0xb10] sm:%s2126] %v2371
                  %v2373 = vld [vmem:[%s2133 + $0x1a08] sm:%s2126]
                  %2374 = vst [vmem:[%s2134 + $0xb28] sm:%s2126] %v2373
                  %v2375 = vld [vmem:[%s2133 + $0x1a40] sm:%s2126]
                  %2376 = vst [vmem:[%s2134 + $0xb40] sm:%s2126] %v2375
                  %v2377 = vld [vmem:[%s2133 + $0x1a78] sm:%s2126]
                  %2378 = vst [vmem:[%s2134 + $0xb58] sm:%s2126] %v2377
                  %v2379 = vld [vmem:[%s2133 + $0x1ab0] sm:%s2126]
                  %2380 = vst [vmem:[%s2134 + $0xb70] sm:%s2126] %v2379
                  %v2381 = vld [vmem:[%s2133 + $0x1ae8] sm:%s2126]
                  %2382 = vst [vmem:[%s2134 + $0xb88] sm:%s2126] %v2381
                  %v2383 = vld [vmem:[%s2133 + $0x1b20] sm:%s2126]
                  %2384 = vst [vmem:[%s2134 + $0xba0] sm:%s2126] %v2383
                  %v2385 = vld [vmem:[%s2133 + $0x1b58] sm:%s2126]
                  %2386 = vst [vmem:[%s2134 + $0xbb8] sm:%s2126] %v2385
                  %v2387 = vld [vmem:[%s2133 + $0x1b90] sm:%s2126]
                  %2388 = vst [vmem:[%s2134 + $0xbd0] sm:%s2126] %v2387
                  %v2389 = vld [vmem:[%s2133 + $0x1bc8] sm:%s2126]
                  %2390 = vst [vmem:[%s2134 + $0xbe8] sm:%s2126] %v2389
                $region122: #{tpu_custom_call.1} parent=109 // loop_footer
                  %s2132 = sadd.s32 1, %s2128
                $region123: #{tpu_custom_call.1} parent=109 // loop_footer_branch
                  %2127 = sbr.rel target = $region119
                $region124: #{tpu_custom_call.1} parent=109 // loop_exit
                  _
              $region110: #{tpu_custom_call.1} parent=83 // pred_fallthru
                _
            $region84: #{tpu_custom_call.1} parent=79 // pred_fallthru
              _
            // Predicated region
            $region85: #{tpu_custom_call.1} parent=79 // pred_check
              %p1295 = pneg %p1291
            $region86: #{tpu_custom_call.1} parent=79 // pred_check_branch
              %1297 = sbr.rel (%p1295) target = $region88
            $region87: #{tpu_custom_call.1} parent=79 // pred_region
              %s1298 = sshllo.u32 0, %s1287
              loop: start=0, step=1, limit=1
              $region89: #{tpu_custom_call.1} parent=87 // loop_pre_header
                _
              $region90: #{tpu_custom_call.1} parent=87 // loop_header
                %s1300 = sphi 0, %s1304
                %p1301 = scmp.ge.s32.totalorder %s1300, 1
                %s1305 = sphi %s1286, %s1286
                %s1306 = sphi %s1276, %s1276
              $region91: #{tpu_custom_call.1} parent=87 // loop_header_branch
                %1303 = sbr.rel (%p1301) target = $region95
              $region92: #{tpu_custom_call.1} parent=87 // loop_body
                %v1307 = vld [vmem:[%s1305] sm:%s1298]
                %1308 = vst [vmem:[%s1306] sm:%s1298] %v1307
                %v1309 = vld [vmem:[%s1305 + $0x38] sm:%s1298]
                %1310 = vst [vmem:[%s1306 + $0x18] sm:%s1298] %v1309
                %v1311 = vld [vmem:[%s1305 + $0x70] sm:%s1298]
                %1312 = vst [vmem:[%s1306 + $0x30] sm:%s1298] %v1311
                %v1313 = vld [vmem:[%s1305 + $0xa8] sm:%s1298]
                %1314 = vst [vmem:[%s1306 + $0x48] sm:%s1298] %v1313
                %v1315 = vld [vmem:[%s1305 + $0xe0] sm:%s1298]
                %1316 = vst [vmem:[%s1306 + $0x60] sm:%s1298] %v1315
                %v1317 = vld [vmem:[%s1305 + $0x118] sm:%s1298]
                %1318 = vst [vmem:[%s1306 + $0x78] sm:%s1298] %v1317
                %v1319 = vld [vmem:[%s1305 + $0x150] sm:%s1298]
                %1320 = vst [vmem:[%s1306 + $0x90] sm:%s1298] %v1319
                %v1321 = vld [vmem:[%s1305 + $0x188] sm:%s1298]
                %1322 = vst [vmem:[%s1306 + $0xa8] sm:%s1298] %v1321
                %v1323 = vld [vmem:[%s1305 + $0x1c0] sm:%s1298]
                %1324 = vst [vmem:[%s1306 + $0xc0] sm:%s1298] %v1323
                %v1325 = vld [vmem:[%s1305 + $0x1f8] sm:%s1298]
                %1326 = vst [vmem:[%s1306 + $0xd8] sm:%s1298] %v1325
                %v1327 = vld [vmem:[%s1305 + $0x230] sm:%s1298]
                %1328 = vst [vmem:[%s1306 + $0xf0] sm:%s1298] %v1327
                %v1329 = vld [vmem:[%s1305 + $0x268] sm:%s1298]
                %1330 = vst [vmem:[%s1306 + $0x108] sm:%s1298] %v1329
                %v1331 = vld [vmem:[%s1305 + $0x2a0] sm:%s1298]
                %1332 = vst [vmem:[%s1306 + $0x120] sm:%s1298] %v1331
                %v1333 = vld [vmem:[%s1305 + $0x2d8] sm:%s1298]
                %1334 = vst [vmem:[%s1306 + $0x138] sm:%s1298] %v1333
                %v1335 = vld [vmem:[%s1305 + $0x310] sm:%s1298]
                %1336 = vst [vmem:[%s1306 + $0x150] sm:%s1298] %v1335
                %v1337 = vld [vmem:[%s1305 + $0x348] sm:%s1298]
                %1338 = vst [vmem:[%s1306 + $0x168] sm:%s1298] %v1337
                %v1339 = vld [vmem:[%s1305 + $0x380] sm:%s1298]
                %1340 = vst [vmem:[%s1306 + $0x180] sm:%s1298] %v1339
                %v1341 = vld [vmem:[%s1305 + $0x3b8] sm:%s1298]
                %1342 = vst [vmem:[%s1306 + $0x198] sm:%s1298] %v1341
                %v1343 = vld [vmem:[%s1305 + $0x3f0] sm:%s1298]
                %1344 = vst [vmem:[%s1306 + $0x1b0] sm:%s1298] %v1343
                %v1345 = vld [vmem:[%s1305 + $0x428] sm:%s1298]
                %1346 = vst [vmem:[%s1306 + $0x1c8] sm:%s1298] %v1345
                %v1347 = vld [vmem:[%s1305 + $0x460] sm:%s1298]
                %1348 = vst [vmem:[%s1306 + $0x1e0] sm:%s1298] %v1347
                %v1349 = vld [vmem:[%s1305 + $0x498] sm:%s1298]
                %1350 = vst [vmem:[%s1306 + $0x1f8] sm:%s1298] %v1349
                %v1351 = vld [vmem:[%s1305 + $0x4d0] sm:%s1298]
                %1352 = vst [vmem:[%s1306 + $0x210] sm:%s1298] %v1351
                %v1353 = vld [vmem:[%s1305 + $0x508] sm:%s1298]
                %1354 = vst [vmem:[%s1306 + $0x228] sm:%s1298] %v1353
                %v1355 = vld [vmem:[%s1305 + $0x540] sm:%s1298]
                %1356 = vst [vmem:[%s1306 + $0x240] sm:%s1298] %v1355
                %v1357 = vld [vmem:[%s1305 + $0x578] sm:%s1298]
                %1358 = vst [vmem:[%s1306 + $0x258] sm:%s1298] %v1357
                %v1359 = vld [vmem:[%s1305 + $0x5b0] sm:%s1298]
                %1360 = vst [vmem:[%s1306 + $0x270] sm:%s1298] %v1359
                %v1361 = vld [vmem:[%s1305 + $0x5e8] sm:%s1298]
                %1362 = vst [vmem:[%s1306 + $0x288] sm:%s1298] %v1361
                %v1363 = vld [vmem:[%s1305 + $0x620] sm:%s1298]
                %1364 = vst [vmem:[%s1306 + $0x2a0] sm:%s1298] %v1363
                %v1365 = vld [vmem:[%s1305 + $0x658] sm:%s1298]
                %1366 = vst [vmem:[%s1306 + $0x2b8] sm:%s1298] %v1365
                %v1367 = vld [vmem:[%s1305 + $0x690] sm:%s1298]
                %1368 = vst [vmem:[%s1306 + $0x2d0] sm:%s1298] %v1367
                %v1369 = vld [vmem:[%s1305 + $0x6c8] sm:%s1298]
                %1370 = vst [vmem:[%s1306 + $0x2e8] sm:%s1298] %v1369
                %v1371 = vld [vmem:[%s1305 + $0x700] sm:%s1298]
                %1372 = vst [vmem:[%s1306 + $0x300] sm:%s1298] %v1371
                %v1373 = vld [vmem:[%s1305 + $0x738] sm:%s1298]
                %1374 = vst [vmem:[%s1306 + $0x318] sm:%s1298] %v1373
                %v1375 = vld [vmem:[%s1305 + $0x770] sm:%s1298]
                %1376 = vst [vmem:[%s1306 + $0x330] sm:%s1298] %v1375
                %v1377 = vld [vmem:[%s1305 + $0x7a8] sm:%s1298]
                %1378 = vst [vmem:[%s1306 + $0x348] sm:%s1298] %v1377
                %v1379 = vld [vmem:[%s1305 + $0x7e0] sm:%s1298]
                %1380 = vst [vmem:[%s1306 + $0x360] sm:%s1298] %v1379
                %v1381 = vld [vmem:[%s1305 + $0x818] sm:%s1298]
                %1382 = vst [vmem:[%s1306 + $0x378] sm:%s1298] %v1381
                %v1383 = vld [vmem:[%s1305 + $0x850] sm:%s1298]
                %1384 = vst [vmem:[%s1306 + $0x390] sm:%s1298] %v1383
                %v1385 = vld [vmem:[%s1305 + $0x888] sm:%s1298]
                %1386 = vst [vmem:[%s1306 + $0x3a8] sm:%s1298] %v1385
                %v1387 = vld [vmem:[%s1305 + $0x8c0] sm:%s1298]
                %1388 = vst [vmem:[%s1306 + $0x3c0] sm:%s1298] %v1387
                %v1389 = vld [vmem:[%s1305 + $0x8f8] sm:%s1298]
                %1390 = vst [vmem:[%s1306 + $0x3d8] sm:%s1298] %v1389
                %v1391 = vld [vmem:[%s1305 + $0x930] sm:%s1298]
                %1392 = vst [vmem:[%s1306 + $0x3f0] sm:%s1298] %v1391
                %v1393 = vld [vmem:[%s1305 + $0x968] sm:%s1298]
                %1394 = vst [vmem:[%s1306 + $0x408] sm:%s1298] %v1393
                %v1395 = vld [vmem:[%s1305 + $0x9a0] sm:%s1298]
                %1396 = vst [vmem:[%s1306 + $0x420] sm:%s1298] %v1395
                %v1397 = vld [vmem:[%s1305 + $0x9d8] sm:%s1298]
                %1398 = vst [vmem:[%s1306 + $0x438] sm:%s1298] %v1397
                %v1399 = vld [vmem:[%s1305 + $0xa10] sm:%s1298]
                %1400 = vst [vmem:[%s1306 + $0x450] sm:%s1298] %v1399
                %v1401 = vld [vmem:[%s1305 + $0xa48] sm:%s1298]
                %1402 = vst [vmem:[%s1306 + $0x468] sm:%s1298] %v1401
                %v1403 = vld [vmem:[%s1305 + $0xa80] sm:%s1298]
                %1404 = vst [vmem:[%s1306 + $0x480] sm:%s1298] %v1403
                %v1405 = vld [vmem:[%s1305 + $0xab8] sm:%s1298]
                %1406 = vst [vmem:[%s1306 + $0x498] sm:%s1298] %v1405
                %v1407 = vld [vmem:[%s1305 + $0xaf0] sm:%s1298]
                %1408 = vst [vmem:[%s1306 + $0x4b0] sm:%s1298] %v1407
                %v1409 = vld [vmem:[%s1305 + $0xb28] sm:%s1298]
                %1410 = vst [vmem:[%s1306 + $0x4c8] sm:%s1298] %v1409
                %v1411 = vld [vmem:[%s1305 + $0xb60] sm:%s1298]
                %1412 = vst [vmem:[%s1306 + $0x4e0] sm:%s1298] %v1411
                %v1413 = vld [vmem:[%s1305 + $0xb98] sm:%s1298]
                %1414 = vst [vmem:[%s1306 + $0x4f8] sm:%s1298] %v1413
                %v1415 = vld [vmem:[%s1305 + $0xbd0] sm:%s1298]
                %1416 = vst [vmem:[%s1306 + $0x510] sm:%s1298] %v1415
                %v1417 = vld [vmem:[%s1305 + $0xc08] sm:%s1298]
                %1418 = vst [vmem:[%s1306 + $0x528] sm:%s1298] %v1417
                %v1419 = vld [vmem:[%s1305 + $0xc40] sm:%s1298]
                %1420 = vst [vmem:[%s1306 + $0x540] sm:%s1298] %v1419
                %v1421 = vld [vmem:[%s1305 + $0xc78] sm:%s1298]
                %1422 = vst [vmem:[%s1306 + $0x558] sm:%s1298] %v1421
                %v1423 = vld [vmem:[%s1305 + $0xcb0] sm:%s1298]
                %1424 = vst [vmem:[%s1306 + $0x570] sm:%s1298] %v1423
                %v1425 = vld [vmem:[%s1305 + $0xce8] sm:%s1298]
                %1426 = vst [vmem:[%s1306 + $0x588] sm:%s1298] %v1425
                %v1427 = vld [vmem:[%s1305 + $0xd20] sm:%s1298]
                %1428 = vst [vmem:[%s1306 + $0x5a0] sm:%s1298] %v1427
                %v1429 = vld [vmem:[%s1305 + $0xd58] sm:%s1298]
                %1430 = vst [vmem:[%s1306 + $0x5b8] sm:%s1298] %v1429
                %v1431 = vld [vmem:[%s1305 + $0xd90] sm:%s1298]
                %1432 = vst [vmem:[%s1306 + $0x5d0] sm:%s1298] %v1431
                %v1433 = vld [vmem:[%s1305 + $0xdc8] sm:%s1298]
                %1434 = vst [vmem:[%s1306 + $0x5e8] sm:%s1298] %v1433
                %v1435 = vld [vmem:[%s1305 + $0xe00] sm:%s1298]
                %1436 = vst [vmem:[%s1306 + $0x600] sm:%s1298] %v1435
                %v1437 = vld [vmem:[%s1305 + $0xe38] sm:%s1298]
                %1438 = vst [vmem:[%s1306 + $0x618] sm:%s1298] %v1437
                %v1439 = vld [vmem:[%s1305 + $0xe70] sm:%s1298]
                %1440 = vst [vmem:[%s1306 + $0x630] sm:%s1298] %v1439
                %v1441 = vld [vmem:[%s1305 + $0xea8] sm:%s1298]
                %1442 = vst [vmem:[%s1306 + $0x648] sm:%s1298] %v1441
                %v1443 = vld [vmem:[%s1305 + $0xee0] sm:%s1298]
                %1444 = vst [vmem:[%s1306 + $0x660] sm:%s1298] %v1443
                %v1445 = vld [vmem:[%s1305 + $0xf18] sm:%s1298]
                %1446 = vst [vmem:[%s1306 + $0x678] sm:%s1298] %v1445
                %v1447 = vld [vmem:[%s1305 + $0xf50] sm:%s1298]
                %1448 = vst [vmem:[%s1306 + $0x690] sm:%s1298] %v1447
                %v1449 = vld [vmem:[%s1305 + $0xf88] sm:%s1298]
                %1450 = vst [vmem:[%s1306 + $0x6a8] sm:%s1298] %v1449
                %v1451 = vld [vmem:[%s1305 + $0xfc0] sm:%s1298]
                %1452 = vst [vmem:[%s1306 + $0x6c0] sm:%s1298] %v1451
                %v1453 = vld [vmem:[%s1305 + $0xff8] sm:%s1298]
                %1454 = vst [vmem:[%s1306 + $0x6d8] sm:%s1298] %v1453
                %v1455 = vld [vmem:[%s1305 + $0x1030] sm:%s1298]
                %1456 = vst [vmem:[%s1306 + $0x6f0] sm:%s1298] %v1455
                %v1457 = vld [vmem:[%s1305 + $0x1068] sm:%s1298]
                %1458 = vst [vmem:[%s1306 + $0x708] sm:%s1298] %v1457
                %v1459 = vld [vmem:[%s1305 + $0x10a0] sm:%s1298]
                %1460 = vst [vmem:[%s1306 + $0x720] sm:%s1298] %v1459
                %v1461 = vld [vmem:[%s1305 + $0x10d8] sm:%s1298]
                %1462 = vst [vmem:[%s1306 + $0x738] sm:%s1298] %v1461
                %v1463 = vld [vmem:[%s1305 + $0x1110] sm:%s1298]
                %1464 = vst [vmem:[%s1306 + $0x750] sm:%s1298] %v1463
                %v1465 = vld [vmem:[%s1305 + $0x1148] sm:%s1298]
                %1466 = vst [vmem:[%s1306 + $0x768] sm:%s1298] %v1465
                %v1467 = vld [vmem:[%s1305 + $0x1180] sm:%s1298]
                %1468 = vst [vmem:[%s1306 + $0x780] sm:%s1298] %v1467
                %v1469 = vld [vmem:[%s1305 + $0x11b8] sm:%s1298]
                %1470 = vst [vmem:[%s1306 + $0x798] sm:%s1298] %v1469
                %v1471 = vld [vmem:[%s1305 + $0x11f0] sm:%s1298]
                %1472 = vst [vmem:[%s1306 + $0x7b0] sm:%s1298] %v1471
                %v1473 = vld [vmem:[%s1305 + $0x1228] sm:%s1298]
                %1474 = vst [vmem:[%s1306 + $0x7c8] sm:%s1298] %v1473
                %v1475 = vld [vmem:[%s1305 + $0x1260] sm:%s1298]
                %1476 = vst [vmem:[%s1306 + $0x7e0] sm:%s1298] %v1475
                %v1477 = vld [vmem:[%s1305 + $0x1298] sm:%s1298]
                %1478 = vst [vmem:[%s1306 + $0x7f8] sm:%s1298] %v1477
                %v1479 = vld [vmem:[%s1305 + $0x12d0] sm:%s1298]
                %1480 = vst [vmem:[%s1306 + $0x810] sm:%s1298] %v1479
                %v1481 = vld [vmem:[%s1305 + $0x1308] sm:%s1298]
                %1482 = vst [vmem:[%s1306 + $0x828] sm:%s1298] %v1481
                %v1483 = vld [vmem:[%s1305 + $0x1340] sm:%s1298]
                %1484 = vst [vmem:[%s1306 + $0x840] sm:%s1298] %v1483
                %v1485 = vld [vmem:[%s1305 + $0x1378] sm:%s1298]
                %1486 = vst [vmem:[%s1306 + $0x858] sm:%s1298] %v1485
                %v1487 = vld [vmem:[%s1305 + $0x13b0] sm:%s1298]
                %1488 = vst [vmem:[%s1306 + $0x870] sm:%s1298] %v1487
                %v1489 = vld [vmem:[%s1305 + $0x13e8] sm:%s1298]
                %1490 = vst [vmem:[%s1306 + $0x888] sm:%s1298] %v1489
                %v1491 = vld [vmem:[%s1305 + $0x1420] sm:%s1298]
                %1492 = vst [vmem:[%s1306 + $0x8a0] sm:%s1298] %v1491
                %v1493 = vld [vmem:[%s1305 + $0x1458] sm:%s1298]
                %1494 = vst [vmem:[%s1306 + $0x8b8] sm:%s1298] %v1493
                %v1495 = vld [vmem:[%s1305 + $0x1490] sm:%s1298]
                %1496 = vst [vmem:[%s1306 + $0x8d0] sm:%s1298] %v1495
                %v1497 = vld [vmem:[%s1305 + $0x14c8] sm:%s1298]
                %1498 = vst [vmem:[%s1306 + $0x8e8] sm:%s1298] %v1497
                %v1499 = vld [vmem:[%s1305 + $0x1500] sm:%s1298]
                %1500 = vst [vmem:[%s1306 + $0x900] sm:%s1298] %v1499
                %v1501 = vld [vmem:[%s1305 + $0x1538] sm:%s1298]
                %1502 = vst [vmem:[%s1306 + $0x918] sm:%s1298] %v1501
                %v1503 = vld [vmem:[%s1305 + $0x1570] sm:%s1298]
                %1504 = vst [vmem:[%s1306 + $0x930] sm:%s1298] %v1503
                %v1505 = vld [vmem:[%s1305 + $0x15a8] sm:%s1298]
                %1506 = vst [vmem:[%s1306 + $0x948] sm:%s1298] %v1505
                %v1507 = vld [vmem:[%s1305 + $0x15e0] sm:%s1298]
                %1508 = vst [vmem:[%s1306 + $0x960] sm:%s1298] %v1507
                %v1509 = vld [vmem:[%s1305 + $0x1618] sm:%s1298]
                %1510 = vst [vmem:[%s1306 + $0x978] sm:%s1298] %v1509
                %v1511 = vld [vmem:[%s1305 + $0x1650] sm:%s1298]
                %1512 = vst [vmem:[%s1306 + $0x990] sm:%s1298] %v1511
                %v1513 = vld [vmem:[%s1305 + $0x1688] sm:%s1298]
                %1514 = vst [vmem:[%s1306 + $0x9a8] sm:%s1298] %v1513
                %v1515 = vld [vmem:[%s1305 + $0x16c0] sm:%s1298]
                %1516 = vst [vmem:[%s1306 + $0x9c0] sm:%s1298] %v1515
                %v1517 = vld [vmem:[%s1305 + $0x16f8] sm:%s1298]
                %1518 = vst [vmem:[%s1306 + $0x9d8] sm:%s1298] %v1517
                %v1519 = vld [vmem:[%s1305 + $0x1730] sm:%s1298]
                %1520 = vst [vmem:[%s1306 + $0x9f0] sm:%s1298] %v1519
                %v1521 = vld [vmem:[%s1305 + $0x1768] sm:%s1298]
                %1522 = vst [vmem:[%s1306 + $0xa08] sm:%s1298] %v1521
                %v1523 = vld [vmem:[%s1305 + $0x17a0] sm:%s1298]
                %1524 = vst [vmem:[%s1306 + $0xa20] sm:%s1298] %v1523
                %v1525 = vld [vmem:[%s1305 + $0x17d8] sm:%s1298]
                %1526 = vst [vmem:[%s1306 + $0xa38] sm:%s1298] %v1525
                %v1527 = vld [vmem:[%s1305 + $0x1810] sm:%s1298]
                %1528 = vst [vmem:[%s1306 + $0xa50] sm:%s1298] %v1527
                %v1529 = vld [vmem:[%s1305 + $0x1848] sm:%s1298]
                %1530 = vst [vmem:[%s1306 + $0xa68] sm:%s1298] %v1529
                %v1531 = vld [vmem:[%s1305 + $0x1880] sm:%s1298]
                %1532 = vst [vmem:[%s1306 + $0xa80] sm:%s1298] %v1531
                %v1533 = vld [vmem:[%s1305 + $0x18b8] sm:%s1298]
                %1534 = vst [vmem:[%s1306 + $0xa98] sm:%s1298] %v1533
                %v1535 = vld [vmem:[%s1305 + $0x18f0] sm:%s1298]
                %1536 = vst [vmem:[%s1306 + $0xab0] sm:%s1298] %v1535
                %v1537 = vld [vmem:[%s1305 + $0x1928] sm:%s1298]
                %1538 = vst [vmem:[%s1306 + $0xac8] sm:%s1298] %v1537
                %v1539 = vld [vmem:[%s1305 + $0x1960] sm:%s1298]
                %1540 = vst [vmem:[%s1306 + $0xae0] sm:%s1298] %v1539
                %v1541 = vld [vmem:[%s1305 + $0x1998] sm:%s1298]
                %1542 = vst [vmem:[%s1306 + $0xaf8] sm:%s1298] %v1541
                %v1543 = vld [vmem:[%s1305 + $0x19d0] sm:%s1298]
                %1544 = vst [vmem:[%s1306 + $0xb10] sm:%s1298] %v1543
                %v1545 = vld [vmem:[%s1305 + $0x1a08] sm:%s1298]
                %1546 = vst [vmem:[%s1306 + $0xb28] sm:%s1298] %v1545
                %v1547 = vld [vmem:[%s1305 + $0x1a40] sm:%s1298]
                %1548 = vst [vmem:[%s1306 + $0xb40] sm:%s1298] %v1547
                %v1549 = vld [vmem:[%s1305 + $0x1a78] sm:%s1298]
                %1550 = vst [vmem:[%s1306 + $0xb58] sm:%s1298] %v1549
                %v1551 = vld [vmem:[%s1305 + $0x1ab0] sm:%s1298]
                %1552 = vst [vmem:[%s1306 + $0xb70] sm:%s1298] %v1551
                %v1553 = vld [vmem:[%s1305 + $0x1ae8] sm:%s1298]
                %1554 = vst [vmem:[%s1306 + $0xb88] sm:%s1298] %v1553
                %v1555 = vld [vmem:[%s1305 + $0x1b20] sm:%s1298]
                %1556 = vst [vmem:[%s1306 + $0xba0] sm:%s1298] %v1555
                %v1557 = vld [vmem:[%s1305 + $0x1b58] sm:%s1298]
                %1558 = vst [vmem:[%s1306 + $0xbb8] sm:%s1298] %v1557
                %v1559 = vld [vmem:[%s1305 + $0x1b90] sm:%s1298]
                %1560 = vst [vmem:[%s1306 + $0xbd0] sm:%s1298] %v1559
                %v1561 = vld [vmem:[%s1305 + $0x1bc8] sm:%s1298]
                %1562 = vst [vmem:[%s1306 + $0xbe8] sm:%s1298] %v1561
              $region93: #{tpu_custom_call.1} parent=87 // loop_footer
                %s1304 = sadd.s32 1, %s1300
              $region94: #{tpu_custom_call.1} parent=87 // loop_footer_branch
                %1299 = sbr.rel target = $region90
              $region95: #{tpu_custom_call.1} parent=87 // loop_exit
                _
            $region88: #{tpu_custom_call.1} parent=79 // pred_fallthru
              _
          $region80: #{tpu_custom_call.1} parent=75 // pred_fallthru
            _
          %2391 = vnop
        $region76: #{tpu_custom_call.1} parent=19 // pred_fallthru
          _
      $region20: #{tpu_custom_call.1} parent=5 // pred_fallthru
        _
      %p2392 = scmp.le.s32.totalorder 1, %s9
      %p2393 = scmp.lt.s32.totalorder %s9, 4
      %p2394 = pnand %p2392, %p2393
      %p2395 = pneg %p2394
      // Predicated region
      $region125: #{tpu_custom_call.1} parent=5 // pred_check
        _
      $region126: #{tpu_custom_call.1} parent=5 // pred_check_branch
        %2397 = sbr.rel (%p2394) target = $region128
      $region127: #{tpu_custom_call.1} parent=5 // pred_region
        %s2398 = ssub.s32 %s9, 1
        %s2399 = sand.u32 %s57, 1
        %s2400 = sand.u32 %s57, 1
        %s2401 = smul.addr %s2400, 3072
        %s2402 = scalar_lea.vmem [#allocation2], %s2401
        // Predicated region
        $region129: #{tpu_custom_call.1} parent=127 // pred_check
          %p2403 = pneg %p70
        $region130: #{tpu_custom_call.1} parent=127 // pred_check_branch
          %2405 = sbr.rel (%p2403) target = $region132
        $region131: #{tpu_custom_call.1} parent=127 // pred_region
          _
        $region132: #{tpu_custom_call.1} parent=127 // pred_fallthru
          _
        %s2406 = sand.u32 %s85, 1
        %s2407 = sand.u32 %s85, 1
        %s2408 = smul.addr %s2407, 3072
        %s2409 = scalar_lea.vmem [#allocation3], %s2408
        // Predicated region
        $region133: #{tpu_custom_call.1} parent=127 // pred_check
          %p2410 = pneg %p98
        $region134: #{tpu_custom_call.1} parent=127 // pred_check_branch
          %2412 = sbr.rel (%p2410) target = $region136
        $region135: #{tpu_custom_call.1} parent=127 // pred_region
          _
        $region136: #{tpu_custom_call.1} parent=127 // pred_fallthru
          _
        %p2413 = pneg %p42
        %p2414 = pneg %p39
        %s2415 = sand.u32 %s57, 1
        %s2416 = sand.u32 %s57, 1
        %s2417 = smul.addr %s2416, 3072
        %s2418 = scalar_lea.vmem [#allocation2], %s2417
        %p2419 = pneg %p70
        %p2420 = pneg %p67
        %s2421 = sand.u32 %s85, 1
        %s2422 = sand.u32 %s85, 1
        %s2423 = smul.addr %s2422, 3072
        %s2424 = scalar_lea.vmem [#allocation3], %s2423
        %p2425 = pneg %p98
        %p2426 = pneg %p95
        %p2427 = pneg %p126
        %p2428 = pneg %p123
        %s2429 = sand.u32 %s113, 1
        %s2430 = sand.u32 %s113, 1
        %s2431 = smul.addr %s2430, 768
        %s2432 = scalar_lea.vmem [#allocation4], %s2431
        %s2433 = smul.u32 3, %s19
        %s2434 = ssub.s32 7, %s2433
        %p2435 = scmp.lt.s32.totalorder %s2434, 3
        %s2436 = scalar_select %p2435, %s2434, 3
        %s2437 = smul.u32 16384, %s2436
        %s2438 = smul.u32 3, %s19
        %s2439 = ssub.s32 7, %s2438
        %p2440 = scmp.lt.s32.totalorder %s2439, 3
        %s2441 = scalar_select %p2440, %s2439, 3
        %s2442 = smul.u32 16384, %s2441
        %s2443 = smul.u32 3, %s19
        %s2444 = ssub.s32 7, %s2443
        %p2445 = scmp.lt.s32.totalorder %s2444, 3
        %s2446 = scalar_select %p2445, %s2444, 3
        %s2447 = smul.u32 4096, %s2446
        %v2449 = vld [vmem:[%s2402] sm:$0xff]
        %v2450 = vld [vmem:[%s2402 + $0x8] sm:$0xff]
        %v2451 = vld [vmem:[%s2402 + $0x10] sm:$0xff]
        %v2452 = vld [vmem:[%s2402 + $0x18] sm:$0xff]
        %v2453 = vld [vmem:[%s2402 + $0x20] sm:$0xff]
        %v2454 = vld [vmem:[%s2402 + $0x28] sm:$0xff]
        %v2455 = vld [vmem:[%s2402 + $0x30] sm:$0xff]
        %v2456 = vld [vmem:[%s2402 + $0x38] sm:$0xff]
        %v2457 = vld [vmem:[%s2402 + $0x40] sm:$0xff]
        %v2458 = vld [vmem:[%s2402 + $0x48] sm:$0xff]
        %v2459 = vld [vmem:[%s2402 + $0x50] sm:$0xff]
        %v2460 = vld [vmem:[%s2402 + $0x58] sm:$0xff]
        %v2461 = vld [vmem:[%s2402 + $0x60] sm:$0xff]
        %v2462 = vld [vmem:[%s2402 + $0x68] sm:$0xff]
        %v2463 = vld [vmem:[%s2402 + $0x70] sm:$0xff]
        %v2464 = vld [vmem:[%s2402 + $0x78] sm:$0xff]
        %v2465 = vld [vmem:[%s2402 + $0x80] sm:$0xff]
        %v2466 = vld [vmem:[%s2402 + $0x88] sm:$0xff]
        %v2467 = vld [vmem:[%s2402 + $0x90] sm:$0xff]
        %v2468 = vld [vmem:[%s2402 + $0x98] sm:$0xff]
        %v2469 = vld [vmem:[%s2402 + $0xa0] sm:$0xff]
        %v2470 = vld [vmem:[%s2402 + $0xa8] sm:$0xff]
        %v2471 = vld [vmem:[%s2402 + $0xb0] sm:$0xff]
        %v2472 = vld [vmem:[%s2402 + $0xb8] sm:$0xff]
        %v2473 = vld [vmem:[%s2402 + $0xc0] sm:$0xff]
        %v2474 = vld [vmem:[%s2402 + $0xc8] sm:$0xff]
        %v2475 = vld [vmem:[%s2402 + $0xd0] sm:$0xff]
        %v2476 = vld [vmem:[%s2402 + $0xd8] sm:$0xff]
        %v2477 = vld [vmem:[%s2402 + $0xe0] sm:$0xff]
        %v2478 = vld [vmem:[%s2402 + $0xe8] sm:$0xff]
        %v2479 = vld [vmem:[%s2402 + $0xf0] sm:$0xff]
        %v2480 = vld [vmem:[%s2402 + $0xf8] sm:$0xff]
        %v2481 = vld [vmem:[%s2402 + $0x100] sm:$0xff]
        %v2482 = vld [vmem:[%s2402 + $0x108] sm:$0xff]
        %v2483 = vld [vmem:[%s2402 + $0x110] sm:$0xff]
        %v2484 = vld [vmem:[%s2402 + $0x118] sm:$0xff]
        %v2485 = vld [vmem:[%s2402 + $0x120] sm:$0xff]
        %v2486 = vld [vmem:[%s2402 + $0x128] sm:$0xff]
        %v2487 = vld [vmem:[%s2402 + $0x130] sm:$0xff]
        %v2488 = vld [vmem:[%s2402 + $0x138] sm:$0xff]
        %v2489 = vld [vmem:[%s2402 + $0x140] sm:$0xff]
        %v2490 = vld [vmem:[%s2402 + $0x148] sm:$0xff]
        %v2491 = vld [vmem:[%s2402 + $0x150] sm:$0xff]
        %v2492 = vld [vmem:[%s2402 + $0x158] sm:$0xff]
        %v2493 = vld [vmem:[%s2402 + $0x160] sm:$0xff]
        %v2494 = vld [vmem:[%s2402 + $0x168] sm:$0xff]
        %v2495 = vld [vmem:[%s2402 + $0x170] sm:$0xff]
        %v2496 = vld [vmem:[%s2402 + $0x178] sm:$0xff]
        %v2497 = vld [vmem:[%s2402 + $0x180] sm:$0xff]
        %v2498 = vld [vmem:[%s2402 + $0x188] sm:$0xff]
        %v2499 = vld [vmem:[%s2402 + $0x190] sm:$0xff]
        %v2500 = vld [vmem:[%s2402 + $0x198] sm:$0xff]
        %v2501 = vld [vmem:[%s2402 + $0x1a0] sm:$0xff]
        %v2502 = vld [vmem:[%s2402 + $0x1a8] sm:$0xff]
        %v2503 = vld [vmem:[%s2402 + $0x1b0] sm:$0xff]
        %v2504 = vld [vmem:[%s2402 + $0x1b8] sm:$0xff]
        %v2505 = vld [vmem:[%s2402 + $0x1c0] sm:$0xff]
        %v2506 = vld [vmem:[%s2402 + $0x1c8] sm:$0xff]
        %v2507 = vld [vmem:[%s2402 + $0x1d0] sm:$0xff]
        %v2508 = vld [vmem:[%s2402 + $0x1d8] sm:$0xff]
        %v2509 = vld [vmem:[%s2402 + $0x1e0] sm:$0xff]
        %v2510 = vld [vmem:[%s2402 + $0x1e8] sm:$0xff]
        %v2511 = vld [vmem:[%s2402 + $0x1f0] sm:$0xff]
        %v2512 = vld [vmem:[%s2402 + $0x1f8] sm:$0xff]
        %v2513 = vld [vmem:[%s2402 + $0x200] sm:$0xff]
        %v2514 = vld [vmem:[%s2402 + $0x208] sm:$0xff]
        %v2515 = vld [vmem:[%s2402 + $0x210] sm:$0xff]
        %v2516 = vld [vmem:[%s2402 + $0x218] sm:$0xff]
        %v2517 = vld [vmem:[%s2402 + $0x220] sm:$0xff]
        %v2518 = vld [vmem:[%s2402 + $0x228] sm:$0xff]
        %v2519 = vld [vmem:[%s2402 + $0x230] sm:$0xff]
        %v2520 = vld [vmem:[%s2402 + $0x238] sm:$0xff]
        %v2521 = vld [vmem:[%s2402 + $0x240] sm:$0xff]
        %v2522 = vld [vmem:[%s2402 + $0x248] sm:$0xff]
        %v2523 = vld [vmem:[%s2402 + $0x250] sm:$0xff]
        %v2524 = vld [vmem:[%s2402 + $0x258] sm:$0xff]
        %v2525 = vld [vmem:[%s2402 + $0x260] sm:$0xff]
        %v2526 = vld [vmem:[%s2402 + $0x268] sm:$0xff]
        %v2527 = vld [vmem:[%s2402 + $0x270] sm:$0xff]
        %v2528 = vld [vmem:[%s2402 + $0x278] sm:$0xff]
        %v2529 = vld [vmem:[%s2402 + $0x280] sm:$0xff]
        %v2530 = vld [vmem:[%s2402 + $0x288] sm:$0xff]
        %v2531 = vld [vmem:[%s2402 + $0x290] sm:$0xff]
        %v2532 = vld [vmem:[%s2402 + $0x298] sm:$0xff]
        %v2533 = vld [vmem:[%s2402 + $0x2a0] sm:$0xff]
        %v2534 = vld [vmem:[%s2402 + $0x2a8] sm:$0xff]
        %v2535 = vld [vmem:[%s2402 + $0x2b0] sm:$0xff]
        %v2536 = vld [vmem:[%s2402 + $0x2b8] sm:$0xff]
        %v2537 = vld [vmem:[%s2402 + $0x2c0] sm:$0xff]
        %v2538 = vld [vmem:[%s2402 + $0x2c8] sm:$0xff]
        %v2539 = vld [vmem:[%s2402 + $0x2d0] sm:$0xff]
        %v2540 = vld [vmem:[%s2402 + $0x2d8] sm:$0xff]
        %v2541 = vld [vmem:[%s2402 + $0x2e0] sm:$0xff]
        %v2542 = vld [vmem:[%s2402 + $0x2e8] sm:$0xff]
        %v2543 = vld [vmem:[%s2402 + $0x2f0] sm:$0xff]
        %v2544 = vld [vmem:[%s2402 + $0x2f8] sm:$0xff]
        %v2545 = vld [vmem:[%s2402 + $0x300] sm:$0xff]
        %v2546 = vld [vmem:[%s2402 + $0x308] sm:$0xff]
        %v2547 = vld [vmem:[%s2402 + $0x310] sm:$0xff]
        %v2548 = vld [vmem:[%s2402 + $0x318] sm:$0xff]
        %v2549 = vld [vmem:[%s2402 + $0x320] sm:$0xff]
        %v2550 = vld [vmem:[%s2402 + $0x328] sm:$0xff]
        %v2551 = vld [vmem:[%s2402 + $0x330] sm:$0xff]
        %v2552 = vld [vmem:[%s2402 + $0x338] sm:$0xff]
        %v2553 = vld [vmem:[%s2402 + $0x340] sm:$0xff]
        %v2554 = vld [vmem:[%s2402 + $0x348] sm:$0xff]
        %v2555 = vld [vmem:[%s2402 + $0x350] sm:$0xff]
        %v2556 = vld [vmem:[%s2402 + $0x358] sm:$0xff]
        %v2557 = vld [vmem:[%s2402 + $0x360] sm:$0xff]
        %v2558 = vld [vmem:[%s2402 + $0x368] sm:$0xff]
        %v2559 = vld [vmem:[%s2402 + $0x370] sm:$0xff]
        %v2560 = vld [vmem:[%s2402 + $0x378] sm:$0xff]
        %v2561 = vld [vmem:[%s2402 + $0x380] sm:$0xff]
        %v2562 = vld [vmem:[%s2402 + $0x388] sm:$0xff]
        %v2563 = vld [vmem:[%s2402 + $0x390] sm:$0xff]
        %v2564 = vld [vmem:[%s2402 + $0x398] sm:$0xff]
        %v2565 = vld [vmem:[%s2402 + $0x3a0] sm:$0xff]
        %v2566 = vld [vmem:[%s2402 + $0x3a8] sm:$0xff]
        %v2567 = vld [vmem:[%s2402 + $0x3b0] sm:$0xff]
        %v2568 = vld [vmem:[%s2402 + $0x3b8] sm:$0xff]
        %v2569 = vld [vmem:[%s2402 + $0x3c0] sm:$0xff]
        %v2570 = vld [vmem:[%s2402 + $0x3c8] sm:$0xff]
        %v2571 = vld [vmem:[%s2402 + $0x3d0] sm:$0xff]
        %v2572 = vld [vmem:[%s2402 + $0x3d8] sm:$0xff]
        %v2573 = vld [vmem:[%s2402 + $0x3e0] sm:$0xff]
        %v2574 = vld [vmem:[%s2402 + $0x3e8] sm:$0xff]
        %v2575 = vld [vmem:[%s2402 + $0x3f0] sm:$0xff]
        %v2576 = vld [vmem:[%s2402 + $0x3f8] sm:$0xff]
        %v2577 = vld [vmem:[%s2402 + $0x400] sm:$0xff]
        %v2578 = vld [vmem:[%s2402 + $0x408] sm:$0xff]
        %v2579 = vld [vmem:[%s2402 + $0x410] sm:$0xff]
        %v2580 = vld [vmem:[%s2402 + $0x418] sm:$0xff]
        %v2581 = vld [vmem:[%s2402 + $0x420] sm:$0xff]
        %v2582 = vld [vmem:[%s2402 + $0x428] sm:$0xff]
        %v2583 = vld [vmem:[%s2402 + $0x430] sm:$0xff]
        %v2584 = vld [vmem:[%s2402 + $0x438] sm:$0xff]
        %v2585 = vld [vmem:[%s2402 + $0x440] sm:$0xff]
        %v2586 = vld [vmem:[%s2402 + $0x448] sm:$0xff]
        %v2587 = vld [vmem:[%s2402 + $0x450] sm:$0xff]
        %v2588 = vld [vmem:[%s2402 + $0x458] sm:$0xff]
        %v2589 = vld [vmem:[%s2402 + $0x460] sm:$0xff]
        %v2590 = vld [vmem:[%s2402 + $0x468] sm:$0xff]
        %v2591 = vld [vmem:[%s2402 + $0x470] sm:$0xff]
        %v2592 = vld [vmem:[%s2402 + $0x478] sm:$0xff]
        %v2593 = vld [vmem:[%s2402 + $0x480] sm:$0xff]
        %v2594 = vld [vmem:[%s2402 + $0x488] sm:$0xff]
        %v2595 = vld [vmem:[%s2402 + $0x490] sm:$0xff]
        %v2596 = vld [vmem:[%s2402 + $0x498] sm:$0xff]
        %v2597 = vld [vmem:[%s2402 + $0x4a0] sm:$0xff]
        %v2598 = vld [vmem:[%s2402 + $0x4a8] sm:$0xff]
        %v2599 = vld [vmem:[%s2402 + $0x4b0] sm:$0xff]
        %v2600 = vld [vmem:[%s2402 + $0x4b8] sm:$0xff]
        %v2601 = vld [vmem:[%s2402 + $0x4c0] sm:$0xff]
        %v2602 = vld [vmem:[%s2402 + $0x4c8] sm:$0xff]
        %v2603 = vld [vmem:[%s2402 + $0x4d0] sm:$0xff]
        %v2604 = vld [vmem:[%s2402 + $0x4d8] sm:$0xff]
        %v2605 = vld [vmem:[%s2402 + $0x4e0] sm:$0xff]
        %v2606 = vld [vmem:[%s2402 + $0x4e8] sm:$0xff]
        %v2607 = vld [vmem:[%s2402 + $0x4f0] sm:$0xff]
        %v2608 = vld [vmem:[%s2402 + $0x4f8] sm:$0xff]
        %v2609 = vld [vmem:[%s2402 + $0x500] sm:$0xff]
        %v2610 = vld [vmem:[%s2402 + $0x508] sm:$0xff]
        %v2611 = vld [vmem:[%s2402 + $0x510] sm:$0xff]
        %v2612 = vld [vmem:[%s2402 + $0x518] sm:$0xff]
        %v2613 = vld [vmem:[%s2402 + $0x520] sm:$0xff]
        %v2614 = vld [vmem:[%s2402 + $0x528] sm:$0xff]
        %v2615 = vld [vmem:[%s2402 + $0x530] sm:$0xff]
        %v2616 = vld [vmem:[%s2402 + $0x538] sm:$0xff]
        %v2617 = vld [vmem:[%s2402 + $0x540] sm:$0xff]
        %v2618 = vld [vmem:[%s2402 + $0x548] sm:$0xff]
        %v2619 = vld [vmem:[%s2402 + $0x550] sm:$0xff]
        %v2620 = vld [vmem:[%s2402 + $0x558] sm:$0xff]
        %v2621 = vld [vmem:[%s2402 + $0x560] sm:$0xff]
        %v2622 = vld [vmem:[%s2402 + $0x568] sm:$0xff]
        %v2623 = vld [vmem:[%s2402 + $0x570] sm:$0xff]
        %v2624 = vld [vmem:[%s2402 + $0x578] sm:$0xff]
        %v2625 = vld [vmem:[%s2402 + $0x580] sm:$0xff]
        %v2626 = vld [vmem:[%s2402 + $0x588] sm:$0xff]
        %v2627 = vld [vmem:[%s2402 + $0x590] sm:$0xff]
        %v2628 = vld [vmem:[%s2402 + $0x598] sm:$0xff]
        %v2629 = vld [vmem:[%s2402 + $0x5a0] sm:$0xff]
        %v2630 = vld [vmem:[%s2402 + $0x5a8] sm:$0xff]
        %v2631 = vld [vmem:[%s2402 + $0x5b0] sm:$0xff]
        %v2632 = vld [vmem:[%s2402 + $0x5b8] sm:$0xff]
        %v2633 = vld [vmem:[%s2402 + $0x5c0] sm:$0xff]
        %v2634 = vld [vmem:[%s2402 + $0x5c8] sm:$0xff]
        %v2635 = vld [vmem:[%s2402 + $0x5d0] sm:$0xff]
        %v2636 = vld [vmem:[%s2402 + $0x5d8] sm:$0xff]
        %v2637 = vld [vmem:[%s2402 + $0x5e0] sm:$0xff]
        %v2638 = vld [vmem:[%s2402 + $0x5e8] sm:$0xff]
        %v2639 = vld [vmem:[%s2402 + $0x5f0] sm:$0xff]
        %v2640 = vld [vmem:[%s2402 + $0x5f8] sm:$0xff]
        %v2641 = vld [vmem:[%s2402 + $0x600] sm:$0xff]
        %v2642 = vld [vmem:[%s2402 + $0x608] sm:$0xff]
        %v2643 = vld [vmem:[%s2402 + $0x610] sm:$0xff]
        %v2644 = vld [vmem:[%s2402 + $0x618] sm:$0xff]
        %v2645 = vld [vmem:[%s2402 + $0x620] sm:$0xff]
        %v2646 = vld [vmem:[%s2402 + $0x628] sm:$0xff]
        %v2647 = vld [vmem:[%s2402 + $0x630] sm:$0xff]
        %v2648 = vld [vmem:[%s2402 + $0x638] sm:$0xff]
        %v2649 = vld [vmem:[%s2402 + $0x640] sm:$0xff]
        %v2650 = vld [vmem:[%s2402 + $0x648] sm:$0xff]
        %v2651 = vld [vmem:[%s2402 + $0x650] sm:$0xff]
        %v2652 = vld [vmem:[%s2402 + $0x658] sm:$0xff]
        %v2653 = vld [vmem:[%s2402 + $0x660] sm:$0xff]
        %v2654 = vld [vmem:[%s2402 + $0x668] sm:$0xff]
        %v2655 = vld [vmem:[%s2402 + $0x670] sm:$0xff]
        %v2656 = vld [vmem:[%s2402 + $0x678] sm:$0xff]
        %v2657 = vld [vmem:[%s2402 + $0x680] sm:$0xff]
        %v2658 = vld [vmem:[%s2402 + $0x688] sm:$0xff]
        %v2659 = vld [vmem:[%s2402 + $0x690] sm:$0xff]
        %v2660 = vld [vmem:[%s2402 + $0x698] sm:$0xff]
        %v2661 = vld [vmem:[%s2402 + $0x6a0] sm:$0xff]
        %v2662 = vld [vmem:[%s2402 + $0x6a8] sm:$0xff]
        %v2663 = vld [vmem:[%s2402 + $0x6b0] sm:$0xff]
        %v2664 = vld [vmem:[%s2402 + $0x6b8] sm:$0xff]
        %v2665 = vld [vmem:[%s2402 + $0x6c0] sm:$0xff]
        %v2666 = vld [vmem:[%s2402 + $0x6c8] sm:$0xff]
        %v2667 = vld [vmem:[%s2402 + $0x6d0] sm:$0xff]
        %v2668 = vld [vmem:[%s2402 + $0x6d8] sm:$0xff]
        %v2669 = vld [vmem:[%s2402 + $0x6e0] sm:$0xff]
        %v2670 = vld [vmem:[%s2402 + $0x6e8] sm:$0xff]
        %v2671 = vld [vmem:[%s2402 + $0x6f0] sm:$0xff]
        %v2672 = vld [vmem:[%s2402 + $0x6f8] sm:$0xff]
        %v2673 = vld [vmem:[%s2402 + $0x700] sm:$0xff]
        %v2674 = vld [vmem:[%s2402 + $0x708] sm:$0xff]
        %v2675 = vld [vmem:[%s2402 + $0x710] sm:$0xff]
        %v2676 = vld [vmem:[%s2402 + $0x718] sm:$0xff]
        %v2677 = vld [vmem:[%s2402 + $0x720] sm:$0xff]
        %v2678 = vld [vmem:[%s2402 + $0x728] sm:$0xff]
        %v2679 = vld [vmem:[%s2402 + $0x730] sm:$0xff]
        %v2680 = vld [vmem:[%s2402 + $0x738] sm:$0xff]
        %v2681 = vld [vmem:[%s2402 + $0x740] sm:$0xff]
        %v2682 = vld [vmem:[%s2402 + $0x748] sm:$0xff]
        %v2683 = vld [vmem:[%s2402 + $0x750] sm:$0xff]
        %v2684 = vld [vmem:[%s2402 + $0x758] sm:$0xff]
        %v2685 = vld [vmem:[%s2402 + $0x760] sm:$0xff]
        %v2686 = vld [vmem:[%s2402 + $0x768] sm:$0xff]
        %v2687 = vld [vmem:[%s2402 + $0x770] sm:$0xff]
        %v2688 = vld [vmem:[%s2402 + $0x778] sm:$0xff]
        %v2689 = vld [vmem:[%s2402 + $0x780] sm:$0xff]
        %v2690 = vld [vmem:[%s2402 + $0x788] sm:$0xff]
        %v2691 = vld [vmem:[%s2402 + $0x790] sm:$0xff]
        %v2692 = vld [vmem:[%s2402 + $0x798] sm:$0xff]
        %v2693 = vld [vmem:[%s2402 + $0x7a0] sm:$0xff]
        %v2694 = vld [vmem:[%s2402 + $0x7a8] sm:$0xff]
        %v2695 = vld [vmem:[%s2402 + $0x7b0] sm:$0xff]
        %v2696 = vld [vmem:[%s2402 + $0x7b8] sm:$0xff]
        %v2697 = vld [vmem:[%s2402 + $0x7c0] sm:$0xff]
        %v2698 = vld [vmem:[%s2402 + $0x7c8] sm:$0xff]
        %v2699 = vld [vmem:[%s2402 + $0x7d0] sm:$0xff]
        %v2700 = vld [vmem:[%s2402 + $0x7d8] sm:$0xff]
        %v2701 = vld [vmem:[%s2402 + $0x7e0] sm:$0xff]
        %v2702 = vld [vmem:[%s2402 + $0x7e8] sm:$0xff]
        %v2703 = vld [vmem:[%s2402 + $0x7f0] sm:$0xff]
        %v2704 = vld [vmem:[%s2402 + $0x7f8] sm:$0xff]
        %v2705 = vld [vmem:[%s2402 + $0x800] sm:$0xff]
        %v2706 = vld [vmem:[%s2402 + $0x808] sm:$0xff]
        %v2707 = vld [vmem:[%s2402 + $0x810] sm:$0xff]
        %v2708 = vld [vmem:[%s2402 + $0x818] sm:$0xff]
        %v2709 = vld [vmem:[%s2402 + $0x820] sm:$0xff]
        %v2710 = vld [vmem:[%s2402 + $0x828] sm:$0xff]
        %v2711 = vld [vmem:[%s2402 + $0x830] sm:$0xff]
        %v2712 = vld [vmem:[%s2402 + $0x838] sm:$0xff]
        %v2713 = vld [vmem:[%s2402 + $0x840] sm:$0xff]
        %v2714 = vld [vmem:[%s2402 + $0x848] sm:$0xff]
        %v2715 = vld [vmem:[%s2402 + $0x850] sm:$0xff]
        %v2716 = vld [vmem:[%s2402 + $0x858] sm:$0xff]
        %v2717 = vld [vmem:[%s2402 + $0x860] sm:$0xff]
        %v2718 = vld [vmem:[%s2402 + $0x868] sm:$0xff]
        %v2719 = vld [vmem:[%s2402 + $0x870] sm:$0xff]
        %v2720 = vld [vmem:[%s2402 + $0x878] sm:$0xff]
        %v2721 = vld [vmem:[%s2402 + $0x880] sm:$0xff]
        %v2722 = vld [vmem:[%s2402 + $0x888] sm:$0xff]
        %v2723 = vld [vmem:[%s2402 + $0x890] sm:$0xff]
        %v2724 = vld [vmem:[%s2402 + $0x898] sm:$0xff]
        %v2725 = vld [vmem:[%s2402 + $0x8a0] sm:$0xff]
        %v2726 = vld [vmem:[%s2402 + $0x8a8] sm:$0xff]
        %v2727 = vld [vmem:[%s2402 + $0x8b0] sm:$0xff]
        %v2728 = vld [vmem:[%s2402 + $0x8b8] sm:$0xff]
        %v2729 = vld [vmem:[%s2402 + $0x8c0] sm:$0xff]
        %v2730 = vld [vmem:[%s2402 + $0x8c8] sm:$0xff]
        %v2731 = vld [vmem:[%s2402 + $0x8d0] sm:$0xff]
        %v2732 = vld [vmem:[%s2402 + $0x8d8] sm:$0xff]
        %v2733 = vld [vmem:[%s2402 + $0x8e0] sm:$0xff]
        %v2734 = vld [vmem:[%s2402 + $0x8e8] sm:$0xff]
        %v2735 = vld [vmem:[%s2402 + $0x8f0] sm:$0xff]
        %v2736 = vld [vmem:[%s2402 + $0x8f8] sm:$0xff]
        %v2737 = vld [vmem:[%s2402 + $0x900] sm:$0xff]
        %v2738 = vld [vmem:[%s2402 + $0x908] sm:$0xff]
        %v2739 = vld [vmem:[%s2402 + $0x910] sm:$0xff]
        %v2740 = vld [vmem:[%s2402 + $0x918] sm:$0xff]
        %v2741 = vld [vmem:[%s2402 + $0x920] sm:$0xff]
        %v2742 = vld [vmem:[%s2402 + $0x928] sm:$0xff]
        %v2743 = vld [vmem:[%s2402 + $0x930] sm:$0xff]
        %v2744 = vld [vmem:[%s2402 + $0x938] sm:$0xff]
        %v2745 = vld [vmem:[%s2402 + $0x940] sm:$0xff]
        %v2746 = vld [vmem:[%s2402 + $0x948] sm:$0xff]
        %v2747 = vld [vmem:[%s2402 + $0x950] sm:$0xff]
        %v2748 = vld [vmem:[%s2402 + $0x958] sm:$0xff]
        %v2749 = vld [vmem:[%s2402 + $0x960] sm:$0xff]
        %v2750 = vld [vmem:[%s2402 + $0x968] sm:$0xff]
        %v2751 = vld [vmem:[%s2402 + $0x970] sm:$0xff]
        %v2752 = vld [vmem:[%s2402 + $0x978] sm:$0xff]
        %v2753 = vld [vmem:[%s2402 + $0x980] sm:$0xff]
        %v2754 = vld [vmem:[%s2402 + $0x988] sm:$0xff]
        %v2755 = vld [vmem:[%s2402 + $0x990] sm:$0xff]
        %v2756 = vld [vmem:[%s2402 + $0x998] sm:$0xff]
        %v2757 = vld [vmem:[%s2402 + $0x9a0] sm:$0xff]
        %v2758 = vld [vmem:[%s2402 + $0x9a8] sm:$0xff]
        %v2759 = vld [vmem:[%s2402 + $0x9b0] sm:$0xff]
        %v2760 = vld [vmem:[%s2402 + $0x9b8] sm:$0xff]
        %v2761 = vld [vmem:[%s2402 + $0x9c0] sm:$0xff]
        %v2762 = vld [vmem:[%s2402 + $0x9c8] sm:$0xff]
        %v2763 = vld [vmem:[%s2402 + $0x9d0] sm:$0xff]
        %v2764 = vld [vmem:[%s2402 + $0x9d8] sm:$0xff]
        %v2765 = vld [vmem:[%s2402 + $0x9e0] sm:$0xff]
        %v2766 = vld [vmem:[%s2402 + $0x9e8] sm:$0xff]
        %v2767 = vld [vmem:[%s2402 + $0x9f0] sm:$0xff]
        %v2768 = vld [vmem:[%s2402 + $0x9f8] sm:$0xff]
        %v2769 = vld [vmem:[%s2402 + $0xa00] sm:$0xff]
        %v2770 = vld [vmem:[%s2402 + $0xa08] sm:$0xff]
        %v2771 = vld [vmem:[%s2402 + $0xa10] sm:$0xff]
        %v2772 = vld [vmem:[%s2402 + $0xa18] sm:$0xff]
        %v2773 = vld [vmem:[%s2402 + $0xa20] sm:$0xff]
        %v2774 = vld [vmem:[%s2402 + $0xa28] sm:$0xff]
        %v2775 = vld [vmem:[%s2402 + $0xa30] sm:$0xff]
        %v2776 = vld [vmem:[%s2402 + $0xa38] sm:$0xff]
        %v2777 = vld [vmem:[%s2402 + $0xa40] sm:$0xff]
        %v2778 = vld [vmem:[%s2402 + $0xa48] sm:$0xff]
        %v2779 = vld [vmem:[%s2402 + $0xa50] sm:$0xff]
        %v2780 = vld [vmem:[%s2402 + $0xa58] sm:$0xff]
        %v2781 = vld [vmem:[%s2402 + $0xa60] sm:$0xff]
        %v2782 = vld [vmem:[%s2402 + $0xa68] sm:$0xff]
        %v2783 = vld [vmem:[%s2402 + $0xa70] sm:$0xff]
        %v2784 = vld [vmem:[%s2402 + $0xa78] sm:$0xff]
        %v2785 = vld [vmem:[%s2402 + $0xa80] sm:$0xff]
        %v2786 = vld [vmem:[%s2402 + $0xa88] sm:$0xff]
        %v2787 = vld [vmem:[%s2402 + $0xa90] sm:$0xff]
        %v2788 = vld [vmem:[%s2402 + $0xa98] sm:$0xff]
        %v2789 = vld [vmem:[%s2402 + $0xaa0] sm:$0xff]
        %v2790 = vld [vmem:[%s2402 + $0xaa8] sm:$0xff]
        %v2791 = vld [vmem:[%s2402 + $0xab0] sm:$0xff]
        %v2792 = vld [vmem:[%s2402 + $0xab8] sm:$0xff]
        %v2793 = vld [vmem:[%s2402 + $0xac0] sm:$0xff]
        %v2794 = vld [vmem:[%s2402 + $0xac8] sm:$0xff]
        %v2795 = vld [vmem:[%s2402 + $0xad0] sm:$0xff]
        %v2796 = vld [vmem:[%s2402 + $0xad8] sm:$0xff]
        %v2797 = vld [vmem:[%s2402 + $0xae0] sm:$0xff]
        %v2798 = vld [vmem:[%s2402 + $0xae8] sm:$0xff]
        %v2799 = vld [vmem:[%s2402 + $0xaf0] sm:$0xff]
        %v2800 = vld [vmem:[%s2402 + $0xaf8] sm:$0xff]
        %v2801 = vld [vmem:[%s2402 + $0xb00] sm:$0xff]
        %v2802 = vld [vmem:[%s2402 + $0xb08] sm:$0xff]
        %v2803 = vld [vmem:[%s2402 + $0xb10] sm:$0xff]
        %v2804 = vld [vmem:[%s2402 + $0xb18] sm:$0xff]
        %v2805 = vld [vmem:[%s2402 + $0xb20] sm:$0xff]
        %v2806 = vld [vmem:[%s2402 + $0xb28] sm:$0xff]
        %v2807 = vld [vmem:[%s2402 + $0xb30] sm:$0xff]
        %v2808 = vld [vmem:[%s2402 + $0xb38] sm:$0xff]
        %v2809 = vld [vmem:[%s2402 + $0xb40] sm:$0xff]
        %v2810 = vld [vmem:[%s2402 + $0xb48] sm:$0xff]
        %v2811 = vld [vmem:[%s2402 + $0xb50] sm:$0xff]
        %v2812 = vld [vmem:[%s2402 + $0xb58] sm:$0xff]
        %v2813 = vld [vmem:[%s2402 + $0xb60] sm:$0xff]
        %v2814 = vld [vmem:[%s2402 + $0xb68] sm:$0xff]
        %v2815 = vld [vmem:[%s2402 + $0xb70] sm:$0xff]
        %v2816 = vld [vmem:[%s2402 + $0xb78] sm:$0xff]
        %v2817 = vld [vmem:[%s2402 + $0xb80] sm:$0xff]
        %v2818 = vld [vmem:[%s2402 + $0xb88] sm:$0xff]
        %v2819 = vld [vmem:[%s2402 + $0xb90] sm:$0xff]
        %v2820 = vld [vmem:[%s2402 + $0xb98] sm:$0xff]
        %v2821 = vld [vmem:[%s2402 + $0xba0] sm:$0xff]
        %v2822 = vld [vmem:[%s2402 + $0xba8] sm:$0xff]
        %v2823 = vld [vmem:[%s2402 + $0xbb0] sm:$0xff]
        %v2824 = vld [vmem:[%s2402 + $0xbb8] sm:$0xff]
        %v2825 = vld [vmem:[%s2402 + $0xbc0] sm:$0xff]
        %v2826 = vld [vmem:[%s2402 + $0xbc8] sm:$0xff]
        %v2827 = vld [vmem:[%s2402 + $0xbd0] sm:$0xff]
        %v2828 = vld [vmem:[%s2402 + $0xbd8] sm:$0xff]
        %v2829 = vld [vmem:[%s2402 + $0xbe0] sm:$0xff]
        %v2830 = vld [vmem:[%s2402 + $0xbe8] sm:$0xff]
        %v2831 = vld [vmem:[%s2402 + $0xbf0] sm:$0xff]
        %v2832 = vld [vmem:[%s2402 + $0xbf8] sm:$0xff]
        %v2833 = vld [vmem:[%s2409] sm:$0xff]
        %v2834 = vld [vmem:[%s2409 + $0x8] sm:$0xff]
        %v2835 = vld [vmem:[%s2409 + $0x10] sm:$0xff]
        %v2836 = vld [vmem:[%s2409 + $0x18] sm:$0xff]
        %v2837 = vld [vmem:[%s2409 + $0x20] sm:$0xff]
        %v2838 = vld [vmem:[%s2409 + $0x28] sm:$0xff]
        %v2839 = vld [vmem:[%s2409 + $0x30] sm:$0xff]
        %v2840 = vld [vmem:[%s2409 + $0x38] sm:$0xff]
        %v2841 = vld [vmem:[%s2409 + $0x40] sm:$0xff]
        %v2842 = vld [vmem:[%s2409 + $0x48] sm:$0xff]
        %v2843 = vld [vmem:[%s2409 + $0x50] sm:$0xff]
        %v2844 = vld [vmem:[%s2409 + $0x58] sm:$0xff]
        %v2845 = vld [vmem:[%s2409 + $0x60] sm:$0xff]
        %v2846 = vld [vmem:[%s2409 + $0x68] sm:$0xff]
        %v2847 = vld [vmem:[%s2409 + $0x70] sm:$0xff]
        %v2848 = vld [vmem:[%s2409 + $0x78] sm:$0xff]
        %v2849 = vld [vmem:[%s2409 + $0x80] sm:$0xff]
        %v2850 = vld [vmem:[%s2409 + $0x88] sm:$0xff]
        %v2851 = vld [vmem:[%s2409 + $0x90] sm:$0xff]
        %v2852 = vld [vmem:[%s2409 + $0x98] sm:$0xff]
        %v2853 = vld [vmem:[%s2409 + $0xa0] sm:$0xff]
        %v2854 = vld [vmem:[%s2409 + $0xa8] sm:$0xff]
        %v2855 = vld [vmem:[%s2409 + $0xb0] sm:$0xff]
        %v2856 = vld [vmem:[%s2409 + $0xb8] sm:$0xff]
        %v2857 = vld [vmem:[%s2409 + $0xc0] sm:$0xff]
        %v2858 = vld [vmem:[%s2409 + $0xc8] sm:$0xff]
        %v2859 = vld [vmem:[%s2409 + $0xd0] sm:$0xff]
        %v2860 = vld [vmem:[%s2409 + $0xd8] sm:$0xff]
        %v2861 = vld [vmem:[%s2409 + $0xe0] sm:$0xff]
        %v2862 = vld [vmem:[%s2409 + $0xe8] sm:$0xff]
        %v2863 = vld [vmem:[%s2409 + $0xf0] sm:$0xff]
        %v2864 = vld [vmem:[%s2409 + $0xf8] sm:$0xff]
        %v2865 = vld [vmem:[%s2409 + $0x100] sm:$0xff]
        %v2866 = vld [vmem:[%s2409 + $0x108] sm:$0xff]
        %v2867 = vld [vmem:[%s2409 + $0x110] sm:$0xff]
        %v2868 = vld [vmem:[%s2409 + $0x118] sm:$0xff]
        %v2869 = vld [vmem:[%s2409 + $0x120] sm:$0xff]
        %v2870 = vld [vmem:[%s2409 + $0x128] sm:$0xff]
        %v2871 = vld [vmem:[%s2409 + $0x130] sm:$0xff]
        %v2872 = vld [vmem:[%s2409 + $0x138] sm:$0xff]
        %v2873 = vld [vmem:[%s2409 + $0x140] sm:$0xff]
        %v2874 = vld [vmem:[%s2409 + $0x148] sm:$0xff]
        %v2875 = vld [vmem:[%s2409 + $0x150] sm:$0xff]
        %v2876 = vld [vmem:[%s2409 + $0x158] sm:$0xff]
        %v2877 = vld [vmem:[%s2409 + $0x160] sm:$0xff]
        %v2878 = vld [vmem:[%s2409 + $0x168] sm:$0xff]
        %v2879 = vld [vmem:[%s2409 + $0x170] sm:$0xff]
        %v2880 = vld [vmem:[%s2409 + $0x178] sm:$0xff]
        %v2881 = vld [vmem:[%s2409 + $0x180] sm:$0xff]
        %v2882 = vld [vmem:[%s2409 + $0x188] sm:$0xff]
        %v2883 = vld [vmem:[%s2409 + $0x190] sm:$0xff]
        %v2884 = vld [vmem:[%s2409 + $0x198] sm:$0xff]
        %v2885 = vld [vmem:[%s2409 + $0x1a0] sm:$0xff]
        %v2886 = vld [vmem:[%s2409 + $0x1a8] sm:$0xff]
        %v2887 = vld [vmem:[%s2409 + $0x1b0] sm:$0xff]
        %v2888 = vld [vmem:[%s2409 + $0x1b8] sm:$0xff]
        %v2889 = vld [vmem:[%s2409 + $0x1c0] sm:$0xff]
        %v2890 = vld [vmem:[%s2409 + $0x1c8] sm:$0xff]
        %v2891 = vld [vmem:[%s2409 + $0x1d0] sm:$0xff]
        %v2892 = vld [vmem:[%s2409 + $0x1d8] sm:$0xff]
        %v2893 = vld [vmem:[%s2409 + $0x1e0] sm:$0xff]
        %v2894 = vld [vmem:[%s2409 + $0x1e8] sm:$0xff]
        %v2895 = vld [vmem:[%s2409 + $0x1f0] sm:$0xff]
        %v2896 = vld [vmem:[%s2409 + $0x1f8] sm:$0xff]
        %v2897 = vld [vmem:[%s2409 + $0x200] sm:$0xff]
        %v2898 = vld [vmem:[%s2409 + $0x208] sm:$0xff]
        %v2899 = vld [vmem:[%s2409 + $0x210] sm:$0xff]
        %v2900 = vld [vmem:[%s2409 + $0x218] sm:$0xff]
        %v2901 = vld [vmem:[%s2409 + $0x220] sm:$0xff]
        %v2902 = vld [vmem:[%s2409 + $0x228] sm:$0xff]
        %v2903 = vld [vmem:[%s2409 + $0x230] sm:$0xff]
        %v2904 = vld [vmem:[%s2409 + $0x238] sm:$0xff]
        %v2905 = vld [vmem:[%s2409 + $0x240] sm:$0xff]
        %v2906 = vld [vmem:[%s2409 + $0x248] sm:$0xff]
        %v2907 = vld [vmem:[%s2409 + $0x250] sm:$0xff]
        %v2908 = vld [vmem:[%s2409 + $0x258] sm:$0xff]
        %v2909 = vld [vmem:[%s2409 + $0x260] sm:$0xff]
        %v2910 = vld [vmem:[%s2409 + $0x268] sm:$0xff]
        %v2911 = vld [vmem:[%s2409 + $0x270] sm:$0xff]
        %v2912 = vld [vmem:[%s2409 + $0x278] sm:$0xff]
        %v2913 = vld [vmem:[%s2409 + $0x280] sm:$0xff]
        %v2914 = vld [vmem:[%s2409 + $0x288] sm:$0xff]
        %v2915 = vld [vmem:[%s2409 + $0x290] sm:$0xff]
        %v2916 = vld [vmem:[%s2409 + $0x298] sm:$0xff]
        %v2917 = vld [vmem:[%s2409 + $0x2a0] sm:$0xff]
        %v2918 = vld [vmem:[%s2409 + $0x2a8] sm:$0xff]
        %v2919 = vld [vmem:[%s2409 + $0x2b0] sm:$0xff]
        %v2920 = vld [vmem:[%s2409 + $0x2b8] sm:$0xff]
        %v2921 = vld [vmem:[%s2409 + $0x2c0] sm:$0xff]
        %v2922 = vld [vmem:[%s2409 + $0x2c8] sm:$0xff]
        %v2923 = vld [vmem:[%s2409 + $0x2d0] sm:$0xff]
        %v2924 = vld [vmem:[%s2409 + $0x2d8] sm:$0xff]
        %v2925 = vld [vmem:[%s2409 + $0x2e0] sm:$0xff]
        %v2926 = vld [vmem:[%s2409 + $0x2e8] sm:$0xff]
        %v2927 = vld [vmem:[%s2409 + $0x2f0] sm:$0xff]
        %v2928 = vld [vmem:[%s2409 + $0x2f8] sm:$0xff]
        %v2929 = vld [vmem:[%s2409 + $0x300] sm:$0xff]
        %v2930 = vld [vmem:[%s2409 + $0x308] sm:$0xff]
        %v2931 = vld [vmem:[%s2409 + $0x310] sm:$0xff]
        %v2932 = vld [vmem:[%s2409 + $0x318] sm:$0xff]
        %v2933 = vld [vmem:[%s2409 + $0x320] sm:$0xff]
        %v2934 = vld [vmem:[%s2409 + $0x328] sm:$0xff]
        %v2935 = vld [vmem:[%s2409 + $0x330] sm:$0xff]
        %v2936 = vld [vmem:[%s2409 + $0x338] sm:$0xff]
        %v2937 = vld [vmem:[%s2409 + $0x340] sm:$0xff]
        %v2938 = vld [vmem:[%s2409 + $0x348] sm:$0xff]
        %v2939 = vld [vmem:[%s2409 + $0x350] sm:$0xff]
        %v2940 = vld [vmem:[%s2409 + $0x358] sm:$0xff]
        %v2941 = vld [vmem:[%s2409 + $0x360] sm:$0xff]
        %v2942 = vld [vmem:[%s2409 + $0x368] sm:$0xff]
        %v2943 = vld [vmem:[%s2409 + $0x370] sm:$0xff]
        %v2944 = vld [vmem:[%s2409 + $0x378] sm:$0xff]
        %v2945 = vld [vmem:[%s2409 + $0x380] sm:$0xff]
        %v2946 = vld [vmem:[%s2409 + $0x388] sm:$0xff]
        %v2947 = vld [vmem:[%s2409 + $0x390] sm:$0xff]
        %v2948 = vld [vmem:[%s2409 + $0x398] sm:$0xff]
        %v2949 = vld [vmem:[%s2409 + $0x3a0] sm:$0xff]
        %v2950 = vld [vmem:[%s2409 + $0x3a8] sm:$0xff]
        %v2951 = vld [vmem:[%s2409 + $0x3b0] sm:$0xff]
        %v2952 = vld [vmem:[%s2409 + $0x3b8] sm:$0xff]
        %v2953 = vld [vmem:[%s2409 + $0x3c0] sm:$0xff]
        %v2954 = vld [vmem:[%s2409 + $0x3c8] sm:$0xff]
        %v2955 = vld [vmem:[%s2409 + $0x3d0] sm:$0xff]
        %v2956 = vld [vmem:[%s2409 + $0x3d8] sm:$0xff]
        %v2957 = vld [vmem:[%s2409 + $0x3e0] sm:$0xff]
        %v2958 = vld [vmem:[%s2409 + $0x3e8] sm:$0xff]
        %v2959 = vld [vmem:[%s2409 + $0x3f0] sm:$0xff]
        %v2960 = vld [vmem:[%s2409 + $0x3f8] sm:$0xff]
        %v2961 = vld [vmem:[%s2409 + $0x400] sm:$0xff]
        %v2962 = vld [vmem:[%s2409 + $0x408] sm:$0xff]
        %v2963 = vld [vmem:[%s2409 + $0x410] sm:$0xff]
        %v2964 = vld [vmem:[%s2409 + $0x418] sm:$0xff]
        %v2965 = vld [vmem:[%s2409 + $0x420] sm:$0xff]
        %v2966 = vld [vmem:[%s2409 + $0x428] sm:$0xff]
        %v2967 = vld [vmem:[%s2409 + $0x430] sm:$0xff]
        %v2968 = vld [vmem:[%s2409 + $0x438] sm:$0xff]
        %v2969 = vld [vmem:[%s2409 + $0x440] sm:$0xff]
        %v2970 = vld [vmem:[%s2409 + $0x448] sm:$0xff]
        %v2971 = vld [vmem:[%s2409 + $0x450] sm:$0xff]
        %v2972 = vld [vmem:[%s2409 + $0x458] sm:$0xff]
        %v2973 = vld [vmem:[%s2409 + $0x460] sm:$0xff]
        %v2974 = vld [vmem:[%s2409 + $0x468] sm:$0xff]
        %v2975 = vld [vmem:[%s2409 + $0x470] sm:$0xff]
        %v2976 = vld [vmem:[%s2409 + $0x478] sm:$0xff]
        %v2977 = vld [vmem:[%s2409 + $0x480] sm:$0xff]
        %v2978 = vld [vmem:[%s2409 + $0x488] sm:$0xff]
        %v2979 = vld [vmem:[%s2409 + $0x490] sm:$0xff]
        %v2980 = vld [vmem:[%s2409 + $0x498] sm:$0xff]
        %v2981 = vld [vmem:[%s2409 + $0x4a0] sm:$0xff]
        %v2982 = vld [vmem:[%s2409 + $0x4a8] sm:$0xff]
        %v2983 = vld [vmem:[%s2409 + $0x4b0] sm:$0xff]
        %v2984 = vld [vmem:[%s2409 + $0x4b8] sm:$0xff]
        %v2985 = vld [vmem:[%s2409 + $0x4c0] sm:$0xff]
        %v2986 = vld [vmem:[%s2409 + $0x4c8] sm:$0xff]
        %v2987 = vld [vmem:[%s2409 + $0x4d0] sm:$0xff]
        %v2988 = vld [vmem:[%s2409 + $0x4d8] sm:$0xff]
        %v2989 = vld [vmem:[%s2409 + $0x4e0] sm:$0xff]
        %v2990 = vld [vmem:[%s2409 + $0x4e8] sm:$0xff]
        %v2991 = vld [vmem:[%s2409 + $0x4f0] sm:$0xff]
        %v2992 = vld [vmem:[%s2409 + $0x4f8] sm:$0xff]
        %v2993 = vld [vmem:[%s2409 + $0x500] sm:$0xff]
        %v2994 = vld [vmem:[%s2409 + $0x508] sm:$0xff]
        %v2995 = vld [vmem:[%s2409 + $0x510] sm:$0xff]
        %v2996 = vld [vmem:[%s2409 + $0x518] sm:$0xff]
        %v2997 = vld [vmem:[%s2409 + $0x520] sm:$0xff]
        %v2998 = vld [vmem:[%s2409 + $0x528] sm:$0xff]
        %v2999 = vld [vmem:[%s2409 + $0x530] sm:$0xff]
        %v3000 = vld [vmem:[%s2409 + $0x538] sm:$0xff]
        %v3001 = vld [vmem:[%s2409 + $0x540] sm:$0xff]
        %v3002 = vld [vmem:[%s2409 + $0x548] sm:$0xff]
        %v3003 = vld [vmem:[%s2409 + $0x550] sm:$0xff]
        %v3004 = vld [vmem:[%s2409 + $0x558] sm:$0xff]
        %v3005 = vld [vmem:[%s2409 + $0x560] sm:$0xff]
        %v3006 = vld [vmem:[%s2409 + $0x568] sm:$0xff]
        %v3007 = vld [vmem:[%s2409 + $0x570] sm:$0xff]
        %v3008 = vld [vmem:[%s2409 + $0x578] sm:$0xff]
        %v3009 = vld [vmem:[%s2409 + $0x580] sm:$0xff]
        %v3010 = vld [vmem:[%s2409 + $0x588] sm:$0xff]
        %v3011 = vld [vmem:[%s2409 + $0x590] sm:$0xff]
        %v3012 = vld [vmem:[%s2409 + $0x598] sm:$0xff]
        %v3013 = vld [vmem:[%s2409 + $0x5a0] sm:$0xff]
        %v3014 = vld [vmem:[%s2409 + $0x5a8] sm:$0xff]
        %v3015 = vld [vmem:[%s2409 + $0x5b0] sm:$0xff]
        %v3016 = vld [vmem:[%s2409 + $0x5b8] sm:$0xff]
        %v3017 = vld [vmem:[%s2409 + $0x5c0] sm:$0xff]
        %v3018 = vld [vmem:[%s2409 + $0x5c8] sm:$0xff]
        %v3019 = vld [vmem:[%s2409 + $0x5d0] sm:$0xff]
        %v3020 = vld [vmem:[%s2409 + $0x5d8] sm:$0xff]
        %v3021 = vld [vmem:[%s2409 + $0x5e0] sm:$0xff]
        %v3022 = vld [vmem:[%s2409 + $0x5e8] sm:$0xff]
        %v3023 = vld [vmem:[%s2409 + $0x5f0] sm:$0xff]
        %v3024 = vld [vmem:[%s2409 + $0x5f8] sm:$0xff]
        %v3025 = vld [vmem:[%s2409 + $0x600] sm:$0xff]
        %v3026 = vld [vmem:[%s2409 + $0x608] sm:$0xff]
        %v3027 = vld [vmem:[%s2409 + $0x610] sm:$0xff]
        %v3028 = vld [vmem:[%s2409 + $0x618] sm:$0xff]
        %v3029 = vld [vmem:[%s2409 + $0x620] sm:$0xff]
        %v3030 = vld [vmem:[%s2409 + $0x628] sm:$0xff]
        %v3031 = vld [vmem:[%s2409 + $0x630] sm:$0xff]
        %v3032 = vld [vmem:[%s2409 + $0x638] sm:$0xff]
        %v3033 = vld [vmem:[%s2409 + $0x640] sm:$0xff]
        %v3034 = vld [vmem:[%s2409 + $0x648] sm:$0xff]
        %v3035 = vld [vmem:[%s2409 + $0x650] sm:$0xff]
        %v3036 = vld [vmem:[%s2409 + $0x658] sm:$0xff]
        %v3037 = vld [vmem:[%s2409 + $0x660] sm:$0xff]
        %v3038 = vld [vmem:[%s2409 + $0x668] sm:$0xff]
        %v3039 = vld [vmem:[%s2409 + $0x670] sm:$0xff]
        %v3040 = vld [vmem:[%s2409 + $0x678] sm:$0xff]
        %v3041 = vld [vmem:[%s2409 + $0x680] sm:$0xff]
        %v3042 = vld [vmem:[%s2409 + $0x688] sm:$0xff]
        %v3043 = vld [vmem:[%s2409 + $0x690] sm:$0xff]
        %v3044 = vld [vmem:[%s2409 + $0x698] sm:$0xff]
        %v3045 = vld [vmem:[%s2409 + $0x6a0] sm:$0xff]
        %v3046 = vld [vmem:[%s2409 + $0x6a8] sm:$0xff]
        %v3047 = vld [vmem:[%s2409 + $0x6b0] sm:$0xff]
        %v3048 = vld [vmem:[%s2409 + $0x6b8] sm:$0xff]
        %v3049 = vld [vmem:[%s2409 + $0x6c0] sm:$0xff]
        %v3050 = vld [vmem:[%s2409 + $0x6c8] sm:$0xff]
        %v3051 = vld [vmem:[%s2409 + $0x6d0] sm:$0xff]
        %v3052 = vld [vmem:[%s2409 + $0x6d8] sm:$0xff]
        %v3053 = vld [vmem:[%s2409 + $0x6e0] sm:$0xff]
        %v3054 = vld [vmem:[%s2409 + $0x6e8] sm:$0xff]
        %v3055 = vld [vmem:[%s2409 + $0x6f0] sm:$0xff]
        %v3056 = vld [vmem:[%s2409 + $0x6f8] sm:$0xff]
        %v3057 = vld [vmem:[%s2409 + $0x700] sm:$0xff]
        %v3058 = vld [vmem:[%s2409 + $0x708] sm:$0xff]
        %v3059 = vld [vmem:[%s2409 + $0x710] sm:$0xff]
        %v3060 = vld [vmem:[%s2409 + $0x718] sm:$0xff]
        %v3061 = vld [vmem:[%s2409 + $0x720] sm:$0xff]
        %v3062 = vld [vmem:[%s2409 + $0x728] sm:$0xff]
        %v3063 = vld [vmem:[%s2409 + $0x730] sm:$0xff]
        %v3064 = vld [vmem:[%s2409 + $0x738] sm:$0xff]
        %v3065 = vld [vmem:[%s2409 + $0x740] sm:$0xff]
        %v3066 = vld [vmem:[%s2409 + $0x748] sm:$0xff]
        %v3067 = vld [vmem:[%s2409 + $0x750] sm:$0xff]
        %v3068 = vld [vmem:[%s2409 + $0x758] sm:$0xff]
        %v3069 = vld [vmem:[%s2409 + $0x760] sm:$0xff]
        %v3070 = vld [vmem:[%s2409 + $0x768] sm:$0xff]
        %v3071 = vld [vmem:[%s2409 + $0x770] sm:$0xff]
        %v3072 = vld [vmem:[%s2409 + $0x778] sm:$0xff]
        %v3073 = vld [vmem:[%s2409 + $0x780] sm:$0xff]
        %v3074 = vld [vmem:[%s2409 + $0x788] sm:$0xff]
        %v3075 = vld [vmem:[%s2409 + $0x790] sm:$0xff]
        %v3076 = vld [vmem:[%s2409 + $0x798] sm:$0xff]
        %v3077 = vld [vmem:[%s2409 + $0x7a0] sm:$0xff]
        %v3078 = vld [vmem:[%s2409 + $0x7a8] sm:$0xff]
        %v3079 = vld [vmem:[%s2409 + $0x7b0] sm:$0xff]
        %v3080 = vld [vmem:[%s2409 + $0x7b8] sm:$0xff]
        %v3081 = vld [vmem:[%s2409 + $0x7c0] sm:$0xff]
        %v3082 = vld [vmem:[%s2409 + $0x7c8] sm:$0xff]
        %v3083 = vld [vmem:[%s2409 + $0x7d0] sm:$0xff]
        %v3084 = vld [vmem:[%s2409 + $0x7d8] sm:$0xff]
        %v3085 = vld [vmem:[%s2409 + $0x7e0] sm:$0xff]
        %v3086 = vld [vmem:[%s2409 + $0x7e8] sm:$0xff]
        %v3087 = vld [vmem:[%s2409 + $0x7f0] sm:$0xff]
        %v3088 = vld [vmem:[%s2409 + $0x7f8] sm:$0xff]
        %v3089 = vld [vmem:[%s2409 + $0x800] sm:$0xff]
        %v3090 = vld [vmem:[%s2409 + $0x808] sm:$0xff]
        %v3091 = vld [vmem:[%s2409 + $0x810] sm:$0xff]
        %v3092 = vld [vmem:[%s2409 + $0x818] sm:$0xff]
        %v3093 = vld [vmem:[%s2409 + $0x820] sm:$0xff]
        %v3094 = vld [vmem:[%s2409 + $0x828] sm:$0xff]
        %v3095 = vld [vmem:[%s2409 + $0x830] sm:$0xff]
        %v3096 = vld [vmem:[%s2409 + $0x838] sm:$0xff]
        %v3097 = vld [vmem:[%s2409 + $0x840] sm:$0xff]
        %v3098 = vld [vmem:[%s2409 + $0x848] sm:$0xff]
        %v3099 = vld [vmem:[%s2409 + $0x850] sm:$0xff]
        %v3100 = vld [vmem:[%s2409 + $0x858] sm:$0xff]
        %v3101 = vld [vmem:[%s2409 + $0x860] sm:$0xff]
        %v3102 = vld [vmem:[%s2409 + $0x868] sm:$0xff]
        %v3103 = vld [vmem:[%s2409 + $0x870] sm:$0xff]
        %v3104 = vld [vmem:[%s2409 + $0x878] sm:$0xff]
        %v3105 = vld [vmem:[%s2409 + $0x880] sm:$0xff]
        %v3106 = vld [vmem:[%s2409 + $0x888] sm:$0xff]
        %v3107 = vld [vmem:[%s2409 + $0x890] sm:$0xff]
        %v3108 = vld [vmem:[%s2409 + $0x898] sm:$0xff]
        %v3109 = vld [vmem:[%s2409 + $0x8a0] sm:$0xff]
        %v3110 = vld [vmem:[%s2409 + $0x8a8] sm:$0xff]
        %v3111 = vld [vmem:[%s2409 + $0x8b0] sm:$0xff]
        %v3112 = vld [vmem:[%s2409 + $0x8b8] sm:$0xff]
        %v3113 = vld [vmem:[%s2409 + $0x8c0] sm:$0xff]
        %v3114 = vld [vmem:[%s2409 + $0x8c8] sm:$0xff]
        %v3115 = vld [vmem:[%s2409 + $0x8d0] sm:$0xff]
        %v3116 = vld [vmem:[%s2409 + $0x8d8] sm:$0xff]
        %v3117 = vld [vmem:[%s2409 + $0x8e0] sm:$0xff]
        %v3118 = vld [vmem:[%s2409 + $0x8e8] sm:$0xff]
        %v3119 = vld [vmem:[%s2409 + $0x8f0] sm:$0xff]
        %v3120 = vld [vmem:[%s2409 + $0x8f8] sm:$0xff]
        %v3121 = vld [vmem:[%s2409 + $0x900] sm:$0xff]
        %v3122 = vld [vmem:[%s2409 + $0x908] sm:$0xff]
        %v3123 = vld [vmem:[%s2409 + $0x910] sm:$0xff]
        %v3124 = vld [vmem:[%s2409 + $0x918] sm:$0xff]
        %v3125 = vld [vmem:[%s2409 + $0x920] sm:$0xff]
        %v3126 = vld [vmem:[%s2409 + $0x928] sm:$0xff]
        %v3127 = vld [vmem:[%s2409 + $0x930] sm:$0xff]
        %v3128 = vld [vmem:[%s2409 + $0x938] sm:$0xff]
        %v3129 = vld [vmem:[%s2409 + $0x940] sm:$0xff]
        %v3130 = vld [vmem:[%s2409 + $0x948] sm:$0xff]
        %v3131 = vld [vmem:[%s2409 + $0x950] sm:$0xff]
        %v3132 = vld [vmem:[%s2409 + $0x958] sm:$0xff]
        %v3133 = vld [vmem:[%s2409 + $0x960] sm:$0xff]
        %v3134 = vld [vmem:[%s2409 + $0x968] sm:$0xff]
        %v3135 = vld [vmem:[%s2409 + $0x970] sm:$0xff]
        %v3136 = vld [vmem:[%s2409 + $0x978] sm:$0xff]
        %v3137 = vld [vmem:[%s2409 + $0x980] sm:$0xff]
        %v3138 = vld [vmem:[%s2409 + $0x988] sm:$0xff]
        %v3139 = vld [vmem:[%s2409 + $0x990] sm:$0xff]
        %v3140 = vld [vmem:[%s2409 + $0x998] sm:$0xff]
        %v3141 = vld [vmem:[%s2409 + $0x9a0] sm:$0xff]
        %v3142 = vld [vmem:[%s2409 + $0x9a8] sm:$0xff]
        %v3143 = vld [vmem:[%s2409 + $0x9b0] sm:$0xff]
        %v3144 = vld [vmem:[%s2409 + $0x9b8] sm:$0xff]
        %v3145 = vld [vmem:[%s2409 + $0x9c0] sm:$0xff]
        %v3146 = vld [vmem:[%s2409 + $0x9c8] sm:$0xff]
        %v3147 = vld [vmem:[%s2409 + $0x9d0] sm:$0xff]
        %v3148 = vld [vmem:[%s2409 + $0x9d8] sm:$0xff]
        %v3149 = vld [vmem:[%s2409 + $0x9e0] sm:$0xff]
        %v3150 = vld [vmem:[%s2409 + $0x9e8] sm:$0xff]
        %v3151 = vld [vmem:[%s2409 + $0x9f0] sm:$0xff]
        %v3152 = vld [vmem:[%s2409 + $0x9f8] sm:$0xff]
        %v3153 = vld [vmem:[%s2409 + $0xa00] sm:$0xff]
        %v3154 = vld [vmem:[%s2409 + $0xa08] sm:$0xff]
        %v3155 = vld [vmem:[%s2409 + $0xa10] sm:$0xff]
        %v3156 = vld [vmem:[%s2409 + $0xa18] sm:$0xff]
        %v3157 = vld [vmem:[%s2409 + $0xa20] sm:$0xff]
        %v3158 = vld [vmem:[%s2409 + $0xa28] sm:$0xff]
        %v3159 = vld [vmem:[%s2409 + $0xa30] sm:$0xff]
        %v3160 = vld [vmem:[%s2409 + $0xa38] sm:$0xff]
        %v3161 = vld [vmem:[%s2409 + $0xa40] sm:$0xff]
        %v3162 = vld [vmem:[%s2409 + $0xa48] sm:$0xff]
        %v3163 = vld [vmem:[%s2409 + $0xa50] sm:$0xff]
        %v3164 = vld [vmem:[%s2409 + $0xa58] sm:$0xff]
        %v3165 = vld [vmem:[%s2409 + $0xa60] sm:$0xff]
        %v3166 = vld [vmem:[%s2409 + $0xa68] sm:$0xff]
        %v3167 = vld [vmem:[%s2409 + $0xa70] sm:$0xff]
        %v3168 = vld [vmem:[%s2409 + $0xa78] sm:$0xff]
        %v3169 = vld [vmem:[%s2409 + $0xa80] sm:$0xff]
        %v3170 = vld [vmem:[%s2409 + $0xa88] sm:$0xff]
        %v3171 = vld [vmem:[%s2409 + $0xa90] sm:$0xff]
        %v3172 = vld [vmem:[%s2409 + $0xa98] sm:$0xff]
        %v3173 = vld [vmem:[%s2409 + $0xaa0] sm:$0xff]
        %v3174 = vld [vmem:[%s2409 + $0xaa8] sm:$0xff]
        %v3175 = vld [vmem:[%s2409 + $0xab0] sm:$0xff]
        %v3176 = vld [vmem:[%s2409 + $0xab8] sm:$0xff]
        %v3177 = vld [vmem:[%s2409 + $0xac0] sm:$0xff]
        %v3178 = vld [vmem:[%s2409 + $0xac8] sm:$0xff]
        %v3179 = vld [vmem:[%s2409 + $0xad0] sm:$0xff]
        %v3180 = vld [vmem:[%s2409 + $0xad8] sm:$0xff]
        %v3181 = vld [vmem:[%s2409 + $0xae0] sm:$0xff]
        %v3182 = vld [vmem:[%s2409 + $0xae8] sm:$0xff]
        %v3183 = vld [vmem:[%s2409 + $0xaf0] sm:$0xff]
        %v3184 = vld [vmem:[%s2409 + $0xaf8] sm:$0xff]
        %v3185 = vld [vmem:[%s2409 + $0xb00] sm:$0xff]
        %v3186 = vld [vmem:[%s2409 + $0xb08] sm:$0xff]
        %v3187 = vld [vmem:[%s2409 + $0xb10] sm:$0xff]
        %v3188 = vld [vmem:[%s2409 + $0xb18] sm:$0xff]
        %v3189 = vld [vmem:[%s2409 + $0xb20] sm:$0xff]
        %v3190 = vld [vmem:[%s2409 + $0xb28] sm:$0xff]
        %v3191 = vld [vmem:[%s2409 + $0xb30] sm:$0xff]
        %v3192 = vld [vmem:[%s2409 + $0xb38] sm:$0xff]
        %v3193 = vld [vmem:[%s2409 + $0xb40] sm:$0xff]
        %v3194 = vld [vmem:[%s2409 + $0xb48] sm:$0xff]
        %v3195 = vld [vmem:[%s2409 + $0xb50] sm:$0xff]
        %v3196 = vld [vmem:[%s2409 + $0xb58] sm:$0xff]
        %v3197 = vld [vmem:[%s2409 + $0xb60] sm:$0xff]
        %v3198 = vld [vmem:[%s2409 + $0xb68] sm:$0xff]
        %v3199 = vld [vmem:[%s2409 + $0xb70] sm:$0xff]
        %v3200 = vld [vmem:[%s2409 + $0xb78] sm:$0xff]
        %v3201 = vld [vmem:[%s2409 + $0xb80] sm:$0xff]
        %v3202 = vld [vmem:[%s2409 + $0xb88] sm:$0xff]
        %v3203 = vld [vmem:[%s2409 + $0xb90] sm:$0xff]
        %v3204 = vld [vmem:[%s2409 + $0xb98] sm:$0xff]
        %v3205 = vld [vmem:[%s2409 + $0xba0] sm:$0xff]
        %v3206 = vld [vmem:[%s2409 + $0xba8] sm:$0xff]
        %v3207 = vld [vmem:[%s2409 + $0xbb0] sm:$0xff]
        %v3208 = vld [vmem:[%s2409 + $0xbb8] sm:$0xff]
        %v3209 = vld [vmem:[%s2409 + $0xbc0] sm:$0xff]
        %v3210 = vld [vmem:[%s2409 + $0xbc8] sm:$0xff]
        %v3211 = vld [vmem:[%s2409 + $0xbd0] sm:$0xff]
        %v3212 = vld [vmem:[%s2409 + $0xbd8] sm:$0xff]
        %v3213 = vld [vmem:[%s2409 + $0xbe0] sm:$0xff]
        %v3214 = vld [vmem:[%s2409 + $0xbe8] sm:$0xff]
        %v3215 = vld [vmem:[%s2409 + $0xbf0] sm:$0xff]
        %v3216 = vld [vmem:[%s2409 + $0xbf8] sm:$0xff]
        %v3217 = vadd.f32 %v2449, %v2833
        %v3218 = vadd.f32 %v2450, %v2834
        %v3219 = vadd.f32 %v2451, %v2835
        %v3220 = vadd.f32 %v2452, %v2836
        %v3221 = vadd.f32 %v2453, %v2837
        %v3222 = vadd.f32 %v2454, %v2838
        %v3223 = vadd.f32 %v2455, %v2839
        %v3224 = vadd.f32 %v2456, %v2840
        %v3225 = vadd.f32 %v2457, %v2841
        %v3226 = vadd.f32 %v2458, %v2842
        %v3227 = vadd.f32 %v2459, %v2843
        %v3228 = vadd.f32 %v2460, %v2844
        %v3229 = vadd.f32 %v2461, %v2845
        %v3230 = vadd.f32 %v2462, %v2846
        %v3231 = vadd.f32 %v2463, %v2847
        %v3232 = vadd.f32 %v2464, %v2848
        %v3233 = vadd.f32 %v2465, %v2849
        %v3234 = vadd.f32 %v2466, %v2850
        %v3235 = vadd.f32 %v2467, %v2851
        %v3236 = vadd.f32 %v2468, %v2852
        %v3237 = vadd.f32 %v2469, %v2853
        %v3238 = vadd.f32 %v2470, %v2854
        %v3239 = vadd.f32 %v2471, %v2855
        %v3240 = vadd.f32 %v2472, %v2856
        %v3241 = vadd.f32 %v2473, %v2857
        %v3242 = vadd.f32 %v2474, %v2858
        %v3243 = vadd.f32 %v2475, %v2859
        %v3244 = vadd.f32 %v2476, %v2860
        %v3245 = vadd.f32 %v2477, %v2861
        %v3246 = vadd.f32 %v2478, %v2862
        %v3247 = vadd.f32 %v2479, %v2863
        %v3248 = vadd.f32 %v2480, %v2864
        %v3249 = vadd.f32 %v2481, %v2865
        %v3250 = vadd.f32 %v2482, %v2866
        %v3251 = vadd.f32 %v2483, %v2867
        %v3252 = vadd.f32 %v2484, %v2868
        %v3253 = vadd.f32 %v2485, %v2869
        %v3254 = vadd.f32 %v2486, %v2870
        %v3255 = vadd.f32 %v2487, %v2871
        %v3256 = vadd.f32 %v2488, %v2872
        %v3257 = vadd.f32 %v2489, %v2873
        %v3258 = vadd.f32 %v2490, %v2874
        %v3259 = vadd.f32 %v2491, %v2875
        %v3260 = vadd.f32 %v2492, %v2876
        %v3261 = vadd.f32 %v2493, %v2877
        %v3262 = vadd.f32 %v2494, %v2878
        %v3263 = vadd.f32 %v2495, %v2879
        %v3264 = vadd.f32 %v2496, %v2880
        %v3265 = vadd.f32 %v2497, %v2881
        %v3266 = vadd.f32 %v2498, %v2882
        %v3267 = vadd.f32 %v2499, %v2883
        %v3268 = vadd.f32 %v2500, %v2884
        %v3269 = vadd.f32 %v2501, %v2885
        %v3270 = vadd.f32 %v2502, %v2886
        %v3271 = vadd.f32 %v2503, %v2887
        %v3272 = vadd.f32 %v2504, %v2888
        %v3273 = vadd.f32 %v2505, %v2889
        %v3274 = vadd.f32 %v2506, %v2890
        %v3275 = vadd.f32 %v2507, %v2891
        %v3276 = vadd.f32 %v2508, %v2892
        %v3277 = vadd.f32 %v2509, %v2893
        %v3278 = vadd.f32 %v2510, %v2894
        %v3279 = vadd.f32 %v2511, %v2895
        %v3280 = vadd.f32 %v2512, %v2896
        %v3281 = vadd.f32 %v2513, %v2897
        %v3282 = vadd.f32 %v2514, %v2898
        %v3283 = vadd.f32 %v2515, %v2899
        %v3284 = vadd.f32 %v2516, %v2900
        %v3285 = vadd.f32 %v2517, %v2901
        %v3286 = vadd.f32 %v2518, %v2902
        %v3287 = vadd.f32 %v2519, %v2903
        %v3288 = vadd.f32 %v2520, %v2904
        %v3289 = vadd.f32 %v2521, %v2905
        %v3290 = vadd.f32 %v2522, %v2906
        %v3291 = vadd.f32 %v2523, %v2907
        %v3292 = vadd.f32 %v2524, %v2908
        %v3293 = vadd.f32 %v2525, %v2909
        %v3294 = vadd.f32 %v2526, %v2910
        %v3295 = vadd.f32 %v2527, %v2911
        %v3296 = vadd.f32 %v2528, %v2912
        %v3297 = vadd.f32 %v2529, %v2913
        %v3298 = vadd.f32 %v2530, %v2914
        %v3299 = vadd.f32 %v2531, %v2915
        %v3300 = vadd.f32 %v2532, %v2916
        %v3301 = vadd.f32 %v2533, %v2917
        %v3302 = vadd.f32 %v2534, %v2918
        %v3303 = vadd.f32 %v2535, %v2919
        %v3304 = vadd.f32 %v2536, %v2920
        %v3305 = vadd.f32 %v2537, %v2921
        %v3306 = vadd.f32 %v2538, %v2922
        %v3307 = vadd.f32 %v2539, %v2923
        %v3308 = vadd.f32 %v2540, %v2924
        %v3309 = vadd.f32 %v2541, %v2925
        %v3310 = vadd.f32 %v2542, %v2926
        %v3311 = vadd.f32 %v2543, %v2927
        %v3312 = vadd.f32 %v2544, %v2928
        %v3313 = vadd.f32 %v2545, %v2929
        %v3314 = vadd.f32 %v2546, %v2930
        %v3315 = vadd.f32 %v2547, %v2931
        %v3316 = vadd.f32 %v2548, %v2932
        %v3317 = vadd.f32 %v2549, %v2933
        %v3318 = vadd.f32 %v2550, %v2934
        %v3319 = vadd.f32 %v2551, %v2935
        %v3320 = vadd.f32 %v2552, %v2936
        %v3321 = vadd.f32 %v2553, %v2937
        %v3322 = vadd.f32 %v2554, %v2938
        %v3323 = vadd.f32 %v2555, %v2939
        %v3324 = vadd.f32 %v2556, %v2940
        %v3325 = vadd.f32 %v2557, %v2941
        %v3326 = vadd.f32 %v2558, %v2942
        %v3327 = vadd.f32 %v2559, %v2943
        %v3328 = vadd.f32 %v2560, %v2944
        %v3329 = vadd.f32 %v2561, %v2945
        %v3330 = vadd.f32 %v2562, %v2946
        %v3331 = vadd.f32 %v2563, %v2947
        %v3332 = vadd.f32 %v2564, %v2948
        %v3333 = vadd.f32 %v2565, %v2949
        %v3334 = vadd.f32 %v2566, %v2950
        %v3335 = vadd.f32 %v2567, %v2951
        %v3336 = vadd.f32 %v2568, %v2952
        %v3337 = vadd.f32 %v2569, %v2953
        %v3338 = vadd.f32 %v2570, %v2954
        %v3339 = vadd.f32 %v2571, %v2955
        %v3340 = vadd.f32 %v2572, %v2956
        %v3341 = vadd.f32 %v2573, %v2957
        %v3342 = vadd.f32 %v2574, %v2958
        %v3343 = vadd.f32 %v2575, %v2959
        %v3344 = vadd.f32 %v2576, %v2960
        %v3345 = vadd.f32 %v2577, %v2961
        %v3346 = vadd.f32 %v2578, %v2962
        %v3347 = vadd.f32 %v2579, %v2963
        %v3348 = vadd.f32 %v2580, %v2964
        %v3349 = vadd.f32 %v2581, %v2965
        %v3350 = vadd.f32 %v2582, %v2966
        %v3351 = vadd.f32 %v2583, %v2967
        %v3352 = vadd.f32 %v2584, %v2968
        %v3353 = vadd.f32 %v2585, %v2969
        %v3354 = vadd.f32 %v2586, %v2970
        %v3355 = vadd.f32 %v2587, %v2971
        %v3356 = vadd.f32 %v2588, %v2972
        %v3357 = vadd.f32 %v2589, %v2973
        %v3358 = vadd.f32 %v2590, %v2974
        %v3359 = vadd.f32 %v2591, %v2975
        %v3360 = vadd.f32 %v2592, %v2976
        %v3361 = vadd.f32 %v2593, %v2977
        %v3362 = vadd.f32 %v2594, %v2978
        %v3363 = vadd.f32 %v2595, %v2979
        %v3364 = vadd.f32 %v2596, %v2980
        %v3365 = vadd.f32 %v2597, %v2981
        %v3366 = vadd.f32 %v2598, %v2982
        %v3367 = vadd.f32 %v2599, %v2983
        %v3368 = vadd.f32 %v2600, %v2984
        %v3369 = vadd.f32 %v2601, %v2985
        %v3370 = vadd.f32 %v2602, %v2986
        %v3371 = vadd.f32 %v2603, %v2987
        %v3372 = vadd.f32 %v2604, %v2988
        %v3373 = vadd.f32 %v2605, %v2989
        %v3374 = vadd.f32 %v2606, %v2990
        %v3375 = vadd.f32 %v2607, %v2991
        %v3376 = vadd.f32 %v2608, %v2992
        %v3377 = vadd.f32 %v2609, %v2993
        %v3378 = vadd.f32 %v2610, %v2994
        %v3379 = vadd.f32 %v2611, %v2995
        %v3380 = vadd.f32 %v2612, %v2996
        %v3381 = vadd.f32 %v2613, %v2997
        %v3382 = vadd.f32 %v2614, %v2998
        %v3383 = vadd.f32 %v2615, %v2999
        %v3384 = vadd.f32 %v2616, %v3000
        %v3385 = vadd.f32 %v2617, %v3001
        %v3386 = vadd.f32 %v2618, %v3002
        %v3387 = vadd.f32 %v2619, %v3003
        %v3388 = vadd.f32 %v2620, %v3004
        %v3389 = vadd.f32 %v2621, %v3005
        %v3390 = vadd.f32 %v2622, %v3006
        %v3391 = vadd.f32 %v2623, %v3007
        %v3392 = vadd.f32 %v2624, %v3008
        %v3393 = vadd.f32 %v2625, %v3009
        %v3394 = vadd.f32 %v2626, %v3010
        %v3395 = vadd.f32 %v2627, %v3011
        %v3396 = vadd.f32 %v2628, %v3012
        %v3397 = vadd.f32 %v2629, %v3013
        %v3398 = vadd.f32 %v2630, %v3014
        %v3399 = vadd.f32 %v2631, %v3015
        %v3400 = vadd.f32 %v2632, %v3016
        %v3401 = vadd.f32 %v2633, %v3017
        %v3402 = vadd.f32 %v2634, %v3018
        %v3403 = vadd.f32 %v2635, %v3019
        %v3404 = vadd.f32 %v2636, %v3020
        %v3405 = vadd.f32 %v2637, %v3021
        %v3406 = vadd.f32 %v2638, %v3022
        %v3407 = vadd.f32 %v2639, %v3023
        %v3408 = vadd.f32 %v2640, %v3024
        %v3409 = vadd.f32 %v2641, %v3025
        %v3410 = vadd.f32 %v2642, %v3026
        %v3411 = vadd.f32 %v2643, %v3027
        %v3412 = vadd.f32 %v2644, %v3028
        %v3413 = vadd.f32 %v2645, %v3029
        %v3414 = vadd.f32 %v2646, %v3030
        %v3415 = vadd.f32 %v2647, %v3031
        %v3416 = vadd.f32 %v2648, %v3032
        %v3417 = vadd.f32 %v2649, %v3033
        %v3418 = vadd.f32 %v2650, %v3034
        %v3419 = vadd.f32 %v2651, %v3035
        %v3420 = vadd.f32 %v2652, %v3036
        %v3421 = vadd.f32 %v2653, %v3037
        %v3422 = vadd.f32 %v2654, %v3038
        %v3423 = vadd.f32 %v2655, %v3039
        %v3424 = vadd.f32 %v2656, %v3040
        %v3425 = vadd.f32 %v2657, %v3041
        %v3426 = vadd.f32 %v2658, %v3042
        %v3427 = vadd.f32 %v2659, %v3043
        %v3428 = vadd.f32 %v2660, %v3044
        %v3429 = vadd.f32 %v2661, %v3045
        %v3430 = vadd.f32 %v2662, %v3046
        %v3431 = vadd.f32 %v2663, %v3047
        %v3432 = vadd.f32 %v2664, %v3048
        %v3433 = vadd.f32 %v2665, %v3049
        %v3434 = vadd.f32 %v2666, %v3050
        %v3435 = vadd.f32 %v2667, %v3051
        %v3436 = vadd.f32 %v2668, %v3052
        %v3437 = vadd.f32 %v2669, %v3053
        %v3438 = vadd.f32 %v2670, %v3054
        %v3439 = vadd.f32 %v2671, %v3055
        %v3440 = vadd.f32 %v2672, %v3056
        %v3441 = vadd.f32 %v2673, %v3057
        %v3442 = vadd.f32 %v2674, %v3058
        %v3443 = vadd.f32 %v2675, %v3059
        %v3444 = vadd.f32 %v2676, %v3060
        %v3445 = vadd.f32 %v2677, %v3061
        %v3446 = vadd.f32 %v2678, %v3062
        %v3447 = vadd.f32 %v2679, %v3063
        %v3448 = vadd.f32 %v2680, %v3064
        %v3449 = vadd.f32 %v2681, %v3065
        %v3450 = vadd.f32 %v2682, %v3066
        %v3451 = vadd.f32 %v2683, %v3067
        %v3452 = vadd.f32 %v2684, %v3068
        %v3453 = vadd.f32 %v2685, %v3069
        %v3454 = vadd.f32 %v2686, %v3070
        %v3455 = vadd.f32 %v2687, %v3071
        %v3456 = vadd.f32 %v2688, %v3072
        %v3457 = vadd.f32 %v2689, %v3073
        %v3458 = vadd.f32 %v2690, %v3074
        %v3459 = vadd.f32 %v2691, %v3075
        %v3460 = vadd.f32 %v2692, %v3076
        %v3461 = vadd.f32 %v2693, %v3077
        %v3462 = vadd.f32 %v2694, %v3078
        %v3463 = vadd.f32 %v2695, %v3079
        %v3464 = vadd.f32 %v2696, %v3080
        %v3465 = vadd.f32 %v2697, %v3081
        %v3466 = vadd.f32 %v2698, %v3082
        %v3467 = vadd.f32 %v2699, %v3083
        %v3468 = vadd.f32 %v2700, %v3084
        %v3469 = vadd.f32 %v2701, %v3085
        %v3470 = vadd.f32 %v2702, %v3086
        %v3471 = vadd.f32 %v2703, %v3087
        %v3472 = vadd.f32 %v2704, %v3088
        %v3473 = vadd.f32 %v2705, %v3089
        %v3474 = vadd.f32 %v2706, %v3090
        %v3475 = vadd.f32 %v2707, %v3091
        %v3476 = vadd.f32 %v2708, %v3092
        %v3477 = vadd.f32 %v2709, %v3093
        %v3478 = vadd.f32 %v2710, %v3094
        %v3479 = vadd.f32 %v2711, %v3095
        %v3480 = vadd.f32 %v2712, %v3096
        %v3481 = vadd.f32 %v2713, %v3097
        %v3482 = vadd.f32 %v2714, %v3098
        %v3483 = vadd.f32 %v2715, %v3099
        %v3484 = vadd.f32 %v2716, %v3100
        %v3485 = vadd.f32 %v2717, %v3101
        %v3486 = vadd.f32 %v2718, %v3102
        %v3487 = vadd.f32 %v2719, %v3103
        %v3488 = vadd.f32 %v2720, %v3104
        %v3489 = vadd.f32 %v2721, %v3105
        %v3490 = vadd.f32 %v2722, %v3106
        %v3491 = vadd.f32 %v2723, %v3107
        %v3492 = vadd.f32 %v2724, %v3108
        %v3493 = vadd.f32 %v2725, %v3109
        %v3494 = vadd.f32 %v2726, %v3110
        %v3495 = vadd.f32 %v2727, %v3111
        %v3496 = vadd.f32 %v2728, %v3112
        %v3497 = vadd.f32 %v2729, %v3113
        %v3498 = vadd.f32 %v2730, %v3114
        %v3499 = vadd.f32 %v2731, %v3115
        %v3500 = vadd.f32 %v2732, %v3116
        %v3501 = vadd.f32 %v2733, %v3117
        %v3502 = vadd.f32 %v2734, %v3118
        %v3503 = vadd.f32 %v2735, %v3119
        %v3504 = vadd.f32 %v2736, %v3120
        %v3505 = vadd.f32 %v2737, %v3121
        %v3506 = vadd.f32 %v2738, %v3122
        %v3507 = vadd.f32 %v2739, %v3123
        %v3508 = vadd.f32 %v2740, %v3124
        %v3509 = vadd.f32 %v2741, %v3125
        %v3510 = vadd.f32 %v2742, %v3126
        %v3511 = vadd.f32 %v2743, %v3127
        %v3512 = vadd.f32 %v2744, %v3128
        %v3513 = vadd.f32 %v2745, %v3129
        %v3514 = vadd.f32 %v2746, %v3130
        %v3515 = vadd.f32 %v2747, %v3131
        %v3516 = vadd.f32 %v2748, %v3132
        %v3517 = vadd.f32 %v2749, %v3133
        %v3518 = vadd.f32 %v2750, %v3134
        %v3519 = vadd.f32 %v2751, %v3135
        %v3520 = vadd.f32 %v2752, %v3136
        %v3521 = vadd.f32 %v2753, %v3137
        %v3522 = vadd.f32 %v2754, %v3138
        %v3523 = vadd.f32 %v2755, %v3139
        %v3524 = vadd.f32 %v2756, %v3140
        %v3525 = vadd.f32 %v2757, %v3141
        %v3526 = vadd.f32 %v2758, %v3142
        %v3527 = vadd.f32 %v2759, %v3143
        %v3528 = vadd.f32 %v2760, %v3144
        %v3529 = vadd.f32 %v2761, %v3145
        %v3530 = vadd.f32 %v2762, %v3146
        %v3531 = vadd.f32 %v2763, %v3147
        %v3532 = vadd.f32 %v2764, %v3148
        %v3533 = vadd.f32 %v2765, %v3149
        %v3534 = vadd.f32 %v2766, %v3150
        %v3535 = vadd.f32 %v2767, %v3151
        %v3536 = vadd.f32 %v2768, %v3152
        %v3537 = vadd.f32 %v2769, %v3153
        %v3538 = vadd.f32 %v2770, %v3154
        %v3539 = vadd.f32 %v2771, %v3155
        %v3540 = vadd.f32 %v2772, %v3156
        %v3541 = vadd.f32 %v2773, %v3157
        %v3542 = vadd.f32 %v2774, %v3158
        %v3543 = vadd.f32 %v2775, %v3159
        %v3544 = vadd.f32 %v2776, %v3160
        %v3545 = vadd.f32 %v2777, %v3161
        %v3546 = vadd.f32 %v2778, %v3162
        %v3547 = vadd.f32 %v2779, %v3163
        %v3548 = vadd.f32 %v2780, %v3164
        %v3549 = vadd.f32 %v2781, %v3165
        %v3550 = vadd.f32 %v2782, %v3166
        %v3551 = vadd.f32 %v2783, %v3167
        %v3552 = vadd.f32 %v2784, %v3168
        %v3553 = vadd.f32 %v2785, %v3169
        %v3554 = vadd.f32 %v2786, %v3170
        %v3555 = vadd.f32 %v2787, %v3171
        %v3556 = vadd.f32 %v2788, %v3172
        %v3557 = vadd.f32 %v2789, %v3173
        %v3558 = vadd.f32 %v2790, %v3174
        %v3559 = vadd.f32 %v2791, %v3175
        %v3560 = vadd.f32 %v2792, %v3176
        %v3561 = vadd.f32 %v2793, %v3177
        %v3562 = vadd.f32 %v2794, %v3178
        %v3563 = vadd.f32 %v2795, %v3179
        %v3564 = vadd.f32 %v2796, %v3180
        %v3565 = vadd.f32 %v2797, %v3181
        %v3566 = vadd.f32 %v2798, %v3182
        %v3567 = vadd.f32 %v2799, %v3183
        %v3568 = vadd.f32 %v2800, %v3184
        %v3569 = vadd.f32 %v2801, %v3185
        %v3570 = vadd.f32 %v2802, %v3186
        %v3571 = vadd.f32 %v2803, %v3187
        %v3572 = vadd.f32 %v2804, %v3188
        %v3573 = vadd.f32 %v2805, %v3189
        %v3574 = vadd.f32 %v2806, %v3190
        %v3575 = vadd.f32 %v2807, %v3191
        %v3576 = vadd.f32 %v2808, %v3192
        %v3577 = vadd.f32 %v2809, %v3193
        %v3578 = vadd.f32 %v2810, %v3194
        %v3579 = vadd.f32 %v2811, %v3195
        %v3580 = vadd.f32 %v2812, %v3196
        %v3581 = vadd.f32 %v2813, %v3197
        %v3582 = vadd.f32 %v2814, %v3198
        %v3583 = vadd.f32 %v2815, %v3199
        %v3584 = vadd.f32 %v2816, %v3200
        %v3585 = vadd.f32 %v2817, %v3201
        %v3586 = vadd.f32 %v2818, %v3202
        %v3587 = vadd.f32 %v2819, %v3203
        %v3588 = vadd.f32 %v2820, %v3204
        %v3589 = vadd.f32 %v2821, %v3205
        %v3590 = vadd.f32 %v2822, %v3206
        %v3591 = vadd.f32 %v2823, %v3207
        %v3592 = vadd.f32 %v2824, %v3208
        %v3593 = vadd.f32 %v2825, %v3209
        %v3594 = vadd.f32 %v2826, %v3210
        %v3595 = vadd.f32 %v2827, %v3211
        %v3596 = vadd.f32 %v2828, %v3212
        %v3597 = vadd.f32 %v2829, %v3213
        %v3598 = vadd.f32 %v2830, %v3214
        %v3599 = vadd.f32 %v2831, %v3215
        %v3600 = vadd.f32 %v2832, %v3216
        %v3601 = vmax.f32 %v3217, 0.0
        %v3602 = vmax.f32 %v3218, 0.0
        %v3603 = vmax.f32 %v3219, 0.0
        %v3604 = vmax.f32 %v3220, 0.0
        %v3605 = vmax.f32 %v3221, 0.0
        %v3606 = vmax.f32 %v3222, 0.0
        %v3607 = vmax.f32 %v3223, 0.0
        %v3608 = vmax.f32 %v3224, 0.0
        %v3609 = vmax.f32 %v3225, 0.0
        %v3610 = vmax.f32 %v3226, 0.0
        %v3611 = vmax.f32 %v3227, 0.0
        %v3612 = vmax.f32 %v3228, 0.0
        %v3613 = vmax.f32 %v3229, 0.0
        %v3614 = vmax.f32 %v3230, 0.0
        %v3615 = vmax.f32 %v3231, 0.0
        %v3616 = vmax.f32 %v3232, 0.0
        %v3617 = vmax.f32 %v3233, 0.0
        %v3618 = vmax.f32 %v3234, 0.0
        %v3619 = vmax.f32 %v3235, 0.0
        %v3620 = vmax.f32 %v3236, 0.0
        %v3621 = vmax.f32 %v3237, 0.0
        %v3622 = vmax.f32 %v3238, 0.0
        %v3623 = vmax.f32 %v3239, 0.0
        %v3624 = vmax.f32 %v3240, 0.0
        %v3625 = vmax.f32 %v3241, 0.0
        %v3626 = vmax.f32 %v3242, 0.0
        %v3627 = vmax.f32 %v3243, 0.0
        %v3628 = vmax.f32 %v3244, 0.0
        %v3629 = vmax.f32 %v3245, 0.0
        %v3630 = vmax.f32 %v3246, 0.0
        %v3631 = vmax.f32 %v3247, 0.0
        %v3632 = vmax.f32 %v3248, 0.0
        %v3633 = vmax.f32 %v3249, 0.0
        %v3634 = vmax.f32 %v3250, 0.0
        %v3635 = vmax.f32 %v3251, 0.0
        %v3636 = vmax.f32 %v3252, 0.0
        %v3637 = vmax.f32 %v3253, 0.0
        %v3638 = vmax.f32 %v3254, 0.0
        %v3639 = vmax.f32 %v3255, 0.0
        %v3640 = vmax.f32 %v3256, 0.0
        %v3641 = vmax.f32 %v3257, 0.0
        %v3642 = vmax.f32 %v3258, 0.0
        %v3643 = vmax.f32 %v3259, 0.0
        %v3644 = vmax.f32 %v3260, 0.0
        %v3645 = vmax.f32 %v3261, 0.0
        %v3646 = vmax.f32 %v3262, 0.0
        %v3647 = vmax.f32 %v3263, 0.0
        %v3648 = vmax.f32 %v3264, 0.0
        %v3649 = vmax.f32 %v3265, 0.0
        %v3650 = vmax.f32 %v3266, 0.0
        %v3651 = vmax.f32 %v3267, 0.0
        %v3652 = vmax.f32 %v3268, 0.0
        %v3653 = vmax.f32 %v3269, 0.0
        %v3654 = vmax.f32 %v3270, 0.0
        %v3655 = vmax.f32 %v3271, 0.0
        %v3656 = vmax.f32 %v3272, 0.0
        %v3657 = vmax.f32 %v3273, 0.0
        %v3658 = vmax.f32 %v3274, 0.0
        %v3659 = vmax.f32 %v3275, 0.0
        %v3660 = vmax.f32 %v3276, 0.0
        %v3661 = vmax.f32 %v3277, 0.0
        %v3662 = vmax.f32 %v3278, 0.0
        %v3663 = vmax.f32 %v3279, 0.0
        %v3664 = vmax.f32 %v3280, 0.0
        %v3665 = vmax.f32 %v3281, 0.0
        %v3666 = vmax.f32 %v3282, 0.0
        %v3667 = vmax.f32 %v3283, 0.0
        %v3668 = vmax.f32 %v3284, 0.0
        %v3669 = vmax.f32 %v3285, 0.0
        %v3670 = vmax.f32 %v3286, 0.0
        %v3671 = vmax.f32 %v3287, 0.0
        %v3672 = vmax.f32 %v3288, 0.0
        %v3673 = vmax.f32 %v3289, 0.0
        %v3674 = vmax.f32 %v3290, 0.0
        %v3675 = vmax.f32 %v3291, 0.0
        %v3676 = vmax.f32 %v3292, 0.0
        %v3677 = vmax.f32 %v3293, 0.0
        %v3678 = vmax.f32 %v3294, 0.0
        %v3679 = vmax.f32 %v3295, 0.0
        %v3680 = vmax.f32 %v3296, 0.0
        %v3681 = vmax.f32 %v3297, 0.0
        %v3682 = vmax.f32 %v3298, 0.0
        %v3683 = vmax.f32 %v3299, 0.0
        %v3684 = vmax.f32 %v3300, 0.0
        %v3685 = vmax.f32 %v3301, 0.0
        %v3686 = vmax.f32 %v3302, 0.0
        %v3687 = vmax.f32 %v3303, 0.0
        %v3688 = vmax.f32 %v3304, 0.0
        %v3689 = vmax.f32 %v3305, 0.0
        %v3690 = vmax.f32 %v3306, 0.0
        %v3691 = vmax.f32 %v3307, 0.0
        %v3692 = vmax.f32 %v3308, 0.0
        %v3693 = vmax.f32 %v3309, 0.0
        %v3694 = vmax.f32 %v3310, 0.0
        %v3695 = vmax.f32 %v3311, 0.0
        %v3696 = vmax.f32 %v3312, 0.0
        %v3697 = vmax.f32 %v3313, 0.0
        %v3698 = vmax.f32 %v3314, 0.0
        %v3699 = vmax.f32 %v3315, 0.0
        %v3700 = vmax.f32 %v3316, 0.0
        %v3701 = vmax.f32 %v3317, 0.0
        %v3702 = vmax.f32 %v3318, 0.0
        %v3703 = vmax.f32 %v3319, 0.0
        %v3704 = vmax.f32 %v3320, 0.0
        %v3705 = vmax.f32 %v3321, 0.0
        %v3706 = vmax.f32 %v3322, 0.0
        %v3707 = vmax.f32 %v3323, 0.0
        %v3708 = vmax.f32 %v3324, 0.0
        %v3709 = vmax.f32 %v3325, 0.0
        %v3710 = vmax.f32 %v3326, 0.0
        %v3711 = vmax.f32 %v3327, 0.0
        %v3712 = vmax.f32 %v3328, 0.0
        %v3713 = vmax.f32 %v3329, 0.0
        %v3714 = vmax.f32 %v3330, 0.0
        %v3715 = vmax.f32 %v3331, 0.0
        %v3716 = vmax.f32 %v3332, 0.0
        %v3717 = vmax.f32 %v3333, 0.0
        %v3718 = vmax.f32 %v3334, 0.0
        %v3719 = vmax.f32 %v3335, 0.0
        %v3720 = vmax.f32 %v3336, 0.0
        %v3721 = vmax.f32 %v3337, 0.0
        %v3722 = vmax.f32 %v3338, 0.0
        %v3723 = vmax.f32 %v3339, 0.0
        %v3724 = vmax.f32 %v3340, 0.0
        %v3725 = vmax.f32 %v3341, 0.0
        %v3726 = vmax.f32 %v3342, 0.0
        %v3727 = vmax.f32 %v3343, 0.0
        %v3728 = vmax.f32 %v3344, 0.0
        %v3729 = vmax.f32 %v3345, 0.0
        %v3730 = vmax.f32 %v3346, 0.0
        %v3731 = vmax.f32 %v3347, 0.0
        %v3732 = vmax.f32 %v3348, 0.0
        %v3733 = vmax.f32 %v3349, 0.0
        %v3734 = vmax.f32 %v3350, 0.0
        %v3735 = vmax.f32 %v3351, 0.0
        %v3736 = vmax.f32 %v3352, 0.0
        %v3737 = vmax.f32 %v3353, 0.0
        %v3738 = vmax.f32 %v3354, 0.0
        %v3739 = vmax.f32 %v3355, 0.0
        %v3740 = vmax.f32 %v3356, 0.0
        %v3741 = vmax.f32 %v3357, 0.0
        %v3742 = vmax.f32 %v3358, 0.0
        %v3743 = vmax.f32 %v3359, 0.0
        %v3744 = vmax.f32 %v3360, 0.0
        %v3745 = vmax.f32 %v3361, 0.0
        %v3746 = vmax.f32 %v3362, 0.0
        %v3747 = vmax.f32 %v3363, 0.0
        %v3748 = vmax.f32 %v3364, 0.0
        %v3749 = vmax.f32 %v3365, 0.0
        %v3750 = vmax.f32 %v3366, 0.0
        %v3751 = vmax.f32 %v3367, 0.0
        %v3752 = vmax.f32 %v3368, 0.0
        %v3753 = vmax.f32 %v3369, 0.0
        %v3754 = vmax.f32 %v3370, 0.0
        %v3755 = vmax.f32 %v3371, 0.0
        %v3756 = vmax.f32 %v3372, 0.0
        %v3757 = vmax.f32 %v3373, 0.0
        %v3758 = vmax.f32 %v3374, 0.0
        %v3759 = vmax.f32 %v3375, 0.0
        %v3760 = vmax.f32 %v3376, 0.0
        %v3761 = vmax.f32 %v3377, 0.0
        %v3762 = vmax.f32 %v3378, 0.0
        %v3763 = vmax.f32 %v3379, 0.0
        %v3764 = vmax.f32 %v3380, 0.0
        %v3765 = vmax.f32 %v3381, 0.0
        %v3766 = vmax.f32 %v3382, 0.0
        %v3767 = vmax.f32 %v3383, 0.0
        %v3768 = vmax.f32 %v3384, 0.0
        %v3769 = vmax.f32 %v3385, 0.0
        %v3770 = vmax.f32 %v3386, 0.0
        %v3771 = vmax.f32 %v3387, 0.0
        %v3772 = vmax.f32 %v3388, 0.0
        %v3773 = vmax.f32 %v3389, 0.0
        %v3774 = vmax.f32 %v3390, 0.0
        %v3775 = vmax.f32 %v3391, 0.0
        %v3776 = vmax.f32 %v3392, 0.0
        %v3777 = vmax.f32 %v3393, 0.0
        %v3778 = vmax.f32 %v3394, 0.0
        %v3779 = vmax.f32 %v3395, 0.0
        %v3780 = vmax.f32 %v3396, 0.0
        %v3781 = vmax.f32 %v3397, 0.0
        %v3782 = vmax.f32 %v3398, 0.0
        %v3783 = vmax.f32 %v3399, 0.0
        %v3784 = vmax.f32 %v3400, 0.0
        %v3785 = vmax.f32 %v3401, 0.0
        %v3786 = vmax.f32 %v3402, 0.0
        %v3787 = vmax.f32 %v3403, 0.0
        %v3788 = vmax.f32 %v3404, 0.0
        %v3789 = vmax.f32 %v3405, 0.0
        %v3790 = vmax.f32 %v3406, 0.0
        %v3791 = vmax.f32 %v3407, 0.0
        %v3792 = vmax.f32 %v3408, 0.0
        %v3793 = vmax.f32 %v3409, 0.0
        %v3794 = vmax.f32 %v3410, 0.0
        %v3795 = vmax.f32 %v3411, 0.0
        %v3796 = vmax.f32 %v3412, 0.0
        %v3797 = vmax.f32 %v3413, 0.0
        %v3798 = vmax.f32 %v3414, 0.0
        %v3799 = vmax.f32 %v3415, 0.0
        %v3800 = vmax.f32 %v3416, 0.0
        %v3801 = vmax.f32 %v3417, 0.0
        %v3802 = vmax.f32 %v3418, 0.0
        %v3803 = vmax.f32 %v3419, 0.0
        %v3804 = vmax.f32 %v3420, 0.0
        %v3805 = vmax.f32 %v3421, 0.0
        %v3806 = vmax.f32 %v3422, 0.0
        %v3807 = vmax.f32 %v3423, 0.0
        %v3808 = vmax.f32 %v3424, 0.0
        %v3809 = vmax.f32 %v3425, 0.0
        %v3810 = vmax.f32 %v3426, 0.0
        %v3811 = vmax.f32 %v3427, 0.0
        %v3812 = vmax.f32 %v3428, 0.0
        %v3813 = vmax.f32 %v3429, 0.0
        %v3814 = vmax.f32 %v3430, 0.0
        %v3815 = vmax.f32 %v3431, 0.0
        %v3816 = vmax.f32 %v3432, 0.0
        %v3817 = vmax.f32 %v3433, 0.0
        %v3818 = vmax.f32 %v3434, 0.0
        %v3819 = vmax.f32 %v3435, 0.0
        %v3820 = vmax.f32 %v3436, 0.0
        %v3821 = vmax.f32 %v3437, 0.0
        %v3822 = vmax.f32 %v3438, 0.0
        %v3823 = vmax.f32 %v3439, 0.0
        %v3824 = vmax.f32 %v3440, 0.0
        %v3825 = vmax.f32 %v3441, 0.0
        %v3826 = vmax.f32 %v3442, 0.0
        %v3827 = vmax.f32 %v3443, 0.0
        %v3828 = vmax.f32 %v3444, 0.0
        %v3829 = vmax.f32 %v3445, 0.0
        %v3830 = vmax.f32 %v3446, 0.0
        %v3831 = vmax.f32 %v3447, 0.0
        %v3832 = vmax.f32 %v3448, 0.0
        %v3833 = vmax.f32 %v3449, 0.0
        %v3834 = vmax.f32 %v3450, 0.0
        %v3835 = vmax.f32 %v3451, 0.0
        %v3836 = vmax.f32 %v3452, 0.0
        %v3837 = vmax.f32 %v3453, 0.0
        %v3838 = vmax.f32 %v3454, 0.0
        %v3839 = vmax.f32 %v3455, 0.0
        %v3840 = vmax.f32 %v3456, 0.0
        %v3841 = vmax.f32 %v3457, 0.0
        %v3842 = vmax.f32 %v3458, 0.0
        %v3843 = vmax.f32 %v3459, 0.0
        %v3844 = vmax.f32 %v3460, 0.0
        %v3845 = vmax.f32 %v3461, 0.0
        %v3846 = vmax.f32 %v3462, 0.0
        %v3847 = vmax.f32 %v3463, 0.0
        %v3848 = vmax.f32 %v3464, 0.0
        %v3849 = vmax.f32 %v3465, 0.0
        %v3850 = vmax.f32 %v3466, 0.0
        %v3851 = vmax.f32 %v3467, 0.0
        %v3852 = vmax.f32 %v3468, 0.0
        %v3853 = vmax.f32 %v3469, 0.0
        %v3854 = vmax.f32 %v3470, 0.0
        %v3855 = vmax.f32 %v3471, 0.0
        %v3856 = vmax.f32 %v3472, 0.0
        %v3857 = vmax.f32 %v3473, 0.0
        %v3858 = vmax.f32 %v3474, 0.0
        %v3859 = vmax.f32 %v3475, 0.0
        %v3860 = vmax.f32 %v3476, 0.0
        %v3861 = vmax.f32 %v3477, 0.0
        %v3862 = vmax.f32 %v3478, 0.0
        %v3863 = vmax.f32 %v3479, 0.0
        %v3864 = vmax.f32 %v3480, 0.0
        %v3865 = vmax.f32 %v3481, 0.0
        %v3866 = vmax.f32 %v3482, 0.0
        %v3867 = vmax.f32 %v3483, 0.0
        %v3868 = vmax.f32 %v3484, 0.0
        %v3869 = vmax.f32 %v3485, 0.0
        %v3870 = vmax.f32 %v3486, 0.0
        %v3871 = vmax.f32 %v3487, 0.0
        %v3872 = vmax.f32 %v3488, 0.0
        %v3873 = vmax.f32 %v3489, 0.0
        %v3874 = vmax.f32 %v3490, 0.0
        %v3875 = vmax.f32 %v3491, 0.0
        %v3876 = vmax.f32 %v3492, 0.0
        %v3877 = vmax.f32 %v3493, 0.0
        %v3878 = vmax.f32 %v3494, 0.0
        %v3879 = vmax.f32 %v3495, 0.0
        %v3880 = vmax.f32 %v3496, 0.0
        %v3881 = vmax.f32 %v3497, 0.0
        %v3882 = vmax.f32 %v3498, 0.0
        %v3883 = vmax.f32 %v3499, 0.0
        %v3884 = vmax.f32 %v3500, 0.0
        %v3885 = vmax.f32 %v3501, 0.0
        %v3886 = vmax.f32 %v3502, 0.0
        %v3887 = vmax.f32 %v3503, 0.0
        %v3888 = vmax.f32 %v3504, 0.0
        %v3889 = vmax.f32 %v3505, 0.0
        %v3890 = vmax.f32 %v3506, 0.0
        %v3891 = vmax.f32 %v3507, 0.0
        %v3892 = vmax.f32 %v3508, 0.0
        %v3893 = vmax.f32 %v3509, 0.0
        %v3894 = vmax.f32 %v3510, 0.0
        %v3895 = vmax.f32 %v3511, 0.0
        %v3896 = vmax.f32 %v3512, 0.0
        %v3897 = vmax.f32 %v3513, 0.0
        %v3898 = vmax.f32 %v3514, 0.0
        %v3899 = vmax.f32 %v3515, 0.0
        %v3900 = vmax.f32 %v3516, 0.0
        %v3901 = vmax.f32 %v3517, 0.0
        %v3902 = vmax.f32 %v3518, 0.0
        %v3903 = vmax.f32 %v3519, 0.0
        %v3904 = vmax.f32 %v3520, 0.0
        %v3905 = vmax.f32 %v3521, 0.0
        %v3906 = vmax.f32 %v3522, 0.0
        %v3907 = vmax.f32 %v3523, 0.0
        %v3908 = vmax.f32 %v3524, 0.0
        %v3909 = vmax.f32 %v3525, 0.0
        %v3910 = vmax.f32 %v3526, 0.0
        %v3911 = vmax.f32 %v3527, 0.0
        %v3912 = vmax.f32 %v3528, 0.0
        %v3913 = vmax.f32 %v3529, 0.0
        %v3914 = vmax.f32 %v3530, 0.0
        %v3915 = vmax.f32 %v3531, 0.0
        %v3916 = vmax.f32 %v3532, 0.0
        %v3917 = vmax.f32 %v3533, 0.0
        %v3918 = vmax.f32 %v3534, 0.0
        %v3919 = vmax.f32 %v3535, 0.0
        %v3920 = vmax.f32 %v3536, 0.0
        %v3921 = vmax.f32 %v3537, 0.0
        %v3922 = vmax.f32 %v3538, 0.0
        %v3923 = vmax.f32 %v3539, 0.0
        %v3924 = vmax.f32 %v3540, 0.0
        %v3925 = vmax.f32 %v3541, 0.0
        %v3926 = vmax.f32 %v3542, 0.0
        %v3927 = vmax.f32 %v3543, 0.0
        %v3928 = vmax.f32 %v3544, 0.0
        %v3929 = vmax.f32 %v3545, 0.0
        %v3930 = vmax.f32 %v3546, 0.0
        %v3931 = vmax.f32 %v3547, 0.0
        %v3932 = vmax.f32 %v3548, 0.0
        %v3933 = vmax.f32 %v3549, 0.0
        %v3934 = vmax.f32 %v3550, 0.0
        %v3935 = vmax.f32 %v3551, 0.0
        %v3936 = vmax.f32 %v3552, 0.0
        %v3937 = vmax.f32 %v3553, 0.0
        %v3938 = vmax.f32 %v3554, 0.0
        %v3939 = vmax.f32 %v3555, 0.0
        %v3940 = vmax.f32 %v3556, 0.0
        %v3941 = vmax.f32 %v3557, 0.0
        %v3942 = vmax.f32 %v3558, 0.0
        %v3943 = vmax.f32 %v3559, 0.0
        %v3944 = vmax.f32 %v3560, 0.0
        %v3945 = vmax.f32 %v3561, 0.0
        %v3946 = vmax.f32 %v3562, 0.0
        %v3947 = vmax.f32 %v3563, 0.0
        %v3948 = vmax.f32 %v3564, 0.0
        %v3949 = vmax.f32 %v3565, 0.0
        %v3950 = vmax.f32 %v3566, 0.0
        %v3951 = vmax.f32 %v3567, 0.0
        %v3952 = vmax.f32 %v3568, 0.0
        %v3953 = vmax.f32 %v3569, 0.0
        %v3954 = vmax.f32 %v3570, 0.0
        %v3955 = vmax.f32 %v3571, 0.0
        %v3956 = vmax.f32 %v3572, 0.0
        %v3957 = vmax.f32 %v3573, 0.0
        %v3958 = vmax.f32 %v3574, 0.0
        %v3959 = vmax.f32 %v3575, 0.0
        %v3960 = vmax.f32 %v3576, 0.0
        %v3961 = vmax.f32 %v3577, 0.0
        %v3962 = vmax.f32 %v3578, 0.0
        %v3963 = vmax.f32 %v3579, 0.0
        %v3964 = vmax.f32 %v3580, 0.0
        %v3965 = vmax.f32 %v3581, 0.0
        %v3966 = vmax.f32 %v3582, 0.0
        %v3967 = vmax.f32 %v3583, 0.0
        %v3968 = vmax.f32 %v3584, 0.0
        %v3969 = vmax.f32 %v3585, 0.0
        %v3970 = vmax.f32 %v3586, 0.0
        %v3971 = vmax.f32 %v3587, 0.0
        %v3972 = vmax.f32 %v3588, 0.0
        %v3973 = vmax.f32 %v3589, 0.0
        %v3974 = vmax.f32 %v3590, 0.0
        %v3975 = vmax.f32 %v3591, 0.0
        %v3976 = vmax.f32 %v3592, 0.0
        %v3977 = vmax.f32 %v3593, 0.0
        %v3978 = vmax.f32 %v3594, 0.0
        %v3979 = vmax.f32 %v3595, 0.0
        %v3980 = vmax.f32 %v3596, 0.0
        %v3981 = vmax.f32 %v3597, 0.0
        %v3982 = vmax.f32 %v3598, 0.0
        %v3983 = vmax.f32 %v3599, 0.0
        %v3984 = vmax.f32 %v3600, 0.0
        %v3985 = vld [vmem:[%s0] sm:$0xff]
        %v3986 = vld [vmem:[%s0 + $0x8] sm:$0xff]
        %v3987 = vld [vmem:[%s0 + $0x10] sm:$0xff]
        %v3988 = vld [vmem:[%s0 + $0x18] sm:$0xff]
        %v3989 = vld [vmem:[%s0 + $0x20] sm:$0xff]
        %v3990 = vld [vmem:[%s0 + $0x28] sm:$0xff]
        %v3991 = vld [vmem:[%s0 + $0x30] sm:$0xff]
        %v3992 = vld [vmem:[%s0 + $0x38] sm:$0xff]
        %v3993 = vld [vmem:[%s0 + $0x40] sm:$0xff]
        %v3994 = vld [vmem:[%s0 + $0x48] sm:$0xff]
        %v3995 = vld [vmem:[%s0 + $0x50] sm:$0xff]
        %v3996 = vld [vmem:[%s0 + $0x58] sm:$0xff]
        %v3997 = vld [vmem:[%s0 + $0x60] sm:$0xff]
        %v3998 = vld [vmem:[%s0 + $0x68] sm:$0xff]
        %v3999 = vld [vmem:[%s0 + $0x70] sm:$0xff]
        %v4000 = vld [vmem:[%s0 + $0x78] sm:$0xff]
        %v4001 = vld [vmem:[%s0 + $0x80] sm:$0xff]
        %v4002 = vld [vmem:[%s0 + $0x88] sm:$0xff]
        %v4003 = vld [vmem:[%s0 + $0x90] sm:$0xff]
        %v4004 = vld [vmem:[%s0 + $0x98] sm:$0xff]
        %v4005 = vld [vmem:[%s0 + $0xa0] sm:$0xff]
        %v4006 = vld [vmem:[%s0 + $0xa8] sm:$0xff]
        %v4007 = vld [vmem:[%s0 + $0xb0] sm:$0xff]
        %v4008 = vld [vmem:[%s0 + $0xb8] sm:$0xff]
        %v4009 = vld [vmem:[%s0 + $0xc0] sm:$0xff]
        %v4010 = vld [vmem:[%s0 + $0xc8] sm:$0xff]
        %v4011 = vld [vmem:[%s0 + $0xd0] sm:$0xff]
        %v4012 = vld [vmem:[%s0 + $0xd8] sm:$0xff]
        %v4013 = vld [vmem:[%s0 + $0xe0] sm:$0xff]
        %v4014 = vld [vmem:[%s0 + $0xe8] sm:$0xff]
        %v4015 = vld [vmem:[%s0 + $0xf0] sm:$0xff]
        %v4016 = vld [vmem:[%s0 + $0xf8] sm:$0xff]
        %v4017 = vld [vmem:[%s0 + $0x100] sm:$0xff]
        %v4018 = vld [vmem:[%s0 + $0x108] sm:$0xff]
        %v4019 = vld [vmem:[%s0 + $0x110] sm:$0xff]
        %v4020 = vld [vmem:[%s0 + $0x118] sm:$0xff]
        %v4021 = vld [vmem:[%s0 + $0x120] sm:$0xff]
        %v4022 = vld [vmem:[%s0 + $0x128] sm:$0xff]
        %v4023 = vld [vmem:[%s0 + $0x130] sm:$0xff]
        %v4024 = vld [vmem:[%s0 + $0x138] sm:$0xff]
        %v4025 = vld [vmem:[%s0 + $0x140] sm:$0xff]
        %v4026 = vld [vmem:[%s0 + $0x148] sm:$0xff]
        %v4027 = vld [vmem:[%s0 + $0x150] sm:$0xff]
        %v4028 = vld [vmem:[%s0 + $0x158] sm:$0xff]
        %v4029 = vld [vmem:[%s0 + $0x160] sm:$0xff]
        %v4030 = vld [vmem:[%s0 + $0x168] sm:$0xff]
        %v4031 = vld [vmem:[%s0 + $0x170] sm:$0xff]
        %v4032 = vld [vmem:[%s0 + $0x178] sm:$0xff]
        %v4033 = vld [vmem:[%s0 + $0x180] sm:$0xff]
        %v4034 = vld [vmem:[%s0 + $0x188] sm:$0xff]
        %v4035 = vld [vmem:[%s0 + $0x190] sm:$0xff]
        %v4036 = vld [vmem:[%s0 + $0x198] sm:$0xff]
        %v4037 = vld [vmem:[%s0 + $0x1a0] sm:$0xff]
        %v4038 = vld [vmem:[%s0 + $0x1a8] sm:$0xff]
        %v4039 = vld [vmem:[%s0 + $0x1b0] sm:$0xff]
        %v4040 = vld [vmem:[%s0 + $0x1b8] sm:$0xff]
        %v4041 = vld [vmem:[%s0 + $0x1c0] sm:$0xff]
        %v4042 = vld [vmem:[%s0 + $0x1c8] sm:$0xff]
        %v4043 = vld [vmem:[%s0 + $0x1d0] sm:$0xff]
        %v4044 = vld [vmem:[%s0 + $0x1d8] sm:$0xff]
        %v4045 = vld [vmem:[%s0 + $0x1e0] sm:$0xff]
        %v4046 = vld [vmem:[%s0 + $0x1e8] sm:$0xff]
        %v4047 = vld [vmem:[%s0 + $0x1f0] sm:$0xff]
        %v4048 = vld [vmem:[%s0 + $0x1f8] sm:$0xff]
        %v4049 = vld [vmem:[%s0 + $0x200] sm:$0xff]
        %v4050 = vld [vmem:[%s0 + $0x208] sm:$0xff]
        %v4051 = vld [vmem:[%s0 + $0x210] sm:$0xff]
        %v4052 = vld [vmem:[%s0 + $0x218] sm:$0xff]
        %v4053 = vld [vmem:[%s0 + $0x220] sm:$0xff]
        %v4054 = vld [vmem:[%s0 + $0x228] sm:$0xff]
        %v4055 = vld [vmem:[%s0 + $0x230] sm:$0xff]
        %v4056 = vld [vmem:[%s0 + $0x238] sm:$0xff]
        %v4057 = vld [vmem:[%s0 + $0x240] sm:$0xff]
        %v4058 = vld [vmem:[%s0 + $0x248] sm:$0xff]
        %v4059 = vld [vmem:[%s0 + $0x250] sm:$0xff]
        %v4060 = vld [vmem:[%s0 + $0x258] sm:$0xff]
        %v4061 = vld [vmem:[%s0 + $0x260] sm:$0xff]
        %v4062 = vld [vmem:[%s0 + $0x268] sm:$0xff]
        %v4063 = vld [vmem:[%s0 + $0x270] sm:$0xff]
        %v4064 = vld [vmem:[%s0 + $0x278] sm:$0xff]
        %v4065 = vld [vmem:[%s0 + $0x280] sm:$0xff]
        %v4066 = vld [vmem:[%s0 + $0x288] sm:$0xff]
        %v4067 = vld [vmem:[%s0 + $0x290] sm:$0xff]
        %v4068 = vld [vmem:[%s0 + $0x298] sm:$0xff]
        %v4069 = vld [vmem:[%s0 + $0x2a0] sm:$0xff]
        %v4070 = vld [vmem:[%s0 + $0x2a8] sm:$0xff]
        %v4071 = vld [vmem:[%s0 + $0x2b0] sm:$0xff]
        %v4072 = vld [vmem:[%s0 + $0x2b8] sm:$0xff]
        %v4073 = vld [vmem:[%s0 + $0x2c0] sm:$0xff]
        %v4074 = vld [vmem:[%s0 + $0x2c8] sm:$0xff]
        %v4075 = vld [vmem:[%s0 + $0x2d0] sm:$0xff]
        %v4076 = vld [vmem:[%s0 + $0x2d8] sm:$0xff]
        %v4077 = vld [vmem:[%s0 + $0x2e0] sm:$0xff]
        %v4078 = vld [vmem:[%s0 + $0x2e8] sm:$0xff]
        %v4079 = vld [vmem:[%s0 + $0x2f0] sm:$0xff]
        %v4080 = vld [vmem:[%s0 + $0x2f8] sm:$0xff]
        %v4081 = vld [vmem:[%s0 + $0x300] sm:$0xff]
        %v4082 = vld [vmem:[%s0 + $0x308] sm:$0xff]
        %v4083 = vld [vmem:[%s0 + $0x310] sm:$0xff]
        %v4084 = vld [vmem:[%s0 + $0x318] sm:$0xff]
        %v4085 = vld [vmem:[%s0 + $0x320] sm:$0xff]
        %v4086 = vld [vmem:[%s0 + $0x328] sm:$0xff]
        %v4087 = vld [vmem:[%s0 + $0x330] sm:$0xff]
        %v4088 = vld [vmem:[%s0 + $0x338] sm:$0xff]
        %v4089 = vld [vmem:[%s0 + $0x340] sm:$0xff]
        %v4090 = vld [vmem:[%s0 + $0x348] sm:$0xff]
        %v4091 = vld [vmem:[%s0 + $0x350] sm:$0xff]
        %v4092 = vld [vmem:[%s0 + $0x358] sm:$0xff]
        %v4093 = vld [vmem:[%s0 + $0x360] sm:$0xff]
        %v4094 = vld [vmem:[%s0 + $0x368] sm:$0xff]
        %v4095 = vld [vmem:[%s0 + $0x370] sm:$0xff]
        %v4096 = vld [vmem:[%s0 + $0x378] sm:$0xff]
        %v4097 = vld [vmem:[%s0 + $0x380] sm:$0xff]
        %v4098 = vld [vmem:[%s0 + $0x388] sm:$0xff]
        %v4099 = vld [vmem:[%s0 + $0x390] sm:$0xff]
        %v4100 = vld [vmem:[%s0 + $0x398] sm:$0xff]
        %v4101 = vld [vmem:[%s0 + $0x3a0] sm:$0xff]
        %v4102 = vld [vmem:[%s0 + $0x3a8] sm:$0xff]
        %v4103 = vld [vmem:[%s0 + $0x3b0] sm:$0xff]
        %v4104 = vld [vmem:[%s0 + $0x3b8] sm:$0xff]
        %v4105 = vld [vmem:[%s0 + $0x3c0] sm:$0xff]
        %v4106 = vld [vmem:[%s0 + $0x3c8] sm:$0xff]
        %v4107 = vld [vmem:[%s0 + $0x3d0] sm:$0xff]
        %v4108 = vld [vmem:[%s0 + $0x3d8] sm:$0xff]
        %v4109 = vld [vmem:[%s0 + $0x3e0] sm:$0xff]
        %v4110 = vld [vmem:[%s0 + $0x3e8] sm:$0xff]
        %v4111 = vld [vmem:[%s0 + $0x3f0] sm:$0xff]
        %v4112 = vld [vmem:[%s0 + $0x3f8] sm:$0xff]
        %v4113 = vpack.c.bf16 %v3604, %v3601
        %v4114 = vpack.c.bf16 %v3605, %v3602
        %v4115 = vpack.c.bf16 %v3606, %v3603
        %v4116 = vpack.c.bf16 %v3610, %v3607
        %v4117 = vpack.c.bf16 %v3611, %v3608
        %v4118 = vpack.c.bf16 %v3612, %v3609
        %v4119 = vpack.c.bf16 %v3616, %v3613
        %v4120 = vpack.c.bf16 %v3617, %v3614
        %v4121 = vpack.c.bf16 %v3618, %v3615
        %v4122 = vpack.c.bf16 %v3622, %v3619
        %v4123 = vpack.c.bf16 %v3623, %v3620
        %v4124 = vpack.c.bf16 %v3624, %v3621
        %v4125 = vpack.c.bf16 %v3628, %v3625
        %v4126 = vpack.c.bf16 %v3629, %v3626
        %v4127 = vpack.c.bf16 %v3630, %v3627
        %v4128 = vpack.c.bf16 %v3634, %v3631
        %v4129 = vpack.c.bf16 %v3635, %v3632
        %v4130 = vpack.c.bf16 %v3636, %v3633
        %v4131 = vpack.c.bf16 %v3640, %v3637
        %v4132 = vpack.c.bf16 %v3641, %v3638
        %v4133 = vpack.c.bf16 %v3642, %v3639
        %v4134 = vpack.c.bf16 %v3646, %v3643
        %v4135 = vpack.c.bf16 %v3647, %v3644
        %v4136 = vpack.c.bf16 %v3648, %v3645
        %v4137 = vpack.c.bf16 %v3652, %v3649
        %v4138 = vpack.c.bf16 %v3653, %v3650
        %v4139 = vpack.c.bf16 %v3654, %v3651
        %v4140 = vpack.c.bf16 %v3658, %v3655
        %v4141 = vpack.c.bf16 %v3659, %v3656
        %v4142 = vpack.c.bf16 %v3660, %v3657
        %v4143 = vpack.c.bf16 %v3664, %v3661
        %v4144 = vpack.c.bf16 %v3665, %v3662
        %v4145 = vpack.c.bf16 %v3666, %v3663
        %v4146 = vpack.c.bf16 %v3670, %v3667
        %v4147 = vpack.c.bf16 %v3671, %v3668
        %v4148 = vpack.c.bf16 %v3672, %v3669
        %v4149 = vpack.c.bf16 %v3676, %v3673
        %v4150 = vpack.c.bf16 %v3677, %v3674
        %v4151 = vpack.c.bf16 %v3678, %v3675
        %v4152 = vpack.c.bf16 %v3682, %v3679
        %v4153 = vpack.c.bf16 %v3683, %v3680
        %v4154 = vpack.c.bf16 %v3684, %v3681
        %v4155 = vpack.c.bf16 %v3688, %v3685
        %v4156 = vpack.c.bf16 %v3689, %v3686
        %v4157 = vpack.c.bf16 %v3690, %v3687
        %v4158 = vpack.c.bf16 %v3694, %v3691
        %v4159 = vpack.c.bf16 %v3695, %v3692
        %v4160 = vpack.c.bf16 %v3696, %v3693
        %v4161 = vpack.c.bf16 %v3700, %v3697
        %v4162 = vpack.c.bf16 %v3701, %v3698
        %v4163 = vpack.c.bf16 %v3702, %v3699
        %v4164 = vpack.c.bf16 %v3706, %v3703
        %v4165 = vpack.c.bf16 %v3707, %v3704
        %v4166 = vpack.c.bf16 %v3708, %v3705
        %v4167 = vpack.c.bf16 %v3712, %v3709
        %v4168 = vpack.c.bf16 %v3713, %v3710
        %v4169 = vpack.c.bf16 %v3714, %v3711
        %v4170 = vpack.c.bf16 %v3718, %v3715
        %v4171 = vpack.c.bf16 %v3719, %v3716
        %v4172 = vpack.c.bf16 %v3720, %v3717
        %v4173 = vpack.c.bf16 %v3724, %v3721
        %v4174 = vpack.c.bf16 %v3725, %v3722
        %v4175 = vpack.c.bf16 %v3726, %v3723
        %v4176 = vpack.c.bf16 %v3730, %v3727
        %v4177 = vpack.c.bf16 %v3731, %v3728
        %v4178 = vpack.c.bf16 %v3732, %v3729
        %v4179 = vpack.c.bf16 %v3736, %v3733
        %v4180 = vpack.c.bf16 %v3737, %v3734
        %v4181 = vpack.c.bf16 %v3738, %v3735
        %v4182 = vpack.c.bf16 %v3742, %v3739
        %v4183 = vpack.c.bf16 %v3743, %v3740
        %v4184 = vpack.c.bf16 %v3744, %v3741
        %v4185 = vpack.c.bf16 %v3748, %v3745
        %v4186 = vpack.c.bf16 %v3749, %v3746
        %v4187 = vpack.c.bf16 %v3750, %v3747
        %v4188 = vpack.c.bf16 %v3754, %v3751
        %v4189 = vpack.c.bf16 %v3755, %v3752
        %v4190 = vpack.c.bf16 %v3756, %v3753
        %v4191 = vpack.c.bf16 %v3760, %v3757
        %v4192 = vpack.c.bf16 %v3761, %v3758
        %v4193 = vpack.c.bf16 %v3762, %v3759
        %v4194 = vpack.c.bf16 %v3766, %v3763
        %v4195 = vpack.c.bf16 %v3767, %v3764
        %v4196 = vpack.c.bf16 %v3768, %v3765
        %v4197 = vpack.c.bf16 %v3772, %v3769
        %v4198 = vpack.c.bf16 %v3773, %v3770
        %v4199 = vpack.c.bf16 %v3774, %v3771
        %v4200 = vpack.c.bf16 %v3778, %v3775
        %v4201 = vpack.c.bf16 %v3779, %v3776
        %v4202 = vpack.c.bf16 %v3780, %v3777
        %v4203 = vpack.c.bf16 %v3784, %v3781
        %v4204 = vpack.c.bf16 %v3785, %v3782
        %v4205 = vpack.c.bf16 %v3786, %v3783
        %v4206 = vpack.c.bf16 %v3790, %v3787
        %v4207 = vpack.c.bf16 %v3791, %v3788
        %v4208 = vpack.c.bf16 %v3792, %v3789
        %v4209 = vpack.c.bf16 %v3796, %v3793
        %v4210 = vpack.c.bf16 %v3797, %v3794
        %v4211 = vpack.c.bf16 %v3798, %v3795
        %v4212 = vpack.c.bf16 %v3802, %v3799
        %v4213 = vpack.c.bf16 %v3803, %v3800
        %v4214 = vpack.c.bf16 %v3804, %v3801
        %v4215 = vpack.c.bf16 %v3808, %v3805
        %v4216 = vpack.c.bf16 %v3809, %v3806
        %v4217 = vpack.c.bf16 %v3810, %v3807
        %v4218 = vpack.c.bf16 %v3814, %v3811
        %v4219 = vpack.c.bf16 %v3815, %v3812
        %v4220 = vpack.c.bf16 %v3816, %v3813
        %v4221 = vpack.c.bf16 %v3820, %v3817
        %v4222 = vpack.c.bf16 %v3821, %v3818
        %v4223 = vpack.c.bf16 %v3822, %v3819
        %v4224 = vpack.c.bf16 %v3826, %v3823
        %v4225 = vpack.c.bf16 %v3827, %v3824
        %v4226 = vpack.c.bf16 %v3828, %v3825
        %v4227 = vpack.c.bf16 %v3832, %v3829
        %v4228 = vpack.c.bf16 %v3833, %v3830
        %v4229 = vpack.c.bf16 %v3834, %v3831
        %v4230 = vpack.c.bf16 %v3838, %v3835
        %v4231 = vpack.c.bf16 %v3839, %v3836
        %v4232 = vpack.c.bf16 %v3840, %v3837
        %v4233 = vpack.c.bf16 %v3844, %v3841
        %v4234 = vpack.c.bf16 %v3845, %v3842
        %v4235 = vpack.c.bf16 %v3846, %v3843
        %v4236 = vpack.c.bf16 %v3850, %v3847
        %v4237 = vpack.c.bf16 %v3851, %v3848
        %v4238 = vpack.c.bf16 %v3852, %v3849
        %v4239 = vpack.c.bf16 %v3856, %v3853
        %v4240 = vpack.c.bf16 %v3857, %v3854
        %v4241 = vpack.c.bf16 %v3858, %v3855
        %v4242 = vpack.c.bf16 %v3862, %v3859
        %v4243 = vpack.c.bf16 %v3863, %v3860
        %v4244 = vpack.c.bf16 %v3864, %v3861
        %v4245 = vpack.c.bf16 %v3868, %v3865
        %v4246 = vpack.c.bf16 %v3869, %v3866
        %v4247 = vpack.c.bf16 %v3870, %v3867
        %v4248 = vpack.c.bf16 %v3874, %v3871
        %v4249 = vpack.c.bf16 %v3875, %v3872
        %v4250 = vpack.c.bf16 %v3876, %v3873
        %v4251 = vpack.c.bf16 %v3880, %v3877
        %v4252 = vpack.c.bf16 %v3881, %v3878
        %v4253 = vpack.c.bf16 %v3882, %v3879
        %v4254 = vpack.c.bf16 %v3886, %v3883
        %v4255 = vpack.c.bf16 %v3887, %v3884
        %v4256 = vpack.c.bf16 %v3888, %v3885
        %v4257 = vpack.c.bf16 %v3892, %v3889
        %v4258 = vpack.c.bf16 %v3893, %v3890
        %v4259 = vpack.c.bf16 %v3894, %v3891
        %v4260 = vpack.c.bf16 %v3898, %v3895
        %v4261 = vpack.c.bf16 %v3899, %v3896
        %v4262 = vpack.c.bf16 %v3900, %v3897
        %v4263 = vpack.c.bf16 %v3904, %v3901
        %v4264 = vpack.c.bf16 %v3905, %v3902
        %v4265 = vpack.c.bf16 %v3906, %v3903
        %v4266 = vpack.c.bf16 %v3910, %v3907
        %v4267 = vpack.c.bf16 %v3911, %v3908
        %v4268 = vpack.c.bf16 %v3912, %v3909
        %v4269 = vpack.c.bf16 %v3916, %v3913
        %v4270 = vpack.c.bf16 %v3917, %v3914
        %v4271 = vpack.c.bf16 %v3918, %v3915
        %v4272 = vpack.c.bf16 %v3922, %v3919
        %v4273 = vpack.c.bf16 %v3923, %v3920
        %v4274 = vpack.c.bf16 %v3924, %v3921
        %v4275 = vpack.c.bf16 %v3928, %v3925
        %v4276 = vpack.c.bf16 %v3929, %v3926
        %v4277 = vpack.c.bf16 %v3930, %v3927
        %v4278 = vpack.c.bf16 %v3934, %v3931
        %v4279 = vpack.c.bf16 %v3935, %v3932
        %v4280 = vpack.c.bf16 %v3936, %v3933
        %v4281 = vpack.c.bf16 %v3940, %v3937
        %v4282 = vpack.c.bf16 %v3941, %v3938
        %v4283 = vpack.c.bf16 %v3942, %v3939
        %v4284 = vpack.c.bf16 %v3946, %v3943
        %v4285 = vpack.c.bf16 %v3947, %v3944
        %v4286 = vpack.c.bf16 %v3948, %v3945
        %v4287 = vpack.c.bf16 %v3952, %v3949
        %v4288 = vpack.c.bf16 %v3953, %v3950
        %v4289 = vpack.c.bf16 %v3954, %v3951
        %v4290 = vpack.c.bf16 %v3958, %v3955
        %v4291 = vpack.c.bf16 %v3959, %v3956
        %v4292 = vpack.c.bf16 %v3960, %v3957
        %v4293 = vpack.c.bf16 %v3964, %v3961
        %v4294 = vpack.c.bf16 %v3965, %v3962
        %v4295 = vpack.c.bf16 %v3966, %v3963
        %v4296 = vpack.c.bf16 %v3970, %v3967
        %v4297 = vpack.c.bf16 %v3971, %v3968
        %v4298 = vpack.c.bf16 %v3972, %v3969
        %v4299 = vpack.c.bf16 %v3976, %v3973
        %v4300 = vpack.c.bf16 %v3977, %v3974
        %v4301 = vpack.c.bf16 %v3978, %v3975
        %v4302 = vpack.c.bf16 %v3982, %v3979
        %v4303 = vpack.c.bf16 %v3983, %v3980
        %v4304 = vpack.c.bf16 %v3984, %v3981
        %v4433 = vunpack.c.l.b16 %v3985
        %v4434 = vunpack.c.h.b16 %v3985
        %v4435 = vunpack.c.l.b16 %v3986
        %v4436 = vunpack.c.h.b16 %v3986
        %v4437 = vunpack.c.l.b16 %v3987
        %v4438 = vunpack.c.h.b16 %v3987
        %v4439 = vunpack.c.l.b16 %v3988
        %v4440 = vunpack.c.h.b16 %v3988
        %v4441 = vunpack.c.l.b16 %v3989
        %v4442 = vunpack.c.h.b16 %v3989
        %v4443 = vunpack.c.l.b16 %v3990
        %v4444 = vunpack.c.h.b16 %v3990
        %v4445 = vunpack.c.l.b16 %v3991
        %v4446 = vunpack.c.h.b16 %v3991
        %v4447 = vunpack.c.l.b16 %v3992
        %v4448 = vunpack.c.h.b16 %v3992
        %v4449 = vunpack.c.l.b16 %v3993
        %v4450 = vunpack.c.h.b16 %v3993
        %v4451 = vunpack.c.l.b16 %v3994
        %v4452 = vunpack.c.h.b16 %v3994
        %v4453 = vunpack.c.l.b16 %v3995
        %v4454 = vunpack.c.h.b16 %v3995
        %v4455 = vunpack.c.l.b16 %v3996
        %v4456 = vunpack.c.h.b16 %v3996
        %v4457 = vunpack.c.l.b16 %v3997
        %v4458 = vunpack.c.h.b16 %v3997
        %v4459 = vunpack.c.l.b16 %v3998
        %v4460 = vunpack.c.h.b16 %v3998
        %v4461 = vunpack.c.l.b16 %v3999
        %v4462 = vunpack.c.h.b16 %v3999
        %v4463 = vunpack.c.l.b16 %v4000
        %v4464 = vunpack.c.h.b16 %v4000
        %v4465 = vunpack.c.l.b16 %v4001
        %v4466 = vunpack.c.h.b16 %v4001
        %v4467 = vunpack.c.l.b16 %v4002
        %v4468 = vunpack.c.h.b16 %v4002
        %v4469 = vunpack.c.l.b16 %v4003
        %v4470 = vunpack.c.h.b16 %v4003
        %v4471 = vunpack.c.l.b16 %v4004
        %v4472 = vunpack.c.h.b16 %v4004
        %v4473 = vunpack.c.l.b16 %v4005
        %v4474 = vunpack.c.h.b16 %v4005
        %v4475 = vunpack.c.l.b16 %v4006
        %v4476 = vunpack.c.h.b16 %v4006
        %v4477 = vunpack.c.l.b16 %v4007
        %v4478 = vunpack.c.h.b16 %v4007
        %v4479 = vunpack.c.l.b16 %v4008
        %v4480 = vunpack.c.h.b16 %v4008
        %v4481 = vunpack.c.l.b16 %v4009
        %v4482 = vunpack.c.h.b16 %v4009
        %v4483 = vunpack.c.l.b16 %v4010
        %v4484 = vunpack.c.h.b16 %v4010
        %v4485 = vunpack.c.l.b16 %v4011
        %v4486 = vunpack.c.h.b16 %v4011
        %v4487 = vunpack.c.l.b16 %v4012
        %v4488 = vunpack.c.h.b16 %v4012
        %v4489 = vunpack.c.l.b16 %v4013
        %v4490 = vunpack.c.h.b16 %v4013
        %v4491 = vunpack.c.l.b16 %v4014
        %v4492 = vunpack.c.h.b16 %v4014
        %v4493 = vunpack.c.l.b16 %v4015
        %v4494 = vunpack.c.h.b16 %v4015
        %v4495 = vunpack.c.l.b16 %v4016
        %v4496 = vunpack.c.h.b16 %v4016
        %v4497 = vunpack.c.l.b16 %v4017
        %v4498 = vunpack.c.h.b16 %v4017
        %v4499 = vunpack.c.l.b16 %v4018
        %v4500 = vunpack.c.h.b16 %v4018
        %v4501 = vunpack.c.l.b16 %v4019
        %v4502 = vunpack.c.h.b16 %v4019
        %v4503 = vunpack.c.l.b16 %v4020
        %v4504 = vunpack.c.h.b16 %v4020
        %v4505 = vunpack.c.l.b16 %v4021
        %v4506 = vunpack.c.h.b16 %v4021
        %v4507 = vunpack.c.l.b16 %v4022
        %v4508 = vunpack.c.h.b16 %v4022
        %v4509 = vunpack.c.l.b16 %v4023
        %v4510 = vunpack.c.h.b16 %v4023
        %v4511 = vunpack.c.l.b16 %v4024
        %v4512 = vunpack.c.h.b16 %v4024
        %v4513 = vunpack.c.l.b16 %v4025
        %v4514 = vunpack.c.h.b16 %v4025
        %v4515 = vunpack.c.l.b16 %v4026
        %v4516 = vunpack.c.h.b16 %v4026
        %v4517 = vunpack.c.l.b16 %v4027
        %v4518 = vunpack.c.h.b16 %v4027
        %v4519 = vunpack.c.l.b16 %v4028
        %v4520 = vunpack.c.h.b16 %v4028
        %v4521 = vunpack.c.l.b16 %v4029
        %v4522 = vunpack.c.h.b16 %v4029
        %v4523 = vunpack.c.l.b16 %v4030
        %v4524 = vunpack.c.h.b16 %v4030
        %v4525 = vunpack.c.l.b16 %v4031
        %v4526 = vunpack.c.h.b16 %v4031
        %v4527 = vunpack.c.l.b16 %v4032
        %v4528 = vunpack.c.h.b16 %v4032
        %v4529 = vunpack.c.l.b16 %v4033
        %v4530 = vunpack.c.h.b16 %v4033
        %v4531 = vunpack.c.l.b16 %v4034
        %v4532 = vunpack.c.h.b16 %v4034
        %v4533 = vunpack.c.l.b16 %v4035
        %v4534 = vunpack.c.h.b16 %v4035
        %v4535 = vunpack.c.l.b16 %v4036
        %v4536 = vunpack.c.h.b16 %v4036
        %v4537 = vunpack.c.l.b16 %v4037
        %v4538 = vunpack.c.h.b16 %v4037
        %v4539 = vunpack.c.l.b16 %v4038
        %v4540 = vunpack.c.h.b16 %v4038
        %v4541 = vunpack.c.l.b16 %v4039
        %v4542 = vunpack.c.h.b16 %v4039
        %v4543 = vunpack.c.l.b16 %v4040
        %v4544 = vunpack.c.h.b16 %v4040
        %v4545 = vunpack.c.l.b16 %v4041
        %v4546 = vunpack.c.h.b16 %v4041
        %v4547 = vunpack.c.l.b16 %v4042
        %v4548 = vunpack.c.h.b16 %v4042
        %v4549 = vunpack.c.l.b16 %v4043
        %v4550 = vunpack.c.h.b16 %v4043
        %v4551 = vunpack.c.l.b16 %v4044
        %v4552 = vunpack.c.h.b16 %v4044
        %v4553 = vunpack.c.l.b16 %v4045
        %v4554 = vunpack.c.h.b16 %v4045
        %v4555 = vunpack.c.l.b16 %v4046
        %v4556 = vunpack.c.h.b16 %v4046
        %v4557 = vunpack.c.l.b16 %v4047
        %v4558 = vunpack.c.h.b16 %v4047
        %v4559 = vunpack.c.l.b16 %v4048
        %v4560 = vunpack.c.h.b16 %v4048
        %v4561 = vunpack.c.l.b16 %v4049
        %v4562 = vunpack.c.h.b16 %v4049
        %v4563 = vunpack.c.l.b16 %v4050
        %v4564 = vunpack.c.h.b16 %v4050
        %v4565 = vunpack.c.l.b16 %v4051
        %v4566 = vunpack.c.h.b16 %v4051
        %v4567 = vunpack.c.l.b16 %v4052
        %v4568 = vunpack.c.h.b16 %v4052
        %v4569 = vunpack.c.l.b16 %v4053
        %v4570 = vunpack.c.h.b16 %v4053
        %v4571 = vunpack.c.l.b16 %v4054
        %v4572 = vunpack.c.h.b16 %v4054
        %v4573 = vunpack.c.l.b16 %v4055
        %v4574 = vunpack.c.h.b16 %v4055
        %v4575 = vunpack.c.l.b16 %v4056
        %v4576 = vunpack.c.h.b16 %v4056
        %v4577 = vunpack.c.l.b16 %v4057
        %v4578 = vunpack.c.h.b16 %v4057
        %v4579 = vunpack.c.l.b16 %v4058
        %v4580 = vunpack.c.h.b16 %v4058
        %v4581 = vunpack.c.l.b16 %v4059
        %v4582 = vunpack.c.h.b16 %v4059
        %v4583 = vunpack.c.l.b16 %v4060
        %v4584 = vunpack.c.h.b16 %v4060
        %v4585 = vunpack.c.l.b16 %v4061
        %v4586 = vunpack.c.h.b16 %v4061
        %v4587 = vunpack.c.l.b16 %v4062
        %v4588 = vunpack.c.h.b16 %v4062
        %v4589 = vunpack.c.l.b16 %v4063
        %v4590 = vunpack.c.h.b16 %v4063
        %v4591 = vunpack.c.l.b16 %v4064
        %v4592 = vunpack.c.h.b16 %v4064
        %v4593 = vunpack.c.l.b16 %v4065
        %v4594 = vunpack.c.h.b16 %v4065
        %v4595 = vunpack.c.l.b16 %v4066
        %v4596 = vunpack.c.h.b16 %v4066
        %v4597 = vunpack.c.l.b16 %v4067
        %v4598 = vunpack.c.h.b16 %v4067
        %v4599 = vunpack.c.l.b16 %v4068
        %v4600 = vunpack.c.h.b16 %v4068
        %v4601 = vunpack.c.l.b16 %v4069
        %v4602 = vunpack.c.h.b16 %v4069
        %v4603 = vunpack.c.l.b16 %v4070
        %v4604 = vunpack.c.h.b16 %v4070
        %v4605 = vunpack.c.l.b16 %v4071
        %v4606 = vunpack.c.h.b16 %v4071
        %v4607 = vunpack.c.l.b16 %v4072
        %v4608 = vunpack.c.h.b16 %v4072
        %v4609 = vunpack.c.l.b16 %v4073
        %v4610 = vunpack.c.h.b16 %v4073
        %v4611 = vunpack.c.l.b16 %v4074
        %v4612 = vunpack.c.h.b16 %v4074
        %v4613 = vunpack.c.l.b16 %v4075
        %v4614 = vunpack.c.h.b16 %v4075
        %v4615 = vunpack.c.l.b16 %v4076
        %v4616 = vunpack.c.h.b16 %v4076
        %v4617 = vunpack.c.l.b16 %v4077
        %v4618 = vunpack.c.h.b16 %v4077
        %v4619 = vunpack.c.l.b16 %v4078
        %v4620 = vunpack.c.h.b16 %v4078
        %v4621 = vunpack.c.l.b16 %v4079
        %v4622 = vunpack.c.h.b16 %v4079
        %v4623 = vunpack.c.l.b16 %v4080
        %v4624 = vunpack.c.h.b16 %v4080
        %v4625 = vunpack.c.l.b16 %v4081
        %v4626 = vunpack.c.h.b16 %v4081
        %v4627 = vunpack.c.l.b16 %v4082
        %v4628 = vunpack.c.h.b16 %v4082
        %v4629 = vunpack.c.l.b16 %v4083
        %v4630 = vunpack.c.h.b16 %v4083
        %v4631 = vunpack.c.l.b16 %v4084
        %v4632 = vunpack.c.h.b16 %v4084
        %v4633 = vunpack.c.l.b16 %v4085
        %v4634 = vunpack.c.h.b16 %v4085
        %v4635 = vunpack.c.l.b16 %v4086
        %v4636 = vunpack.c.h.b16 %v4086
        %v4637 = vunpack.c.l.b16 %v4087
        %v4638 = vunpack.c.h.b16 %v4087
        %v4639 = vunpack.c.l.b16 %v4088
        %v4640 = vunpack.c.h.b16 %v4088
        %v4641 = vunpack.c.l.b16 %v4089
        %v4642 = vunpack.c.h.b16 %v4089
        %v4643 = vunpack.c.l.b16 %v4090
        %v4644 = vunpack.c.h.b16 %v4090
        %v4645 = vunpack.c.l.b16 %v4091
        %v4646 = vunpack.c.h.b16 %v4091
        %v4647 = vunpack.c.l.b16 %v4092
        %v4648 = vunpack.c.h.b16 %v4092
        %v4649 = vunpack.c.l.b16 %v4093
        %v4650 = vunpack.c.h.b16 %v4093
        %v4651 = vunpack.c.l.b16 %v4094
        %v4652 = vunpack.c.h.b16 %v4094
        %v4653 = vunpack.c.l.b16 %v4095
        %v4654 = vunpack.c.h.b16 %v4095
        %v4655 = vunpack.c.l.b16 %v4096
        %v4656 = vunpack.c.h.b16 %v4096
        %v4657 = vunpack.c.l.b16 %v4097
        %v4658 = vunpack.c.h.b16 %v4097
        %v4659 = vunpack.c.l.b16 %v4098
        %v4660 = vunpack.c.h.b16 %v4098
        %v4661 = vunpack.c.l.b16 %v4099
        %v4662 = vunpack.c.h.b16 %v4099
        %v4663 = vunpack.c.l.b16 %v4100
        %v4664 = vunpack.c.h.b16 %v4100
        %v4665 = vunpack.c.l.b16 %v4101
        %v4666 = vunpack.c.h.b16 %v4101
        %v4667 = vunpack.c.l.b16 %v4102
        %v4668 = vunpack.c.h.b16 %v4102
        %v4669 = vunpack.c.l.b16 %v4103
        %v4670 = vunpack.c.h.b16 %v4103
        %v4671 = vunpack.c.l.b16 %v4104
        %v4672 = vunpack.c.h.b16 %v4104
        %v4673 = vunpack.c.l.b16 %v4105
        %v4674 = vunpack.c.h.b16 %v4105
        %v4675 = vunpack.c.l.b16 %v4106
        %v4676 = vunpack.c.h.b16 %v4106
        %v4677 = vunpack.c.l.b16 %v4107
        %v4678 = vunpack.c.h.b16 %v4107
        %v4679 = vunpack.c.l.b16 %v4108
        %v4680 = vunpack.c.h.b16 %v4108
        %v4681 = vunpack.c.l.b16 %v4109
        %v4682 = vunpack.c.h.b16 %v4109
        %v4683 = vunpack.c.l.b16 %v4110
        %v4684 = vunpack.c.h.b16 %v4110
        %v4685 = vunpack.c.l.b16 %v4111
        %v4686 = vunpack.c.h.b16 %v4111
        %v4687 = vunpack.c.l.b16 %v4112
        %v4688 = vunpack.c.h.b16 %v4112
        %v4689 = vpack.c.b16 %v4441, %v4433
        %v4690 = vpack.c.b16 %v4442, %v4434
        %v4691 = vpack.c.b16 %v4443, %v4435
        %v4692 = vpack.c.b16 %v4444, %v4436
        %v4693 = vpack.c.b16 %v4445, %v4437
        %v4694 = vpack.c.b16 %v4446, %v4438
        %v4695 = vpack.c.b16 %v4447, %v4439
        %v4696 = vpack.c.b16 %v4448, %v4440
        %v4697 = vpack.c.b16 %v4457, %v4449
        %v4698 = vpack.c.b16 %v4458, %v4450
        %v4699 = vpack.c.b16 %v4459, %v4451
        %v4700 = vpack.c.b16 %v4460, %v4452
        %v4701 = vpack.c.b16 %v4461, %v4453
        %v4702 = vpack.c.b16 %v4462, %v4454
        %v4703 = vpack.c.b16 %v4463, %v4455
        %v4704 = vpack.c.b16 %v4464, %v4456
        %v4705 = vpack.c.b16 %v4473, %v4465
        %v4706 = vpack.c.b16 %v4474, %v4466
        %v4707 = vpack.c.b16 %v4475, %v4467
        %v4708 = vpack.c.b16 %v4476, %v4468
        %v4709 = vpack.c.b16 %v4477, %v4469
        %v4710 = vpack.c.b16 %v4478, %v4470
        %v4711 = vpack.c.b16 %v4479, %v4471
        %v4712 = vpack.c.b16 %v4480, %v4472
        %v4713 = vpack.c.b16 %v4489, %v4481
        %v4714 = vpack.c.b16 %v4490, %v4482
        %v4715 = vpack.c.b16 %v4491, %v4483
        %v4716 = vpack.c.b16 %v4492, %v4484
        %v4717 = vpack.c.b16 %v4493, %v4485
        %v4718 = vpack.c.b16 %v4494, %v4486
        %v4719 = vpack.c.b16 %v4495, %v4487
        %v4720 = vpack.c.b16 %v4496, %v4488
        %v4721 = vpack.c.b16 %v4505, %v4497
        %v4722 = vpack.c.b16 %v4506, %v4498
        %v4723 = vpack.c.b16 %v4507, %v4499
        %v4724 = vpack.c.b16 %v4508, %v4500
        %v4725 = vpack.c.b16 %v4509, %v4501
        %v4726 = vpack.c.b16 %v4510, %v4502
        %v4727 = vpack.c.b16 %v4511, %v4503
        %v4728 = vpack.c.b16 %v4512, %v4504
        %v4729 = vpack.c.b16 %v4521, %v4513
        %v4730 = vpack.c.b16 %v4522, %v4514
        %v4731 = vpack.c.b16 %v4523, %v4515
        %v4732 = vpack.c.b16 %v4524, %v4516
        %v4733 = vpack.c.b16 %v4525, %v4517
        %v4734 = vpack.c.b16 %v4526, %v4518
        %v4735 = vpack.c.b16 %v4527, %v4519
        %v4736 = vpack.c.b16 %v4528, %v4520
        %v4737 = vpack.c.b16 %v4537, %v4529
        %v4738 = vpack.c.b16 %v4538, %v4530
        %v4739 = vpack.c.b16 %v4539, %v4531
        %v4740 = vpack.c.b16 %v4540, %v4532
        %v4741 = vpack.c.b16 %v4541, %v4533
        %v4742 = vpack.c.b16 %v4542, %v4534
        %v4743 = vpack.c.b16 %v4543, %v4535
        %v4744 = vpack.c.b16 %v4544, %v4536
        %v4745 = vpack.c.b16 %v4553, %v4545
        %v4746 = vpack.c.b16 %v4554, %v4546
        %v4747 = vpack.c.b16 %v4555, %v4547
        %v4748 = vpack.c.b16 %v4556, %v4548
        %v4749 = vpack.c.b16 %v4557, %v4549
        %v4750 = vpack.c.b16 %v4558, %v4550
        %v4751 = vpack.c.b16 %v4559, %v4551
        %v4752 = vpack.c.b16 %v4560, %v4552
        %v4753 = vpack.c.b16 %v4569, %v4561
        %v4754 = vpack.c.b16 %v4570, %v4562
        %v4755 = vpack.c.b16 %v4571, %v4563
        %v4756 = vpack.c.b16 %v4572, %v4564
        %v4757 = vpack.c.b16 %v4573, %v4565
        %v4758 = vpack.c.b16 %v4574, %v4566
        %v4759 = vpack.c.b16 %v4575, %v4567
        %v4760 = vpack.c.b16 %v4576, %v4568
        %v4761 = vpack.c.b16 %v4585, %v4577
        %v4762 = vpack.c.b16 %v4586, %v4578
        %v4763 = vpack.c.b16 %v4587, %v4579
        %v4764 = vpack.c.b16 %v4588, %v4580
        %v4765 = vpack.c.b16 %v4589, %v4581
        %v4766 = vpack.c.b16 %v4590, %v4582
        %v4767 = vpack.c.b16 %v4591, %v4583
        %v4768 = vpack.c.b16 %v4592, %v4584
        %v4769 = vpack.c.b16 %v4601, %v4593
        %v4770 = vpack.c.b16 %v4602, %v4594
        %v4771 = vpack.c.b16 %v4603, %v4595
        %v4772 = vpack.c.b16 %v4604, %v4596
        %v4773 = vpack.c.b16 %v4605, %v4597
        %v4774 = vpack.c.b16 %v4606, %v4598
        %v4775 = vpack.c.b16 %v4607, %v4599
        %v4776 = vpack.c.b16 %v4608, %v4600
        %v4777 = vpack.c.b16 %v4617, %v4609
        %v4778 = vpack.c.b16 %v4618, %v4610
        %v4779 = vpack.c.b16 %v4619, %v4611
        %v4780 = vpack.c.b16 %v4620, %v4612
        %v4781 = vpack.c.b16 %v4621, %v4613
        %v4782 = vpack.c.b16 %v4622, %v4614
        %v4783 = vpack.c.b16 %v4623, %v4615
        %v4784 = vpack.c.b16 %v4624, %v4616
        %v4785 = vpack.c.b16 %v4633, %v4625
        %v4786 = vpack.c.b16 %v4634, %v4626
        %v4787 = vpack.c.b16 %v4635, %v4627
        %v4788 = vpack.c.b16 %v4636, %v4628
        %v4789 = vpack.c.b16 %v4637, %v4629
        %v4790 = vpack.c.b16 %v4638, %v4630
        %v4791 = vpack.c.b16 %v4639, %v4631
        %v4792 = vpack.c.b16 %v4640, %v4632
        %v4793 = vpack.c.b16 %v4649, %v4641
        %v4794 = vpack.c.b16 %v4650, %v4642
        %v4795 = vpack.c.b16 %v4651, %v4643
        %v4796 = vpack.c.b16 %v4652, %v4644
        %v4797 = vpack.c.b16 %v4653, %v4645
        %v4798 = vpack.c.b16 %v4654, %v4646
        %v4799 = vpack.c.b16 %v4655, %v4647
        %v4800 = vpack.c.b16 %v4656, %v4648
        %v4801 = vpack.c.b16 %v4665, %v4657
        %v4802 = vpack.c.b16 %v4666, %v4658
        %v4803 = vpack.c.b16 %v4667, %v4659
        %v4804 = vpack.c.b16 %v4668, %v4660
        %v4805 = vpack.c.b16 %v4669, %v4661
        %v4806 = vpack.c.b16 %v4670, %v4662
        %v4807 = vpack.c.b16 %v4671, %v4663
        %v4808 = vpack.c.b16 %v4672, %v4664
        %v4809 = vpack.c.b16 %v4681, %v4673
        %v4810 = vpack.c.b16 %v4682, %v4674
        %v4811 = vpack.c.b16 %v4683, %v4675
        %v4812 = vpack.c.b16 %v4684, %v4676
        %v4813 = vpack.c.b16 %v4685, %v4677
        %v4814 = vpack.c.b16 %v4686, %v4678
        %v4815 = vpack.c.b16 %v4687, %v4679
        %v4816 = vpack.c.b16 %v4688, %v4680
        %4945 = vmatprep.subr.bf16.mxu0 %v4114
        %4946 = vmatpush1.bf16.msra.mxu0 %v4113
        %4947 = vmatprep.subr.bf16.mxu0 %v4117
        %4948 = vmatpush1.bf16.msra.mxu0 %v4116
        %4949 = vmatprep.subr.bf16.mxu0 %v4120
        %4950 = vmatpush1.bf16.msra.mxu0 %v4119
        %4951 = vmatprep.subr.bf16.mxu0 %v4123
        %4952 = vmatpush1.bf16.msra.mxu0 %v4122
        %4953 = vmatprep.subr.bf16.mxu0 %v4126
        %4954 = vmatpush1.bf16.msra.mxu0 %v4125
        %4955 = vmatprep.subr.bf16.mxu0 %v4129
        %4956 = vmatpush1.bf16.msra.mxu0 %v4128
        %4957 = vmatprep.subr.bf16.mxu0 %v4132
        %4958 = vmatpush1.bf16.msra.mxu0 %v4131
        %4959 = vmatprep.subr.bf16.mxu0 %v4135
        %4960 = vmatpush1.bf16.msra.mxu0 %v4134
        %4961 = vmatprep.subr.bf16.mxu0 %v4138
        %4962 = vmatpush1.bf16.msra.mxu0 %v4137
        %4963 = vmatprep.subr.bf16.mxu0 %v4141
        %4964 = vmatpush1.bf16.msra.mxu0 %v4140
        %4965 = vmatprep.subr.bf16.mxu0 %v4144
        %4966 = vmatpush1.bf16.msra.mxu0 %v4143
        %4967 = vmatprep.subr.bf16.mxu0 %v4147
        %4968 = vmatpush1.bf16.msra.mxu0 %v4146
        %4969 = vmatprep.subr.bf16.mxu0 %v4150
        %4970 = vmatpush1.bf16.msra.mxu0 %v4149
        %4971 = vmatprep.subr.bf16.mxu0 %v4153
        %4972 = vmatpush1.bf16.msra.mxu0 %v4152
        %4973 = vmatprep.subr.bf16.mxu0 %v4156
        %4974 = vmatpush1.bf16.msra.mxu0 %v4155
        %4975 = vmatprep.subr.bf16.mxu0 %v4159
        %4976 = vmatpush1.bf16.msra.mxu0 %v4158
        %4977 = vmatprep.mubr.bf16.mxu0 %v4690
        %4978 = vmatmul.mubr.bf16.gmra.mrb[0].mxu0 %v4689
        %v4979 = vpop.f32.mrb[0].mxu0
        %v4980 = vadd.f32 0.0, %v4979
        %v4981 = vpop.f32.mrb[0].mxu0
        %v4982 = vadd.f32 0.0, %v4981
        %v4983 = vpop.f32.mrb[0].mxu0
        %v4984 = vadd.f32 0.0, %v4983
        %v4985 = vpop.f32.mrb[0].mxu0
        %v4986 = vadd.f32 0.0, %v4985
        %4987 = vmatprep.mubr.bf16.mxu0 %v4698
        %4988 = vmatmul.mubr.bf16.gmra.mrb[0].mxu0 %v4697
        %v4989 = vpop.f32.mrb[0].mxu0
        %v4990 = vadd.f32 0.0, %v4989
        %v4991 = vpop.f32.mrb[0].mxu0
        %v4992 = vadd.f32 0.0, %v4991
        %v4993 = vpop.f32.mrb[0].mxu0
        %v4994 = vadd.f32 0.0, %v4993
        %v4995 = vpop.f32.mrb[0].mxu0
        %v4996 = vadd.f32 0.0, %v4995
        %4997 = vmatprep.mubr.bf16.mxu0 %v4706
        %4998 = vmatmul.mubr.bf16.gmra.mrb[0].mxu0 %v4705
        %v4999 = vpop.f32.mrb[0].mxu0
        %v5000 = vadd.f32 0.0, %v4999
        %v5001 = vpop.f32.mrb[0].mxu0
        %v5002 = vadd.f32 0.0, %v5001
        %v5003 = vpop.f32.mrb[0].mxu0
        %v5004 = vadd.f32 0.0, %v5003
        %v5005 = vpop.f32.mrb[0].mxu0
        %v5006 = vadd.f32 0.0, %v5005
        %5007 = vmatprep.mubr.bf16.mxu0 %v4714
        %5008 = vmatmul.mubr.bf16.gmra.mrb[0].mxu0 %v4713
        %v5009 = vpop.f32.mrb[0].mxu0
        %v5010 = vadd.f32 0.0, %v5009
        %v5011 = vpop.f32.mrb[0].mxu0
        %v5012 = vadd.f32 0.0, %v5011
        %v5013 = vpop.f32.mrb[0].mxu0
        %v5014 = vadd.f32 0.0, %v5013
        %v5015 = vpop.f32.mrb[0].mxu0
        %v5016 = vadd.f32 0.0, %v5015
        %5017 = vmatprep.mubr.bf16.mxu0 %v4722
        %5018 = vmatmul.mubr.bf16.gmra.mrb[0].mxu0 %v4721
        %v5019 = vpop.f32.mrb[0].mxu0
        %v5020 = vadd.f32 0.0, %v5019
        %v5021 = vpop.f32.mrb[0].mxu0
        %v5022 = vadd.f32 0.0, %v5021
        %v5023 = vpop.f32.mrb[0].mxu0
        %v5024 = vadd.f32 0.0, %v5023
        %v5025 = vpop.f32.mrb[0].mxu0
        %v5026 = vadd.f32 0.0, %v5025
        %5027 = vmatprep.mubr.bf16.mxu0 %v4730
        %5028 = vmatmul.mubr.bf16.gmra.mrb[0].mxu0 %v4729
        %v5029 = vpop.f32.mrb[0].mxu0
        %v5030 = vadd.f32 0.0, %v5029
        %v5031 = vpop.f32.mrb[0].mxu0
        %v5032 = vadd.f32 0.0, %v5031
        %v5033 = vpop.f32.mrb[0].mxu0
        %v5034 = vadd.f32 0.0, %v5033
        %v5035 = vpop.f32.mrb[0].mxu0
        %v5036 = vadd.f32 0.0, %v5035
        %5037 = vmatprep.mubr.bf16.mxu0 %v4738
        %5038 = vmatmul.mubr.bf16.gmra.mrb[0].mxu0 %v4737
        %v5039 = vpop.f32.mrb[0].mxu0
        %v5040 = vadd.f32 0.0, %v5039
        %v5041 = vpop.f32.mrb[0].mxu0
        %v5042 = vadd.f32 0.0, %v5041
        %v5043 = vpop.f32.mrb[0].mxu0
        %v5044 = vadd.f32 0.0, %v5043
        %v5045 = vpop.f32.mrb[0].mxu0
        %v5046 = vadd.f32 0.0, %v5045
        %5047 = vmatprep.mubr.bf16.mxu0 %v4746
        %5048 = vmatmul.mubr.bf16.gmra.mrb[0].mxu0 %v4745
        %v5049 = vpop.f32.mrb[0].mxu0
        %v5050 = vadd.f32 0.0, %v5049
        %v5051 = vpop.f32.mrb[0].mxu0
        %v5052 = vadd.f32 0.0, %v5051
        %v5053 = vpop.f32.mrb[0].mxu0
        %v5054 = vadd.f32 0.0, %v5053
        %v5055 = vpop.f32.mrb[0].mxu0
        %v5056 = vadd.f32 0.0, %v5055
        %5057 = vmatprep.mubr.bf16.mxu0 %v4754
        %5058 = vmatmul.mubr.bf16.gmra.mrb[0].mxu0 %v4753
        %v5059 = vpop.f32.mrb[0].mxu0
        %v5060 = vadd.f32 0.0, %v5059
        %v5061 = vpop.f32.mrb[0].mxu0
        %v5062 = vadd.f32 0.0, %v5061
        %v5063 = vpop.f32.mrb[0].mxu0
        %v5064 = vadd.f32 0.0, %v5063
        %v5065 = vpop.f32.mrb[0].mxu0
        %v5066 = vadd.f32 0.0, %v5065
        %5067 = vmatprep.mubr.bf16.mxu0 %v4762
        %5068 = vmatmul.mubr.bf16.gmra.mrb[0].mxu0 %v4761
        %v5069 = vpop.f32.mrb[0].mxu0
        %v5070 = vadd.f32 0.0, %v5069
        %v5071 = vpop.f32.mrb[0].mxu0
        %v5072 = vadd.f32 0.0, %v5071
        %v5073 = vpop.f32.mrb[0].mxu0
        %v5074 = vadd.f32 0.0, %v5073
        %v5075 = vpop.f32.mrb[0].mxu0
        %v5076 = vadd.f32 0.0, %v5075
        %5077 = vmatprep.mubr.bf16.mxu0 %v4770
        %5078 = vmatmul.mubr.bf16.gmra.mrb[0].mxu0 %v4769
        %v5079 = vpop.f32.mrb[0].mxu0
        %v5080 = vadd.f32 0.0, %v5079
        %v5081 = vpop.f32.mrb[0].mxu0
        %v5082 = vadd.f32 0.0, %v5081
        %v5083 = vpop.f32.mrb[0].mxu0
        %v5084 = vadd.f32 0.0, %v5083
        %v5085 = vpop.f32.mrb[0].mxu0
        %v5086 = vadd.f32 0.0, %v5085
        %5087 = vmatprep.mubr.bf16.mxu0 %v4778
        %5088 = vmatmul.mubr.bf16.gmra.mrb[0].mxu0 %v4777
        %v5089 = vpop.f32.mrb[0].mxu0
        %v5090 = vadd.f32 0.0, %v5089
        %v5091 = vpop.f32.mrb[0].mxu0
        %v5092 = vadd.f32 0.0, %v5091
        %v5093 = vpop.f32.mrb[0].mxu0
        %v5094 = vadd.f32 0.0, %v5093
        %v5095 = vpop.f32.mrb[0].mxu0
        %v5096 = vadd.f32 0.0, %v5095
        %5097 = vmatprep.mubr.bf16.mxu0 %v4786
        %5098 = vmatmul.mubr.bf16.gmra.mrb[0].mxu0 %v4785
        %v5099 = vpop.f32.mrb[0].mxu0
        %v5100 = vadd.f32 0.0, %v5099
        %v5101 = vpop.f32.mrb[0].mxu0
        %v5102 = vadd.f32 0.0, %v5101
        %v5103 = vpop.f32.mrb[0].mxu0
        %v5104 = vadd.f32 0.0, %v5103
        %v5105 = vpop.f32.mrb[0].mxu0
        %v5106 = vadd.f32 0.0, %v5105
        %5107 = vmatprep.mubr.bf16.mxu0 %v4794
        %5108 = vmatmul.mubr.bf16.gmra.mrb[0].mxu0 %v4793
        %v5109 = vpop.f32.mrb[0].mxu0
        %v5110 = vadd.f32 0.0, %v5109
        %v5111 = vpop.f32.mrb[0].mxu0
        %v5112 = vadd.f32 0.0, %v5111
        %v5113 = vpop.f32.mrb[0].mxu0
        %v5114 = vadd.f32 0.0, %v5113
        %v5115 = vpop.f32.mrb[0].mxu0
        %v5116 = vadd.f32 0.0, %v5115
        %5117 = vmatprep.mubr.bf16.mxu0 %v4802
        %5118 = vmatmul.mubr.bf16.gmra.mrb[0].mxu0 %v4801
        %v5119 = vpop.f32.mrb[0].mxu0
        %v5120 = vadd.f32 0.0, %v5119
        %v5121 = vpop.f32.mrb[0].mxu0
        %v5122 = vadd.f32 0.0, %v5121
        %v5123 = vpop.f32.mrb[0].mxu0
        %v5124 = vadd.f32 0.0, %v5123
        %v5125 = vpop.f32.mrb[0].mxu0
        %v5126 = vadd.f32 0.0, %v5125
        %5127 = vmatprep.mubr.bf16.mxu0 %v4810
        %5128 = vmatmul.mubr.bf16.gmra.mrb[0].mxu0 %v4809
        %v5129 = vpop.f32.mrb[0].mxu0
        %v5130 = vadd.f32 0.0, %v5129
        %v5131 = vpop.f32.mrb[0].mxu0
        %v5132 = vadd.f32 0.0, %v5131
        %v5133 = vpop.f32.mrb[0].mxu0
        %v5134 = vadd.f32 0.0, %v5133
        %v5135 = vpop.f32.mrb[0].mxu0
        %v5136 = vadd.f32 0.0, %v5135
        %5137 = vdwg.mxu0
        %5138 = vmatprep.subr.bf16.mxu0 %v4162
        %5139 = vmatpush1.bf16.msra.mxu0 %v4161
        %5140 = vmatprep.subr.bf16.mxu0 %v4165
        %5141 = vmatpush1.bf16.msra.mxu0 %v4164
        %5142 = vmatprep.subr.bf16.mxu0 %v4168
        %5143 = vmatpush1.bf16.msra.mxu0 %v4167
        %5144 = vmatprep.subr.bf16.mxu0 %v4171
        %5145 = vmatpush1.bf16.msra.mxu0 %v4170
        %5146 = vmatprep.subr.bf16.mxu0 %v4174
        %5147 = vmatpush1.bf16.msra.mxu0 %v4173
        %5148 = vmatprep.subr.bf16.mxu0 %v4177
        %5149 = vmatpush1.bf16.msra.mxu0 %v4176
        %5150 = vmatprep.subr.bf16.mxu0 %v4180
        %5151 = vmatpush1.bf16.msra.mxu0 %v4179
        %5152 = vmatprep.subr.bf16.mxu0 %v4183
        %5153 = vmatpush1.bf16.msra.mxu0 %v4182
        %5154 = vmatprep.subr.bf16.mxu0 %v4186
        %5155 = vmatpush1.bf16.msra.mxu0 %v4185
        %5156 = vmatprep.subr.bf16.mxu0 %v4189
        %5157 = vmatpush1.bf16.msra.mxu0 %v4188
        %5158 = vmatprep.subr.bf16.mxu0 %v4192
        %5159 = vmatpush1.bf16.msra.mxu0 %v4191
        %5160 = vmatprep.subr.bf16.mxu0 %v4195
        %5161 = vmatpush1.bf16.msra.mxu0 %v4194
        %5162 = vmatprep.subr.bf16.mxu0 %v4198
        %5163 = vmatpush1.bf16.msra.mxu0 %v4197
        %5164 = vmatprep.subr.bf16.mxu0 %v4201
        %5165 = vmatpush1.bf16.msra.mxu0 %v4200
        %5166 = vmatprep.subr.bf16.mxu0 %v4204
        %5167 = vmatpush1.bf16.msra.mxu0 %v4203
        %5168 = vmatprep.subr.bf16.mxu0 %v4207
        %5169 = vmatpush1.bf16.msra.mxu0 %v4206
        %5170 = vmatprep.mubr.bf16.mxu0 %v4692
        %5171 = vmatmul.mubr.bf16.gmra.mrb[0].mxu0 %v4691
        %v5172 = vpop.f32.mrb[0].mxu0
        %v5173 = vadd.f32 %v4980, %v5172
        %v5174 = vpop.f32.mrb[0].mxu0
        %v5175 = vadd.f32 %v4982, %v5174
        %v5176 = vpop.f32.mrb[0].mxu0
        %v5177 = vadd.f32 %v4984, %v5176
        %v5178 = vpop.f32.mrb[0].mxu0
        %v5179 = vadd.f32 %v4986, %v5178
        %5180 = vmatprep.mubr.bf16.mxu0 %v4700
        %5181 = vmatmul.mubr.bf16.gmra.mrb[0].mxu0 %v4699
        %v5182 = vpop.f32.mrb[0].mxu0
        %v5183 = vadd.f32 %v4990, %v5182
        %v5184 = vpop.f32.mrb[0].mxu0
        %v5185 = vadd.f32 %v4992, %v5184
        %v5186 = vpop.f32.mrb[0].mxu0
        %v5187 = vadd.f32 %v4994, %v5186
        %v5188 = vpop.f32.mrb[0].mxu0
        %v5189 = vadd.f32 %v4996, %v5188
        %5190 = vmatprep.mubr.bf16.mxu0 %v4708
        %5191 = vmatmul.mubr.bf16.gmra.mrb[0].mxu0 %v4707
        %v5192 = vpop.f32.mrb[0].mxu0
        %v5193 = vadd.f32 %v5000, %v5192
        %v5194 = vpop.f32.mrb[0].mxu0
        %v5195 = vadd.f32 %v5002, %v5194
        %v5196 = vpop.f32.mrb[0].mxu0
        %v5197 = vadd.f32 %v5004, %v5196
        %v5198 = vpop.f32.mrb[0].mxu0
        %v5199 = vadd.f32 %v5006, %v5198
        %5200 = vmatprep.mubr.bf16.mxu0 %v4716
        %5201 = vmatmul.mubr.bf16.gmra.mrb[0].mxu0 %v4715
        %v5202 = vpop.f32.mrb[0].mxu0
        %v5203 = vadd.f32 %v5010, %v5202
        %v5204 = vpop.f32.mrb[0].mxu0
        %v5205 = vadd.f32 %v5012, %v5204
        %v5206 = vpop.f32.mrb[0].mxu0
        %v5207 = vadd.f32 %v5014, %v5206
        %v5208 = vpop.f32.mrb[0].mxu0
        %v5209 = vadd.f32 %v5016, %v5208
        %5210 = vmatprep.mubr.bf16.mxu0 %v4724
        %5211 = vmatmul.mubr.bf16.gmra.mrb[0].mxu0 %v4723
        %v5212 = vpop.f32.mrb[0].mxu0
        %v5213 = vadd.f32 %v5020, %v5212
        %v5214 = vpop.f32.mrb[0].mxu0
        %v5215 = vadd.f32 %v5022, %v5214
        %v5216 = vpop.f32.mrb[0].mxu0
        %v5217 = vadd.f32 %v5024, %v5216
        %v5218 = vpop.f32.mrb[0].mxu0
        %v5219 = vadd.f32 %v5026, %v5218
        %5220 = vmatprep.mubr.bf16.mxu0 %v4732
        %5221 = vmatmul.mubr.bf16.gmra.mrb[0].mxu0 %v4731
        %v5222 = vpop.f32.mrb[0].mxu0
        %v5223 = vadd.f32 %v5030, %v5222
        %v5224 = vpop.f32.mrb[0].mxu0
        %v5225 = vadd.f32 %v5032, %v5224
        %v5226 = vpop.f32.mrb[0].mxu0
        %v5227 = vadd.f32 %v5034, %v5226
        %v5228 = vpop.f32.mrb[0].mxu0
        %v5229 = vadd.f32 %v5036, %v5228
        %5230 = vmatprep.mubr.bf16.mxu0 %v4740
        %5231 = vmatmul.mubr.bf16.gmra.mrb[0].mxu0 %v4739
        %v5232 = vpop.f32.mrb[0].mxu0
        %v5233 = vadd.f32 %v5040, %v5232
        %v5234 = vpop.f32.mrb[0].mxu0
        %v5235 = vadd.f32 %v5042, %v5234
        %v5236 = vpop.f32.mrb[0].mxu0
        %v5237 = vadd.f32 %v5044, %v5236
        %v5238 = vpop.f32.mrb[0].mxu0
        %v5239 = vadd.f32 %v5046, %v5238
        %5240 = vmatprep.mubr.bf16.mxu0 %v4748
        %5241 = vmatmul.mubr.bf16.gmra.mrb[0].mxu0 %v4747
        %v5242 = vpop.f32.mrb[0].mxu0
        %v5243 = vadd.f32 %v5050, %v5242
        %v5244 = vpop.f32.mrb[0].mxu0
        %v5245 = vadd.f32 %v5052, %v5244
        %v5246 = vpop.f32.mrb[0].mxu0
        %v5247 = vadd.f32 %v5054, %v5246
        %v5248 = vpop.f32.mrb[0].mxu0
        %v5249 = vadd.f32 %v5056, %v5248
        %5250 = vmatprep.mubr.bf16.mxu0 %v4756
        %5251 = vmatmul.mubr.bf16.gmra.mrb[0].mxu0 %v4755
        %v5252 = vpop.f32.mrb[0].mxu0
        %v5253 = vadd.f32 %v5060, %v5252
        %v5254 = vpop.f32.mrb[0].mxu0
        %v5255 = vadd.f32 %v5062, %v5254
        %v5256 = vpop.f32.mrb[0].mxu0
        %v5257 = vadd.f32 %v5064, %v5256
        %v5258 = vpop.f32.mrb[0].mxu0
        %v5259 = vadd.f32 %v5066, %v5258
        %5260 = vmatprep.mubr.bf16.mxu0 %v4764
        %5261 = vmatmul.mubr.bf16.gmra.mrb[0].mxu0 %v4763
        %v5262 = vpop.f32.mrb[0].mxu0
        %v5263 = vadd.f32 %v5070, %v5262
        %v5264 = vpop.f32.mrb[0].mxu0
        %v5265 = vadd.f32 %v5072, %v5264
        %v5266 = vpop.f32.mrb[0].mxu0
        %v5267 = vadd.f32 %v5074, %v5266
        %v5268 = vpop.f32.mrb[0].mxu0
        %v5269 = vadd.f32 %v5076, %v5268
        %5270 = vmatprep.mubr.bf16.mxu0 %v4772
        %5271 = vmatmul.mubr.bf16.gmra.mrb[0].mxu0 %v4771
        %v5272 = vpop.f32.mrb[0].mxu0
        %v5273 = vadd.f32 %v5080, %v5272
        %v5274 = vpop.f32.mrb[0].mxu0
        %v5275 = vadd.f32 %v5082, %v5274
        %v5276 = vpop.f32.mrb[0].mxu0
        %v5277 = vadd.f32 %v5084, %v5276
        %v5278 = vpop.f32.mrb[0].mxu0
        %v5279 = vadd.f32 %v5086, %v5278
        %5280 = vmatprep.mubr.bf16.mxu0 %v4780
        %5281 = vmatmul.mubr.bf16.gmra.mrb[0].mxu0 %v4779
        %v5282 = vpop.f32.mrb[0].mxu0
        %v5283 = vadd.f32 %v5090, %v5282
        %v5284 = vpop.f32.mrb[0].mxu0
        %v5285 = vadd.f32 %v5092, %v5284
        %v5286 = vpop.f32.mrb[0].mxu0
        %v5287 = vadd.f32 %v5094, %v5286
        %v5288 = vpop.f32.mrb[0].mxu0
        %v5289 = vadd.f32 %v5096, %v5288
        %5290 = vmatprep.mubr.bf16.mxu0 %v4788
        %5291 = vmatmul.mubr.bf16.gmra.mrb[0].mxu0 %v4787
        %v5292 = vpop.f32.mrb[0].mxu0
        %v5293 = vadd.f32 %v5100, %v5292
        %v5294 = vpop.f32.mrb[0].mxu0
        %v5295 = vadd.f32 %v5102, %v5294
        %v5296 = vpop.f32.mrb[0].mxu0
        %v5297 = vadd.f32 %v5104, %v5296
        %v5298 = vpop.f32.mrb[0].mxu0
        %v5299 = vadd.f32 %v5106, %v5298
        %5300 = vmatprep.mubr.bf16.mxu0 %v4796
        %5301 = vmatmul.mubr.bf16.gmra.mrb[0].mxu0 %v4795
        %v5302 = vpop.f32.mrb[0].mxu0
        %v5303 = vadd.f32 %v5110, %v5302
        %v5304 = vpop.f32.mrb[0].mxu0
        %v5305 = vadd.f32 %v5112, %v5304
        %v5306 = vpop.f32.mrb[0].mxu0
        %v5307 = vadd.f32 %v5114, %v5306
        %v5308 = vpop.f32.mrb[0].mxu0
        %v5309 = vadd.f32 %v5116, %v5308
        %5310 = vmatprep.mubr.bf16.mxu0 %v4804
        %5311 = vmatmul.mubr.bf16.gmra.mrb[0].mxu0 %v4803
        %v5312 = vpop.f32.mrb[0].mxu0
        %v5313 = vadd.f32 %v5120, %v5312
        %v5314 = vpop.f32.mrb[0].mxu0
        %v5315 = vadd.f32 %v5122, %v5314
        %v5316 = vpop.f32.mrb[0].mxu0
        %v5317 = vadd.f32 %v5124, %v5316
        %v5318 = vpop.f32.mrb[0].mxu0
        %v5319 = vadd.f32 %v5126, %v5318
        %5320 = vmatprep.mubr.bf16.mxu0 %v4812
        %5321 = vmatmul.mubr.bf16.gmra.mrb[0].mxu0 %v4811
        %v5322 = vpop.f32.mrb[0].mxu0
        %v5323 = vadd.f32 %v5130, %v5322
        %v5324 = vpop.f32.mrb[0].mxu0
        %v5325 = vadd.f32 %v5132, %v5324
        %v5326 = vpop.f32.mrb[0].mxu0
        %v5327 = vadd.f32 %v5134, %v5326
        %v5328 = vpop.f32.mrb[0].mxu0
        %v5329 = vadd.f32 %v5136, %v5328
        %5330 = vdwg.mxu0
        %5331 = vmatprep.subr.bf16.mxu0 %v4210
        %5332 = vmatpush1.bf16.msra.mxu0 %v4209
        %5333 = vmatprep.subr.bf16.mxu0 %v4213
        %5334 = vmatpush1.bf16.msra.mxu0 %v4212
        %5335 = vmatprep.subr.bf16.mxu0 %v4216
        %5336 = vmatpush1.bf16.msra.mxu0 %v4215
        %5337 = vmatprep.subr.bf16.mxu0 %v4219
        %5338 = vmatpush1.bf16.msra.mxu0 %v4218
        %5339 = vmatprep.subr.bf16.mxu0 %v4222
        %5340 = vmatpush1.bf16.msra.mxu0 %v4221
        %5341 = vmatprep.subr.bf16.mxu0 %v4225
        %5342 = vmatpush1.bf16.msra.mxu0 %v4224
        %5343 = vmatprep.subr.bf16.mxu0 %v4228
        %5344 = vmatpush1.bf16.msra.mxu0 %v4227
        %5345 = vmatprep.subr.bf16.mxu0 %v4231
        %5346 = vmatpush1.bf16.msra.mxu0 %v4230
        %5347 = vmatprep.subr.bf16.mxu0 %v4234
        %5348 = vmatpush1.bf16.msra.mxu0 %v4233
        %5349 = vmatprep.subr.bf16.mxu0 %v4237
        %5350 = vmatpush1.bf16.msra.mxu0 %v4236
        %5351 = vmatprep.subr.bf16.mxu0 %v4240
        %5352 = vmatpush1.bf16.msra.mxu0 %v4239
        %5353 = vmatprep.subr.bf16.mxu0 %v4243
        %5354 = vmatpush1.bf16.msra.mxu0 %v4242
        %5355 = vmatprep.subr.bf16.mxu0 %v4246
        %5356 = vmatpush1.bf16.msra.mxu0 %v4245
        %5357 = vmatprep.subr.bf16.mxu0 %v4249
        %5358 = vmatpush1.bf16.msra.mxu0 %v4248
        %5359 = vmatprep.subr.bf16.mxu0 %v4252
        %5360 = vmatpush1.bf16.msra.mxu0 %v4251
        %5361 = vmatprep.subr.bf16.mxu0 %v4255
        %5362 = vmatpush1.bf16.msra.mxu0 %v4254
        %5363 = vmatprep.mubr.bf16.mxu0 %v4694
        %5364 = vmatmul.mubr.bf16.gmra.mrb[0].mxu0 %v4693
        %v5365 = vpop.f32.mrb[0].mxu0
        %v5366 = vadd.f32 %v5173, %v5365
        %v5367 = vpop.f32.mrb[0].mxu0
        %v5368 = vadd.f32 %v5175, %v5367
        %v5369 = vpop.f32.mrb[0].mxu0
        %v5370 = vadd.f32 %v5177, %v5369
        %v5371 = vpop.f32.mrb[0].mxu0
        %v5372 = vadd.f32 %v5179, %v5371
        %5373 = vmatprep.mubr.bf16.mxu0 %v4702
        %5374 = vmatmul.mubr.bf16.gmra.mrb[0].mxu0 %v4701
        %v5375 = vpop.f32.mrb[0].mxu0
        %v5376 = vadd.f32 %v5183, %v5375
        %v5377 = vpop.f32.mrb[0].mxu0
        %v5378 = vadd.f32 %v5185, %v5377
        %v5379 = vpop.f32.mrb[0].mxu0
        %v5380 = vadd.f32 %v5187, %v5379
        %v5381 = vpop.f32.mrb[0].mxu0
        %v5382 = vadd.f32 %v5189, %v5381
        %5383 = vmatprep.mubr.bf16.mxu0 %v4710
        %5384 = vmatmul.mubr.bf16.gmra.mrb[0].mxu0 %v4709
        %v5385 = vpop.f32.mrb[0].mxu0
        %v5386 = vadd.f32 %v5193, %v5385
        %v5387 = vpop.f32.mrb[0].mxu0
        %v5388 = vadd.f32 %v5195, %v5387
        %v5389 = vpop.f32.mrb[0].mxu0
        %v5390 = vadd.f32 %v5197, %v5389
        %v5391 = vpop.f32.mrb[0].mxu0
        %v5392 = vadd.f32 %v5199, %v5391
        %5393 = vmatprep.mubr.bf16.mxu0 %v4718
        %5394 = vmatmul.mubr.bf16.gmra.mrb[0].mxu0 %v4717
        %v5395 = vpop.f32.mrb[0].mxu0
        %v5396 = vadd.f32 %v5203, %v5395
        %v5397 = vpop.f32.mrb[0].mxu0
        %v5398 = vadd.f32 %v5205, %v5397
        %v5399 = vpop.f32.mrb[0].mxu0
        %v5400 = vadd.f32 %v5207, %v5399
        %v5401 = vpop.f32.mrb[0].mxu0
        %v5402 = vadd.f32 %v5209, %v5401
        %5403 = vmatprep.mubr.bf16.mxu0 %v4726
        %5404 = vmatmul.mubr.bf16.gmra.mrb[0].mxu0 %v4725
        %v5405 = vpop.f32.mrb[0].mxu0
        %v5406 = vadd.f32 %v5213, %v5405
        %v5407 = vpop.f32.mrb[0].mxu0
        %v5408 = vadd.f32 %v5215, %v5407
        %v5409 = vpop.f32.mrb[0].mxu0
        %v5410 = vadd.f32 %v5217, %v5409
        %v5411 = vpop.f32.mrb[0].mxu0
        %v5412 = vadd.f32 %v5219, %v5411
        %5413 = vmatprep.mubr.bf16.mxu0 %v4734
        %5414 = vmatmul.mubr.bf16.gmra.mrb[0].mxu0 %v4733
        %v5415 = vpop.f32.mrb[0].mxu0
        %v5416 = vadd.f32 %v5223, %v5415
        %v5417 = vpop.f32.mrb[0].mxu0
        %v5418 = vadd.f32 %v5225, %v5417
        %v5419 = vpop.f32.mrb[0].mxu0
        %v5420 = vadd.f32 %v5227, %v5419
        %v5421 = vpop.f32.mrb[0].mxu0
        %v5422 = vadd.f32 %v5229, %v5421
        %5423 = vmatprep.mubr.bf16.mxu0 %v4742
        %5424 = vmatmul.mubr.bf16.gmra.mrb[0].mxu0 %v4741
        %v5425 = vpop.f32.mrb[0].mxu0
        %v5426 = vadd.f32 %v5233, %v5425
        %v5427 = vpop.f32.mrb[0].mxu0
        %v5428 = vadd.f32 %v5235, %v5427
        %v5429 = vpop.f32.mrb[0].mxu0
        %v5430 = vadd.f32 %v5237, %v5429
        %v5431 = vpop.f32.mrb[0].mxu0
        %v5432 = vadd.f32 %v5239, %v5431
        %5433 = vmatprep.mubr.bf16.mxu0 %v4750
        %5434 = vmatmul.mubr.bf16.gmra.mrb[0].mxu0 %v4749
        %v5435 = vpop.f32.mrb[0].mxu0
        %v5436 = vadd.f32 %v5243, %v5435
        %v5437 = vpop.f32.mrb[0].mxu0
        %v5438 = vadd.f32 %v5245, %v5437
        %v5439 = vpop.f32.mrb[0].mxu0
        %v5440 = vadd.f32 %v5247, %v5439
        %v5441 = vpop.f32.mrb[0].mxu0
        %v5442 = vadd.f32 %v5249, %v5441
        %5443 = vmatprep.mubr.bf16.mxu0 %v4758
        %5444 = vmatmul.mubr.bf16.gmra.mrb[0].mxu0 %v4757
        %v5445 = vpop.f32.mrb[0].mxu0
        %v5446 = vadd.f32 %v5253, %v5445
        %v5447 = vpop.f32.mrb[0].mxu0
        %v5448 = vadd.f32 %v5255, %v5447
        %v5449 = vpop.f32.mrb[0].mxu0
        %v5450 = vadd.f32 %v5257, %v5449
        %v5451 = vpop.f32.mrb[0].mxu0
        %v5452 = vadd.f32 %v5259, %v5451
        %5453 = vmatprep.mubr.bf16.mxu0 %v4766
        %5454 = vmatmul.mubr.bf16.gmra.mrb[0].mxu0 %v4765
        %v5455 = vpop.f32.mrb[0].mxu0
        %v5456 = vadd.f32 %v5263, %v5455
        %v5457 = vpop.f32.mrb[0].mxu0
        %v5458 = vadd.f32 %v5265, %v5457
        %v5459 = vpop.f32.mrb[0].mxu0
        %v5460 = vadd.f32 %v5267, %v5459
        %v5461 = vpop.f32.mrb[0].mxu0
        %v5462 = vadd.f32 %v5269, %v5461
        %5463 = vmatprep.mubr.bf16.mxu0 %v4774
        %5464 = vmatmul.mubr.bf16.gmra.mrb[0].mxu0 %v4773
        %v5465 = vpop.f32.mrb[0].mxu0
        %v5466 = vadd.f32 %v5273, %v5465
        %v5467 = vpop.f32.mrb[0].mxu0
        %v5468 = vadd.f32 %v5275, %v5467
        %v5469 = vpop.f32.mrb[0].mxu0
        %v5470 = vadd.f32 %v5277, %v5469
        %v5471 = vpop.f32.mrb[0].mxu0
        %v5472 = vadd.f32 %v5279, %v5471
        %5473 = vmatprep.mubr.bf16.mxu0 %v4782
        %5474 = vmatmul.mubr.bf16.gmra.mrb[0].mxu0 %v4781
        %v5475 = vpop.f32.mrb[0].mxu0
        %v5476 = vadd.f32 %v5283, %v5475
        %v5477 = vpop.f32.mrb[0].mxu0
        %v5478 = vadd.f32 %v5285, %v5477
        %v5479 = vpop.f32.mrb[0].mxu0
        %v5480 = vadd.f32 %v5287, %v5479
        %v5481 = vpop.f32.mrb[0].mxu0
        %v5482 = vadd.f32 %v5289, %v5481
        %5483 = vmatprep.mubr.bf16.mxu0 %v4790
        %5484 = vmatmul.mubr.bf16.gmra.mrb[0].mxu0 %v4789
        %v5485 = vpop.f32.mrb[0].mxu0
        %v5486 = vadd.f32 %v5293, %v5485
        %v5487 = vpop.f32.mrb[0].mxu0
        %v5488 = vadd.f32 %v5295, %v5487
        %v5489 = vpop.f32.mrb[0].mxu0
        %v5490 = vadd.f32 %v5297, %v5489
        %v5491 = vpop.f32.mrb[0].mxu0
        %v5492 = vadd.f32 %v5299, %v5491
        %5493 = vmatprep.mubr.bf16.mxu0 %v4798
        %5494 = vmatmul.mubr.bf16.gmra.mrb[0].mxu0 %v4797
        %v5495 = vpop.f32.mrb[0].mxu0
        %v5496 = vadd.f32 %v5303, %v5495
        %v5497 = vpop.f32.mrb[0].mxu0
        %v5498 = vadd.f32 %v5305, %v5497
        %v5499 = vpop.f32.mrb[0].mxu0
        %v5500 = vadd.f32 %v5307, %v5499
        %v5501 = vpop.f32.mrb[0].mxu0
        %v5502 = vadd.f32 %v5309, %v5501
        %5503 = vmatprep.mubr.bf16.mxu0 %v4806
        %5504 = vmatmul.mubr.bf16.gmra.mrb[0].mxu0 %v4805
        %v5505 = vpop.f32.mrb[0].mxu0
        %v5506 = vadd.f32 %v5313, %v5505
        %v5507 = vpop.f32.mrb[0].mxu0
        %v5508 = vadd.f32 %v5315, %v5507
        %v5509 = vpop.f32.mrb[0].mxu0
        %v5510 = vadd.f32 %v5317, %v5509
        %v5511 = vpop.f32.mrb[0].mxu0
        %v5512 = vadd.f32 %v5319, %v5511
        %5513 = vmatprep.mubr.bf16.mxu0 %v4814
        %5514 = vmatmul.mubr.bf16.gmra.mrb[0].mxu0 %v4813
        %v5515 = vpop.f32.mrb[0].mxu0
        %v5516 = vadd.f32 %v5323, %v5515
        %v5517 = vpop.f32.mrb[0].mxu0
        %v5518 = vadd.f32 %v5325, %v5517
        %v5519 = vpop.f32.mrb[0].mxu0
        %v5520 = vadd.f32 %v5327, %v5519
        %v5521 = vpop.f32.mrb[0].mxu0
        %v5522 = vadd.f32 %v5329, %v5521
        %5523 = vdwg.mxu0
        %5524 = vmatprep.subr.bf16.mxu0 %v4258
        %5525 = vmatpush1.bf16.msra.mxu0 %v4257
        %5526 = vmatprep.subr.bf16.mxu0 %v4261
        %5527 = vmatpush1.bf16.msra.mxu0 %v4260
        %5528 = vmatprep.subr.bf16.mxu0 %v4264
        %5529 = vmatpush1.bf16.msra.mxu0 %v4263
        %5530 = vmatprep.subr.bf16.mxu0 %v4267
        %5531 = vmatpush1.bf16.msra.mxu0 %v4266
        %5532 = vmatprep.subr.bf16.mxu0 %v4270
        %5533 = vmatpush1.bf16.msra.mxu0 %v4269
        %5534 = vmatprep.subr.bf16.mxu0 %v4273
        %5535 = vmatpush1.bf16.msra.mxu0 %v4272
        %5536 = vmatprep.subr.bf16.mxu0 %v4276
        %5537 = vmatpush1.bf16.msra.mxu0 %v4275
        %5538 = vmatprep.subr.bf16.mxu0 %v4279
        %5539 = vmatpush1.bf16.msra.mxu0 %v4278
        %5540 = vmatprep.subr.bf16.mxu0 %v4282
        %5541 = vmatpush1.bf16.msra.mxu0 %v4281
        %5542 = vmatprep.subr.bf16.mxu0 %v4285
        %5543 = vmatpush1.bf16.msra.mxu0 %v4284
        %5544 = vmatprep.subr.bf16.mxu0 %v4288
        %5545 = vmatpush1.bf16.msra.mxu0 %v4287
        %5546 = vmatprep.subr.bf16.mxu0 %v4291
        %5547 = vmatpush1.bf16.msra.mxu0 %v4290
        %5548 = vmatprep.subr.bf16.mxu0 %v4294
        %5549 = vmatpush1.bf16.msra.mxu0 %v4293
        %5550 = vmatprep.subr.bf16.mxu0 %v4297
        %5551 = vmatpush1.bf16.msra.mxu0 %v4296
        %5552 = vmatprep.subr.bf16.mxu0 %v4300
        %5553 = vmatpush1.bf16.msra.mxu0 %v4299
        %5554 = vmatprep.subr.bf16.mxu0 %v4303
        %5555 = vmatpush1.bf16.msra.mxu0 %v4302
        %5556 = vmatprep.mubr.bf16.mxu0 %v4696
        %5557 = vmatmul.mubr.bf16.gmra.mrb[0].mxu0 %v4695
        %v5558 = vpop.f32.mrb[0].mxu0
        %v5559 = vadd.f32 %v5366, %v5558
        %v5560 = vpop.f32.mrb[0].mxu0
        %v5561 = vadd.f32 %v5368, %v5560
        %v5562 = vpop.f32.mrb[0].mxu0
        %v5563 = vadd.f32 %v5370, %v5562
        %v5564 = vpop.f32.mrb[0].mxu0
        %v5565 = vadd.f32 %v5372, %v5564
        %5566 = vmatprep.mubr.bf16.mxu0 %v4704
        %5567 = vmatmul.mubr.bf16.gmra.mrb[0].mxu0 %v4703
        %v5568 = vpop.f32.mrb[0].mxu0
        %v5569 = vadd.f32 %v5376, %v5568
        %v5570 = vpop.f32.mrb[0].mxu0
        %v5571 = vadd.f32 %v5378, %v5570
        %v5572 = vpop.f32.mrb[0].mxu0
        %v5573 = vadd.f32 %v5380, %v5572
        %v5574 = vpop.f32.mrb[0].mxu0
        %v5575 = vadd.f32 %v5382, %v5574
        %5576 = vmatprep.mubr.bf16.mxu0 %v4712
        %5577 = vmatmul.mubr.bf16.gmra.mrb[0].mxu0 %v4711
        %v5578 = vpop.f32.mrb[0].mxu0
        %v5579 = vadd.f32 %v5386, %v5578
        %v5580 = vpop.f32.mrb[0].mxu0
        %v5581 = vadd.f32 %v5388, %v5580
        %v5582 = vpop.f32.mrb[0].mxu0
        %v5583 = vadd.f32 %v5390, %v5582
        %v5584 = vpop.f32.mrb[0].mxu0
        %v5585 = vadd.f32 %v5392, %v5584
        %5586 = vmatprep.mubr.bf16.mxu0 %v4720
        %5587 = vmatmul.mubr.bf16.gmra.mrb[0].mxu0 %v4719
        %v5588 = vpop.f32.mrb[0].mxu0
        %v5589 = vadd.f32 %v5396, %v5588
        %v5590 = vpop.f32.mrb[0].mxu0
        %v5591 = vadd.f32 %v5398, %v5590
        %v5592 = vpop.f32.mrb[0].mxu0
        %v5593 = vadd.f32 %v5400, %v5592
        %v5594 = vpop.f32.mrb[0].mxu0
        %v5595 = vadd.f32 %v5402, %v5594
        %5596 = vmatprep.mubr.bf16.mxu0 %v4728
        %5597 = vmatmul.mubr.bf16.gmra.mrb[0].mxu0 %v4727
        %v5598 = vpop.f32.mrb[0].mxu0
        %v5599 = vadd.f32 %v5406, %v5598
        %v5600 = vpop.f32.mrb[0].mxu0
        %v5601 = vadd.f32 %v5408, %v5600
        %v5602 = vpop.f32.mrb[0].mxu0
        %v5603 = vadd.f32 %v5410, %v5602
        %v5604 = vpop.f32.mrb[0].mxu0
        %v5605 = vadd.f32 %v5412, %v5604
        %5606 = vmatprep.mubr.bf16.mxu0 %v4736
        %5607 = vmatmul.mubr.bf16.gmra.mrb[0].mxu0 %v4735
        %v5608 = vpop.f32.mrb[0].mxu0
        %v5609 = vadd.f32 %v5416, %v5608
        %v5610 = vpop.f32.mrb[0].mxu0
        %v5611 = vadd.f32 %v5418, %v5610
        %v5612 = vpop.f32.mrb[0].mxu0
        %v5613 = vadd.f32 %v5420, %v5612
        %v5614 = vpop.f32.mrb[0].mxu0
        %v5615 = vadd.f32 %v5422, %v5614
        %5616 = vmatprep.mubr.bf16.mxu0 %v4744
        %5617 = vmatmul.mubr.bf16.gmra.mrb[0].mxu0 %v4743
        %v5618 = vpop.f32.mrb[0].mxu0
        %v5619 = vadd.f32 %v5426, %v5618
        %v5620 = vpop.f32.mrb[0].mxu0
        %v5621 = vadd.f32 %v5428, %v5620
        %v5622 = vpop.f32.mrb[0].mxu0
        %v5623 = vadd.f32 %v5430, %v5622
        %v5624 = vpop.f32.mrb[0].mxu0
        %v5625 = vadd.f32 %v5432, %v5624
        %5626 = vmatprep.mubr.bf16.mxu0 %v4752
        %5627 = vmatmul.mubr.bf16.gmra.mrb[0].mxu0 %v4751
        %v5628 = vpop.f32.mrb[0].mxu0
        %v5629 = vadd.f32 %v5436, %v5628
        %v5630 = vpop.f32.mrb[0].mxu0
        %v5631 = vadd.f32 %v5438, %v5630
        %v5632 = vpop.f32.mrb[0].mxu0
        %v5633 = vadd.f32 %v5440, %v5632
        %v5634 = vpop.f32.mrb[0].mxu0
        %v5635 = vadd.f32 %v5442, %v5634
        %5636 = vmatprep.mubr.bf16.mxu0 %v4760
        %5637 = vmatmul.mubr.bf16.gmra.mrb[0].mxu0 %v4759
        %v5638 = vpop.f32.mrb[0].mxu0
        %v5639 = vadd.f32 %v5446, %v5638
        %v5640 = vpop.f32.mrb[0].mxu0
        %v5641 = vadd.f32 %v5448, %v5640
        %v5642 = vpop.f32.mrb[0].mxu0
        %v5643 = vadd.f32 %v5450, %v5642
        %v5644 = vpop.f32.mrb[0].mxu0
        %v5645 = vadd.f32 %v5452, %v5644
        %5646 = vmatprep.mubr.bf16.mxu0 %v4768
        %5647 = vmatmul.mubr.bf16.gmra.mrb[0].mxu0 %v4767
        %v5648 = vpop.f32.mrb[0].mxu0
        %v5649 = vadd.f32 %v5456, %v5648
        %v5650 = vpop.f32.mrb[0].mxu0
        %v5651 = vadd.f32 %v5458, %v5650
        %v5652 = vpop.f32.mrb[0].mxu0
        %v5653 = vadd.f32 %v5460, %v5652
        %v5654 = vpop.f32.mrb[0].mxu0
        %v5655 = vadd.f32 %v5462, %v5654
        %5656 = vmatprep.mubr.bf16.mxu0 %v4776
        %5657 = vmatmul.mubr.bf16.gmra.mrb[0].mxu0 %v4775
        %v5658 = vpop.f32.mrb[0].mxu0
        %v5659 = vadd.f32 %v5466, %v5658
        %v5660 = vpop.f32.mrb[0].mxu0
        %v5661 = vadd.f32 %v5468, %v5660
        %v5662 = vpop.f32.mrb[0].mxu0
        %v5663 = vadd.f32 %v5470, %v5662
        %v5664 = vpop.f32.mrb[0].mxu0
        %v5665 = vadd.f32 %v5472, %v5664
        %5666 = vmatprep.mubr.bf16.mxu0 %v4784
        %5667 = vmatmul.mubr.bf16.gmra.mrb[0].mxu0 %v4783
        %v5668 = vpop.f32.mrb[0].mxu0
        %v5669 = vadd.f32 %v5476, %v5668
        %v5670 = vpop.f32.mrb[0].mxu0
        %v5671 = vadd.f32 %v5478, %v5670
        %v5672 = vpop.f32.mrb[0].mxu0
        %v5673 = vadd.f32 %v5480, %v5672
        %v5674 = vpop.f32.mrb[0].mxu0
        %v5675 = vadd.f32 %v5482, %v5674
        %5676 = vmatprep.mubr.bf16.mxu0 %v4792
        %5677 = vmatmul.mubr.bf16.gmra.mrb[0].mxu0 %v4791
        %v5678 = vpop.f32.mrb[0].mxu0
        %v5679 = vadd.f32 %v5486, %v5678
        %v5680 = vpop.f32.mrb[0].mxu0
        %v5681 = vadd.f32 %v5488, %v5680
        %v5682 = vpop.f32.mrb[0].mxu0
        %v5683 = vadd.f32 %v5490, %v5682
        %v5684 = vpop.f32.mrb[0].mxu0
        %v5685 = vadd.f32 %v5492, %v5684
        %5686 = vmatprep.mubr.bf16.mxu0 %v4800
        %5687 = vmatmul.mubr.bf16.gmra.mrb[0].mxu0 %v4799
        %v5688 = vpop.f32.mrb[0].mxu0
        %v5689 = vadd.f32 %v5496, %v5688
        %v5690 = vpop.f32.mrb[0].mxu0
        %v5691 = vadd.f32 %v5498, %v5690
        %v5692 = vpop.f32.mrb[0].mxu0
        %v5693 = vadd.f32 %v5500, %v5692
        %v5694 = vpop.f32.mrb[0].mxu0
        %v5695 = vadd.f32 %v5502, %v5694
        %5696 = vmatprep.mubr.bf16.mxu0 %v4808
        %5697 = vmatmul.mubr.bf16.gmra.mrb[0].mxu0 %v4807
        %v5698 = vpop.f32.mrb[0].mxu0
        %v5699 = vadd.f32 %v5506, %v5698
        %v5700 = vpop.f32.mrb[0].mxu0
        %v5701 = vadd.f32 %v5508, %v5700
        %v5702 = vpop.f32.mrb[0].mxu0
        %v5703 = vadd.f32 %v5510, %v5702
        %v5704 = vpop.f32.mrb[0].mxu0
        %v5705 = vadd.f32 %v5512, %v5704
        %5706 = vmatprep.mubr.bf16.mxu0 %v4816
        %5707 = vmatmul.mubr.bf16.gmra.mrb[0].mxu0 %v4815
        %v5708 = vpop.f32.mrb[0].mxu0
        %v5709 = vadd.f32 %v5516, %v5708
        %v5710 = vpop.f32.mrb[0].mxu0
        %v5711 = vadd.f32 %v5518, %v5710
        %v5712 = vpop.f32.mrb[0].mxu0
        %v5713 = vadd.f32 %v5520, %v5712
        %v5714 = vpop.f32.mrb[0].mxu0
        %v5715 = vadd.f32 %v5522, %v5714
        %5716 = vdwg.mxu0
        %5717 = vmatprep.subr.bf16.mxu0 0
        %5718 = vmatpush1.bf16.msra.mxu0 %v4115
        %5719 = vmatprep.subr.bf16.mxu0 0
        %5720 = vmatpush1.bf16.msra.mxu0 %v4118
        %5721 = vmatprep.subr.bf16.mxu0 0
        %5722 = vmatpush1.bf16.msra.mxu0 %v4121
        %5723 = vmatprep.subr.bf16.mxu0 0
        %5724 = vmatpush1.bf16.msra.mxu0 %v4124
        %5725 = vmatprep.subr.bf16.mxu0 0
        %5726 = vmatpush1.bf16.msra.mxu0 %v4127
        %5727 = vmatprep.subr.bf16.mxu0 0
        %5728 = vmatpush1.bf16.msra.mxu0 %v4130
        %5729 = vmatprep.subr.bf16.mxu0 0
        %5730 = vmatpush1.bf16.msra.mxu0 %v4133
        %5731 = vmatprep.subr.bf16.mxu0 0
        %5732 = vmatpush1.bf16.msra.mxu0 %v4136
        %5733 = vmatprep.subr.bf16.mxu0 0
        %5734 = vmatpush1.bf16.msra.mxu0 %v4139
        %5735 = vmatprep.subr.bf16.mxu0 0
        %5736 = vmatpush1.bf16.msra.mxu0 %v4142
        %5737 = vmatprep.subr.bf16.mxu0 0
        %5738 = vmatpush1.bf16.msra.mxu0 %v4145
        %5739 = vmatprep.subr.bf16.mxu0 0
        %5740 = vmatpush1.bf16.msra.mxu0 %v4148
        %5741 = vmatprep.subr.bf16.mxu0 0
        %5742 = vmatpush1.bf16.msra.mxu0 %v4151
        %5743 = vmatprep.subr.bf16.mxu0 0
        %5744 = vmatpush1.bf16.msra.mxu0 %v4154
        %5745 = vmatprep.subr.bf16.mxu0 0
        %5746 = vmatpush1.bf16.msra.mxu0 %v4157
        %5747 = vmatprep.subr.bf16.mxu0 0
        %5748 = vmatpush1.bf16.msra.mxu0 %v4160
        %5749 = vmatprep.mubr.bf16.mxu0 %v4690
        %5750 = vmatmul.mubr.bf16.gmra.mrb[0].mxu0 %v4689
        %v5751 = vpop.f32.mrb[0].mxu0
        %v5752 = vadd.f32 0.0, %v5751
        %v5753 = vpop.f32.mrb[0].mxu0
        %v5754 = vpop.f32.mrb[0].mxu0
        %v5755 = vadd.f32 0.0, %v5754
        %v5756 = vpop.f32.mrb[0].mxu0
        %5757 = vmatprep.mubr.bf16.mxu0 %v4698
        %5758 = vmatmul.mubr.bf16.gmra.mrb[0].mxu0 %v4697
        %v5759 = vpop.f32.mrb[0].mxu0
        %v5760 = vadd.f32 0.0, %v5759
        %v5761 = vpop.f32.mrb[0].mxu0
        %v5762 = vpop.f32.mrb[0].mxu0
        %v5763 = vadd.f32 0.0, %v5762
        %v5764 = vpop.f32.mrb[0].mxu0
        %5765 = vmatprep.mubr.bf16.mxu0 %v4706
        %5766 = vmatmul.mubr.bf16.gmra.mrb[0].mxu0 %v4705
        %v5767 = vpop.f32.mrb[0].mxu0
        %v5768 = vadd.f32 0.0, %v5767
        %v5769 = vpop.f32.mrb[0].mxu0
        %v5770 = vpop.f32.mrb[0].mxu0
        %v5771 = vadd.f32 0.0, %v5770
        %v5772 = vpop.f32.mrb[0].mxu0
        %5773 = vmatprep.mubr.bf16.mxu0 %v4714
        %5774 = vmatmul.mubr.bf16.gmra.mrb[0].mxu0 %v4713
        %v5775 = vpop.f32.mrb[0].mxu0
        %v5776 = vadd.f32 0.0, %v5775
        %v5777 = vpop.f32.mrb[0].mxu0
        %v5778 = vpop.f32.mrb[0].mxu0
        %v5779 = vadd.f32 0.0, %v5778
        %v5780 = vpop.f32.mrb[0].mxu0
        %5781 = vmatprep.mubr.bf16.mxu0 %v4722
        %5782 = vmatmul.mubr.bf16.gmra.mrb[0].mxu0 %v4721
        %v5783 = vpop.f32.mrb[0].mxu0
        %v5784 = vadd.f32 0.0, %v5783
        %v5785 = vpop.f32.mrb[0].mxu0
        %v5786 = vpop.f32.mrb[0].mxu0
        %v5787 = vadd.f32 0.0, %v5786
        %v5788 = vpop.f32.mrb[0].mxu0
        %5789 = vmatprep.mubr.bf16.mxu0 %v4730
        %5790 = vmatmul.mubr.bf16.gmra.mrb[0].mxu0 %v4729
        %v5791 = vpop.f32.mrb[0].mxu0
        %v5792 = vadd.f32 0.0, %v5791
        %v5793 = vpop.f32.mrb[0].mxu0
        %v5794 = vpop.f32.mrb[0].mxu0
        %v5795 = vadd.f32 0.0, %v5794
        %v5796 = vpop.f32.mrb[0].mxu0
        %5797 = vmatprep.mubr.bf16.mxu0 %v4738
        %5798 = vmatmul.mubr.bf16.gmra.mrb[0].mxu0 %v4737
        %v5799 = vpop.f32.mrb[0].mxu0
        %v5800 = vadd.f32 0.0, %v5799
        %v5801 = vpop.f32.mrb[0].mxu0
        %v5802 = vpop.f32.mrb[0].mxu0
        %v5803 = vadd.f32 0.0, %v5802
        %v5804 = vpop.f32.mrb[0].mxu0
        %5805 = vmatprep.mubr.bf16.mxu0 %v4746
        %5806 = vmatmul.mubr.bf16.gmra.mrb[0].mxu0 %v4745
        %v5807 = vpop.f32.mrb[0].mxu0
        %v5808 = vadd.f32 0.0, %v5807
        %v5809 = vpop.f32.mrb[0].mxu0
        %v5810 = vpop.f32.mrb[0].mxu0
        %v5811 = vadd.f32 0.0, %v5810
        %v5812 = vpop.f32.mrb[0].mxu0
        %5813 = vmatprep.mubr.bf16.mxu0 %v4754
        %5814 = vmatmul.mubr.bf16.gmra.mrb[0].mxu0 %v4753
        %v5815 = vpop.f32.mrb[0].mxu0
        %v5816 = vadd.f32 0.0, %v5815
        %v5817 = vpop.f32.mrb[0].mxu0
        %v5818 = vpop.f32.mrb[0].mxu0
        %v5819 = vadd.f32 0.0, %v5818
        %v5820 = vpop.f32.mrb[0].mxu0
        %5821 = vmatprep.mubr.bf16.mxu0 %v4762
        %5822 = vmatmul.mubr.bf16.gmra.mrb[0].mxu0 %v4761
        %v5823 = vpop.f32.mrb[0].mxu0
        %v5824 = vadd.f32 0.0, %v5823
        %v5825 = vpop.f32.mrb[0].mxu0
        %v5826 = vpop.f32.mrb[0].mxu0
        %v5827 = vadd.f32 0.0, %v5826
        %v5828 = vpop.f32.mrb[0].mxu0
        %5829 = vmatprep.mubr.bf16.mxu0 %v4770
        %5830 = vmatmul.mubr.bf16.gmra.mrb[0].mxu0 %v4769
        %v5831 = vpop.f32.mrb[0].mxu0
        %v5832 = vadd.f32 0.0, %v5831
        %v5833 = vpop.f32.mrb[0].mxu0
        %v5834 = vpop.f32.mrb[0].mxu0
        %v5835 = vadd.f32 0.0, %v5834
        %v5836 = vpop.f32.mrb[0].mxu0
        %5837 = vmatprep.mubr.bf16.mxu0 %v4778
        %5838 = vmatmul.mubr.bf16.gmra.mrb[0].mxu0 %v4777
        %v5839 = vpop.f32.mrb[0].mxu0
        %v5840 = vadd.f32 0.0, %v5839
        %v5841 = vpop.f32.mrb[0].mxu0
        %v5842 = vpop.f32.mrb[0].mxu0
        %v5843 = vadd.f32 0.0, %v5842
        %v5844 = vpop.f32.mrb[0].mxu0
        %5845 = vmatprep.mubr.bf16.mxu0 %v4786
        %5846 = vmatmul.mubr.bf16.gmra.mrb[0].mxu0 %v4785
        %v5847 = vpop.f32.mrb[0].mxu0
        %v5848 = vadd.f32 0.0, %v5847
        %v5849 = vpop.f32.mrb[0].mxu0
        %v5850 = vpop.f32.mrb[0].mxu0
        %v5851 = vadd.f32 0.0, %v5850
        %v5852 = vpop.f32.mrb[0].mxu0
        %5853 = vmatprep.mubr.bf16.mxu0 %v4794
        %5854 = vmatmul.mubr.bf16.gmra.mrb[0].mxu0 %v4793
        %v5855 = vpop.f32.mrb[0].mxu0
        %v5856 = vadd.f32 0.0, %v5855
        %v5857 = vpop.f32.mrb[0].mxu0
        %v5858 = vpop.f32.mrb[0].mxu0
        %v5859 = vadd.f32 0.0, %v5858
        %v5860 = vpop.f32.mrb[0].mxu0
        %5861 = vmatprep.mubr.bf16.mxu0 %v4802
        %5862 = vmatmul.mubr.bf16.gmra.mrb[0].mxu0 %v4801
        %v5863 = vpop.f32.mrb[0].mxu0
        %v5864 = vadd.f32 0.0, %v5863
        %v5865 = vpop.f32.mrb[0].mxu0
        %v5866 = vpop.f32.mrb[0].mxu0
        %v5867 = vadd.f32 0.0, %v5866
        %v5868 = vpop.f32.mrb[0].mxu0
        %5869 = vmatprep.mubr.bf16.mxu0 %v4810
        %5870 = vmatmul.mubr.bf16.gmra.mrb[0].mxu0 %v4809
        %v5871 = vpop.f32.mrb[0].mxu0
        %v5872 = vadd.f32 0.0, %v5871
        %v5873 = vpop.f32.mrb[0].mxu0
        %v5874 = vpop.f32.mrb[0].mxu0
        %v5875 = vadd.f32 0.0, %v5874
        %v5876 = vpop.f32.mrb[0].mxu0
        %5877 = vdwg.mxu0
        %5878 = vmatprep.subr.bf16.mxu0 0
        %5879 = vmatpush1.bf16.msra.mxu0 %v4163
        %5880 = vmatprep.subr.bf16.mxu0 0
        %5881 = vmatpush1.bf16.msra.mxu0 %v4166
        %5882 = vmatprep.subr.bf16.mxu0 0
        %5883 = vmatpush1.bf16.msra.mxu0 %v4169
        %5884 = vmatprep.subr.bf16.mxu0 0
        %5885 = vmatpush1.bf16.msra.mxu0 %v4172
        %5886 = vmatprep.subr.bf16.mxu0 0
        %5887 = vmatpush1.bf16.msra.mxu0 %v4175
        %5888 = vmatprep.subr.bf16.mxu0 0
        %5889 = vmatpush1.bf16.msra.mxu0 %v4178
        %5890 = vmatprep.subr.bf16.mxu0 0
        %5891 = vmatpush1.bf16.msra.mxu0 %v4181
        %5892 = vmatprep.subr.bf16.mxu0 0
        %5893 = vmatpush1.bf16.msra.mxu0 %v4184
        %5894 = vmatprep.subr.bf16.mxu0 0
        %5895 = vmatpush1.bf16.msra.mxu0 %v4187
        %5896 = vmatprep.subr.bf16.mxu0 0
        %5897 = vmatpush1.bf16.msra.mxu0 %v4190
        %5898 = vmatprep.subr.bf16.mxu0 0
        %5899 = vmatpush1.bf16.msra.mxu0 %v4193
        %5900 = vmatprep.subr.bf16.mxu0 0
        %5901 = vmatpush1.bf16.msra.mxu0 %v4196
        %5902 = vmatprep.subr.bf16.mxu0 0
        %5903 = vmatpush1.bf16.msra.mxu0 %v4199
        %5904 = vmatprep.subr.bf16.mxu0 0
        %5905 = vmatpush1.bf16.msra.mxu0 %v4202
        %5906 = vmatprep.subr.bf16.mxu0 0
        %5907 = vmatpush1.bf16.msra.mxu0 %v4205
        %5908 = vmatprep.subr.bf16.mxu0 0
        %5909 = vmatpush1.bf16.msra.mxu0 %v4208
        %5910 = vmatprep.mubr.bf16.mxu0 %v4692
        %5911 = vmatmul.mubr.bf16.gmra.mrb[0].mxu0 %v4691
        %v5912 = vpop.f32.mrb[0].mxu0
        %v5913 = vadd.f32 %v5752, %v5912
        %v5914 = vpop.f32.mrb[0].mxu0
        %v5915 = vpop.f32.mrb[0].mxu0
        %v5916 = vadd.f32 %v5755, %v5915
        %v5917 = vpop.f32.mrb[0].mxu0
        %5918 = vmatprep.mubr.bf16.mxu0 %v4700
        %5919 = vmatmul.mubr.bf16.gmra.mrb[0].mxu0 %v4699
        %v5920 = vpop.f32.mrb[0].mxu0
        %v5921 = vadd.f32 %v5760, %v5920
        %v5922 = vpop.f32.mrb[0].mxu0
        %v5923 = vpop.f32.mrb[0].mxu0
        %v5924 = vadd.f32 %v5763, %v5923
        %v5925 = vpop.f32.mrb[0].mxu0
        %5926 = vmatprep.mubr.bf16.mxu0 %v4708
        %5927 = vmatmul.mubr.bf16.gmra.mrb[0].mxu0 %v4707
        %v5928 = vpop.f32.mrb[0].mxu0
        %v5929 = vadd.f32 %v5768, %v5928
        %v5930 = vpop.f32.mrb[0].mxu0
        %v5931 = vpop.f32.mrb[0].mxu0
        %v5932 = vadd.f32 %v5771, %v5931
        %v5933 = vpop.f32.mrb[0].mxu0
        %5934 = vmatprep.mubr.bf16.mxu0 %v4716
        %5935 = vmatmul.mubr.bf16.gmra.mrb[0].mxu0 %v4715
        %v5936 = vpop.f32.mrb[0].mxu0
        %v5937 = vadd.f32 %v5776, %v5936
        %v5938 = vpop.f32.mrb[0].mxu0
        %v5939 = vpop.f32.mrb[0].mxu0
        %v5940 = vadd.f32 %v5779, %v5939
        %v5941 = vpop.f32.mrb[0].mxu0
        %5942 = vmatprep.mubr.bf16.mxu0 %v4724
        %5943 = vmatmul.mubr.bf16.gmra.mrb[0].mxu0 %v4723
        %v5944 = vpop.f32.mrb[0].mxu0
        %v5945 = vadd.f32 %v5784, %v5944
        %v5946 = vpop.f32.mrb[0].mxu0
        %v5947 = vpop.f32.mrb[0].mxu0
        %v5948 = vadd.f32 %v5787, %v5947
        %v5949 = vpop.f32.mrb[0].mxu0
        %5950 = vmatprep.mubr.bf16.mxu0 %v4732
        %5951 = vmatmul.mubr.bf16.gmra.mrb[0].mxu0 %v4731
        %v5952 = vpop.f32.mrb[0].mxu0
        %v5953 = vadd.f32 %v5792, %v5952
        %v5954 = vpop.f32.mrb[0].mxu0
        %v5955 = vpop.f32.mrb[0].mxu0
        %v5956 = vadd.f32 %v5795, %v5955
        %v5957 = vpop.f32.mrb[0].mxu0
        %5958 = vmatprep.mubr.bf16.mxu0 %v4740
        %5959 = vmatmul.mubr.bf16.gmra.mrb[0].mxu0 %v4739
        %v5960 = vpop.f32.mrb[0].mxu0
        %v5961 = vadd.f32 %v5800, %v5960
        %v5962 = vpop.f32.mrb[0].mxu0
        %v5963 = vpop.f32.mrb[0].mxu0
        %v5964 = vadd.f32 %v5803, %v5963
        %v5965 = vpop.f32.mrb[0].mxu0
        %5966 = vmatprep.mubr.bf16.mxu0 %v4748
        %5967 = vmatmul.mubr.bf16.gmra.mrb[0].mxu0 %v4747
        %v5968 = vpop.f32.mrb[0].mxu0
        %v5969 = vadd.f32 %v5808, %v5968
        %v5970 = vpop.f32.mrb[0].mxu0
        %v5971 = vpop.f32.mrb[0].mxu0
        %v5972 = vadd.f32 %v5811, %v5971
        %v5973 = vpop.f32.mrb[0].mxu0
        %5974 = vmatprep.mubr.bf16.mxu0 %v4756
        %5975 = vmatmul.mubr.bf16.gmra.mrb[0].mxu0 %v4755
        %v5976 = vpop.f32.mrb[0].mxu0
        %v5977 = vadd.f32 %v5816, %v5976
        %v5978 = vpop.f32.mrb[0].mxu0
        %v5979 = vpop.f32.mrb[0].mxu0
        %v5980 = vadd.f32 %v5819, %v5979
        %v5981 = vpop.f32.mrb[0].mxu0
        %5982 = vmatprep.mubr.bf16.mxu0 %v4764
        %5983 = vmatmul.mubr.bf16.gmra.mrb[0].mxu0 %v4763
        %v5984 = vpop.f32.mrb[0].mxu0
        %v5985 = vadd.f32 %v5824, %v5984
        %v5986 = vpop.f32.mrb[0].mxu0
        %v5987 = vpop.f32.mrb[0].mxu0
        %v5988 = vadd.f32 %v5827, %v5987
        %v5989 = vpop.f32.mrb[0].mxu0
        %5990 = vmatprep.mubr.bf16.mxu0 %v4772
        %5991 = vmatmul.mubr.bf16.gmra.mrb[0].mxu0 %v4771
        %v5992 = vpop.f32.mrb[0].mxu0
        %v5993 = vadd.f32 %v5832, %v5992
        %v5994 = vpop.f32.mrb[0].mxu0
        %v5995 = vpop.f32.mrb[0].mxu0
        %v5996 = vadd.f32 %v5835, %v5995
        %v5997 = vpop.f32.mrb[0].mxu0
        %5998 = vmatprep.mubr.bf16.mxu0 %v4780
        %5999 = vmatmul.mubr.bf16.gmra.mrb[0].mxu0 %v4779
        %v6000 = vpop.f32.mrb[0].mxu0
        %v6001 = vadd.f32 %v5840, %v6000
        %v6002 = vpop.f32.mrb[0].mxu0
        %v6003 = vpop.f32.mrb[0].mxu0
        %v6004 = vadd.f32 %v5843, %v6003
        %v6005 = vpop.f32.mrb[0].mxu0
        %6006 = vmatprep.mubr.bf16.mxu0 %v4788
        %6007 = vmatmul.mubr.bf16.gmra.mrb[0].mxu0 %v4787
        %v6008 = vpop.f32.mrb[0].mxu0
        %v6009 = vadd.f32 %v5848, %v6008
        %v6010 = vpop.f32.mrb[0].mxu0
        %v6011 = vpop.f32.mrb[0].mxu0
        %v6012 = vadd.f32 %v5851, %v6011
        %v6013 = vpop.f32.mrb[0].mxu0
        %6014 = vmatprep.mubr.bf16.mxu0 %v4796
        %6015 = vmatmul.mubr.bf16.gmra.mrb[0].mxu0 %v4795
        %v6016 = vpop.f32.mrb[0].mxu0
        %v6017 = vadd.f32 %v5856, %v6016
        %v6018 = vpop.f32.mrb[0].mxu0
        %v6019 = vpop.f32.mrb[0].mxu0
        %v6020 = vadd.f32 %v5859, %v6019
        %v6021 = vpop.f32.mrb[0].mxu0
        %6022 = vmatprep.mubr.bf16.mxu0 %v4804
        %6023 = vmatmul.mubr.bf16.gmra.mrb[0].mxu0 %v4803
        %v6024 = vpop.f32.mrb[0].mxu0
        %v6025 = vadd.f32 %v5864, %v6024
        %v6026 = vpop.f32.mrb[0].mxu0
        %v6027 = vpop.f32.mrb[0].mxu0
        %v6028 = vadd.f32 %v5867, %v6027
        %v6029 = vpop.f32.mrb[0].mxu0
        %6030 = vmatprep.mubr.bf16.mxu0 %v4812
        %6031 = vmatmul.mubr.bf16.gmra.mrb[0].mxu0 %v4811
        %v6032 = vpop.f32.mrb[0].mxu0
        %v6033 = vadd.f32 %v5872, %v6032
        %v6034 = vpop.f32.mrb[0].mxu0
        %v6035 = vpop.f32.mrb[0].mxu0
        %v6036 = vadd.f32 %v5875, %v6035
        %v6037 = vpop.f32.mrb[0].mxu0
        %6038 = vdwg.mxu0
        %6039 = vmatprep.subr.bf16.mxu0 0
        %6040 = vmatpush1.bf16.msra.mxu0 %v4211
        %6041 = vmatprep.subr.bf16.mxu0 0
        %6042 = vmatpush1.bf16.msra.mxu0 %v4214
        %6043 = vmatprep.subr.bf16.mxu0 0
        %6044 = vmatpush1.bf16.msra.mxu0 %v4217
        %6045 = vmatprep.subr.bf16.mxu0 0
        %6046 = vmatpush1.bf16.msra.mxu0 %v4220
        %6047 = vmatprep.subr.bf16.mxu0 0
        %6048 = vmatpush1.bf16.msra.mxu0 %v4223
        %6049 = vmatprep.subr.bf16.mxu0 0
        %6050 = vmatpush1.bf16.msra.mxu0 %v4226
        %6051 = vmatprep.subr.bf16.mxu0 0
        %6052 = vmatpush1.bf16.msra.mxu0 %v4229
        %6053 = vmatprep.subr.bf16.mxu0 0
        %6054 = vmatpush1.bf16.msra.mxu0 %v4232
        %6055 = vmatprep.subr.bf16.mxu0 0
        %6056 = vmatpush1.bf16.msra.mxu0 %v4235
        %6057 = vmatprep.subr.bf16.mxu0 0
        %6058 = vmatpush1.bf16.msra.mxu0 %v4238
        %6059 = vmatprep.subr.bf16.mxu0 0
        %6060 = vmatpush1.bf16.msra.mxu0 %v4241
        %6061 = vmatprep.subr.bf16.mxu0 0
        %6062 = vmatpush1.bf16.msra.mxu0 %v4244
        %6063 = vmatprep.subr.bf16.mxu0 0
        %6064 = vmatpush1.bf16.msra.mxu0 %v4247
        %6065 = vmatprep.subr.bf16.mxu0 0
        %6066 = vmatpush1.bf16.msra.mxu0 %v4250
        %6067 = vmatprep.subr.bf16.mxu0 0
        %6068 = vmatpush1.bf16.msra.mxu0 %v4253
        %6069 = vmatprep.subr.bf16.mxu0 0
        %6070 = vmatpush1.bf16.msra.mxu0 %v4256
        %6071 = vmatprep.mubr.bf16.mxu0 %v4694
        %6072 = vmatmul.mubr.bf16.gmra.mrb[0].mxu0 %v4693
        %v6073 = vpop.f32.mrb[0].mxu0
        %v6074 = vadd.f32 %v5913, %v6073
        %v6075 = vpop.f32.mrb[0].mxu0
        %v6076 = vpop.f32.mrb[0].mxu0
        %v6077 = vadd.f32 %v5916, %v6076
        %v6078 = vpop.f32.mrb[0].mxu0
        %6079 = vmatprep.mubr.bf16.mxu0 %v4702
        %6080 = vmatmul.mubr.bf16.gmra.mrb[0].mxu0 %v4701
        %v6081 = vpop.f32.mrb[0].mxu0
        %v6082 = vadd.f32 %v5921, %v6081
        %v6083 = vpop.f32.mrb[0].mxu0
        %v6084 = vpop.f32.mrb[0].mxu0
        %v6085 = vadd.f32 %v5924, %v6084
        %v6086 = vpop.f32.mrb[0].mxu0
        %6087 = vmatprep.mubr.bf16.mxu0 %v4710
        %6088 = vmatmul.mubr.bf16.gmra.mrb[0].mxu0 %v4709
        %v6089 = vpop.f32.mrb[0].mxu0
        %v6090 = vadd.f32 %v5929, %v6089
        %v6091 = vpop.f32.mrb[0].mxu0
        %v6092 = vpop.f32.mrb[0].mxu0
        %v6093 = vadd.f32 %v5932, %v6092
        %v6094 = vpop.f32.mrb[0].mxu0
        %6095 = vmatprep.mubr.bf16.mxu0 %v4718
        %6096 = vmatmul.mubr.bf16.gmra.mrb[0].mxu0 %v4717
        %v6097 = vpop.f32.mrb[0].mxu0
        %v6098 = vadd.f32 %v5937, %v6097
        %v6099 = vpop.f32.mrb[0].mxu0
        %v6100 = vpop.f32.mrb[0].mxu0
        %v6101 = vadd.f32 %v5940, %v6100
        %v6102 = vpop.f32.mrb[0].mxu0
        %6103 = vmatprep.mubr.bf16.mxu0 %v4726
        %6104 = vmatmul.mubr.bf16.gmra.mrb[0].mxu0 %v4725
        %v6105 = vpop.f32.mrb[0].mxu0
        %v6106 = vadd.f32 %v5945, %v6105
        %v6107 = vpop.f32.mrb[0].mxu0
        %v6108 = vpop.f32.mrb[0].mxu0
        %v6109 = vadd.f32 %v5948, %v6108
        %v6110 = vpop.f32.mrb[0].mxu0
        %6111 = vmatprep.mubr.bf16.mxu0 %v4734
        %6112 = vmatmul.mubr.bf16.gmra.mrb[0].mxu0 %v4733
        %v6113 = vpop.f32.mrb[0].mxu0
        %v6114 = vadd.f32 %v5953, %v6113
        %v6115 = vpop.f32.mrb[0].mxu0
        %v6116 = vpop.f32.mrb[0].mxu0
        %v6117 = vadd.f32 %v5956, %v6116
        %v6118 = vpop.f32.mrb[0].mxu0
        %6119 = vmatprep.mubr.bf16.mxu0 %v4742
        %6120 = vmatmul.mubr.bf16.gmra.mrb[0].mxu0 %v4741
        %v6121 = vpop.f32.mrb[0].mxu0
        %v6122 = vadd.f32 %v5961, %v6121
        %v6123 = vpop.f32.mrb[0].mxu0
        %v6124 = vpop.f32.mrb[0].mxu0
        %v6125 = vadd.f32 %v5964, %v6124
        %v6126 = vpop.f32.mrb[0].mxu0
        %6127 = vmatprep.mubr.bf16.mxu0 %v4750
        %6128 = vmatmul.mubr.bf16.gmra.mrb[0].mxu0 %v4749
        %v6129 = vpop.f32.mrb[0].mxu0
        %v6130 = vadd.f32 %v5969, %v6129
        %v6131 = vpop.f32.mrb[0].mxu0
        %v6132 = vpop.f32.mrb[0].mxu0
        %v6133 = vadd.f32 %v5972, %v6132
        %v6134 = vpop.f32.mrb[0].mxu0
        %6135 = vmatprep.mubr.bf16.mxu0 %v4758
        %6136 = vmatmul.mubr.bf16.gmra.mrb[0].mxu0 %v4757
        %v6137 = vpop.f32.mrb[0].mxu0
        %v6138 = vadd.f32 %v5977, %v6137
        %v6139 = vpop.f32.mrb[0].mxu0
        %v6140 = vpop.f32.mrb[0].mxu0
        %v6141 = vadd.f32 %v5980, %v6140
        %v6142 = vpop.f32.mrb[0].mxu0
        %6143 = vmatprep.mubr.bf16.mxu0 %v4766
        %6144 = vmatmul.mubr.bf16.gmra.mrb[0].mxu0 %v4765
        %v6145 = vpop.f32.mrb[0].mxu0
        %v6146 = vadd.f32 %v5985, %v6145
        %v6147 = vpop.f32.mrb[0].mxu0
        %v6148 = vpop.f32.mrb[0].mxu0
        %v6149 = vadd.f32 %v5988, %v6148
        %v6150 = vpop.f32.mrb[0].mxu0
        %6151 = vmatprep.mubr.bf16.mxu0 %v4774
        %6152 = vmatmul.mubr.bf16.gmra.mrb[0].mxu0 %v4773
        %v6153 = vpop.f32.mrb[0].mxu0
        %v6154 = vadd.f32 %v5993, %v6153
        %v6155 = vpop.f32.mrb[0].mxu0
        %v6156 = vpop.f32.mrb[0].mxu0
        %v6157 = vadd.f32 %v5996, %v6156
        %v6158 = vpop.f32.mrb[0].mxu0
        %6159 = vmatprep.mubr.bf16.mxu0 %v4782
        %6160 = vmatmul.mubr.bf16.gmra.mrb[0].mxu0 %v4781
        %v6161 = vpop.f32.mrb[0].mxu0
        %v6162 = vadd.f32 %v6001, %v6161
        %v6163 = vpop.f32.mrb[0].mxu0
        %v6164 = vpop.f32.mrb[0].mxu0
        %v6165 = vadd.f32 %v6004, %v6164
        %v6166 = vpop.f32.mrb[0].mxu0
        %6167 = vmatprep.mubr.bf16.mxu0 %v4790
        %6168 = vmatmul.mubr.bf16.gmra.mrb[0].mxu0 %v4789
        %v6169 = vpop.f32.mrb[0].mxu0
        %v6170 = vadd.f32 %v6009, %v6169
        %v6171 = vpop.f32.mrb[0].mxu0
        %v6172 = vpop.f32.mrb[0].mxu0
        %v6173 = vadd.f32 %v6012, %v6172
        %v6174 = vpop.f32.mrb[0].mxu0
        %6175 = vmatprep.mubr.bf16.mxu0 %v4798
        %6176 = vmatmul.mubr.bf16.gmra.mrb[0].mxu0 %v4797
        %v6177 = vpop.f32.mrb[0].mxu0
        %v6178 = vadd.f32 %v6017, %v6177
        %v6179 = vpop.f32.mrb[0].mxu0
        %v6180 = vpop.f32.mrb[0].mxu0
        %v6181 = vadd.f32 %v6020, %v6180
        %v6182 = vpop.f32.mrb[0].mxu0
        %6183 = vmatprep.mubr.bf16.mxu0 %v4806
        %6184 = vmatmul.mubr.bf16.gmra.mrb[0].mxu0 %v4805
        %v6185 = vpop.f32.mrb[0].mxu0
        %v6186 = vadd.f32 %v6025, %v6185
        %v6187 = vpop.f32.mrb[0].mxu0
        %v6188 = vpop.f32.mrb[0].mxu0
        %v6189 = vadd.f32 %v6028, %v6188
        %v6190 = vpop.f32.mrb[0].mxu0
        %6191 = vmatprep.mubr.bf16.mxu0 %v4814
        %6192 = vmatmul.mubr.bf16.gmra.mrb[0].mxu0 %v4813
        %v6193 = vpop.f32.mrb[0].mxu0
        %v6194 = vadd.f32 %v6033, %v6193
        %v6195 = vpop.f32.mrb[0].mxu0
        %v6196 = vpop.f32.mrb[0].mxu0
        %v6197 = vadd.f32 %v6036, %v6196
        %v6198 = vpop.f32.mrb[0].mxu0
        %6199 = vdwg.mxu0
        %6200 = vmatprep.subr.bf16.mxu0 0
        %6201 = vmatpush1.bf16.msra.mxu0 %v4259
        %6202 = vmatprep.subr.bf16.mxu0 0
        %6203 = vmatpush1.bf16.msra.mxu0 %v4262
        %6204 = vmatprep.subr.bf16.mxu0 0
        %6205 = vmatpush1.bf16.msra.mxu0 %v4265
        %6206 = vmatprep.subr.bf16.mxu0 0
        %6207 = vmatpush1.bf16.msra.mxu0 %v4268
        %6208 = vmatprep.subr.bf16.mxu0 0
        %6209 = vmatpush1.bf16.msra.mxu0 %v4271
        %6210 = vmatprep.subr.bf16.mxu0 0
        %6211 = vmatpush1.bf16.msra.mxu0 %v4274
        %6212 = vmatprep.subr.bf16.mxu0 0
        %6213 = vmatpush1.bf16.msra.mxu0 %v4277
        %6214 = vmatprep.subr.bf16.mxu0 0
        %6215 = vmatpush1.bf16.msra.mxu0 %v4280
        %6216 = vmatprep.subr.bf16.mxu0 0
        %6217 = vmatpush1.bf16.msra.mxu0 %v4283
        %6218 = vmatprep.subr.bf16.mxu0 0
        %6219 = vmatpush1.bf16.msra.mxu0 %v4286
        %6220 = vmatprep.subr.bf16.mxu0 0
        %6221 = vmatpush1.bf16.msra.mxu0 %v4289
        %6222 = vmatprep.subr.bf16.mxu0 0
        %6223 = vmatpush1.bf16.msra.mxu0 %v4292
        %6224 = vmatprep.subr.bf16.mxu0 0
        %6225 = vmatpush1.bf16.msra.mxu0 %v4295
        %6226 = vmatprep.subr.bf16.mxu0 0
        %6227 = vmatpush1.bf16.msra.mxu0 %v4298
        %6228 = vmatprep.subr.bf16.mxu0 0
        %6229 = vmatpush1.bf16.msra.mxu0 %v4301
        %6230 = vmatprep.subr.bf16.mxu0 0
        %6231 = vmatpush1.bf16.msra.mxu0 %v4304
        %6232 = vmatprep.mubr.bf16.mxu0 %v4696
        %6233 = vmatmul.mubr.bf16.gmra.mrb[0].mxu0 %v4695
        %v6234 = vpop.f32.mrb[0].mxu0
        %v6235 = vadd.f32 %v6074, %v6234
        %v6236 = vpop.f32.mrb[0].mxu0
        %v6237 = vpop.f32.mrb[0].mxu0
        %v6238 = vadd.f32 %v6077, %v6237
        %v6239 = vpop.f32.mrb[0].mxu0
        %6240 = vmatprep.mubr.bf16.mxu0 %v4704
        %6241 = vmatmul.mubr.bf16.gmra.mrb[0].mxu0 %v4703
        %v6242 = vpop.f32.mrb[0].mxu0
        %v6243 = vadd.f32 %v6082, %v6242
        %v6244 = vpop.f32.mrb[0].mxu0
        %v6245 = vpop.f32.mrb[0].mxu0
        %v6246 = vadd.f32 %v6085, %v6245
        %v6247 = vpop.f32.mrb[0].mxu0
        %6248 = vmatprep.mubr.bf16.mxu0 %v4712
        %6249 = vmatmul.mubr.bf16.gmra.mrb[0].mxu0 %v4711
        %v6250 = vpop.f32.mrb[0].mxu0
        %v6251 = vadd.f32 %v6090, %v6250
        %v6252 = vpop.f32.mrb[0].mxu0
        %v6253 = vpop.f32.mrb[0].mxu0
        %v6254 = vadd.f32 %v6093, %v6253
        %v6255 = vpop.f32.mrb[0].mxu0
        %6256 = vmatprep.mubr.bf16.mxu0 %v4720
        %6257 = vmatmul.mubr.bf16.gmra.mrb[0].mxu0 %v4719
        %v6258 = vpop.f32.mrb[0].mxu0
        %v6259 = vadd.f32 %v6098, %v6258
        %v6260 = vpop.f32.mrb[0].mxu0
        %v6261 = vpop.f32.mrb[0].mxu0
        %v6262 = vadd.f32 %v6101, %v6261
        %v6263 = vpop.f32.mrb[0].mxu0
        %6264 = vmatprep.mubr.bf16.mxu0 %v4728
        %6265 = vmatmul.mubr.bf16.gmra.mrb[0].mxu0 %v4727
        %v6266 = vpop.f32.mrb[0].mxu0
        %v6267 = vadd.f32 %v6106, %v6266
        %v6268 = vpop.f32.mrb[0].mxu0
        %v6269 = vpop.f32.mrb[0].mxu0
        %v6270 = vadd.f32 %v6109, %v6269
        %v6271 = vpop.f32.mrb[0].mxu0
        %6272 = vmatprep.mubr.bf16.mxu0 %v4736
        %6273 = vmatmul.mubr.bf16.gmra.mrb[0].mxu0 %v4735
        %v6274 = vpop.f32.mrb[0].mxu0
        %v6275 = vadd.f32 %v6114, %v6274
        %v6276 = vpop.f32.mrb[0].mxu0
        %v6277 = vpop.f32.mrb[0].mxu0
        %v6278 = vadd.f32 %v6117, %v6277
        %v6279 = vpop.f32.mrb[0].mxu0
        %6280 = vmatprep.mubr.bf16.mxu0 %v4744
        %6281 = vmatmul.mubr.bf16.gmra.mrb[0].mxu0 %v4743
        %v6282 = vpop.f32.mrb[0].mxu0
        %v6283 = vadd.f32 %v6122, %v6282
        %v6284 = vpop.f32.mrb[0].mxu0
        %v6285 = vpop.f32.mrb[0].mxu0
        %v6286 = vadd.f32 %v6125, %v6285
        %v6287 = vpop.f32.mrb[0].mxu0
        %6288 = vmatprep.mubr.bf16.mxu0 %v4752
        %6289 = vmatmul.mubr.bf16.gmra.mrb[0].mxu0 %v4751
        %v6290 = vpop.f32.mrb[0].mxu0
        %v6291 = vadd.f32 %v6130, %v6290
        %v6292 = vpop.f32.mrb[0].mxu0
        %v6293 = vpop.f32.mrb[0].mxu0
        %v6294 = vadd.f32 %v6133, %v6293
        %v6295 = vpop.f32.mrb[0].mxu0
        %6296 = vmatprep.mubr.bf16.mxu0 %v4760
        %6297 = vmatmul.mubr.bf16.gmra.mrb[0].mxu0 %v4759
        %v6298 = vpop.f32.mrb[0].mxu0
        %v6299 = vadd.f32 %v6138, %v6298
        %v6300 = vpop.f32.mrb[0].mxu0
        %v6301 = vpop.f32.mrb[0].mxu0
        %v6302 = vadd.f32 %v6141, %v6301
        %v6303 = vpop.f32.mrb[0].mxu0
        %6304 = vmatprep.mubr.bf16.mxu0 %v4768
        %6305 = vmatmul.mubr.bf16.gmra.mrb[0].mxu0 %v4767
        %v6306 = vpop.f32.mrb[0].mxu0
        %v6307 = vadd.f32 %v6146, %v6306
        %v6308 = vpop.f32.mrb[0].mxu0
        %v6309 = vpop.f32.mrb[0].mxu0
        %v6310 = vadd.f32 %v6149, %v6309
        %v6311 = vpop.f32.mrb[0].mxu0
        %6312 = vmatprep.mubr.bf16.mxu0 %v4776
        %6313 = vmatmul.mubr.bf16.gmra.mrb[0].mxu0 %v4775
        %v6314 = vpop.f32.mrb[0].mxu0
        %v6315 = vadd.f32 %v6154, %v6314
        %v6316 = vpop.f32.mrb[0].mxu0
        %v6317 = vpop.f32.mrb[0].mxu0
        %v6318 = vadd.f32 %v6157, %v6317
        %v6319 = vpop.f32.mrb[0].mxu0
        %6320 = vmatprep.mubr.bf16.mxu0 %v4784
        %6321 = vmatmul.mubr.bf16.gmra.mrb[0].mxu0 %v4783
        %v6322 = vpop.f32.mrb[0].mxu0
        %v6323 = vadd.f32 %v6162, %v6322
        %v6324 = vpop.f32.mrb[0].mxu0
        %v6325 = vpop.f32.mrb[0].mxu0
        %v6326 = vadd.f32 %v6165, %v6325
        %v6327 = vpop.f32.mrb[0].mxu0
        %6328 = vmatprep.mubr.bf16.mxu0 %v4792
        %6329 = vmatmul.mubr.bf16.gmra.mrb[0].mxu0 %v4791
        %v6330 = vpop.f32.mrb[0].mxu0
        %v6331 = vadd.f32 %v6170, %v6330
        %v6332 = vpop.f32.mrb[0].mxu0
        %v6333 = vpop.f32.mrb[0].mxu0
        %v6334 = vadd.f32 %v6173, %v6333
        %v6335 = vpop.f32.mrb[0].mxu0
        %6336 = vmatprep.mubr.bf16.mxu0 %v4800
        %6337 = vmatmul.mubr.bf16.gmra.mrb[0].mxu0 %v4799
        %v6338 = vpop.f32.mrb[0].mxu0
        %v6339 = vadd.f32 %v6178, %v6338
        %v6340 = vpop.f32.mrb[0].mxu0
        %v6341 = vpop.f32.mrb[0].mxu0
        %v6342 = vadd.f32 %v6181, %v6341
        %v6343 = vpop.f32.mrb[0].mxu0
        %6344 = vmatprep.mubr.bf16.mxu0 %v4808
        %6345 = vmatmul.mubr.bf16.gmra.mrb[0].mxu0 %v4807
        %v6346 = vpop.f32.mrb[0].mxu0
        %v6347 = vadd.f32 %v6186, %v6346
        %v6348 = vpop.f32.mrb[0].mxu0
        %v6349 = vpop.f32.mrb[0].mxu0
        %v6350 = vadd.f32 %v6189, %v6349
        %v6351 = vpop.f32.mrb[0].mxu0
        %6352 = vmatprep.mubr.bf16.mxu0 %v4816
        %6353 = vmatmul.mubr.bf16.gmra.mrb[0].mxu0 %v4815
        %v6354 = vpop.f32.mrb[0].mxu0
        %v6355 = vadd.f32 %v6194, %v6354
        %v6356 = vpop.f32.mrb[0].mxu0
        %v6357 = vpop.f32.mrb[0].mxu0
        %v6358 = vadd.f32 %v6197, %v6357
        %v6359 = vpop.f32.mrb[0].mxu0
        %6360 = vdwg.mxu0
        %6361 = vst [vmem:[%s2432] sm:$0xff] %v5559
        %6362 = vst [vmem:[%s2432 + $0x8] sm:$0xff] %v5561
        %6363 = vst [vmem:[%s2432 + $0x10] sm:$0xff] %v6235
        %6364 = vst [vmem:[%s2432 + $0x18] sm:$0xff] %v5563
        %6365 = vst [vmem:[%s2432 + $0x20] sm:$0xff] %v5565
        %6366 = vst [vmem:[%s2432 + $0x28] sm:$0xff] %v6238
        %6367 = vst [vmem:[%s2432 + $0x30] sm:$0xff] %v5569
        %6368 = vst [vmem:[%s2432 + $0x38] sm:$0xff] %v5571
        %6369 = vst [vmem:[%s2432 + $0x40] sm:$0xff] %v6243
        %6370 = vst [vmem:[%s2432 + $0x48] sm:$0xff] %v5573
        %6371 = vst [vmem:[%s2432 + $0x50] sm:$0xff] %v5575
        %6372 = vst [vmem:[%s2432 + $0x58] sm:$0xff] %v6246
        %6373 = vst [vmem:[%s2432 + $0x60] sm:$0xff] %v5579
        %6374 = vst [vmem:[%s2432 + $0x68] sm:$0xff] %v5581
        %6375 = vst [vmem:[%s2432 + $0x70] sm:$0xff] %v6251
        %6376 = vst [vmem:[%s2432 + $0x78] sm:$0xff] %v5583
        %6377 = vst [vmem:[%s2432 + $0x80] sm:$0xff] %v5585
        %6378 = vst [vmem:[%s2432 + $0x88] sm:$0xff] %v6254
        %6379 = vst [vmem:[%s2432 + $0x90] sm:$0xff] %v5589
        %6380 = vst [vmem:[%s2432 + $0x98] sm:$0xff] %v5591
        %6381 = vst [vmem:[%s2432 + $0xa0] sm:$0xff] %v6259
        %6382 = vst [vmem:[%s2432 + $0xa8] sm:$0xff] %v5593
        %6383 = vst [vmem:[%s2432 + $0xb0] sm:$0xff] %v5595
        %6384 = vst [vmem:[%s2432 + $0xb8] sm:$0xff] %v6262
        %6385 = vst [vmem:[%s2432 + $0xc0] sm:$0xff] %v5599
        %6386 = vst [vmem:[%s2432 + $0xc8] sm:$0xff] %v5601
        %6387 = vst [vmem:[%s2432 + $0xd0] sm:$0xff] %v6267
        %6388 = vst [vmem:[%s2432 + $0xd8] sm:$0xff] %v5603
        %6389 = vst [vmem:[%s2432 + $0xe0] sm:$0xff] %v5605
        %6390 = vst [vmem:[%s2432 + $0xe8] sm:$0xff] %v6270
        %6391 = vst [vmem:[%s2432 + $0xf0] sm:$0xff] %v5609
        %6392 = vst [vmem:[%s2432 + $0xf8] sm:$0xff] %v5611
        %6393 = vst [vmem:[%s2432 + $0x100] sm:$0xff] %v6275
        %6394 = vst [vmem:[%s2432 + $0x108] sm:$0xff] %v5613
        %6395 = vst [vmem:[%s2432 + $0x110] sm:$0xff] %v5615
        %6396 = vst [vmem:[%s2432 + $0x118] sm:$0xff] %v6278
        %6397 = vst [vmem:[%s2432 + $0x120] sm:$0xff] %v5619
        %6398 = vst [vmem:[%s2432 + $0x128] sm:$0xff] %v5621
        %6399 = vst [vmem:[%s2432 + $0x130] sm:$0xff] %v6283
        %6400 = vst [vmem:[%s2432 + $0x138] sm:$0xff] %v5623
        %6401 = vst [vmem:[%s2432 + $0x140] sm:$0xff] %v5625
        %6402 = vst [vmem:[%s2432 + $0x148] sm:$0xff] %v6286
        %6403 = vst [vmem:[%s2432 + $0x150] sm:$0xff] %v5629
        %6404 = vst [vmem:[%s2432 + $0x158] sm:$0xff] %v5631
        %6405 = vst [vmem:[%s2432 + $0x160] sm:$0xff] %v6291
        %6406 = vst [vmem:[%s2432 + $0x168] sm:$0xff] %v5633
        %6407 = vst [vmem:[%s2432 + $0x170] sm:$0xff] %v5635
        %6408 = vst [vmem:[%s2432 + $0x178] sm:$0xff] %v6294
        %6409 = vst [vmem:[%s2432 + $0x180] sm:$0xff] %v5639
        %6410 = vst [vmem:[%s2432 + $0x188] sm:$0xff] %v5641
        %6411 = vst [vmem:[%s2432 + $0x190] sm:$0xff] %v6299
        %6412 = vst [vmem:[%s2432 + $0x198] sm:$0xff] %v5643
        %6413 = vst [vmem:[%s2432 + $0x1a0] sm:$0xff] %v5645
        %6414 = vst [vmem:[%s2432 + $0x1a8] sm:$0xff] %v6302
        %6415 = vst [vmem:[%s2432 + $0x1b0] sm:$0xff] %v5649
        %6416 = vst [vmem:[%s2432 + $0x1b8] sm:$0xff] %v5651
        %6417 = vst [vmem:[%s2432 + $0x1c0] sm:$0xff] %v6307
        %6418 = vst [vmem:[%s2432 + $0x1c8] sm:$0xff] %v5653
        %6419 = vst [vmem:[%s2432 + $0x1d0] sm:$0xff] %v5655
        %6420 = vst [vmem:[%s2432 + $0x1d8] sm:$0xff] %v6310
        %6421 = vst [vmem:[%s2432 + $0x1e0] sm:$0xff] %v5659
        %6422 = vst [vmem:[%s2432 + $0x1e8] sm:$0xff] %v5661
        %6423 = vst [vmem:[%s2432 + $0x1f0] sm:$0xff] %v6315
        %6424 = vst [vmem:[%s2432 + $0x1f8] sm:$0xff] %v5663
        %6425 = vst [vmem:[%s2432 + $0x200] sm:$0xff] %v5665
        %6426 = vst [vmem:[%s2432 + $0x208] sm:$0xff] %v6318
        %6427 = vst [vmem:[%s2432 + $0x210] sm:$0xff] %v5669
        %6428 = vst [vmem:[%s2432 + $0x218] sm:$0xff] %v5671
        %6429 = vst [vmem:[%s2432 + $0x220] sm:$0xff] %v6323
        %6430 = vst [vmem:[%s2432 + $0x228] sm:$0xff] %v5673
        %6431 = vst [vmem:[%s2432 + $0x230] sm:$0xff] %v5675
        %6432 = vst [vmem:[%s2432 + $0x238] sm:$0xff] %v6326
        %6433 = vst [vmem:[%s2432 + $0x240] sm:$0xff] %v5679
        %6434 = vst [vmem:[%s2432 + $0x248] sm:$0xff] %v5681
        %6435 = vst [vmem:[%s2432 + $0x250] sm:$0xff] %v6331
        %6436 = vst [vmem:[%s2432 + $0x258] sm:$0xff] %v5683
        %6437 = vst [vmem:[%s2432 + $0x260] sm:$0xff] %v5685
        %6438 = vst [vmem:[%s2432 + $0x268] sm:$0xff] %v6334
        %6439 = vst [vmem:[%s2432 + $0x270] sm:$0xff] %v5689
        %6440 = vst [vmem:[%s2432 + $0x278] sm:$0xff] %v5691
        %6441 = vst [vmem:[%s2432 + $0x280] sm:$0xff] %v6339
        %6442 = vst [vmem:[%s2432 + $0x288] sm:$0xff] %v5693
        %6443 = vst [vmem:[%s2432 + $0x290] sm:$0xff] %v5695
        %6444 = vst [vmem:[%s2432 + $0x298] sm:$0xff] %v6342
        %6445 = vst [vmem:[%s2432 + $0x2a0] sm:$0xff] %v5699
        %6446 = vst [vmem:[%s2432 + $0x2a8] sm:$0xff] %v5701
        %6447 = vst [vmem:[%s2432 + $0x2b0] sm:$0xff] %v6347
        %6448 = vst [vmem:[%s2432 + $0x2b8] sm:$0xff] %v5703
        %6449 = vst [vmem:[%s2432 + $0x2c0] sm:$0xff] %v5705
        %6450 = vst [vmem:[%s2432 + $0x2c8] sm:$0xff] %v6350
        %6451 = vst [vmem:[%s2432 + $0x2d0] sm:$0xff] %v5709
        %6452 = vst [vmem:[%s2432 + $0x2d8] sm:$0xff] %v5711
        %6453 = vst [vmem:[%s2432 + $0x2e0] sm:$0xff] %v6355
        %6454 = vst [vmem:[%s2432 + $0x2e8] sm:$0xff] %v5713
        %6455 = vst [vmem:[%s2432 + $0x2f0] sm:$0xff] %v5715
        %6456 = vst [vmem:[%s2432 + $0x2f8] sm:$0xff] %v6358
        %s6457 = sand.u32 %s113, 1
        %s6458 = sand.u32 %s113, 1
        %s6459 = smul.addr %s6458, 768
        %s6460 = scalar_lea.vmem [#allocation4], %s6459
        // Predicated region
        $region137: #{tpu_custom_call.1} parent=127 // pred_check
          %p6461 = pneg %p123
        $region138: #{tpu_custom_call.1} parent=127 // pred_check_branch
          %6463 = sbr.rel (%p6461) target = $region140
        $region139: #{tpu_custom_call.1} parent=127 // pred_region
          %s6464 = smul.u32 3, %s19
          %s6465 = ssub.s32 7, %s6464
          %p6466 = scmp.lt.s32.totalorder %s6465, 3
          %s6467 = scalar_select %p6466, %s6465, 3
          %s6468 = smul.u32 4096, %s6467
          %p6469 = scmp.ne.s32.totalorder 0, %s6468
          %s6470 = smul.addr %s18, 224
          %s6471 = sadd.s32 %s6464, %s6470
          %s6472 = smul.addr %s6471, 8
          %s6473 = scalar_lea.vmem %s3, %s6472
          %s6474 = smul.u32 %s6467, 8
          // Predicated region
          $region141: #{tpu_custom_call.1} parent=139 // pred_check
            %p6475 = pneg %p6469
          $region142: #{tpu_custom_call.1} parent=139 // pred_check_branch
            %6477 = sbr.rel (%p6475) target = $region144
          $region143: #{tpu_custom_call.1} parent=139 // pred_region
            %p6478 = scmp.lt.u32.totalorder %s6474, 8
            %p6479 = pneg %p6478
            // Predicated region
            $region145: #{tpu_custom_call.1} parent=143 // pred_check
              _
            $region146: #{tpu_custom_call.1} parent=143 // pred_check_branch
              %6481 = sbr.rel (%p6478) target = $region148
            $region147: #{tpu_custom_call.1} parent=143 // pred_region
              %s6558 = sand.u32 %s6474, 7
              %p6559 = scmp.eq.s32.totalorder %s6558, 0
              // Predicated region
              $region160: #{tpu_custom_call.1} parent=147 // pred_check
                %p6560 = pneg %p6559
              $region161: #{tpu_custom_call.1} parent=147 // pred_check_branch
                %6562 = sbr.rel (%p6560) target = $region163
              $region162: #{tpu_custom_call.1} parent=147 // pred_region
                %s6563 = sshrl.u32 %s6474, 3
                %s6564 = sshrl.u32 %s6563, 1
                // While loop
                $region164: #{tpu_custom_call.1} parent=162 // loop_pre_header
                  _
                $region165: #{tpu_custom_call.1} parent=162 // loop_header
                  %s6568 = sphi 0, %s6570
                  %p6569 = scmp.ge.s32.totalorder %s6568, %s6564
                  %s6573 = sphi 0, %s6706
                  %s6574 = sphi %s6460, %s6709
                  %s6575 = sphi %s6473, %s6710
                $region166: #{tpu_custom_call.1} parent=162 // loop_header_branch
                  %6572 = sbr.rel (%p6569) target = $region170
                $region167: #{tpu_custom_call.1} parent=162 // loop_body
                  %v6576 = vld [vmem:[%s6574] sm:$0xff]
                  %6577 = vst [vmem:[%s6575] sm:$0xff] %v6576
                  %v6578 = vld [vmem:[%s6574 + $0x8] sm:$0xff]
                  %6579 = vst [vmem:[%s6575 + $0x8] sm:$0xff] %v6578
                  %v6580 = vld [vmem:[%s6574 + $0x18] sm:$0xff]
                  %6581 = vst [vmem:[%s6575 + $0x38] sm:$0xff] %v6580
                  %v6582 = vld [vmem:[%s6574 + $0x20] sm:$0xff]
                  %6583 = vst [vmem:[%s6575 + $0x40] sm:$0xff] %v6582
                  %v6584 = vld [vmem:[%s6574 + $0x30] sm:$0xff]
                  %6585 = vst [vmem:[%s6575 + $0x70] sm:$0xff] %v6584
                  %v6586 = vld [vmem:[%s6574 + $0x38] sm:$0xff]
                  %6587 = vst [vmem:[%s6575 + $0x78] sm:$0xff] %v6586
                  %v6588 = vld [vmem:[%s6574 + $0x48] sm:$0xff]
                  %6589 = vst [vmem:[%s6575 + $0xa8] sm:$0xff] %v6588
                  %v6590 = vld [vmem:[%s6574 + $0x50] sm:$0xff]
                  %6591 = vst [vmem:[%s6575 + $0xb0] sm:$0xff] %v6590
                  %v6592 = vld [vmem:[%s6574 + $0x60] sm:$0xff]
                  %6593 = vst [vmem:[%s6575 + $0xe0] sm:$0xff] %v6592
                  %v6594 = vld [vmem:[%s6574 + $0x68] sm:$0xff]
                  %6595 = vst [vmem:[%s6575 + $0xe8] sm:$0xff] %v6594
                  %v6596 = vld [vmem:[%s6574 + $0x78] sm:$0xff]
                  %6597 = vst [vmem:[%s6575 + $0x118] sm:$0xff] %v6596
                  %v6598 = vld [vmem:[%s6574 + $0x80] sm:$0xff]
                  %6599 = vst [vmem:[%s6575 + $0x120] sm:$0xff] %v6598
                  %v6600 = vld [vmem:[%s6574 + $0x90] sm:$0xff]
                  %6601 = vst [vmem:[%s6575 + $0x150] sm:$0xff] %v6600
                  %v6602 = vld [vmem:[%s6574 + $0x98] sm:$0xff]
                  %6603 = vst [vmem:[%s6575 + $0x158] sm:$0xff] %v6602
                  %v6604 = vld [vmem:[%s6574 + $0xa8] sm:$0xff]
                  %6605 = vst [vmem:[%s6575 + $0x188] sm:$0xff] %v6604
                  %v6606 = vld [vmem:[%s6574 + $0xb0] sm:$0xff]
                  %6607 = vst [vmem:[%s6575 + $0x190] sm:$0xff] %v6606
                  %v6608 = vld [vmem:[%s6574 + $0xc0] sm:$0xff]
                  %6609 = vst [vmem:[%s6575 + $0x1c0] sm:$0xff] %v6608
                  %v6610 = vld [vmem:[%s6574 + $0xc8] sm:$0xff]
                  %6611 = vst [vmem:[%s6575 + $0x1c8] sm:$0xff] %v6610
                  %v6612 = vld [vmem:[%s6574 + $0xd8] sm:$0xff]
                  %6613 = vst [vmem:[%s6575 + $0x1f8] sm:$0xff] %v6612
                  %v6614 = vld [vmem:[%s6574 + $0xe0] sm:$0xff]
                  %6615 = vst [vmem:[%s6575 + $0x200] sm:$0xff] %v6614
                  %v6616 = vld [vmem:[%s6574 + $0xf0] sm:$0xff]
                  %6617 = vst [vmem:[%s6575 + $0x230] sm:$0xff] %v6616
                  %v6618 = vld [vmem:[%s6574 + $0xf8] sm:$0xff]
                  %6619 = vst [vmem:[%s6575 + $0x238] sm:$0xff] %v6618
                  %v6620 = vld [vmem:[%s6574 + $0x108] sm:$0xff]
                  %6621 = vst [vmem:[%s6575 + $0x268] sm:$0xff] %v6620
                  %v6622 = vld [vmem:[%s6574 + $0x110] sm:$0xff]
                  %6623 = vst [vmem:[%s6575 + $0x270] sm:$0xff] %v6622
                  %v6624 = vld [vmem:[%s6574 + $0x120] sm:$0xff]
                  %6625 = vst [vmem:[%s6575 + $0x2a0] sm:$0xff] %v6624
                  %v6626 = vld [vmem:[%s6574 + $0x128] sm:$0xff]
                  %6627 = vst [vmem:[%s6575 + $0x2a8] sm:$0xff] %v6626
                  %v6628 = vld [vmem:[%s6574 + $0x138] sm:$0xff]
                  %6629 = vst [vmem:[%s6575 + $0x2d8] sm:$0xff] %v6628
                  %v6630 = vld [vmem:[%s6574 + $0x140] sm:$0xff]
                  %6631 = vst [vmem:[%s6575 + $0x2e0] sm:$0xff] %v6630
                  %v6632 = vld [vmem:[%s6574 + $0x150] sm:$0xff]
                  %6633 = vst [vmem:[%s6575 + $0x310] sm:$0xff] %v6632
                  %v6634 = vld [vmem:[%s6574 + $0x158] sm:$0xff]
                  %6635 = vst [vmem:[%s6575 + $0x318] sm:$0xff] %v6634
                  %v6636 = vld [vmem:[%s6574 + $0x168] sm:$0xff]
                  %6637 = vst [vmem:[%s6575 + $0x348] sm:$0xff] %v6636
                  %v6638 = vld [vmem:[%s6574 + $0x170] sm:$0xff]
                  %6639 = vst [vmem:[%s6575 + $0x350] sm:$0xff] %v6638
                  %v6640 = vld [vmem:[%s6574 + $0x180] sm:$0xff]
                  %6641 = vst [vmem:[%s6575 + $0x380] sm:$0xff] %v6640
                  %v6642 = vld [vmem:[%s6574 + $0x188] sm:$0xff]
                  %6643 = vst [vmem:[%s6575 + $0x388] sm:$0xff] %v6642
                  %v6644 = vld [vmem:[%s6574 + $0x198] sm:$0xff]
                  %6645 = vst [vmem:[%s6575 + $0x3b8] sm:$0xff] %v6644
                  %v6646 = vld [vmem:[%s6574 + $0x1a0] sm:$0xff]
                  %6647 = vst [vmem:[%s6575 + $0x3c0] sm:$0xff] %v6646
                  %v6648 = vld [vmem:[%s6574 + $0x1b0] sm:$0xff]
                  %6649 = vst [vmem:[%s6575 + $0x3f0] sm:$0xff] %v6648
                  %v6650 = vld [vmem:[%s6574 + $0x1b8] sm:$0xff]
                  %6651 = vst [vmem:[%s6575 + $0x3f8] sm:$0xff] %v6650
                  %v6652 = vld [vmem:[%s6574 + $0x1c8] sm:$0xff]
                  %6653 = vst [vmem:[%s6575 + $0x428] sm:$0xff] %v6652
                  %v6654 = vld [vmem:[%s6574 + $0x1d0] sm:$0xff]
                  %6655 = vst [vmem:[%s6575 + $0x430] sm:$0xff] %v6654
                  %v6656 = vld [vmem:[%s6574 + $0x1e0] sm:$0xff]
                  %6657 = vst [vmem:[%s6575 + $0x460] sm:$0xff] %v6656
                  %v6658 = vld [vmem:[%s6574 + $0x1e8] sm:$0xff]
                  %6659 = vst [vmem:[%s6575 + $0x468] sm:$0xff] %v6658
                  %v6660 = vld [vmem:[%s6574 + $0x1f8] sm:$0xff]
                  %6661 = vst [vmem:[%s6575 + $0x498] sm:$0xff] %v6660
                  %v6662 = vld [vmem:[%s6574 + $0x200] sm:$0xff]
                  %6663 = vst [vmem:[%s6575 + $0x4a0] sm:$0xff] %v6662
                  %v6664 = vld [vmem:[%s6574 + $0x210] sm:$0xff]
                  %6665 = vst [vmem:[%s6575 + $0x4d0] sm:$0xff] %v6664
                  %v6666 = vld [vmem:[%s6574 + $0x218] sm:$0xff]
                  %6667 = vst [vmem:[%s6575 + $0x4d8] sm:$0xff] %v6666
                  %v6668 = vld [vmem:[%s6574 + $0x228] sm:$0xff]
                  %6669 = vst [vmem:[%s6575 + $0x508] sm:$0xff] %v6668
                  %v6670 = vld [vmem:[%s6574 + $0x230] sm:$0xff]
                  %6671 = vst [vmem:[%s6575 + $0x510] sm:$0xff] %v6670
                  %v6672 = vld [vmem:[%s6574 + $0x240] sm:$0xff]
                  %6673 = vst [vmem:[%s6575 + $0x540] sm:$0xff] %v6672
                  %v6674 = vld [vmem:[%s6574 + $0x248] sm:$0xff]
                  %6675 = vst [vmem:[%s6575 + $0x548] sm:$0xff] %v6674
                  %v6676 = vld [vmem:[%s6574 + $0x258] sm:$0xff]
                  %6677 = vst [vmem:[%s6575 + $0x578] sm:$0xff] %v6676
                  %v6678 = vld [vmem:[%s6574 + $0x260] sm:$0xff]
                  %6679 = vst [vmem:[%s6575 + $0x580] sm:$0xff] %v6678
                  %v6680 = vld [vmem:[%s6574 + $0x270] sm:$0xff]
                  %6681 = vst [vmem:[%s6575 + $0x5b0] sm:$0xff] %v6680
                  %v6682 = vld [vmem:[%s6574 + $0x278] sm:$0xff]
                  %6683 = vst [vmem:[%s6575 + $0x5b8] sm:$0xff] %v6682
                  %v6684 = vld [vmem:[%s6574 + $0x288] sm:$0xff]
                  %6685 = vst [vmem:[%s6575 + $0x5e8] sm:$0xff] %v6684
                  %v6686 = vld [vmem:[%s6574 + $0x290] sm:$0xff]
                  %6687 = vst [vmem:[%s6575 + $0x5f0] sm:$0xff] %v6686
                  %v6688 = vld [vmem:[%s6574 + $0x2a0] sm:$0xff]
                  %6689 = vst [vmem:[%s6575 + $0x620] sm:$0xff] %v6688
                  %v6690 = vld [vmem:[%s6574 + $0x2a8] sm:$0xff]
                  %6691 = vst [vmem:[%s6575 + $0x628] sm:$0xff] %v6690
                  %v6692 = vld [vmem:[%s6574 + $0x2b8] sm:$0xff]
                  %6693 = vst [vmem:[%s6575 + $0x658] sm:$0xff] %v6692
                  %v6694 = vld [vmem:[%s6574 + $0x2c0] sm:$0xff]
                  %6695 = vst [vmem:[%s6575 + $0x660] sm:$0xff] %v6694
                  %v6696 = vld [vmem:[%s6574 + $0x2d0] sm:$0xff]
                  %6697 = vst [vmem:[%s6575 + $0x690] sm:$0xff] %v6696
                  %v6698 = vld [vmem:[%s6574 + $0x2d8] sm:$0xff]
                  %6699 = vst [vmem:[%s6575 + $0x698] sm:$0xff] %v6698
                  %v6700 = vld [vmem:[%s6574 + $0x2e8] sm:$0xff]
                  %6701 = vst [vmem:[%s6575 + $0x6c8] sm:$0xff] %v6700
                  %v6702 = vld [vmem:[%s6574 + $0x2f0] sm:$0xff]
                  %6703 = vst [vmem:[%s6575 + $0x6d0] sm:$0xff] %v6702
                  %s6704 = sadd.s32 1, %s6573
                  %p6705 = scmp.ge.s32.totalorder %s6704, %s6564
                  %s6706 = scalar_select %p6705, 0, %s6704
                  %s6707 = smul.u32 %s6706, 16
                  %s6708 = smul.u32 %s6706, 16
                  %s6709 = scalar_lea.vmem %s6460, %s6707 [#allocation4]
                  %s6710 = scalar_lea.vmem %s6473, %s6708
                $region168: #{tpu_custom_call.1} parent=162 // loop_footer
                  %s6570 = sadd.s32 %s6568, 1
                $region169: #{tpu_custom_call.1} parent=162 // loop_footer_branch
                  %6567 = sbr.rel target = $region165
                $region170: #{tpu_custom_call.1} parent=162 // loop_exit
                  _
                %s6711 = sshrl.u32 %s6563, 1
                %s6712 = sand.u32 %s6563, 1
                %s6713 = smul.u32 %s6711, 2
                %s6714 = smul.u32 128, %s6713
                %s6715 = sshra.s32 %s6714, 4
                %s6716 = scalar_lea.vmem %s6460, %s6715 [#allocation4]
                %s6717 = smul.u32 128, %s6713
                %s6718 = sshra.s32 %s6717, 4
                %s6719 = scalar_lea.vmem %s6473, %s6718
                // While loop
                $region171: #{tpu_custom_call.1} parent=162 // loop_pre_header
                  _
                $region172: #{tpu_custom_call.1} parent=162 // loop_header
                  %s6723 = sphi 0, %s6725
                  %p6724 = scmp.ge.s32.totalorder %s6723, %s6712
                  %s6728 = sphi 0, %s6797
                  %s6729 = sphi %s6716, %s6800
                  %s6730 = sphi %s6719, %s6801
                $region173: #{tpu_custom_call.1} parent=162 // loop_header_branch
                  %6727 = sbr.rel (%p6724) target = $region177
                $region174: #{tpu_custom_call.1} parent=162 // loop_body
                  %v6731 = vld [vmem:[%s6729] sm:$0xff]
                  %6732 = vst [vmem:[%s6730] sm:$0xff] %v6731
                  %v6733 = vld [vmem:[%s6729 + $0x18] sm:$0xff]
                  %6734 = vst [vmem:[%s6730 + $0x38] sm:$0xff] %v6733
                  %v6735 = vld [vmem:[%s6729 + $0x30] sm:$0xff]
                  %6736 = vst [vmem:[%s6730 + $0x70] sm:$0xff] %v6735
                  %v6737 = vld [vmem:[%s6729 + $0x48] sm:$0xff]
                  %6738 = vst [vmem:[%s6730 + $0xa8] sm:$0xff] %v6737
                  %v6739 = vld [vmem:[%s6729 + $0x60] sm:$0xff]
                  %6740 = vst [vmem:[%s6730 + $0xe0] sm:$0xff] %v6739
                  %v6741 = vld [vmem:[%s6729 + $0x78] sm:$0xff]
                  %6742 = vst [vmem:[%s6730 + $0x118] sm:$0xff] %v6741
                  %v6743 = vld [vmem:[%s6729 + $0x90] sm:$0xff]
                  %6744 = vst [vmem:[%s6730 + $0x150] sm:$0xff] %v6743
                  %v6745 = vld [vmem:[%s6729 + $0xa8] sm:$0xff]
                  %6746 = vst [vmem:[%s6730 + $0x188] sm:$0xff] %v6745
                  %v6747 = vld [vmem:[%s6729 + $0xc0] sm:$0xff]
                  %6748 = vst [vmem:[%s6730 + $0x1c0] sm:$0xff] %v6747
                  %v6749 = vld [vmem:[%s6729 + $0xd8] sm:$0xff]
                  %6750 = vst [vmem:[%s6730 + $0x1f8] sm:$0xff] %v6749
                  %v6751 = vld [vmem:[%s6729 + $0xf0] sm:$0xff]
                  %6752 = vst [vmem:[%s6730 + $0x230] sm:$0xff] %v6751
                  %v6753 = vld [vmem:[%s6729 + $0x108] sm:$0xff]
                  %6754 = vst [vmem:[%s6730 + $0x268] sm:$0xff] %v6753
                  %v6755 = vld [vmem:[%s6729 + $0x120] sm:$0xff]
                  %6756 = vst [vmem:[%s6730 + $0x2a0] sm:$0xff] %v6755
                  %v6757 = vld [vmem:[%s6729 + $0x138] sm:$0xff]
                  %6758 = vst [vmem:[%s6730 + $0x2d8] sm:$0xff] %v6757
                  %v6759 = vld [vmem:[%s6729 + $0x150] sm:$0xff]
                  %6760 = vst [vmem:[%s6730 + $0x310] sm:$0xff] %v6759
                  %v6761 = vld [vmem:[%s6729 + $0x168] sm:$0xff]
                  %6762 = vst [vmem:[%s6730 + $0x348] sm:$0xff] %v6761
                  %v6763 = vld [vmem:[%s6729 + $0x180] sm:$0xff]
                  %6764 = vst [vmem:[%s6730 + $0x380] sm:$0xff] %v6763
                  %v6765 = vld [vmem:[%s6729 + $0x198] sm:$0xff]
                  %6766 = vst [vmem:[%s6730 + $0x3b8] sm:$0xff] %v6765
                  %v6767 = vld [vmem:[%s6729 + $0x1b0] sm:$0xff]
                  %6768 = vst [vmem:[%s6730 + $0x3f0] sm:$0xff] %v6767
                  %v6769 = vld [vmem:[%s6729 + $0x1c8] sm:$0xff]
                  %6770 = vst [vmem:[%s6730 + $0x428] sm:$0xff] %v6769
                  %v6771 = vld [vmem:[%s6729 + $0x1e0] sm:$0xff]
                  %6772 = vst [vmem:[%s6730 + $0x460] sm:$0xff] %v6771
                  %v6773 = vld [vmem:[%s6729 + $0x1f8] sm:$0xff]
                  %6774 = vst [vmem:[%s6730 + $0x498] sm:$0xff] %v6773
                  %v6775 = vld [vmem:[%s6729 + $0x210] sm:$0xff]
                  %6776 = vst [vmem:[%s6730 + $0x4d0] sm:$0xff] %v6775
                  %v6777 = vld [vmem:[%s6729 + $0x228] sm:$0xff]
                  %6778 = vst [vmem:[%s6730 + $0x508] sm:$0xff] %v6777
                  %v6779 = vld [vmem:[%s6729 + $0x240] sm:$0xff]
                  %6780 = vst [vmem:[%s6730 + $0x540] sm:$0xff] %v6779
                  %v6781 = vld [vmem:[%s6729 + $0x258] sm:$0xff]
                  %6782 = vst [vmem:[%s6730 + $0x578] sm:$0xff] %v6781
                  %v6783 = vld [vmem:[%s6729 + $0x270] sm:$0xff]
                  %6784 = vst [vmem:[%s6730 + $0x5b0] sm:$0xff] %v6783
                  %v6785 = vld [vmem:[%s6729 + $0x288] sm:$0xff]
                  %6786 = vst [vmem:[%s6730 + $0x5e8] sm:$0xff] %v6785
                  %v6787 = vld [vmem:[%s6729 + $0x2a0] sm:$0xff]
                  %6788 = vst [vmem:[%s6730 + $0x620] sm:$0xff] %v6787
                  %v6789 = vld [vmem:[%s6729 + $0x2b8] sm:$0xff]
                  %6790 = vst [vmem:[%s6730 + $0x658] sm:$0xff] %v6789
                  %v6791 = vld [vmem:[%s6729 + $0x2d0] sm:$0xff]
                  %6792 = vst [vmem:[%s6730 + $0x690] sm:$0xff] %v6791
                  %v6793 = vld [vmem:[%s6729 + $0x2e8] sm:$0xff]
                  %6794 = vst [vmem:[%s6730 + $0x6c8] sm:$0xff] %v6793
                  %s6795 = sadd.s32 1, %s6728
                  %p6796 = scmp.ge.s32.totalorder %s6795, %s6712
                  %s6797 = scalar_select %p6796, 0, %s6795
                  %s6798 = smul.u32 %s6797, 8
                  %s6799 = smul.u32 %s6797, 8
                  %s6800 = scalar_lea.vmem %s6716, %s6798 [#allocation4]
                  %s6801 = scalar_lea.vmem %s6719, %s6799
                $region175: #{tpu_custom_call.1} parent=162 // loop_footer
                  %s6725 = sadd.s32 %s6723, 1
                $region176: #{tpu_custom_call.1} parent=162 // loop_footer_branch
                  %6722 = sbr.rel target = $region172
                $region177: #{tpu_custom_call.1} parent=162 // loop_exit
                  _
              $region163: #{tpu_custom_call.1} parent=147 // pred_fallthru
                _
              %p6802 = pneg %p6559
              // Predicated region
              $region178: #{tpu_custom_call.1} parent=147 // pred_check
                _
              $region179: #{tpu_custom_call.1} parent=147 // pred_check_branch
                %6804 = sbr.rel (%p6559) target = $region181
              $region180: #{tpu_custom_call.1} parent=147 // pred_region
                %s6805 = sand.u32 %s6474, 7
                %s6806 = ssub.s32 %s6474, %s6805
                %s6807 = scalar_lea.vmem %s6460, %s6806 [#allocation4]
                %s6808 = ssub.s32 %s6474, %s6805
                %s6809 = scalar_lea.vmem %s6473, %s6808
                %s6810 = sshrl.u32 %s6474, 3
                %s6811 = sshrl.u32 %s6810, 1
                // While loop
                $region182: #{tpu_custom_call.1} parent=180 // loop_pre_header
                  _
                $region183: #{tpu_custom_call.1} parent=180 // loop_header
                  %s6815 = sphi 0, %s6817
                  %p6816 = scmp.ge.s32.totalorder %s6815, %s6811
                  %s6820 = sphi 0, %s6953
                  %s6821 = sphi %s6460, %s6956
                  %s6822 = sphi %s6473, %s6957
                $region184: #{tpu_custom_call.1} parent=180 // loop_header_branch
                  %6819 = sbr.rel (%p6816) target = $region188
                $region185: #{tpu_custom_call.1} parent=180 // loop_body
                  %v6823 = vld [vmem:[%s6821] sm:$0xff]
                  %6824 = vst [vmem:[%s6822] sm:$0xff] %v6823
                  %v6825 = vld [vmem:[%s6821 + $0x8] sm:$0xff]
                  %6826 = vst [vmem:[%s6822 + $0x8] sm:$0xff] %v6825
                  %v6827 = vld [vmem:[%s6821 + $0x18] sm:$0xff]
                  %6828 = vst [vmem:[%s6822 + $0x38] sm:$0xff] %v6827
                  %v6829 = vld [vmem:[%s6821 + $0x20] sm:$0xff]
                  %6830 = vst [vmem:[%s6822 + $0x40] sm:$0xff] %v6829
                  %v6831 = vld [vmem:[%s6821 + $0x30] sm:$0xff]
                  %6832 = vst [vmem:[%s6822 + $0x70] sm:$0xff] %v6831
                  %v6833 = vld [vmem:[%s6821 + $0x38] sm:$0xff]
                  %6834 = vst [vmem:[%s6822 + $0x78] sm:$0xff] %v6833
                  %v6835 = vld [vmem:[%s6821 + $0x48] sm:$0xff]
                  %6836 = vst [vmem:[%s6822 + $0xa8] sm:$0xff] %v6835
                  %v6837 = vld [vmem:[%s6821 + $0x50] sm:$0xff]
                  %6838 = vst [vmem:[%s6822 + $0xb0] sm:$0xff] %v6837
                  %v6839 = vld [vmem:[%s6821 + $0x60] sm:$0xff]
                  %6840 = vst [vmem:[%s6822 + $0xe0] sm:$0xff] %v6839
                  %v6841 = vld [vmem:[%s6821 + $0x68] sm:$0xff]
                  %6842 = vst [vmem:[%s6822 + $0xe8] sm:$0xff] %v6841
                  %v6843 = vld [vmem:[%s6821 + $0x78] sm:$0xff]
                  %6844 = vst [vmem:[%s6822 + $0x118] sm:$0xff] %v6843
                  %v6845 = vld [vmem:[%s6821 + $0x80] sm:$0xff]
                  %6846 = vst [vmem:[%s6822 + $0x120] sm:$0xff] %v6845
                  %v6847 = vld [vmem:[%s6821 + $0x90] sm:$0xff]
                  %6848 = vst [vmem:[%s6822 + $0x150] sm:$0xff] %v6847
                  %v6849 = vld [vmem:[%s6821 + $0x98] sm:$0xff]
                  %6850 = vst [vmem:[%s6822 + $0x158] sm:$0xff] %v6849
                  %v6851 = vld [vmem:[%s6821 + $0xa8] sm:$0xff]
                  %6852 = vst [vmem:[%s6822 + $0x188] sm:$0xff] %v6851
                  %v6853 = vld [vmem:[%s6821 + $0xb0] sm:$0xff]
                  %6854 = vst [vmem:[%s6822 + $0x190] sm:$0xff] %v6853
                  %v6855 = vld [vmem:[%s6821 + $0xc0] sm:$0xff]
                  %6856 = vst [vmem:[%s6822 + $0x1c0] sm:$0xff] %v6855
                  %v6857 = vld [vmem:[%s6821 + $0xc8] sm:$0xff]
                  %6858 = vst [vmem:[%s6822 + $0x1c8] sm:$0xff] %v6857
                  %v6859 = vld [vmem:[%s6821 + $0xd8] sm:$0xff]
                  %6860 = vst [vmem:[%s6822 + $0x1f8] sm:$0xff] %v6859
                  %v6861 = vld [vmem:[%s6821 + $0xe0] sm:$0xff]
                  %6862 = vst [vmem:[%s6822 + $0x200] sm:$0xff] %v6861
                  %v6863 = vld [vmem:[%s6821 + $0xf0] sm:$0xff]
                  %6864 = vst [vmem:[%s6822 + $0x230] sm:$0xff] %v6863
                  %v6865 = vld [vmem:[%s6821 + $0xf8] sm:$0xff]
                  %6866 = vst [vmem:[%s6822 + $0x238] sm:$0xff] %v6865
                  %v6867 = vld [vmem:[%s6821 + $0x108] sm:$0xff]
                  %6868 = vst [vmem:[%s6822 + $0x268] sm:$0xff] %v6867
                  %v6869 = vld [vmem:[%s6821 + $0x110] sm:$0xff]
                  %6870 = vst [vmem:[%s6822 + $0x270] sm:$0xff] %v6869
                  %v6871 = vld [vmem:[%s6821 + $0x120] sm:$0xff]
                  %6872 = vst [vmem:[%s6822 + $0x2a0] sm:$0xff] %v6871
                  %v6873 = vld [vmem:[%s6821 + $0x128] sm:$0xff]
                  %6874 = vst [vmem:[%s6822 + $0x2a8] sm:$0xff] %v6873
                  %v6875 = vld [vmem:[%s6821 + $0x138] sm:$0xff]
                  %6876 = vst [vmem:[%s6822 + $0x2d8] sm:$0xff] %v6875
                  %v6877 = vld [vmem:[%s6821 + $0x140] sm:$0xff]
                  %6878 = vst [vmem:[%s6822 + $0x2e0] sm:$0xff] %v6877
                  %v6879 = vld [vmem:[%s6821 + $0x150] sm:$0xff]
                  %6880 = vst [vmem:[%s6822 + $0x310] sm:$0xff] %v6879
                  %v6881 = vld [vmem:[%s6821 + $0x158] sm:$0xff]
                  %6882 = vst [vmem:[%s6822 + $0x318] sm:$0xff] %v6881
                  %v6883 = vld [vmem:[%s6821 + $0x168] sm:$0xff]
                  %6884 = vst [vmem:[%s6822 + $0x348] sm:$0xff] %v6883
                  %v6885 = vld [vmem:[%s6821 + $0x170] sm:$0xff]
                  %6886 = vst [vmem:[%s6822 + $0x350] sm:$0xff] %v6885
                  %v6887 = vld [vmem:[%s6821 + $0x180] sm:$0xff]
                  %6888 = vst [vmem:[%s6822 + $0x380] sm:$0xff] %v6887
                  %v6889 = vld [vmem:[%s6821 + $0x188] sm:$0xff]
                  %6890 = vst [vmem:[%s6822 + $0x388] sm:$0xff] %v6889
                  %v6891 = vld [vmem:[%s6821 + $0x198] sm:$0xff]
                  %6892 = vst [vmem:[%s6822 + $0x3b8] sm:$0xff] %v6891
                  %v6893 = vld [vmem:[%s6821 + $0x1a0] sm:$0xff]
                  %6894 = vst [vmem:[%s6822 + $0x3c0] sm:$0xff] %v6893
                  %v6895 = vld [vmem:[%s6821 + $0x1b0] sm:$0xff]
                  %6896 = vst [vmem:[%s6822 + $0x3f0] sm:$0xff] %v6895
                  %v6897 = vld [vmem:[%s6821 + $0x1b8] sm:$0xff]
                  %6898 = vst [vmem:[%s6822 + $0x3f8] sm:$0xff] %v6897
                  %v6899 = vld [vmem:[%s6821 + $0x1c8] sm:$0xff]
                  %6900 = vst [vmem:[%s6822 + $0x428] sm:$0xff] %v6899
                  %v6901 = vld [vmem:[%s6821 + $0x1d0] sm:$0xff]
                  %6902 = vst [vmem:[%s6822 + $0x430] sm:$0xff] %v6901
                  %v6903 = vld [vmem:[%s6821 + $0x1e0] sm:$0xff]
                  %6904 = vst [vmem:[%s6822 + $0x460] sm:$0xff] %v6903
                  %v6905 = vld [vmem:[%s6821 + $0x1e8] sm:$0xff]
                  %6906 = vst [vmem:[%s6822 + $0x468] sm:$0xff] %v6905
                  %v6907 = vld [vmem:[%s6821 + $0x1f8] sm:$0xff]
                  %6908 = vst [vmem:[%s6822 + $0x498] sm:$0xff] %v6907
                  %v6909 = vld [vmem:[%s6821 + $0x200] sm:$0xff]
                  %6910 = vst [vmem:[%s6822 + $0x4a0] sm:$0xff] %v6909
                  %v6911 = vld [vmem:[%s6821 + $0x210] sm:$0xff]
                  %6912 = vst [vmem:[%s6822 + $0x4d0] sm:$0xff] %v6911
                  %v6913 = vld [vmem:[%s6821 + $0x218] sm:$0xff]
                  %6914 = vst [vmem:[%s6822 + $0x4d8] sm:$0xff] %v6913
                  %v6915 = vld [vmem:[%s6821 + $0x228] sm:$0xff]
                  %6916 = vst [vmem:[%s6822 + $0x508] sm:$0xff] %v6915
                  %v6917 = vld [vmem:[%s6821 + $0x230] sm:$0xff]
                  %6918 = vst [vmem:[%s6822 + $0x510] sm:$0xff] %v6917
                  %v6919 = vld [vmem:[%s6821 + $0x240] sm:$0xff]
                  %6920 = vst [vmem:[%s6822 + $0x540] sm:$0xff] %v6919
                  %v6921 = vld [vmem:[%s6821 + $0x248] sm:$0xff]
                  %6922 = vst [vmem:[%s6822 + $0x548] sm:$0xff] %v6921
                  %v6923 = vld [vmem:[%s6821 + $0x258] sm:$0xff]
                  %6924 = vst [vmem:[%s6822 + $0x578] sm:$0xff] %v6923
                  %v6925 = vld [vmem:[%s6821 + $0x260] sm:$0xff]
                  %6926 = vst [vmem:[%s6822 + $0x580] sm:$0xff] %v6925
                  %v6927 = vld [vmem:[%s6821 + $0x270] sm:$0xff]
                  %6928 = vst [vmem:[%s6822 + $0x5b0] sm:$0xff] %v6927
                  %v6929 = vld [vmem:[%s6821 + $0x278] sm:$0xff]
                  %6930 = vst [vmem:[%s6822 + $0x5b8] sm:$0xff] %v6929
                  %v6931 = vld [vmem:[%s6821 + $0x288] sm:$0xff]
                  %6932 = vst [vmem:[%s6822 + $0x5e8] sm:$0xff] %v6931
                  %v6933 = vld [vmem:[%s6821 + $0x290] sm:$0xff]
                  %6934 = vst [vmem:[%s6822 + $0x5f0] sm:$0xff] %v6933
                  %v6935 = vld [vmem:[%s6821 + $0x2a0] sm:$0xff]
                  %6936 = vst [vmem:[%s6822 + $0x620] sm:$0xff] %v6935
                  %v6937 = vld [vmem:[%s6821 + $0x2a8] sm:$0xff]
                  %6938 = vst [vmem:[%s6822 + $0x628] sm:$0xff] %v6937
                  %v6939 = vld [vmem:[%s6821 + $0x2b8] sm:$0xff]
                  %6940 = vst [vmem:[%s6822 + $0x658] sm:$0xff] %v6939
                  %v6941 = vld [vmem:[%s6821 + $0x2c0] sm:$0xff]
                  %6942 = vst [vmem:[%s6822 + $0x660] sm:$0xff] %v6941
                  %v6943 = vld [vmem:[%s6821 + $0x2d0] sm:$0xff]
                  %6944 = vst [vmem:[%s6822 + $0x690] sm:$0xff] %v6943
                  %v6945 = vld [vmem:[%s6821 + $0x2d8] sm:$0xff]
                  %6946 = vst [vmem:[%s6822 + $0x698] sm:$0xff] %v6945
                  %v6947 = vld [vmem:[%s6821 + $0x2e8] sm:$0xff]
                  %6948 = vst [vmem:[%s6822 + $0x6c8] sm:$0xff] %v6947
                  %v6949 = vld [vmem:[%s6821 + $0x2f0] sm:$0xff]
                  %6950 = vst [vmem:[%s6822 + $0x6d0] sm:$0xff] %v6949
                  %s6951 = sadd.s32 1, %s6820
                  %p6952 = scmp.ge.s32.totalorder %s6951, %s6811
                  %s6953 = scalar_select %p6952, 0, %s6951
                  %s6954 = smul.u32 %s6953, 16
                  %s6955 = smul.u32 %s6953, 16
                  %s6956 = scalar_lea.vmem %s6460, %s6954 [#allocation4]
                  %s6957 = scalar_lea.vmem %s6473, %s6955
                $region186: #{tpu_custom_call.1} parent=180 // loop_footer
                  %s6817 = sadd.s32 %s6815, 1
                $region187: #{tpu_custom_call.1} parent=180 // loop_footer_branch
                  %6814 = sbr.rel target = $region183
                $region188: #{tpu_custom_call.1} parent=180 // loop_exit
                  _
                %s6958 = sshrl.u32 %s6810, 1
                %s6959 = sand.u32 %s6810, 1
                %s6960 = smul.u32 %s6958, 2
                %s6961 = smul.u32 128, %s6960
                %s6962 = sshra.s32 %s6961, 4
                %s6963 = scalar_lea.vmem %s6460, %s6962 [#allocation4]
                %s6964 = smul.u32 128, %s6960
                %s6965 = sshra.s32 %s6964, 4
                %s6966 = scalar_lea.vmem %s6473, %s6965
                // While loop
                $region189: #{tpu_custom_call.1} parent=180 // loop_pre_header
                  _
                $region190: #{tpu_custom_call.1} parent=180 // loop_header
                  %s6970 = sphi 0, %s6972
                  %p6971 = scmp.ge.s32.totalorder %s6970, %s6959
                  %s6975 = sphi 0, %s7044
                  %s6976 = sphi %s6963, %s7047
                  %s6977 = sphi %s6966, %s7048
                $region191: #{tpu_custom_call.1} parent=180 // loop_header_branch
                  %6974 = sbr.rel (%p6971) target = $region195
                $region192: #{tpu_custom_call.1} parent=180 // loop_body
                  %v6978 = vld [vmem:[%s6976] sm:$0xff]
                  %6979 = vst [vmem:[%s6977] sm:$0xff] %v6978
                  %v6980 = vld [vmem:[%s6976 + $0x18] sm:$0xff]
                  %6981 = vst [vmem:[%s6977 + $0x38] sm:$0xff] %v6980
                  %v6982 = vld [vmem:[%s6976 + $0x30] sm:$0xff]
                  %6983 = vst [vmem:[%s6977 + $0x70] sm:$0xff] %v6982
                  %v6984 = vld [vmem:[%s6976 + $0x48] sm:$0xff]
                  %6985 = vst [vmem:[%s6977 + $0xa8] sm:$0xff] %v6984
                  %v6986 = vld [vmem:[%s6976 + $0x60] sm:$0xff]
                  %6987 = vst [vmem:[%s6977 + $0xe0] sm:$0xff] %v6986
                  %v6988 = vld [vmem:[%s6976 + $0x78] sm:$0xff]
                  %6989 = vst [vmem:[%s6977 + $0x118] sm:$0xff] %v6988
                  %v6990 = vld [vmem:[%s6976 + $0x90] sm:$0xff]
                  %6991 = vst [vmem:[%s6977 + $0x150] sm:$0xff] %v6990
                  %v6992 = vld [vmem:[%s6976 + $0xa8] sm:$0xff]
                  %6993 = vst [vmem:[%s6977 + $0x188] sm:$0xff] %v6992
                  %v6994 = vld [vmem:[%s6976 + $0xc0] sm:$0xff]
                  %6995 = vst [vmem:[%s6977 + $0x1c0] sm:$0xff] %v6994
                  %v6996 = vld [vmem:[%s6976 + $0xd8] sm:$0xff]
                  %6997 = vst [vmem:[%s6977 + $0x1f8] sm:$0xff] %v6996
                  %v6998 = vld [vmem:[%s6976 + $0xf0] sm:$0xff]
                  %6999 = vst [vmem:[%s6977 + $0x230] sm:$0xff] %v6998
                  %v7000 = vld [vmem:[%s6976 + $0x108] sm:$0xff]
                  %7001 = vst [vmem:[%s6977 + $0x268] sm:$0xff] %v7000
                  %v7002 = vld [vmem:[%s6976 + $0x120] sm:$0xff]
                  %7003 = vst [vmem:[%s6977 + $0x2a0] sm:$0xff] %v7002
                  %v7004 = vld [vmem:[%s6976 + $0x138] sm:$0xff]
                  %7005 = vst [vmem:[%s6977 + $0x2d8] sm:$0xff] %v7004
                  %v7006 = vld [vmem:[%s6976 + $0x150] sm:$0xff]
                  %7007 = vst [vmem:[%s6977 + $0x310] sm:$0xff] %v7006
                  %v7008 = vld [vmem:[%s6976 + $0x168] sm:$0xff]
                  %7009 = vst [vmem:[%s6977 + $0x348] sm:$0xff] %v7008
                  %v7010 = vld [vmem:[%s6976 + $0x180] sm:$0xff]
                  %7011 = vst [vmem:[%s6977 + $0x380] sm:$0xff] %v7010
                  %v7012 = vld [vmem:[%s6976 + $0x198] sm:$0xff]
                  %7013 = vst [vmem:[%s6977 + $0x3b8] sm:$0xff] %v7012
                  %v7014 = vld [vmem:[%s6976 + $0x1b0] sm:$0xff]
                  %7015 = vst [vmem:[%s6977 + $0x3f0] sm:$0xff] %v7014
                  %v7016 = vld [vmem:[%s6976 + $0x1c8] sm:$0xff]
                  %7017 = vst [vmem:[%s6977 + $0x428] sm:$0xff] %v7016
                  %v7018 = vld [vmem:[%s6976 + $0x1e0] sm:$0xff]
                  %7019 = vst [vmem:[%s6977 + $0x460] sm:$0xff] %v7018
                  %v7020 = vld [vmem:[%s6976 + $0x1f8] sm:$0xff]
                  %7021 = vst [vmem:[%s6977 + $0x498] sm:$0xff] %v7020
                  %v7022 = vld [vmem:[%s6976 + $0x210] sm:$0xff]
                  %7023 = vst [vmem:[%s6977 + $0x4d0] sm:$0xff] %v7022
                  %v7024 = vld [vmem:[%s6976 + $0x228] sm:$0xff]
                  %7025 = vst [vmem:[%s6977 + $0x508] sm:$0xff] %v7024
                  %v7026 = vld [vmem:[%s6976 + $0x240] sm:$0xff]
                  %7027 = vst [vmem:[%s6977 + $0x540] sm:$0xff] %v7026
                  %v7028 = vld [vmem:[%s6976 + $0x258] sm:$0xff]
                  %7029 = vst [vmem:[%s6977 + $0x578] sm:$0xff] %v7028
                  %v7030 = vld [vmem:[%s6976 + $0x270] sm:$0xff]
                  %7031 = vst [vmem:[%s6977 + $0x5b0] sm:$0xff] %v7030
                  %v7032 = vld [vmem:[%s6976 + $0x288] sm:$0xff]
                  %7033 = vst [vmem:[%s6977 + $0x5e8] sm:$0xff] %v7032
                  %v7034 = vld [vmem:[%s6976 + $0x2a0] sm:$0xff]
                  %7035 = vst [vmem:[%s6977 + $0x620] sm:$0xff] %v7034
                  %v7036 = vld [vmem:[%s6976 + $0x2b8] sm:$0xff]
                  %7037 = vst [vmem:[%s6977 + $0x658] sm:$0xff] %v7036
                  %v7038 = vld [vmem:[%s6976 + $0x2d0] sm:$0xff]
                  %7039 = vst [vmem:[%s6977 + $0x690] sm:$0xff] %v7038
                  %v7040 = vld [vmem:[%s6976 + $0x2e8] sm:$0xff]
                  %7041 = vst [vmem:[%s6977 + $0x6c8] sm:$0xff] %v7040
                  %s7042 = sadd.s32 1, %s6975
                  %p7043 = scmp.ge.s32.totalorder %s7042, %s6959
                  %s7044 = scalar_select %p7043, 0, %s7042
                  %s7045 = smul.u32 %s7044, 8
                  %s7046 = smul.u32 %s7044, 8
                  %s7047 = scalar_lea.vmem %s6963, %s7045 [#allocation4]
                  %s7048 = scalar_lea.vmem %s6966, %s7046
                $region193: #{tpu_custom_call.1} parent=180 // loop_footer
                  %s6972 = sadd.s32 %s6970, 1
                $region194: #{tpu_custom_call.1} parent=180 // loop_footer_branch
                  %6969 = sbr.rel target = $region190
                $region195: #{tpu_custom_call.1} parent=180 // loop_exit
                  _
                %s7049 = sshllo.u32 0, %s6805
                loop: start=0, step=1, limit=1
                $region196: #{tpu_custom_call.1} parent=180 // loop_pre_header
                  _
                $region197: #{tpu_custom_call.1} parent=180 // loop_header
                  %s7051 = sphi 0, %s7055
                  %p7052 = scmp.ge.s32.totalorder %s7051, 1
                  %s7056 = sphi %s6807, %s6807
                  %s7057 = sphi %s6809, %s6809
                $region198: #{tpu_custom_call.1} parent=180 // loop_header_branch
                  %7054 = sbr.rel (%p7052) target = $region202
                $region199: #{tpu_custom_call.1} parent=180 // loop_body
                  %v7058 = vld [vmem:[%s7056] sm:%s7049]
                  %7059 = vst [vmem:[%s7057] sm:%s7049] %v7058
                  %v7060 = vld [vmem:[%s7056 + $0x18] sm:%s7049]
                  %7061 = vst [vmem:[%s7057 + $0x38] sm:%s7049] %v7060
                  %v7062 = vld [vmem:[%s7056 + $0x30] sm:%s7049]
                  %7063 = vst [vmem:[%s7057 + $0x70] sm:%s7049] %v7062
                  %v7064 = vld [vmem:[%s7056 + $0x48] sm:%s7049]
                  %7065 = vst [vmem:[%s7057 + $0xa8] sm:%s7049] %v7064
                  %v7066 = vld [vmem:[%s7056 + $0x60] sm:%s7049]
                  %7067 = vst [vmem:[%s7057 + $0xe0] sm:%s7049] %v7066
                  %v7068 = vld [vmem:[%s7056 + $0x78] sm:%s7049]
                  %7069 = vst [vmem:[%s7057 + $0x118] sm:%s7049] %v7068
                  %v7070 = vld [vmem:[%s7056 + $0x90] sm:%s7049]
                  %7071 = vst [vmem:[%s7057 + $0x150] sm:%s7049] %v7070
                  %v7072 = vld [vmem:[%s7056 + $0xa8] sm:%s7049]
                  %7073 = vst [vmem:[%s7057 + $0x188] sm:%s7049] %v7072
                  %v7074 = vld [vmem:[%s7056 + $0xc0] sm:%s7049]
                  %7075 = vst [vmem:[%s7057 + $0x1c0] sm:%s7049] %v7074
                  %v7076 = vld [vmem:[%s7056 + $0xd8] sm:%s7049]
                  %7077 = vst [vmem:[%s7057 + $0x1f8] sm:%s7049] %v7076
                  %v7078 = vld [vmem:[%s7056 + $0xf0] sm:%s7049]
                  %7079 = vst [vmem:[%s7057 + $0x230] sm:%s7049] %v7078
                  %v7080 = vld [vmem:[%s7056 + $0x108] sm:%s7049]
                  %7081 = vst [vmem:[%s7057 + $0x268] sm:%s7049] %v7080
                  %v7082 = vld [vmem:[%s7056 + $0x120] sm:%s7049]
                  %7083 = vst [vmem:[%s7057 + $0x2a0] sm:%s7049] %v7082
                  %v7084 = vld [vmem:[%s7056 + $0x138] sm:%s7049]
                  %7085 = vst [vmem:[%s7057 + $0x2d8] sm:%s7049] %v7084
                  %v7086 = vld [vmem:[%s7056 + $0x150] sm:%s7049]
                  %7087 = vst [vmem:[%s7057 + $0x310] sm:%s7049] %v7086
                  %v7088 = vld [vmem:[%s7056 + $0x168] sm:%s7049]
                  %7089 = vst [vmem:[%s7057 + $0x348] sm:%s7049] %v7088
                  %v7090 = vld [vmem:[%s7056 + $0x180] sm:%s7049]
                  %7091 = vst [vmem:[%s7057 + $0x380] sm:%s7049] %v7090
                  %v7092 = vld [vmem:[%s7056 + $0x198] sm:%s7049]
                  %7093 = vst [vmem:[%s7057 + $0x3b8] sm:%s7049] %v7092
                  %v7094 = vld [vmem:[%s7056 + $0x1b0] sm:%s7049]
                  %7095 = vst [vmem:[%s7057 + $0x3f0] sm:%s7049] %v7094
                  %v7096 = vld [vmem:[%s7056 + $0x1c8] sm:%s7049]
                  %7097 = vst [vmem:[%s7057 + $0x428] sm:%s7049] %v7096
                  %v7098 = vld [vmem:[%s7056 + $0x1e0] sm:%s7049]
                  %7099 = vst [vmem:[%s7057 + $0x460] sm:%s7049] %v7098
                  %v7100 = vld [vmem:[%s7056 + $0x1f8] sm:%s7049]
                  %7101 = vst [vmem:[%s7057 + $0x498] sm:%s7049] %v7100
                  %v7102 = vld [vmem:[%s7056 + $0x210] sm:%s7049]
                  %7103 = vst [vmem:[%s7057 + $0x4d0] sm:%s7049] %v7102
                  %v7104 = vld [vmem:[%s7056 + $0x228] sm:%s7049]
                  %7105 = vst [vmem:[%s7057 + $0x508] sm:%s7049] %v7104
                  %v7106 = vld [vmem:[%s7056 + $0x240] sm:%s7049]
                  %7107 = vst [vmem:[%s7057 + $0x540] sm:%s7049] %v7106
                  %v7108 = vld [vmem:[%s7056 + $0x258] sm:%s7049]
                  %7109 = vst [vmem:[%s7057 + $0x578] sm:%s7049] %v7108
                  %v7110 = vld [vmem:[%s7056 + $0x270] sm:%s7049]
                  %7111 = vst [vmem:[%s7057 + $0x5b0] sm:%s7049] %v7110
                  %v7112 = vld [vmem:[%s7056 + $0x288] sm:%s7049]
                  %7113 = vst [vmem:[%s7057 + $0x5e8] sm:%s7049] %v7112
                  %v7114 = vld [vmem:[%s7056 + $0x2a0] sm:%s7049]
                  %7115 = vst [vmem:[%s7057 + $0x620] sm:%s7049] %v7114
                  %v7116 = vld [vmem:[%s7056 + $0x2b8] sm:%s7049]
                  %7117 = vst [vmem:[%s7057 + $0x658] sm:%s7049] %v7116
                  %v7118 = vld [vmem:[%s7056 + $0x2d0] sm:%s7049]
                  %7119 = vst [vmem:[%s7057 + $0x690] sm:%s7049] %v7118
                  %v7120 = vld [vmem:[%s7056 + $0x2e8] sm:%s7049]
                  %7121 = vst [vmem:[%s7057 + $0x6c8] sm:%s7049] %v7120
                $region200: #{tpu_custom_call.1} parent=180 // loop_footer
                  %s7055 = sadd.s32 1, %s7051
                $region201: #{tpu_custom_call.1} parent=180 // loop_footer_branch
                  %7050 = sbr.rel target = $region197
                $region202: #{tpu_custom_call.1} parent=180 // loop_exit
                  _
              $region181: #{tpu_custom_call.1} parent=147 // pred_fallthru
                _
            $region148: #{tpu_custom_call.1} parent=143 // pred_fallthru
              _
            // Predicated region
            $region149: #{tpu_custom_call.1} parent=143 // pred_check
              %p6482 = pneg %p6478
            $region150: #{tpu_custom_call.1} parent=143 // pred_check_branch
              %6484 = sbr.rel (%p6482) target = $region152
            $region151: #{tpu_custom_call.1} parent=143 // pred_region
              %s6485 = sshllo.u32 0, %s6474
              loop: start=0, step=1, limit=1
              $region153: #{tpu_custom_call.1} parent=151 // loop_pre_header
                _
              $region154: #{tpu_custom_call.1} parent=151 // loop_header
                %s6487 = sphi 0, %s6491
                %p6488 = scmp.ge.s32.totalorder %s6487, 1
                %s6492 = sphi %s6460, %s6460
                %s6493 = sphi %s6473, %s6473
              $region155: #{tpu_custom_call.1} parent=151 // loop_header_branch
                %6490 = sbr.rel (%p6488) target = $region159
              $region156: #{tpu_custom_call.1} parent=151 // loop_body
                %v6494 = vld [vmem:[%s6492] sm:%s6485]
                %6495 = vst [vmem:[%s6493] sm:%s6485] %v6494
                %v6496 = vld [vmem:[%s6492 + $0x18] sm:%s6485]
                %6497 = vst [vmem:[%s6493 + $0x38] sm:%s6485] %v6496
                %v6498 = vld [vmem:[%s6492 + $0x30] sm:%s6485]
                %6499 = vst [vmem:[%s6493 + $0x70] sm:%s6485] %v6498
                %v6500 = vld [vmem:[%s6492 + $0x48] sm:%s6485]
                %6501 = vst [vmem:[%s6493 + $0xa8] sm:%s6485] %v6500
                %v6502 = vld [vmem:[%s6492 + $0x60] sm:%s6485]
                %6503 = vst [vmem:[%s6493 + $0xe0] sm:%s6485] %v6502
                %v6504 = vld [vmem:[%s6492 + $0x78] sm:%s6485]
                %6505 = vst [vmem:[%s6493 + $0x118] sm:%s6485] %v6504
                %v6506 = vld [vmem:[%s6492 + $0x90] sm:%s6485]
                %6507 = vst [vmem:[%s6493 + $0x150] sm:%s6485] %v6506
                %v6508 = vld [vmem:[%s6492 + $0xa8] sm:%s6485]
                %6509 = vst [vmem:[%s6493 + $0x188] sm:%s6485] %v6508
                %v6510 = vld [vmem:[%s6492 + $0xc0] sm:%s6485]
                %6511 = vst [vmem:[%s6493 + $0x1c0] sm:%s6485] %v6510
                %v6512 = vld [vmem:[%s6492 + $0xd8] sm:%s6485]
                %6513 = vst [vmem:[%s6493 + $0x1f8] sm:%s6485] %v6512
                %v6514 = vld [vmem:[%s6492 + $0xf0] sm:%s6485]
                %6515 = vst [vmem:[%s6493 + $0x230] sm:%s6485] %v6514
                %v6516 = vld [vmem:[%s6492 + $0x108] sm:%s6485]
                %6517 = vst [vmem:[%s6493 + $0x268] sm:%s6485] %v6516
                %v6518 = vld [vmem:[%s6492 + $0x120] sm:%s6485]
                %6519 = vst [vmem:[%s6493 + $0x2a0] sm:%s6485] %v6518
                %v6520 = vld [vmem:[%s6492 + $0x138] sm:%s6485]
                %6521 = vst [vmem:[%s6493 + $0x2d8] sm:%s6485] %v6520
                %v6522 = vld [vmem:[%s6492 + $0x150] sm:%s6485]
                %6523 = vst [vmem:[%s6493 + $0x310] sm:%s6485] %v6522
                %v6524 = vld [vmem:[%s6492 + $0x168] sm:%s6485]
                %6525 = vst [vmem:[%s6493 + $0x348] sm:%s6485] %v6524
                %v6526 = vld [vmem:[%s6492 + $0x180] sm:%s6485]
                %6527 = vst [vmem:[%s6493 + $0x380] sm:%s6485] %v6526
                %v6528 = vld [vmem:[%s6492 + $0x198] sm:%s6485]
                %6529 = vst [vmem:[%s6493 + $0x3b8] sm:%s6485] %v6528
                %v6530 = vld [vmem:[%s6492 + $0x1b0] sm:%s6485]
                %6531 = vst [vmem:[%s6493 + $0x3f0] sm:%s6485] %v6530
                %v6532 = vld [vmem:[%s6492 + $0x1c8] sm:%s6485]
                %6533 = vst [vmem:[%s6493 + $0x428] sm:%s6485] %v6532
                %v6534 = vld [vmem:[%s6492 + $0x1e0] sm:%s6485]
                %6535 = vst [vmem:[%s6493 + $0x460] sm:%s6485] %v6534
                %v6536 = vld [vmem:[%s6492 + $0x1f8] sm:%s6485]
                %6537 = vst [vmem:[%s6493 + $0x498] sm:%s6485] %v6536
                %v6538 = vld [vmem:[%s6492 + $0x210] sm:%s6485]
                %6539 = vst [vmem:[%s6493 + $0x4d0] sm:%s6485] %v6538
                %v6540 = vld [vmem:[%s6492 + $0x228] sm:%s6485]
                %6541 = vst [vmem:[%s6493 + $0x508] sm:%s6485] %v6540
                %v6542 = vld [vmem:[%s6492 + $0x240] sm:%s6485]
                %6543 = vst [vmem:[%s6493 + $0x540] sm:%s6485] %v6542
                %v6544 = vld [vmem:[%s6492 + $0x258] sm:%s6485]
                %6545 = vst [vmem:[%s6493 + $0x578] sm:%s6485] %v6544
                %v6546 = vld [vmem:[%s6492 + $0x270] sm:%s6485]
                %6547 = vst [vmem:[%s6493 + $0x5b0] sm:%s6485] %v6546
                %v6548 = vld [vmem:[%s6492 + $0x288] sm:%s6485]
                %6549 = vst [vmem:[%s6493 + $0x5e8] sm:%s6485] %v6548
                %v6550 = vld [vmem:[%s6492 + $0x2a0] sm:%s6485]
                %6551 = vst [vmem:[%s6493 + $0x620] sm:%s6485] %v6550
                %v6552 = vld [vmem:[%s6492 + $0x2b8] sm:%s6485]
                %6553 = vst [vmem:[%s6493 + $0x658] sm:%s6485] %v6552
                %v6554 = vld [vmem:[%s6492 + $0x2d0] sm:%s6485]
                %6555 = vst [vmem:[%s6493 + $0x690] sm:%s6485] %v6554
                %v6556 = vld [vmem:[%s6492 + $0x2e8] sm:%s6485]
                %6557 = vst [vmem:[%s6493 + $0x6c8] sm:%s6485] %v6556
              $region157: #{tpu_custom_call.1} parent=151 // loop_footer
                %s6491 = sadd.s32 1, %s6487
              $region158: #{tpu_custom_call.1} parent=151 // loop_footer_branch
                %6486 = sbr.rel target = $region154
              $region159: #{tpu_custom_call.1} parent=151 // loop_exit
                _
            $region152: #{tpu_custom_call.1} parent=143 // pred_fallthru
              _
          $region144: #{tpu_custom_call.1} parent=139 // pred_fallthru
            _
          %7122 = vnop
        $region140: #{tpu_custom_call.1} parent=127 // pred_fallthru
          _
      $region128: #{tpu_custom_call.1} parent=5 // pred_fallthru
        _
      %p7123 = scmp.le.s32.totalorder 2, %s9
      // Predicated region
      $region203: #{tpu_custom_call.1} parent=5 // pred_check
        %p7124 = pneg %p7123
      $region204: #{tpu_custom_call.1} parent=5 // pred_check_branch
        %7126 = sbr.rel (%p7124) target = $region206
      $region205: #{tpu_custom_call.1} parent=5 // pred_region
        %s7127 = ssub.s32 %s9, 2
        // Predicated region
        $region207: #{tpu_custom_call.1} parent=205 // pred_check
          %p7128 = pneg %p129
        $region208: #{tpu_custom_call.1} parent=205 // pred_check_branch
          %7130 = sbr.rel (%p7128) target = $region210
        $region209: #{tpu_custom_call.1} parent=205 // pred_region
          %s7131 = sand.u32 %s114, 1
          %s7132 = sand.u32 %s114, 1
          %s7133 = smul.addr %s7132, 768
          %s7134 = scalar_lea.vmem [#allocation4], %s7133
        $region210: #{tpu_custom_call.1} parent=205 // pred_fallthru
          _
      $region206: #{tpu_custom_call.1} parent=5 // pred_fallthru
        _
    $region6: #{tpu_custom_call.1} parent=1 // loop_footer
      %s13 = sadd.s32 1, %s9
    $region7: #{tpu_custom_call.1} parent=1 // loop_footer_branch
      %8 = sbr.rel target = $region3
    $region8: #{tpu_custom_call.1} parent=1 // loop_exit
      _

</llo_original>
